<compile_context>
chip_gen: v7x
topology: tpu7x:2x2x1
jax: 0.10.0
libtpu: 0.0.40
codegen_flags: <defaults>
</compile_context>

<pallas_src>
import jax
import jax.numpy as jnp
from jax.experimental import pallas as pl
from jax.experimental.pallas import tpu as pltpu


# ---------------------------------------------------------------------------
# Fused kernel:
#   bn0 -> conv1 -> bn1 -> PReLU -> conv2 -> bn2 -> SE -> +identity -> PReLU
# One grid step processes `Bb` images; the row-halo'd plane and the 3-band
# column matrix live in VMEM scratch for the whole step.
# ---------------------------------------------------------------------------
def _irblock_kernel(x_ref, w1_ref, w2_ref, bn_ref, pw_ref,
                    fc1w_ref, fc1b_ref, fc2w_ref, fc2b_ref,
                    o_ref, plane_ref, col_ref):
    Bb, H, WC = x_ref.shape
    M = Bb * H

    alpha = pw_ref[0]        # shared PReLU slope (after bn1 and after residual)
    se_alpha = pw_ref[1]     # SE-block PReLU slope

    # Zero ONLY the two halo rows (top/bottom zero padding of the conv).
    # Interior writes never touch them, so they stay zero for both convs.
    plane_ref[:, 0:1, :] = jnp.zeros((Bb, 1, WC), jnp.float32)
    plane_ref[:, H + 1:H + 2, :] = jnp.zeros((Bb, 1, WC), jnp.float32)

    # ---- bn0(x) into the plane interior (lane-dense, aligned stores) ----
    plane_ref[:, 1:H + 1, :] = x_ref[...] * bn_ref[0:1, :] + bn_ref[1:2, :]

    def build_col():
        # Three kh-shifted row bands -> 128-aligned lane groups of the col
        # matrix; cast to bf16 for the MXU (accumulation stays f32).
        for kh in range(3):
            band = plane_ref[:, kh:kh + H, :]                      # (Bb, H, WC)
            col_ref[:, kh * WC:(kh + 1) * WC] = (
                band.reshape(M, WC).astype(jnp.bfloat16))

    # ---- conv1 as one (M, 3*WC) @ (3*WC, WC) matmul, then bn1 + PReLU ----
    build_col()
    h = jnp.dot(col_ref[...], w1_ref[...], preferred_element_type=jnp.float32)
    h = h * bn_ref[2:3, :] + bn_ref[3:4, :]                        # bn1
    h = jnp.where(h >= 0, h, alpha * h)                            # PReLU
    plane_ref[:, 1:H + 1, :] = h.reshape(Bb, H, WC)                # halo stays 0

    # ---- conv2 -> bn2 ----
    build_col()
    h = jnp.dot(col_ref[...], w2_ref[...], preferred_element_type=jnp.float32)
    h = (h * bn_ref[4:5, :] + bn_ref[5:6, :]).reshape(Bb, H, WC)   # bn2

    # ---- SE block, fully lane-dense ----
    # fc1 weights are pre-tiled to (WC, hid) and pre-scaled by 1/(H*W), so the
    # W-fold of the average pool is absorbed into the matmul; fc2 weights/bias
    # are pre-tiled to (hid, WC)/(1, WC), so the gate comes out already tiled.
    # (SE matmuls are tiny (hid = C/16); negligible either on MXU or VPU.)
    rowsum = jnp.sum(h, axis=1)                                    # (Bb, WC)
    y = jnp.dot(rowsum, fc1w_ref[...],
                preferred_element_type=jnp.float32) + fc1b_ref[...]
    y = jnp.where(y >= 0, y, se_alpha * y)                         # SE PReLU
    gate = jax.nn.sigmoid(
        jnp.dot(y, fc2w_ref[...], preferred_element_type=jnp.float32)
        + fc2b_ref[...])                                           # (Bb, WC)

    # ---- SE scale + residual add + PReLU (all lane-dense) ----
    h = h * gate[:, None, :] + x_ref[...]
    o_ref[...] = jnp.where(h >= 0, h, alpha * h)


# ---------------------------------------------------------------------------
# Wrapper: layout packing + parameter folding (bn, banded conv weights, SE)
# ---------------------------------------------------------------------------
def irblock_pallas(x_nchw, p, block_b=None):
    B, C, H, W = x_nchw.shape
    WC = W * C
    if block_b is None:
        block_b = B                      # single grid step (v5e/v6e sweet spot)
    block_b = min(block_b, B)
    assert B % block_b == 0, "batch must be divisible by block_b"

    # NCHW -> lane-dense (B, H, W*C); lane index = w*C + c.
    x = jnp.transpose(x_nchw, (0, 2, 3, 1)).astype(jnp.float32).reshape(B, H, WC)

    def tile_c(v):                       # (C,) -> (WC,), index w*C + c -> v[c]
        return jnp.tile(v.astype(jnp.float32), W)

    bn = jnp.stack([tile_c(p["bn0_s"]), tile_c(p["bn0_b"]),
                    tile_c(p["bn1_s"]), tile_c(p["bn1_b"]),
                    tile_c(p["bn2_s"]), tile_c(p["bn2_b"])], axis=0)   # (6, WC)

    pw = jnp.array([p["prelu"], p["se_prelu"]], jnp.float32)           # SMEM

    def banded(w_oihw):
        # PyTorch (O, I, 3, 3) -> block-tridiagonal (3*WC, WC), bf16.
        # Row index = kh*WC + w'*C + ci, col index = w*C + co; nonzero iff
        # w' = w + kw - 1 with kw in {0,1,2} (left/right zero pad folded in).
        wt = jnp.transpose(w_oihw, (2, 3, 1, 0)).astype(jnp.float32)   # (3,3,I,O)
        blocks = []
        for kh in range(3):
            A = jnp.zeros((WC, WC), jnp.float32)
            for kw in range(3):
                A = A + jnp.kron(jnp.eye(W, k=1 - kw, dtype=jnp.float32),
                                 wt[kh, kw])
            blocks.append(A)
        return jnp.concatenate(blocks, axis=0).astype(jnp.bfloat16)    # (3WC, WC)

    w1b = banded(p["w1"])
    w2b = banded(p["w2"])

    # SE weights: fold avg-pool's 1/(H*W) + W-fold into fc1, and the gate's
    # broadcast-over-W into fc2 (host-side tiling -> no in-kernel relayout).
    fc1w_t = jnp.tile(p["fc1_w"].T.astype(jnp.float32), (W, 1)) / float(H * W)  # (WC, hid)
    fc1b = p["fc1_b"].reshape(1, -1).astype(jnp.float32)                        # (1, hid)
    fc2w_t = jnp.tile(p["fc2_w"].T.astype(jnp.float32), (1, W))                 # (hid, WC)
    fc2b_t = jnp.tile(p["fc2_b"].reshape(1, -1).astype(jnp.float32), (1, W))    # (1, WC)
    hid = fc1b.shape[1]

    out = pl.pallas_call(
        _irblock_kernel,
        out_shape=jax.ShapeDtypeStruct((B, H, WC), jnp.float32),
        grid=(B // block_b,),
        in_specs=[
            pl.BlockSpec((block_b, H, WC), lambda b: (b, 0, 0)),   # x (lane-dense)
            pl.BlockSpec((3 * WC, WC), lambda b: (0, 0)),          # conv1 banded w
            pl.BlockSpec((3 * WC, WC), lambda b: (0, 0)),          # conv2 banded w
            pl.BlockSpec((6, WC), lambda b: (0, 0)),               # tiled bn params
            pl.BlockSpec(memory_space=pltpu.MemorySpace.SMEM),     # prelu slopes
            pl.BlockSpec((WC, hid), lambda b: (0, 0)),             # se fc1 w (tiled)
            pl.BlockSpec((1, hid), lambda b: (0, 0)),              # se fc1 b
            pl.BlockSpec((hid, WC), lambda b: (0, 0)),             # se fc2 w (tiled)
            pl.BlockSpec((1, WC), lambda b: (0, 0)),               # se fc2 b (tiled)
        ],
        out_specs=pl.BlockSpec((block_b, H, WC), lambda b: (b, 0, 0)),
        scratch_shapes=[
            pltpu.VMEM((block_b, H + 2, WC), jnp.float32),         # row-halo plane
            pltpu.VMEM((block_b * H, 3 * WC), jnp.bfloat16),       # 3-band col
        ],
        compiler_params=pltpu.CompilerParams(
            dimension_semantics=("parallel",)),
    )(x, w1b, w2b, bn, pw, fc1w_t, fc1b, fc2w_t, fc2b_t)

    return jnp.transpose(out.reshape(B, H, W, C), (0, 3, 1, 2))    # back to NCHW


# ---------------------------------------------------------------------------
# Pure-JAX reference (f32, HIGHEST precision) for verification
# ---------------------------------------------------------------------------
def irblock_reference(x_nchw, p):
    x = jnp.transpose(x_nchw, (0, 2, 3, 1)).astype(jnp.float32)

    def conv3x3(v, w_oihw):
        w = jnp.transpose(w_oihw, (2, 3, 1, 0))           # HWIO
        return jax.lax.conv_general_dilated(
            v, w, window_strides=(1, 1), padding=((1, 1), (1, 1)),
            dimension_numbers=("NHWC", "HWIO", "NHWC"),
            precision=jax.lax.Precision.HIGHEST)

    alpha = p["prelu"]
    h = x * p["bn0_s"] + p["bn0_b"]
    h = conv3x3(h, p["w1"])
    h = h * p["bn1_s"] + p["bn1_b"]
    h = jnp.where(h >= 0, h, alpha * h)
    h = conv3x3(h, p["w2"])
    h = h * p["bn2_s"] + p["bn2_b"]
    pooled = jnp.mean(h, axis=(1, 2))                     # (B, C)
    y = pooled @ p["fc1_w"].T + p["fc1_b"]
    y = jnp.where(y >= 0, y, p["se_prelu"] * y)
    y = y @ p["fc2_w"].T + p["fc2_b"]
    y = jax.nn.sigmoid(y)
    h = h * y[:, None, None, :]
    h = h + x
    h = jnp.where(h >= 0, h, alpha * h)
    return jnp.transpose(h, (0, 3, 1, 2))


# ---------------------------------------------------------------------------
# Deterministic parameter construction + test
# ---------------------------------------------------------------------------
def make_params(C, reduction=16, seed=0):
    hid = C // reduction
    keys = jax.random.split(jax.random.PRNGKey(seed), 20)
    it = iter(keys)

    def bn_fold(c):
        gamma = 1.0 + 0.1 * jax.random.normal(next(it), (c,), jnp.float32)
        beta = 0.1 * jax.random.normal(next(it), (c,), jnp.float32)
        rmean = 0.1 * jax.random.normal(next(it), (c,), jnp.float32)
        rvar = jax.random.uniform(next(it), (c,), jnp.float32, 0.5, 1.5)
        scale = gamma / jnp.sqrt(rvar + 1e-5)
        bias = beta - rmean * scale
        return scale, bias

    bn0_s, bn0_b = bn_fold(C)
    bn1_s, bn1_b = bn_fold(C)
    bn2_s, bn2_b = bn_fold(C)
    p = {
        "bn0_s": bn0_s, "bn0_b": bn0_b,
        "bn1_s": bn1_s, "bn1_b": bn1_b,
        "bn2_s": bn2_s, "bn2_b": bn2_b,
        "w1": 0.1 * jax.random.normal(next(it), (C, C, 3, 3), jnp.float32),
        "w2": 0.1 * jax.random.normal(next(it), (C, C, 3, 3), jnp.float32),
        "fc1_w": 0.2 * jax.random.normal(next(it), (hid, C), jnp.float32),
        "fc1_b": 0.1 * jax.random.normal(next(it), (hid,), jnp.float32),
        "fc2_w": 0.2 * jax.random.normal(next(it), (C, hid), jnp.float32),
        "fc2_b": 0.1 * jax.random.normal(next(it), (C,), jnp.float32),
        "prelu": jnp.float32(0.25),      # nn.PReLU() default init
        "se_prelu": jnp.float32(0.25),   # SEBlock PReLU default init
    }
    return p


if __name__ == "__main__":
    B, C, H, W = 4, 32, 16, 16          # in_ch == out_ch, s=1, downsample=None
    params = make_params(C)
    x = jax.random.normal(jax.random.PRNGKey(0), (B, C, H, W), jnp.float32)

    out = irblock_pallas(x, params)      # block_b=B -> single grid step
    out = jax.block_until_ready(out)

    ref = irblock_reference(x, params)
    assert out.shape == ref.shape == (B, C, H, W)
    # Tolerance reflects bf16 MXU operands vs the f32 HIGHEST-precision
    # reference (two chained 288-term bf16 dot products -> ~0.5% relative).
    if not bool(jnp.allclose(out, ref, atol=5e-2, rtol=5e-2)):
        max_err = float(jnp.max(jnp.abs(out - ref)))
        raise AssertionError(f"Pallas IRBlock mismatch, max abs err = {max_err}")

    print("KERNEL_OK")
</pallas_src>

<mosaic_0001>
module attributes {stable_mosaic.version = 11 : i64} {
  func.func @_irblock_kernel(%arg0: i32, %arg1: memref<4x16x512xf32, #tpu.memory_space<vmem>>, %arg2: memref<1536x512xbf16, #tpu.memory_space<vmem>>, %arg3: memref<1536x512xbf16, #tpu.memory_space<vmem>>, %arg4: memref<6x512xf32, #tpu.memory_space<vmem>>, %arg5: memref<2xf32, #tpu.memory_space<smem>>, %arg6: memref<512x2xf32, #tpu.memory_space<vmem>>, %arg7: memref<1x2xf32, #tpu.memory_space<vmem>>, %arg8: memref<2x512xf32, #tpu.memory_space<vmem>>, %arg9: memref<1x512xf32, #tpu.memory_space<vmem>>, %arg10: memref<4x16x512xf32, #tpu.memory_space<vmem>>, %arg11: memref<4x18x512xf32, #tpu.memory_space<vmem>>, %arg12: memref<64x1536xbf16, #tpu.memory_space<vmem>>) attributes {dimension_semantics = [#tpu.dimension_semantics<parallel>], iteration_bounds = array<i64: 1>, scalar_prefetch = 0 : i64, scratch_operands = 2 : i64, tpu.core_type = #tpu.core_type<tc>, window_params = [{transform_indices = @transform_0, window_bounds = array<i64: 4, 16, 512>}, {pipeline_mode = #tpu.pipeline_mode<synchronous>, transform_indices = @transform_1, window_bounds = array<i64: 1536, 512>}, {pipeline_mode = #tpu.pipeline_mode<synchronous>, transform_indices = @transform_2, window_bounds = array<i64: 1536, 512>}, {pipeline_mode = #tpu.pipeline_mode<synchronous>, transform_indices = @transform_3, window_bounds = array<i64: 6, 512>}, {transform_indices = @transform_4, window_bounds = array<i64: 2>}, {pipeline_mode = #tpu.pipeline_mode<synchronous>, transform_indices = @transform_5, window_bounds = array<i64: 512, 2>}, {pipeline_mode = #tpu.pipeline_mode<synchronous>, transform_indices = @transform_6, window_bounds = array<i64: 1, 2>}, {pipeline_mode = #tpu.pipeline_mode<synchronous>, transform_indices = @transform_7, window_bounds = array<i64: 2, 512>}, {pipeline_mode = #tpu.pipeline_mode<synchronous>, transform_indices = @transform_8, window_bounds = array<i64: 1, 512>}, {transform_indices = @transform_9, window_bounds = array<i64: 4, 16, 512>}]} {
    %c0 = arith.constant 0 : index
    %0 = memref.load %arg5[%c0] : memref<2xf32, #tpu.memory_space<smem>>
    %c1 = arith.constant 1 : index
    %1 = memref.load %arg5[%c1] : memref<2xf32, #tpu.memory_space<smem>>
    %cst = arith.constant 0.000000e+00 : f32
    %2 = vector.broadcast %cst : f32 to vector<4x1x512xf32>
    %c0_0 = arith.constant 0 : index
    %c0_1 = arith.constant 0 : index
    %c0_2 = arith.constant 0 : index
    %3 = vector.load %arg11[%c0_0, %c0_1, %c0_2] : memref<4x18x512xf32, #tpu.memory_space<vmem>>, vector<4x1x512xf32>
    tpu.vector_store %arg11[%c0_0, %c0_1, %c0_2], %2 {strides = array<i32>} : memref<4x18x512xf32, #tpu.memory_space<vmem>>, vector<4x1x512xf32>,
    %cst_3 = arith.constant 0.000000e+00 : f32
    %4 = vector.broadcast %cst_3 : f32 to vector<4x1x512xf32>
    %c0_4 = arith.constant 0 : index
    %c17 = arith.constant 17 : index
    %c0_5 = arith.constant 0 : index
    %5 = vector.load %arg11[%c0_4, %c17, %c0_5] : memref<4x18x512xf32, #tpu.memory_space<vmem>>, vector<4x1x512xf32>
    tpu.vector_store %arg11[%c0_4, %c17, %c0_5], %4 {strides = array<i32>} : memref<4x18x512xf32, #tpu.memory_space<vmem>>, vector<4x1x512xf32>,
    %c0_6 = arith.constant 0 : index
    %c0_7 = arith.constant 0 : index
    %c0_8 = arith.constant 0 : index
    %6 = vector.load %arg1[%c0_6, %c0_7, %c0_8] : memref<4x16x512xf32, #tpu.memory_space<vmem>>, vector<4x16x512xf32>
    %c0_9 = arith.constant 0 : index
    %c0_10 = arith.constant 0 : index
    %7 = vector.load %arg4[%c0_9, %c0_10] : memref<6x512xf32, #tpu.memory_space<vmem>>, vector<1x512xf32>
    %8 = vector.shape_cast %7 : vector<1x512xf32> to vector<1x1x512xf32>
    %9 = vector.broadcast %8 : vector<1x1x512xf32> to vector<4x16x512xf32>
    %10 = arith.mulf %6, %9 : vector<4x16x512xf32>
    %c1_11 = arith.constant 1 : index
    %c0_12 = arith.constant 0 : index
    %11 = vector.load %arg4[%c1_11, %c0_12] : memref<6x512xf32, #tpu.memory_space<vmem>>, vector<1x512xf32>
    %12 = vector.shape_cast %11 : vector<1x512xf32> to vector<1x1x512xf32>
    %13 = vector.broadcast %12 : vector<1x1x512xf32> to vector<4x16x512xf32>
    %14 = arith.addf %10, %13 : vector<4x16x512xf32>
    %c0_13 = arith.constant 0 : index
    %c1_14 = arith.constant 1 : index
    %c0_15 = arith.constant 0 : index
    %15 = vector.load %arg11[%c0_13, %c1_14, %c0_15] : memref<4x18x512xf32, #tpu.memory_space<vmem>>, vector<4x16x512xf32>
    tpu.vector_store %arg11[%c0_13, %c1_14, %c0_15], %14 {strides = array<i32>} : memref<4x18x512xf32, #tpu.memory_space<vmem>>, vector<4x16x512xf32>,
    %c0_16 = arith.constant 0 : index
    %c0_17 = arith.constant 0 : index
    %c0_18 = arith.constant 0 : index
    %16 = vector.load %arg11[%c0_16, %c0_17, %c0_18] : memref<4x18x512xf32, #tpu.memory_space<vmem>>, vector<4x16x512xf32>
    %17 = vector.shape_cast %16 : vector<4x16x512xf32> to vector<64x512xf32>
    %18 = arith.truncf %17 : vector<64x512xf32> to vector<64x512xbf16>
    %c0_19 = arith.constant 0 : index
    %c0_20 = arith.constant 0 : index
    %19 = vector.load %arg12[%c0_19, %c0_20] : memref<64x1536xbf16, #tpu.memory_space<vmem>>, vector<64x512xbf16>
    tpu.vector_store %arg12[%c0_19, %c0_20], %18 {strides = array<i32>} : memref<64x1536xbf16, #tpu.memory_space<vmem>>, vector<64x512xbf16>,
    %c0_21 = arith.constant 0 : index
    %c1_22 = arith.constant 1 : index
    %c0_23 = arith.constant 0 : index
    %20 = vector.load %arg11[%c0_21, %c1_22, %c0_23] : memref<4x18x512xf32, #tpu.memory_space<vmem>>, vector<4x16x512xf32>
    %21 = vector.shape_cast %20 : vector<4x16x512xf32> to vector<64x512xf32>
    %22 = arith.truncf %21 : vector<64x512xf32> to vector<64x512xbf16>
    %c0_24 = arith.constant 0 : index
    %c512 = arith.constant 512 : index
    %23 = vector.load %arg12[%c0_24, %c512] : memref<64x1536xbf16, #tpu.memory_space<vmem>>, vector<64x512xbf16>
    tpu.vector_store %arg12[%c0_24, %c512], %22 {strides = array<i32>} : memref<64x1536xbf16, #tpu.memory_space<vmem>>, vector<64x512xbf16>,
    %c0_25 = arith.constant 0 : index
    %c2 = arith.constant 2 : index
    %c0_26 = arith.constant 0 : index
    %24 = vector.load %arg11[%c0_25, %c2, %c0_26] : memref<4x18x512xf32, #tpu.memory_space<vmem>>, vector<4x16x512xf32>
    %25 = vector.shape_cast %24 : vector<4x16x512xf32> to vector<64x512xf32>
    %26 = arith.truncf %25 : vector<64x512xf32> to vector<64x512xbf16>
    %c0_27 = arith.constant 0 : index
    %c1024 = arith.constant 1024 : index
    %27 = vector.load %arg12[%c0_27, %c1024] : memref<64x1536xbf16, #tpu.memory_space<vmem>>, vector<64x512xbf16>
    tpu.vector_store %arg12[%c0_27, %c1024], %26 {strides = array<i32>} : memref<64x1536xbf16, #tpu.memory_space<vmem>>, vector<64x512xbf16>,
    %c0_28 = arith.constant 0 : index
    %c0_29 = arith.constant 0 : index
    %28 = vector.load %arg12[%c0_28, %c0_29] : memref<64x1536xbf16, #tpu.memory_space<vmem>>, vector<64x1536xbf16>
    %c0_30 = arith.constant 0 : index
    %c0_31 = arith.constant 0 : index
    %29 = vector.load %arg2[%c0_30, %c0_31] : memref<1536x512xbf16, #tpu.memory_space<vmem>>, vector<1536x512xbf16>
    %cst_32 = arith.constant dense<0.000000e+00> : vector<64x512xf32>
    %30 = tpu.matmul %28, %29, %cst_32 {dimension_numbers = #tpu.dot_dimension_numbers<[1], [0], [0], [1], [0, 0, 1, 1], [], []>} : vector<64x1536xbf16>, vector<1536x512xbf16>, vector<64x512xf32> -> vector<64x512xf32>
    %c2_33 = arith.constant 2 : index
    %c0_34 = arith.constant 0 : index
    %31 = vector.load %arg4[%c2_33, %c0_34] : memref<6x512xf32, #tpu.memory_space<vmem>>, vector<1x512xf32>
    %32 = vector.broadcast %31 : vector<1x512xf32> to vector<64x512xf32>
    %33 = arith.mulf %30, %32 : vector<64x512xf32>
    %c3 = arith.constant 3 : index
    %c0_35 = arith.constant 0 : index
    %34 = vector.load %arg4[%c3, %c0_35] : memref<6x512xf32, #tpu.memory_space<vmem>>, vector<1x512xf32>
    %35 = vector.broadcast %34 : vector<1x512xf32> to vector<64x512xf32>
    %36 = arith.addf %33, %35 : vector<64x512xf32>
    %cst_36 = arith.constant 0.000000e+00 : f32
    %37 = vector.broadcast %cst_36 : f32 to vector<64x512xf32>
    %38 = arith.cmpf oge, %36, %37 : vector<64x512xf32>
    %39 = vector.broadcast %0 : f32 to vector<64x512xf32>
    %40 = arith.mulf %39, %36 : vector<64x512xf32>
    %41 = arith.select %38, %36, %40 : vector<64x512xi1>, vector<64x512xf32>
    %42 = vector.shape_cast %41 : vector<64x512xf32> to vector<4x16x512xf32>
    %c0_37 = arith.constant 0 : index
    %c1_38 = arith.constant 1 : index
    %c0_39 = arith.constant 0 : index
    %43 = vector.load %arg11[%c0_37, %c1_38, %c0_39] : memref<4x18x512xf32, #tpu.memory_space<vmem>>, vector<4x16x512xf32>
    tpu.vector_store %arg11[%c0_37, %c1_38, %c0_39], %42 {strides = array<i32>} : memref<4x18x512xf32, #tpu.memory_space<vmem>>, vector<4x16x512xf32>,
    %c0_40 = arith.constant 0 : index
    %c0_41 = arith.constant 0 : index
    %c0_42 = arith.constant 0 : index
    %44 = vector.load %arg11[%c0_40, %c0_41, %c0_42] : memref<4x18x512xf32, #tpu.memory_space<vmem>>, vector<4x16x512xf32>
    %45 = vector.shape_cast %44 : vector<4x16x512xf32> to vector<64x512xf32>
    %46 = arith.truncf %45 : vector<64x512xf32> to vector<64x512xbf16>
    %c0_43 = arith.constant 0 : index
    %c0_44 = arith.constant 0 : index
    %47 = vector.load %arg12[%c0_43, %c0_44] : memref<64x1536xbf16, #tpu.memory_space<vmem>>, vector<64x512xbf16>
    tpu.vector_store %arg12[%c0_43, %c0_44], %46 {strides = array<i32>} : memref<64x1536xbf16, #tpu.memory_space<vmem>>, vector<64x512xbf16>,
    %c0_45 = arith.constant 0 : index
    %c1_46 = arith.constant 1 : index
    %c0_47 = arith.constant 0 : index
    %48 = vector.load %arg11[%c0_45, %c1_46, %c0_47] : memref<4x18x512xf32, #tpu.memory_space<vmem>>, vector<4x16x512xf32>
    %49 = vector.shape_cast %48 : vector<4x16x512xf32> to vector<64x512xf32>
    %50 = arith.truncf %49 : vector<64x512xf32> to vector<64x512xbf16>
    %c0_48 = arith.constant 0 : index
    %c512_49 = arith.constant 512 : index
    %51 = vector.load %arg12[%c0_48, %c512_49] : memref<64x1536xbf16, #tpu.memory_space<vmem>>, vector<64x512xbf16>
    tpu.vector_store %arg12[%c0_48, %c512_49], %50 {strides = array<i32>} : memref<64x1536xbf16, #tpu.memory_space<vmem>>, vector<64x512xbf16>,
    %c0_50 = arith.constant 0 : index
    %c2_51 = arith.constant 2 : index
    %c0_52 = arith.constant 0 : index
    %52 = vector.load %arg11[%c0_50, %c2_51, %c0_52] : memref<4x18x512xf32, #tpu.memory_space<vmem>>, vector<4x16x512xf32>
    %53 = vector.shape_cast %52 : vector<4x16x512xf32> to vector<64x512xf32>
    %54 = arith.truncf %53 : vector<64x512xf32> to vector<64x512xbf16>
    %c0_53 = arith.constant 0 : index
    %c1024_54 = arith.constant 1024 : index
    %55 = vector.load %arg12[%c0_53, %c1024_54] : memref<64x1536xbf16, #tpu.memory_space<vmem>>, vector<64x512xbf16>
    tpu.vector_store %arg12[%c0_53, %c1024_54], %54 {strides = array<i32>} : memref<64x1536xbf16, #tpu.memory_space<vmem>>, vector<64x512xbf16>,
    %c0_55 = arith.constant 0 : index
    %c0_56 = arith.constant 0 : index
    %56 = vector.load %arg12[%c0_55, %c0_56] : memref<64x1536xbf16, #tpu.memory_space<vmem>>, vector<64x1536xbf16>
    %c0_57 = arith.constant 0 : index
    %c0_58 = arith.constant 0 : index
    %57 = vector.load %arg3[%c0_57, %c0_58] : memref<1536x512xbf16, #tpu.memory_space<vmem>>, vector<1536x512xbf16>
    %cst_59 = arith.constant dense<0.000000e+00> : vector<64x512xf32>
    %58 = tpu.matmul %56, %57, %cst_59 {dimension_numbers = #tpu.dot_dimension_numbers<[1], [0], [0], [1], [0, 0, 1, 1], [], []>} : vector<64x1536xbf16>, vector<1536x512xbf16>, vector<64x512xf32> -> vector<64x512xf32>
    %c4 = arith.constant 4 : index
    %c0_60 = arith.constant 0 : index
    %59 = vector.load %arg4[%c4, %c0_60] : memref<6x512xf32, #tpu.memory_space<vmem>>, vector<1x512xf32>
    %60 = vector.broadcast %59 : vector<1x512xf32> to vector<64x512xf32>
    %61 = arith.mulf %58, %60 : vector<64x512xf32>
    %c5 = arith.constant 5 : index
    %c0_61 = arith.constant 0 : index
    %62 = vector.load %arg4[%c5, %c0_61] : memref<6x512xf32, #tpu.memory_space<vmem>>, vector<1x512xf32>
    %63 = vector.broadcast %62 : vector<1x512xf32> to vector<64x512xf32>
    %64 = arith.addf %61, %63 : vector<64x512xf32>
    %65 = vector.shape_cast %64 : vector<64x512xf32> to vector<4x16x512xf32>
    %cst_62 = arith.constant dense<0.000000e+00> : vector<4x512xf32>
    %66 = vector.multi_reduction <add>, %65, %cst_62 [1] : vector<4x16x512xf32> to vector<4x512xf32>
    %c0_63 = arith.constant 0 : index
    %c0_64 = arith.constant 0 : index
    %67 = vector.load %arg6[%c0_63, %c0_64] : memref<512x2xf32, #tpu.memory_space<vmem>>, vector<512x2xf32>
    %cst_65 = arith.constant dense<0.000000e+00> : vector<4x2xf32>
    %68 = tpu.matmul %66, %67, %cst_65 {dimension_numbers = #tpu.dot_dimension_numbers<[1], [0], [0], [1], [0, 0, 1, 1], [], []>} : vector<4x512xf32>, vector<512x2xf32>, vector<4x2xf32> -> vector<4x2xf32>
    %c0_66 = arith.constant 0 : index
    %c0_67 = arith.constant 0 : index
    %69 = vector.load %arg7[%c0_66, %c0_67] : memref<1x2xf32, #tpu.memory_space<vmem>>, vector<1x2xf32>
    %70 = vector.broadcast %69 : vector<1x2xf32> to vector<4x2xf32>
    %71 = arith.addf %68, %70 : vector<4x2xf32>
    %cst_68 = arith.constant 0.000000e+00 : f32
    %72 = vector.broadcast %cst_68 : f32 to vector<4x2xf32>
    %73 = arith.cmpf oge, %71, %72 : vector<4x2xf32>
    %74 = vector.broadcast %1 : f32 to vector<4x2xf32>
    %75 = arith.mulf %74, %71 : vector<4x2xf32>
    %76 = arith.select %73, %71, %75 : vector<4x2xi1>, vector<4x2xf32>
    %c0_69 = arith.constant 0 : index
    %c0_70 = arith.constant 0 : index
    %77 = vector.load %arg8[%c0_69, %c0_70] : memref<2x512xf32, #tpu.memory_space<vmem>>, vector<2x512xf32>
    %cst_71 = arith.constant dense<0.000000e+00> : vector<4x512xf32>
    %78 = tpu.matmul %76, %77, %cst_71 {dimension_numbers = #tpu.dot_dimension_numbers<[1], [0], [0], [1], [0, 0, 1, 1], [], []>} : vector<4x2xf32>, vector<2x512xf32>, vector<4x512xf32> -> vector<4x512xf32>
    %c0_72 = arith.constant 0 : index
    %c0_73 = arith.constant 0 : index
    %79 = vector.load %arg9[%c0_72, %c0_73] : memref<1x512xf32, #tpu.memory_space<vmem>>, vector<1x512xf32>
    %80 = vector.broadcast %79 : vector<1x512xf32> to vector<4x512xf32>
    %81 = arith.addf %78, %80 : vector<4x512xf32>
    %82 = arith.negf %81 : vector<4x512xf32>
    %83 = math.exp %82 : vector<4x512xf32>
    %cst_74 = arith.constant 1.000000e+00 : f32
    %84 = vector.broadcast %cst_74 : f32 to vector<4x512xf32>
    %85 = arith.addf %84, %83 : vector<4x512xf32>
    %86 = arith.divf %84, %85 : vector<4x512xf32>
    %87 = vector.shape_cast %86 : vector<4x512xf32> to vector<4x1x512xf32>
    %88 = vector.broadcast %87 : vector<4x1x512xf32> to vector<4x16x512xf32>
    %89 = arith.mulf %65, %88 : vector<4x16x512xf32>
    %c0_75 = arith.constant 0 : index
    %c0_76 = arith.constant 0 : index
    %c0_77 = arith.constant 0 : index
    %90 = vector.load %arg1[%c0_75, %c0_76, %c0_77] : memref<4x16x512xf32, #tpu.memory_space<vmem>>, vector<4x16x512xf32>
    %91 = arith.addf %89, %90 : vector<4x16x512xf32>
    %cst_78 = arith.constant 0.000000e+00 : f32
    %92 = vector.broadcast %cst_78 : f32 to vector<4x16x512xf32>
    %93 = arith.cmpf oge, %91, %92 : vector<4x16x512xf32>
    %94 = vector.broadcast %0 : f32 to vector<4x16x512xf32>
    %95 = arith.mulf %94, %91 : vector<4x16x512xf32>
    %96 = arith.select %93, %91, %95 : vector<4x16x512xi1>, vector<4x16x512xf32>
    %c0_79 = arith.constant 0 : index
    %c0_80 = arith.constant 0 : index
    %c0_81 = arith.constant 0 : index
    %97 = vector.load %arg10[%c0_79, %c0_80, %c0_81] : memref<4x16x512xf32, #tpu.memory_space<vmem>>, vector<4x16x512xf32>
    tpu.vector_store %arg10[%c0_79, %c0_80, %c0_81], %96 {strides = array<i32>} : memref<4x16x512xf32, #tpu.memory_space<vmem>>, vector<4x16x512xf32>,
    return
  }
  func.func @transform_0(%arg0: i32) -> (i32, i32, i32) {
    %c0_i32 = arith.constant 0 : i32
    %c0_i32_0 = arith.constant 0 : i32
    %c0_i32_1 = arith.constant 0 : i32
    return %arg0, %c0_i32, %c0_i32_0 : i32, i32, i32
  }
  func.func @transform_1(%arg0: i32) -> (i32, i32) {
    %c0_i32 = arith.constant 0 : i32
    %c0_i32_0 = arith.constant 0 : i32
    %c0_i32_1 = arith.constant 0 : i32
    return %c0_i32, %c0_i32_0 : i32, i32
  }
  func.func @transform_2(%arg0: i32) -> (i32, i32) {
    %c0_i32 = arith.constant 0 : i32
    %c0_i32_0 = arith.constant 0 : i32
    %c0_i32_1 = arith.constant 0 : i32
    return %c0_i32, %c0_i32_0 : i32, i32
  }
  func.func @transform_3(%arg0: i32) -> (i32, i32) {
    %c0_i32 = arith.constant 0 : i32
    %c0_i32_0 = arith.constant 0 : i32
    %c0_i32_1 = arith.constant 0 : i32
    return %c0_i32, %c0_i32_0 : i32, i32
  }
  func.func @transform_4(%arg0: i32) -> i32 {
    %c0_i32 = arith.constant 0 : i32
    %c0_i32_0 = arith.constant 0 : i32
    return %c0_i32 : i32
  }
  func.func @transform_5(%arg0: i32) -> (i32, i32) {
    %c0_i32 = arith.constant 0 : i32
    %c0_i32_0 = arith.constant 0 : i32
    %c0_i32_1 = arith.constant 0 : i32
    return %c0_i32, %c0_i32_0 : i32, i32
  }
  func.func @transform_6(%arg0: i32) -> (i32, i32) {
    %c0_i32 = arith.constant 0 : i32
    %c0_i32_0 = arith.constant 0 : i32
    %c0_i32_1 = arith.constant 0 : i32
    return %c0_i32, %c0_i32_0 : i32, i32
  }
  func.func @transform_7(%arg0: i32) -> (i32, i32) {
    %c0_i32 = arith.constant 0 : i32
    %c0_i32_0 = arith.constant 0 : i32
    %c0_i32_1 = arith.constant 0 : i32
    return %c0_i32, %c0_i32_0 : i32, i32
  }
  func.func @transform_8(%arg0: i32) -> (i32, i32) {
    %c0_i32 = arith.constant 0 : i32
    %c0_i32_0 = arith.constant 0 : i32
    %c0_i32_1 = arith.constant 0 : i32
    return %c0_i32, %c0_i32_0 : i32, i32
  }
  func.func @transform_9(%arg0: i32) -> (i32, i32, i32) {
    %c0_i32 = arith.constant 0 : i32
    %c0_i32_0 = arith.constant 0 : i32
    %c0_i32_1 = arith.constant 0 : i32
    return %arg0, %c0_i32, %c0_i32_0 : i32, i32, i32
  }
}

</mosaic_0001>

<llo_original>
// kernel: tpu_custom_call.1
$region0: #{tpu_custom_call.1}
  #allocation0 [shape = 'u32[]', space=smem, size = 0x4, offset = 0x4, fixed_abs, tag = 'smem constant byte address 0x4 - core index']
  #allocation1 [shape = 'u32[144,128]{1,0:T(1,128)}', space=vmem, size = 0x12000, scoped, tag = 'internal scratch']
  #allocation2 [shape = 'f32[4,18,512]{2,1,0:T(8,128)}', space=vmem, size = 0x30000, scoped, tag = 'scratch operand']
  #allocation3 [shape = 'bf16[64,1536]{1,0:T(16,128)(2,1)}', space=vmem, size = 0x30000, scoped, tag = 'scratch operand']
  %s0 = inlined_call_operand.hbm [shape: f32[4,16,512], index: 0, kind: input, shape index: {}]
  %s1 = inlined_call_operand.hbm [shape: bf16[1536,512], index: 1, kind: input, shape index: {}]
  %s2 = inlined_call_operand.hbm [shape: bf16[1536,512], index: 2, kind: input, shape index: {}]
  %s3 = inlined_call_operand.hbm [shape: f32[6,512], index: 3, kind: input, shape index: {}]
  %s4 = inlined_call_operand.hbm [shape: f32[2], index: 4, kind: input, shape index: {}]
  %s5 = inlined_call_operand.vmem [shape: f32[512,2], index: 5, kind: input, shape index: {}]
  %s6 = inlined_call_operand.hbm [shape: f32[1,2], index: 6, kind: input, shape index: {}]
  %s7 = inlined_call_operand.hbm [shape: f32[2,512], index: 7, kind: input, shape index: {}]
  %s8 = inlined_call_operand.hbm [shape: f32[1,512], index: 8, kind: input, shape index: {}]
  %s9 = inlined_call_operand.hbm [shape: f32[4,16,512], index: 9, kind: output, shape index: {}]
  %s10 = sld [smem:[#allocation0]]
  $region78: #{tpu_custom_call.1} parent=0
    _
  %s12 = ssub.s32 1, %s10
  %s13 = scalar_select 0, %s12, %s10
  $region1: #{tpu_custom_call.1} parent=0
    #allocation4 [shape = 'u8[131072]{0}', space=vmem, size = 0x20000, scoped, tag = 'input window, operand 0, single buffered']
    #allocation5 [shape = 's32[1]{0}', space=sflag, size = 0x4, scoped, tag = 'scoped memory for tpu_custom_call.1']
    #allocation6 [shape = 's32[1]{0}', space=sflag, size = 0x4, scoped, tag = 'scoped memory for tpu_custom_call.1']
    #allocation7 [shape = 's32[1]{0}', space=sflag, size = 0x4, scoped, tag = 'scoped memory for tpu_custom_call.1']
    #allocation8 [shape = 'u8[1572864]{0}', space=vmem, size = 0x180000, scoped, tag = 'input window, operand 1, single buffered']
    #allocation9 [shape = 's32[1]{0}', space=sflag, size = 0x4, scoped, tag = 'scoped memory for tpu_custom_call.1']
    #allocation10 [shape = 'u8[1572864]{0}', space=vmem, size = 0x180000, scoped, tag = 'input window, operand 2, single buffered']
    #allocation11 [shape = 'u8[16384]{0}', space=vmem, size = 0x4000, scoped, tag = 'input window, operand 3, single buffered']
    #allocation12 [shape = 's32[1]{0}', space=sflag, size = 0x4, scoped, tag = 'scoped memory for tpu_custom_call.1']
    #allocation13 [shape = 'u8[512]{0}', space=smem, size = 0x200, scoped, tag = 'input window, operand 4, single buffered']
    #allocation14 [shape = 'u8[512]{0}', space=vmem, size = 0x400, scoped, tag = 'input window, operand 6, single buffered']
    #allocation15 [shape = 'u8[4096]{0}', space=vmem, size = 0x1000, scoped, tag = 'input window, operand 7, single buffered']
    #allocation16 [shape = 's32[1]{0}', space=sflag, size = 0x4, scoped, tag = 'scoped memory for tpu_custom_call.1']
    #allocation17 [shape = 'u8[2048]{0}', space=vmem, size = 0x800, scoped, tag = 'input window, operand 8, single buffered']
    #allocation18 [shape = 'u8[131072]{0}', space=vmem, size = 0x20000, scoped, tag = 'output window, operand 0, single buffered']
    %14 = vsyncpa [#allocation5], 0
    %15 = vsyncpa [#allocation9], 0
    %16 = vsyncpa [#allocation12], 0
    %17 = vsyncpa [#allocation7], 0
    %18 = vsyncpa [#allocation16], 0
    %19 = vsyncpa [#allocation6], 0
    // Predicated region
    $region2: #{tpu_custom_call.1} parent=1 // pred_check
      _
    $region3: #{tpu_custom_call.1} parent=1 // pred_check_branch
      %21 = sbr.rel (0) target = $region5
    $region4: #{tpu_custom_call.1} parent=1 // pred_region
      %s23 = ssub.s32 4096, 4096
      %24 = vsyncadd [#allocation5], %s23
      %s25 = sshll.u32 [#allocation4], 4
      %s26 = int_to_ptr.vmem [resolvable:$true] %s25
      %31 = dma.hbm_to_vmem [thread:$0]  %s0, 4096, %s26, [#allocation5], 512, 512, 32
    $region5: #{tpu_custom_call.1} parent=1 // pred_fallthru
      _
    // Predicated region
    $region6: #{tpu_custom_call.1} parent=1 // pred_check
      _
    $region7: #{tpu_custom_call.1} parent=1 // pred_check_branch
      %33 = sbr.rel (0) target = $region9
    $region8: #{tpu_custom_call.1} parent=1 // pred_region
      %s35 = ssub.s32 49152, 49152
      %36 = vsyncadd [#allocation9], %s35
      %s37 = sshll.u32 [#allocation8], 4
      %s38 = int_to_ptr.vmem [resolvable:$true] %s37
      %43 = dma.hbm_to_vmem [thread:$0]  %s1, 49152, %s38, [#allocation9], 256, 256, 16
    $region9: #{tpu_custom_call.1} parent=1 // pred_fallthru
      _
    // Predicated region
    $region10: #{tpu_custom_call.1} parent=1 // pred_check
      _
    $region11: #{tpu_custom_call.1} parent=1 // pred_check_branch
      %45 = sbr.rel (0) target = $region13
    $region12: #{tpu_custom_call.1} parent=1 // pred_region
      %s47 = ssub.s32 49152, 49152
      %48 = vsyncadd [#allocation9], %s47
      %s49 = sshll.u32 [#allocation10], 4
      %s50 = int_to_ptr.vmem [resolvable:$true] %s49
      %55 = dma.hbm_to_vmem [thread:$0]  %s2, 49152, %s50, [#allocation9], 256, 256, 16
    $region13: #{tpu_custom_call.1} parent=1 // pred_fallthru
      _
    // Predicated region
    $region14: #{tpu_custom_call.1} parent=1 // pred_check
      _
    $region15: #{tpu_custom_call.1} parent=1 // pred_check_branch
      %57 = sbr.rel (0) target = $region17
    $region16: #{tpu_custom_call.1} parent=1 // pred_region
      %s59 = ssub.s32 512, 512
      %60 = vsyncadd [#allocation12], %s59
      %s62 = sshll.u32 [#allocation11], 4
      %s63 = int_to_ptr.vmem [resolvable:$true] %s62
      %65 = dma.hbm_to_vmem [thread:$0]  %s3, 512, %s63, [#allocation12]
    $region17: #{tpu_custom_call.1} parent=1 // pred_fallthru
      _
    // Predicated region
    $region18: #{tpu_custom_call.1} parent=1 // pred_check
      _
    $region19: #{tpu_custom_call.1} parent=1 // pred_check_branch
      %67 = sbr.rel (0) target = $region21
    $region20: #{tpu_custom_call.1} parent=1 // pred_region
      %s69 = ssub.s32 16, 16
      %70 = vsyncadd [#allocation7], %s69
      %73 = dma.hbm_to_smem %s4, 16, [#allocation13], [#allocation7]
    $region21: #{tpu_custom_call.1} parent=1 // pred_fallthru
      _
    // Predicated region
    $region22: #{tpu_custom_call.1} parent=1 // pred_check
      _
    $region23: #{tpu_custom_call.1} parent=1 // pred_check_branch
      %75 = sbr.rel (0) target = $region25
    $region24: #{tpu_custom_call.1} parent=1 // pred_region
      _
    $region25: #{tpu_custom_call.1} parent=1 // pred_fallthru
      _
    // Predicated region
    $region26: #{tpu_custom_call.1} parent=1 // pred_check
      _
    $region27: #{tpu_custom_call.1} parent=1 // pred_check_branch
      %77 = sbr.rel (0) target = $region29
    $region28: #{tpu_custom_call.1} parent=1 // pred_region
      %s79 = ssub.s32 16, 16
      %80 = vsyncadd [#allocation12], %s79
      %s82 = sshll.u32 [#allocation14], 4
      %s83 = int_to_ptr.vmem [resolvable:$true] %s82
      %85 = dma.hbm_to_vmem [thread:$0]  %s6, 16, %s83, [#allocation12]
    $region29: #{tpu_custom_call.1} parent=1 // pred_fallthru
      _
    // Predicated region
    $region30: #{tpu_custom_call.1} parent=1 // pred_check
      _
    $region31: #{tpu_custom_call.1} parent=1 // pred_check_branch
      %87 = sbr.rel (0) target = $region33
    $region32: #{tpu_custom_call.1} parent=1 // pred_region
      %s89 = ssub.s32 128, 128
      %90 = vsyncadd [#allocation16], %s89
      %s92 = sshll.u32 [#allocation15], 4
      %s93 = int_to_ptr.vmem [resolvable:$true] %s92
      %95 = dma.hbm_to_vmem [thread:$0]  %s7, 128, %s93, [#allocation16]
    $region33: #{tpu_custom_call.1} parent=1 // pred_fallthru
      _
    // Predicated region
    $region34: #{tpu_custom_call.1} parent=1 // pred_check
      _
    $region35: #{tpu_custom_call.1} parent=1 // pred_check_branch
      %97 = sbr.rel (0) target = $region37
    $region36: #{tpu_custom_call.1} parent=1 // pred_region
      %s99 = ssub.s32 64, 64
      %100 = vsyncadd [#allocation16], %s99
      %s102 = sshll.u32 [#allocation17], 4
      %s103 = int_to_ptr.vmem [resolvable:$true] %s102
      %105 = dma.hbm_to_vmem [thread:$0]  %s8, 64, %s103, [#allocation16]
    $region37: #{tpu_custom_call.1} parent=1 // pred_fallthru
      _
    // Predicated region
    $region38: #{tpu_custom_call.1} parent=1 // pred_check
      _
    $region39: #{tpu_custom_call.1} parent=1 // pred_check_branch
      %107 = sbr.rel (0) target = $region41
    $region40: #{tpu_custom_call.1} parent=1 // pred_region
      %108 = dma.done [#allocation5], 4096
    $region41: #{tpu_custom_call.1} parent=1 // pred_fallthru
      _
    // Predicated region
    $region42: #{tpu_custom_call.1} parent=1 // pred_check
      _
    $region43: #{tpu_custom_call.1} parent=1 // pred_check_branch
      %110 = sbr.rel (0) target = $region45
    $region44: #{tpu_custom_call.1} parent=1 // pred_region
      %111 = dma.done [#allocation9], 49152
    $region45: #{tpu_custom_call.1} parent=1 // pred_fallthru
      _
    // Predicated region
    $region46: #{tpu_custom_call.1} parent=1 // pred_check
      _
    $region47: #{tpu_custom_call.1} parent=1 // pred_check_branch
      %113 = sbr.rel (0) target = $region49
    $region48: #{tpu_custom_call.1} parent=1 // pred_region
      %114 = dma.done [#allocation9], 49152
    $region49: #{tpu_custom_call.1} parent=1 // pred_fallthru
      _
    // Predicated region
    $region50: #{tpu_custom_call.1} parent=1 // pred_check
      _
    $region51: #{tpu_custom_call.1} parent=1 // pred_check_branch
      %116 = sbr.rel (0) target = $region53
    $region52: #{tpu_custom_call.1} parent=1 // pred_region
      %117 = dma.done [#allocation12], 512
    $region53: #{tpu_custom_call.1} parent=1 // pred_fallthru
      _
    // Predicated region
    $region54: #{tpu_custom_call.1} parent=1 // pred_check
      _
    $region55: #{tpu_custom_call.1} parent=1 // pred_check_branch
      %119 = sbr.rel (0) target = $region57
    $region56: #{tpu_custom_call.1} parent=1 // pred_region
      %120 = dma.done [#allocation7], 16
    $region57: #{tpu_custom_call.1} parent=1 // pred_fallthru
      _
    // Predicated region
    $region58: #{tpu_custom_call.1} parent=1 // pred_check
      _
    $region59: #{tpu_custom_call.1} parent=1 // pred_check_branch
      %122 = sbr.rel (0) target = $region61
    $region60: #{tpu_custom_call.1} parent=1 // pred_region
      %123 = dma.done [#allocation12], 16
    $region61: #{tpu_custom_call.1} parent=1 // pred_fallthru
      _
    // Predicated region
    $region62: #{tpu_custom_call.1} parent=1 // pred_check
      _
    $region63: #{tpu_custom_call.1} parent=1 // pred_check_branch
      %125 = sbr.rel (0) target = $region65
    $region64: #{tpu_custom_call.1} parent=1 // pred_region
      %126 = dma.done [#allocation16], 128
    $region65: #{tpu_custom_call.1} parent=1 // pred_fallthru
      _
    // Predicated region
    $region66: #{tpu_custom_call.1} parent=1 // pred_check
      _
    $region67: #{tpu_custom_call.1} parent=1 // pred_check_branch
      %128 = sbr.rel (0) target = $region69
    $region68: #{tpu_custom_call.1} parent=1 // pred_region
      %129 = dma.done [#allocation16], 64
    $region69: #{tpu_custom_call.1} parent=1 // pred_fallthru
      _
    %130 = sfence
    %s131 = sld [smem:[#allocation13]]
    %s132 = sld [smem:[#allocation13 + $0x1]]
    %v133 = vlaneseq
    %vm134 = vcmp.ge.s32.totalorder %v133, 0
    %vm135 = vcmp.lt.s32.totalorder %v133, 512
    %vm136 = vmand %vm134, %vm135
    %137 = vst.msk [vmem:[#allocation2] ss:$8 sm:$0xf] %vm136, 0.0
    %138 = vst.msk [vmem:[#allocation2] ss:$8 sm:$0x0] %vm136, 0.0
    %s139 = scalar_lea.vmem [#allocation2], 96
    %140 = vst.msk [vmem:[%s139] ss:$8 sm:$0xf] %vm136, 0.0
    %141 = vst.msk [vmem:[%s139] ss:$8 sm:$0x0] %vm136, 0.0
    %s142 = scalar_lea.vmem [#allocation2], 192
    %143 = vst.msk [vmem:[%s142] ss:$8 sm:$0xf] %vm136, 0.0
    %144 = vst.msk [vmem:[%s142] ss:$8 sm:$0x0] %vm136, 0.0
    %s145 = scalar_lea.vmem [#allocation2], 288
    %146 = vst.msk [vmem:[%s145] ss:$8 sm:$0xf] %vm136, 0.0
    %147 = vst.msk [vmem:[%s145] ss:$8 sm:$0x0] %vm136, 0.0
    %s148 = scalar_lea.vmem [#allocation2], 65
    %149 = vst.msk [vmem:[%s148] ss:$8 sm:$0xf] %vm136, 0.0
    %150 = vst.msk [vmem:[%s148] ss:$8 sm:$0x0] %vm136, 0.0
    %s151 = scalar_lea.vmem [#allocation2], 161
    %152 = vst.msk [vmem:[%s151] ss:$8 sm:$0xf] %vm136, 0.0
    %153 = vst.msk [vmem:[%s151] ss:$8 sm:$0x0] %vm136, 0.0
    %s154 = scalar_lea.vmem [#allocation2], 257
    %155 = vst.msk [vmem:[%s154] ss:$8 sm:$0xf] %vm136, 0.0
    %156 = vst.msk [vmem:[%s154] ss:$8 sm:$0x0] %vm136, 0.0
    %s157 = scalar_lea.vmem [#allocation2], 353
    %158 = vst.msk [vmem:[%s157] ss:$8 sm:$0xf] %vm136, 0.0
    %159 = vst.msk [vmem:[%s157] ss:$8 sm:$0x0] %vm136, 0.0
    %v160 = vld [vmem:[#allocation4] sm:$0xff]
    %v161 = vld [vmem:[#allocation4 + $0x8] sm:$0xff]
    %v162 = vld [vmem:[#allocation4 + $0x10] sm:$0xff]
    %v163 = vld [vmem:[#allocation4 + $0x18] sm:$0xff]
    %v164 = vld [vmem:[#allocation4 + $0x20] sm:$0xff]
    %v165 = vld [vmem:[#allocation4 + $0x28] sm:$0xff]
    %v166 = vld [vmem:[#allocation4 + $0x30] sm:$0xff]
    %v167 = vld [vmem:[#allocation4 + $0x38] sm:$0xff]
    %v168 = vld [vmem:[#allocation4 + $0x40] sm:$0xff]
    %v169 = vld [vmem:[#allocation4 + $0x48] sm:$0xff]
    %v170 = vld [vmem:[#allocation4 + $0x50] sm:$0xff]
    %v171 = vld [vmem:[#allocation4 + $0x58] sm:$0xff]
    %v172 = vld [vmem:[#allocation4 + $0x60] sm:$0xff]
    %v173 = vld [vmem:[#allocation4 + $0x68] sm:$0xff]
    %v174 = vld [vmem:[#allocation4 + $0x70] sm:$0xff]
    %v175 = vld [vmem:[#allocation4 + $0x78] sm:$0xff]
    %v176 = vld [vmem:[#allocation4 + $0x80] sm:$0xff]
    %v177 = vld [vmem:[#allocation4 + $0x88] sm:$0xff]
    %v178 = vld [vmem:[#allocation4 + $0x90] sm:$0xff]
    %v179 = vld [vmem:[#allocation4 + $0x98] sm:$0xff]
    %v180 = vld [vmem:[#allocation4 + $0xa0] sm:$0xff]
    %v181 = vld [vmem:[#allocation4 + $0xa8] sm:$0xff]
    %v182 = vld [vmem:[#allocation4 + $0xb0] sm:$0xff]
    %v183 = vld [vmem:[#allocation4 + $0xb8] sm:$0xff]
    %v184 = vld [vmem:[#allocation4 + $0xc0] sm:$0xff]
    %v185 = vld [vmem:[#allocation4 + $0xc8] sm:$0xff]
    %v186 = vld [vmem:[#allocation4 + $0xd0] sm:$0xff]
    %v187 = vld [vmem:[#allocation4 + $0xd8] sm:$0xff]
    %v188 = vld [vmem:[#allocation4 + $0xe0] sm:$0xff]
    %v189 = vld [vmem:[#allocation4 + $0xe8] sm:$0xff]
    %v190 = vld [vmem:[#allocation4 + $0xf0] sm:$0xff]
    %v191 = vld [vmem:[#allocation4 + $0xf8] sm:$0xff]
    %v192 = vld [vmem:[#allocation11] ss:$8 sm:$0xf]
    %v194 = vlaneseq
    %v195 = vshrl.u32 %v194, 7
    %v196 = vsub.s32 0, %v195
    %v197 = vrot.slane %v192, %v196
    %v198 = vlaneseq
    %v199 = vshrl.u32 %v198, 7
    %v200 = vsub.s32 1, %v199
    %v201 = vrot.slane %v192, %v200
    %v202 = vlaneseq
    %v203 = vshrl.u32 %v202, 7
    %v204 = vsub.s32 2, %v203
    %v205 = vrot.slane %v192, %v204
    %v206 = vlaneseq
    %v207 = vshrl.u32 %v206, 7
    %v208 = vsub.s32 3, %v207
    %v209 = vrot.slane %v192, %v208
    %v214 = vmul.f32 %v160, %v197
    %v215 = vmul.f32 %v161, %v201
    %v216 = vmul.f32 %v162, %v205
    %v217 = vmul.f32 %v163, %v209
    %v218 = vmul.f32 %v164, %v197
    %v219 = vmul.f32 %v165, %v201
    %v220 = vmul.f32 %v166, %v205
    %v221 = vmul.f32 %v167, %v209
    %v222 = vmul.f32 %v168, %v197
    %v223 = vmul.f32 %v169, %v201
    %v224 = vmul.f32 %v170, %v205
    %v225 = vmul.f32 %v171, %v209
    %v226 = vmul.f32 %v172, %v197
    %v227 = vmul.f32 %v173, %v201
    %v228 = vmul.f32 %v174, %v205
    %v229 = vmul.f32 %v175, %v209
    %v230 = vmul.f32 %v176, %v197
    %v231 = vmul.f32 %v177, %v201
    %v232 = vmul.f32 %v178, %v205
    %v233 = vmul.f32 %v179, %v209
    %v234 = vmul.f32 %v180, %v197
    %v235 = vmul.f32 %v181, %v201
    %v236 = vmul.f32 %v182, %v205
    %v237 = vmul.f32 %v183, %v209
    %v238 = vmul.f32 %v184, %v197
    %v239 = vmul.f32 %v185, %v201
    %v240 = vmul.f32 %v186, %v205
    %v241 = vmul.f32 %v187, %v209
    %v242 = vmul.f32 %v188, %v197
    %v243 = vmul.f32 %v189, %v201
    %v244 = vmul.f32 %v190, %v205
    %v245 = vmul.f32 %v191, %v209
    %s246 = scalar_lea.vmem [#allocation11], 1
    %v247 = vld [vmem:[%s246] ss:$8 sm:$0xf]
    %v249 = vlaneseq
    %v250 = vshrl.u32 %v249, 7
    %v251 = vsub.s32 0, %v250
    %v252 = vrot.slane %v247, %v251
    %v253 = vlaneseq
    %v254 = vshrl.u32 %v253, 7
    %v255 = vsub.s32 1, %v254
    %v256 = vrot.slane %v247, %v255
    %v257 = vlaneseq
    %v258 = vshrl.u32 %v257, 7
    %v259 = vsub.s32 2, %v258
    %v260 = vrot.slane %v247, %v259
    %v261 = vlaneseq
    %v262 = vshrl.u32 %v261, 7
    %v263 = vsub.s32 3, %v262
    %v264 = vrot.slane %v247, %v263
    %v269 = vadd.f32 %v214, %v252
    %v270 = vadd.f32 %v215, %v256
    %v271 = vadd.f32 %v216, %v260
    %v272 = vadd.f32 %v217, %v264
    %v273 = vadd.f32 %v218, %v252
    %v274 = vadd.f32 %v219, %v256
    %v275 = vadd.f32 %v220, %v260
    %v276 = vadd.f32 %v221, %v264
    %v277 = vadd.f32 %v222, %v252
    %v278 = vadd.f32 %v223, %v256
    %v279 = vadd.f32 %v224, %v260
    %v280 = vadd.f32 %v225, %v264
    %v281 = vadd.f32 %v226, %v252
    %v282 = vadd.f32 %v227, %v256
    %v283 = vadd.f32 %v228, %v260
    %v284 = vadd.f32 %v229, %v264
    %v285 = vadd.f32 %v230, %v252
    %v286 = vadd.f32 %v231, %v256
    %v287 = vadd.f32 %v232, %v260
    %v288 = vadd.f32 %v233, %v264
    %v289 = vadd.f32 %v234, %v252
    %v290 = vadd.f32 %v235, %v256
    %v291 = vadd.f32 %v236, %v260
    %v292 = vadd.f32 %v237, %v264
    %v293 = vadd.f32 %v238, %v252
    %v294 = vadd.f32 %v239, %v256
    %v295 = vadd.f32 %v240, %v260
    %v296 = vadd.f32 %v241, %v264
    %v297 = vadd.f32 %v242, %v252
    %v298 = vadd.f32 %v243, %v256
    %v299 = vadd.f32 %v244, %v260
    %v300 = vadd.f32 %v245, %v264
    %vm333 = vcmask 1040384
    %v334 = vrot.slane %v269, 7
    %v335 = vrot.slane %v270, 7
    %v336 = vrot.slane %v271, 7
    %v337 = vrot.slane %v272, 7
    %v338 = vrot.slane %v273, 7
    %v339 = vsel %vm333, %v334, %v338
    %v340 = vrot.slane %v274, 7
    %v341 = vsel %vm333, %v335, %v340
    %v342 = vrot.slane %v275, 7
    %v343 = vsel %vm333, %v336, %v342
    %v344 = vrot.slane %v276, 7
    %v345 = vsel %vm333, %v337, %v344
    %v346 = vrot.slane %v277, 7
    %v347 = vrot.slane %v278, 7
    %v348 = vrot.slane %v279, 7
    %v349 = vrot.slane %v280, 7
    %v350 = vrot.slane %v281, 7
    %v351 = vsel %vm333, %v346, %v350
    %v352 = vrot.slane %v282, 7
    %v353 = vsel %vm333, %v347, %v352
    %v354 = vrot.slane %v283, 7
    %v355 = vsel %vm333, %v348, %v354
    %v356 = vrot.slane %v284, 7
    %v357 = vsel %vm333, %v349, %v356
    %v358 = vrot.slane %v285, 7
    %v359 = vrot.slane %v286, 7
    %v360 = vrot.slane %v287, 7
    %v361 = vrot.slane %v288, 7
    %v362 = vrot.slane %v289, 7
    %v363 = vsel %vm333, %v358, %v362
    %v364 = vrot.slane %v290, 7
    %v365 = vsel %vm333, %v359, %v364
    %v366 = vrot.slane %v291, 7
    %v367 = vsel %vm333, %v360, %v366
    %v368 = vrot.slane %v292, 7
    %v369 = vsel %vm333, %v361, %v368
    %v370 = vrot.slane %v293, 7
    %v371 = vrot.slane %v294, 7
    %v372 = vrot.slane %v295, 7
    %v373 = vrot.slane %v296, 7
    %v374 = vrot.slane %v297, 7
    %v375 = vsel %vm333, %v370, %v374
    %v376 = vrot.slane %v298, 7
    %v377 = vsel %vm333, %v371, %v376
    %v378 = vrot.slane %v299, 7
    %v379 = vsel %vm333, %v372, %v378
    %v380 = vrot.slane %v300, 7
    %v381 = vsel %vm333, %v373, %v380
    %430 = vst [vmem:[#allocation2] sm:$0xfe] %v334
    %431 = vst [vmem:[#allocation2 + $0x8] sm:$0xfe] %v335
    %432 = vst [vmem:[#allocation2 + $0x10] sm:$0xfe] %v336
    %433 = vst [vmem:[#allocation2 + $0x18] sm:$0xfe] %v337
    %434 = vst [vmem:[#allocation2 + $0x20] sm:$0xff] %v339
    %435 = vst [vmem:[#allocation2 + $0x28] sm:$0xff] %v341
    %436 = vst [vmem:[#allocation2 + $0x30] sm:$0xff] %v343
    %437 = vst [vmem:[#allocation2 + $0x38] sm:$0xff] %v345
    %438 = vst [vmem:[#allocation2 + $0x40] sm:$0x1] %v338
    %439 = vst [vmem:[#allocation2 + $0x48] sm:$0x1] %v340
    %440 = vst [vmem:[#allocation2 + $0x50] sm:$0x1] %v342
    %441 = vst [vmem:[#allocation2 + $0x58] sm:$0x1] %v344
    %442 = vst [vmem:[#allocation2 + $0x60] sm:$0xfe] %v346
    %443 = vst [vmem:[#allocation2 + $0x68] sm:$0xfe] %v347
    %444 = vst [vmem:[#allocation2 + $0x70] sm:$0xfe] %v348
    %445 = vst [vmem:[#allocation2 + $0x78] sm:$0xfe] %v349
    %446 = vst [vmem:[#allocation2 + $0x80] sm:$0xff] %v351
    %447 = vst [vmem:[#allocation2 + $0x88] sm:$0xff] %v353
    %448 = vst [vmem:[#allocation2 + $0x90] sm:$0xff] %v355
    %449 = vst [vmem:[#allocation2 + $0x98] sm:$0xff] %v357
    %450 = vst [vmem:[#allocation2 + $0xa0] sm:$0x1] %v350
    %451 = vst [vmem:[#allocation2 + $0xa8] sm:$0x1] %v352
    %452 = vst [vmem:[#allocation2 + $0xb0] sm:$0x1] %v354
    %453 = vst [vmem:[#allocation2 + $0xb8] sm:$0x1] %v356
    %454 = vst [vmem:[#allocation2 + $0xc0] sm:$0xfe] %v358
    %455 = vst [vmem:[#allocation2 + $0xc8] sm:$0xfe] %v359
    %456 = vst [vmem:[#allocation2 + $0xd0] sm:$0xfe] %v360
    %457 = vst [vmem:[#allocation2 + $0xd8] sm:$0xfe] %v361
    %458 = vst [vmem:[#allocation2 + $0xe0] sm:$0xff] %v363
    %459 = vst [vmem:[#allocation2 + $0xe8] sm:$0xff] %v365
    %460 = vst [vmem:[#allocation2 + $0xf0] sm:$0xff] %v367
    %461 = vst [vmem:[#allocation2 + $0xf8] sm:$0xff] %v369
    %462 = vst [vmem:[#allocation2 + $0x100] sm:$0x1] %v362
    %463 = vst [vmem:[#allocation2 + $0x108] sm:$0x1] %v364
    %464 = vst [vmem:[#allocation2 + $0x110] sm:$0x1] %v366
    %465 = vst [vmem:[#allocation2 + $0x118] sm:$0x1] %v368
    %466 = vst [vmem:[#allocation2 + $0x120] sm:$0xfe] %v370
    %467 = vst [vmem:[#allocation2 + $0x128] sm:$0xfe] %v371
    %468 = vst [vmem:[#allocation2 + $0x130] sm:$0xfe] %v372
    %469 = vst [vmem:[#allocation2 + $0x138] sm:$0xfe] %v373
    %470 = vst [vmem:[#allocation2 + $0x140] sm:$0xff] %v375
    %471 = vst [vmem:[#allocation2 + $0x148] sm:$0xff] %v377
    %472 = vst [vmem:[#allocation2 + $0x150] sm:$0xff] %v379
    %473 = vst [vmem:[#allocation2 + $0x158] sm:$0xff] %v381
    %474 = vst [vmem:[#allocation2 + $0x160] sm:$0x1] %v374
    %475 = vst [vmem:[#allocation2 + $0x168] sm:$0x1] %v376
    %476 = vst [vmem:[#allocation2 + $0x170] sm:$0x1] %v378
    %477 = vst [vmem:[#allocation2 + $0x178] sm:$0x1] %v380
    %v478 = vld [vmem:[#allocation2] sm:$0xff]
    %v479 = vld [vmem:[#allocation2 + $0x8] sm:$0xff]
    %v480 = vld [vmem:[#allocation2 + $0x10] sm:$0xff]
    %v481 = vld [vmem:[#allocation2 + $0x18] sm:$0xff]
    %v482 = vld [vmem:[#allocation2 + $0x20] sm:$0xff]
    %v483 = vld [vmem:[#allocation2 + $0x28] sm:$0xff]
    %v484 = vld [vmem:[#allocation2 + $0x30] sm:$0xff]
    %v485 = vld [vmem:[#allocation2 + $0x38] sm:$0xff]
    %v486 = vld [vmem:[#allocation2 + $0x60] sm:$0xff]
    %v487 = vld [vmem:[#allocation2 + $0x68] sm:$0xff]
    %v488 = vld [vmem:[#allocation2 + $0x70] sm:$0xff]
    %v489 = vld [vmem:[#allocation2 + $0x78] sm:$0xff]
    %v490 = vld [vmem:[#allocation2 + $0x80] sm:$0xff]
    %v491 = vld [vmem:[#allocation2 + $0x88] sm:$0xff]
    %v492 = vld [vmem:[#allocation2 + $0x90] sm:$0xff]
    %v493 = vld [vmem:[#allocation2 + $0x98] sm:$0xff]
    %v494 = vld [vmem:[#allocation2 + $0xc0] sm:$0xff]
    %v495 = vld [vmem:[#allocation2 + $0xc8] sm:$0xff]
    %v496 = vld [vmem:[#allocation2 + $0xd0] sm:$0xff]
    %v497 = vld [vmem:[#allocation2 + $0xd8] sm:$0xff]
    %v498 = vld [vmem:[#allocation2 + $0xe0] sm:$0xff]
    %v499 = vld [vmem:[#allocation2 + $0xe8] sm:$0xff]
    %v500 = vld [vmem:[#allocation2 + $0xf0] sm:$0xff]
    %v501 = vld [vmem:[#allocation2 + $0xf8] sm:$0xff]
    %v502 = vld [vmem:[#allocation2 + $0x120] sm:$0xff]
    %v503 = vld [vmem:[#allocation2 + $0x128] sm:$0xff]
    %v504 = vld [vmem:[#allocation2 + $0x130] sm:$0xff]
    %v505 = vld [vmem:[#allocation2 + $0x138] sm:$0xff]
    %v506 = vld [vmem:[#allocation2 + $0x140] sm:$0xff]
    %v507 = vld [vmem:[#allocation2 + $0x148] sm:$0xff]
    %v508 = vld [vmem:[#allocation2 + $0x150] sm:$0xff]
    %v509 = vld [vmem:[#allocation2 + $0x158] sm:$0xff]
    %v510 = vpack.c.bf16 %v482, %v478
    %v511 = vpack.c.bf16 %v483, %v479
    %v512 = vpack.c.bf16 %v484, %v480
    %v513 = vpack.c.bf16 %v485, %v481
    %v514 = vpack.c.bf16 %v490, %v486
    %v515 = vpack.c.bf16 %v491, %v487
    %v516 = vpack.c.bf16 %v492, %v488
    %v517 = vpack.c.bf16 %v493, %v489
    %v518 = vpack.c.bf16 %v498, %v494
    %v519 = vpack.c.bf16 %v499, %v495
    %v520 = vpack.c.bf16 %v500, %v496
    %v521 = vpack.c.bf16 %v501, %v497
    %v522 = vpack.c.bf16 %v506, %v502
    %v523 = vpack.c.bf16 %v507, %v503
    %v524 = vpack.c.bf16 %v508, %v504
    %v525 = vpack.c.bf16 %v509, %v505
    %526 = vst [vmem:[#allocation3] sm:$0xff] %v510
    %527 = vst [vmem:[#allocation3 + $0x8] sm:$0xff] %v511
    %528 = vst [vmem:[#allocation3 + $0x10] sm:$0xff] %v512
    %529 = vst [vmem:[#allocation3 + $0x18] sm:$0xff] %v513
    %530 = vst [vmem:[#allocation3 + $0x60] sm:$0xff] %v514
    %531 = vst [vmem:[#allocation3 + $0x68] sm:$0xff] %v515
    %532 = vst [vmem:[#allocation3 + $0x70] sm:$0xff] %v516
    %533 = vst [vmem:[#allocation3 + $0x78] sm:$0xff] %v517
    %534 = vst [vmem:[#allocation3 + $0xc0] sm:$0xff] %v518
    %535 = vst [vmem:[#allocation3 + $0xc8] sm:$0xff] %v519
    %536 = vst [vmem:[#allocation3 + $0xd0] sm:$0xff] %v520
    %537 = vst [vmem:[#allocation3 + $0xd8] sm:$0xff] %v521
    %538 = vst [vmem:[#allocation3 + $0x120] sm:$0xff] %v522
    %539 = vst [vmem:[#allocation3 + $0x128] sm:$0xff] %v523
    %540 = vst [vmem:[#allocation3 + $0x130] sm:$0xff] %v524
    %541 = vst [vmem:[#allocation3 + $0x138] sm:$0xff] %v525
    %v542 = vld [vmem:[#allocation2] sm:$0xfe]
    %v543 = vld [vmem:[#allocation2 + $0x8] sm:$0xfe]
    %v544 = vld [vmem:[#allocation2 + $0x10] sm:$0xfe]
    %v545 = vld [vmem:[#allocation2 + $0x18] sm:$0xfe]
    %v546 = vld [vmem:[#allocation2 + $0x20] sm:$0xff]
    %v547 = vld [vmem:[#allocation2 + $0x28] sm:$0xff]
    %v548 = vld [vmem:[#allocation2 + $0x30] sm:$0xff]
    %v549 = vld [vmem:[#allocation2 + $0x38] sm:$0xff]
    %v550 = vld [vmem:[#allocation2 + $0x40] sm:$0x1]
    %v551 = vld [vmem:[#allocation2 + $0x48] sm:$0x1]
    %v552 = vld [vmem:[#allocation2 + $0x50] sm:$0x1]
    %v553 = vld [vmem:[#allocation2 + $0x58] sm:$0x1]
    %v554 = vld [vmem:[#allocation2 + $0x60] sm:$0xfe]
    %v555 = vld [vmem:[#allocation2 + $0x68] sm:$0xfe]
    %v556 = vld [vmem:[#allocation2 + $0x70] sm:$0xfe]
    %v557 = vld [vmem:[#allocation2 + $0x78] sm:$0xfe]
    %v558 = vld [vmem:[#allocation2 + $0x80] sm:$0xff]
    %v559 = vld [vmem:[#allocation2 + $0x88] sm:$0xff]
    %v560 = vld [vmem:[#allocation2 + $0x90] sm:$0xff]
    %v561 = vld [vmem:[#allocation2 + $0x98] sm:$0xff]
    %v562 = vld [vmem:[#allocation2 + $0xa0] sm:$0x1]
    %v563 = vld [vmem:[#allocation2 + $0xa8] sm:$0x1]
    %v564 = vld [vmem:[#allocation2 + $0xb0] sm:$0x1]
    %v565 = vld [vmem:[#allocation2 + $0xb8] sm:$0x1]
    %v566 = vld [vmem:[#allocation2 + $0xc0] sm:$0xfe]
    %v567 = vld [vmem:[#allocation2 + $0xc8] sm:$0xfe]
    %v568 = vld [vmem:[#allocation2 + $0xd0] sm:$0xfe]
    %v569 = vld [vmem:[#allocation2 + $0xd8] sm:$0xfe]
    %v570 = vld [vmem:[#allocation2 + $0xe0] sm:$0xff]
    %v571 = vld [vmem:[#allocation2 + $0xe8] sm:$0xff]
    %v572 = vld [vmem:[#allocation2 + $0xf0] sm:$0xff]
    %v573 = vld [vmem:[#allocation2 + $0xf8] sm:$0xff]
    %v574 = vld [vmem:[#allocation2 + $0x100] sm:$0x1]
    %v575 = vld [vmem:[#allocation2 + $0x108] sm:$0x1]
    %v576 = vld [vmem:[#allocation2 + $0x110] sm:$0x1]
    %v577 = vld [vmem:[#allocation2 + $0x118] sm:$0x1]
    %v578 = vld [vmem:[#allocation2 + $0x120] sm:$0xfe]
    %v579 = vld [vmem:[#allocation2 + $0x128] sm:$0xfe]
    %v580 = vld [vmem:[#allocation2 + $0x130] sm:$0xfe]
    %v581 = vld [vmem:[#allocation2 + $0x138] sm:$0xfe]
    %v582 = vld [vmem:[#allocation2 + $0x140] sm:$0xff]
    %v583 = vld [vmem:[#allocation2 + $0x148] sm:$0xff]
    %v584 = vld [vmem:[#allocation2 + $0x150] sm:$0xff]
    %v585 = vld [vmem:[#allocation2 + $0x158] sm:$0xff]
    %v586 = vld [vmem:[#allocation2 + $0x160] sm:$0x1]
    %v587 = vld [vmem:[#allocation2 + $0x168] sm:$0x1]
    %v588 = vld [vmem:[#allocation2 + $0x170] sm:$0x1]
    %v589 = vld [vmem:[#allocation2 + $0x178] sm:$0x1]
    %vm638 = vcmask 1046528
    %v639 = vrot.slane %v542, 1
    %v640 = vrot.slane %v546, 1
    %v641 = vsel %vm638, %v639, %v640
    %v642 = vrot.slane %v543, 1
    %v643 = vrot.slane %v547, 1
    %v644 = vsel %vm638, %v642, %v643
    %v645 = vrot.slane %v544, 1
    %v646 = vrot.slane %v548, 1
    %v647 = vsel %vm638, %v645, %v646
    %v648 = vrot.slane %v545, 1
    %v649 = vrot.slane %v549, 1
    %v650 = vsel %vm638, %v648, %v649
    %v651 = vrot.slane %v550, 1
    %v652 = vsel %vm638, %v640, %v651
    %v653 = vrot.slane %v551, 1
    %v654 = vsel %vm638, %v643, %v653
    %v655 = vrot.slane %v552, 1
    %v656 = vsel %vm638, %v646, %v655
    %v657 = vrot.slane %v553, 1
    %v658 = vsel %vm638, %v649, %v657
    %v659 = vrot.slane %v554, 1
    %v660 = vrot.slane %v558, 1
    %v661 = vsel %vm638, %v659, %v660
    %v662 = vrot.slane %v555, 1
    %v663 = vrot.slane %v559, 1
    %v664 = vsel %vm638, %v662, %v663
    %v665 = vrot.slane %v556, 1
    %v666 = vrot.slane %v560, 1
    %v667 = vsel %vm638, %v665, %v666
    %v668 = vrot.slane %v557, 1
    %v669 = vrot.slane %v561, 1
    %v670 = vsel %vm638, %v668, %v669
    %v671 = vrot.slane %v562, 1
    %v672 = vsel %vm638, %v660, %v671
    %v673 = vrot.slane %v563, 1
    %v674 = vsel %vm638, %v663, %v673
    %v675 = vrot.slane %v564, 1
    %v676 = vsel %vm638, %v666, %v675
    %v677 = vrot.slane %v565, 1
    %v678 = vsel %vm638, %v669, %v677
    %v679 = vrot.slane %v566, 1
    %v680 = vrot.slane %v570, 1
    %v681 = vsel %vm638, %v679, %v680
    %v682 = vrot.slane %v567, 1
    %v683 = vrot.slane %v571, 1
    %v684 = vsel %vm638, %v682, %v683
    %v685 = vrot.slane %v568, 1
    %v686 = vrot.slane %v572, 1
    %v687 = vsel %vm638, %v685, %v686
    %v688 = vrot.slane %v569, 1
    %v689 = vrot.slane %v573, 1
    %v690 = vsel %vm638, %v688, %v689
    %v691 = vrot.slane %v574, 1
    %v692 = vsel %vm638, %v680, %v691
    %v693 = vrot.slane %v575, 1
    %v694 = vsel %vm638, %v683, %v693
    %v695 = vrot.slane %v576, 1
    %v696 = vsel %vm638, %v686, %v695
    %v697 = vrot.slane %v577, 1
    %v698 = vsel %vm638, %v689, %v697
    %v699 = vrot.slane %v578, 1
    %v700 = vrot.slane %v582, 1
    %v701 = vsel %vm638, %v699, %v700
    %v702 = vrot.slane %v579, 1
    %v703 = vrot.slane %v583, 1
    %v704 = vsel %vm638, %v702, %v703
    %v705 = vrot.slane %v580, 1
    %v706 = vrot.slane %v584, 1
    %v707 = vsel %vm638, %v705, %v706
    %v708 = vrot.slane %v581, 1
    %v709 = vrot.slane %v585, 1
    %v710 = vsel %vm638, %v708, %v709
    %v711 = vrot.slane %v586, 1
    %v712 = vsel %vm638, %v700, %v711
    %v713 = vrot.slane %v587, 1
    %v714 = vsel %vm638, %v703, %v713
    %v715 = vrot.slane %v588, 1
    %v716 = vsel %vm638, %v706, %v715
    %v717 = vrot.slane %v589, 1
    %v718 = vsel %vm638, %v709, %v717
    %v751 = vpack.c.bf16 %v652, %v641
    %v752 = vpack.c.bf16 %v654, %v644
    %v753 = vpack.c.bf16 %v656, %v647
    %v754 = vpack.c.bf16 %v658, %v650
    %v755 = vpack.c.bf16 %v672, %v661
    %v756 = vpack.c.bf16 %v674, %v664
    %v757 = vpack.c.bf16 %v676, %v667
    %v758 = vpack.c.bf16 %v678, %v670
    %v759 = vpack.c.bf16 %v692, %v681
    %v760 = vpack.c.bf16 %v694, %v684
    %v761 = vpack.c.bf16 %v696, %v687
    %v762 = vpack.c.bf16 %v698, %v690
    %v763 = vpack.c.bf16 %v712, %v701
    %v764 = vpack.c.bf16 %v714, %v704
    %v765 = vpack.c.bf16 %v716, %v707
    %v766 = vpack.c.bf16 %v718, %v710
    %767 = vst [vmem:[#allocation3 + $0x20] sm:$0xff] %v751
    %768 = vst [vmem:[#allocation3 + $0x28] sm:$0xff] %v752
    %769 = vst [vmem:[#allocation3 + $0x30] sm:$0xff] %v753
    %770 = vst [vmem:[#allocation3 + $0x38] sm:$0xff] %v754
    %771 = vst [vmem:[#allocation3 + $0x80] sm:$0xff] %v755
    %772 = vst [vmem:[#allocation3 + $0x88] sm:$0xff] %v756
    %773 = vst [vmem:[#allocation3 + $0x90] sm:$0xff] %v757
    %774 = vst [vmem:[#allocation3 + $0x98] sm:$0xff] %v758
    %775 = vst [vmem:[#allocation3 + $0xe0] sm:$0xff] %v759
    %776 = vst [vmem:[#allocation3 + $0xe8] sm:$0xff] %v760
    %777 = vst [vmem:[#allocation3 + $0xf0] sm:$0xff] %v761
    %778 = vst [vmem:[#allocation3 + $0xf8] sm:$0xff] %v762
    %779 = vst [vmem:[#allocation3 + $0x140] sm:$0xff] %v763
    %780 = vst [vmem:[#allocation3 + $0x148] sm:$0xff] %v764
    %781 = vst [vmem:[#allocation3 + $0x150] sm:$0xff] %v765
    %782 = vst [vmem:[#allocation3 + $0x158] sm:$0xff] %v766
    %v783 = vld [vmem:[#allocation2] sm:$0xfc]
    %v784 = vld [vmem:[#allocation2 + $0x8] sm:$0xfc]
    %v785 = vld [vmem:[#allocation2 + $0x10] sm:$0xfc]
    %v786 = vld [vmem:[#allocation2 + $0x18] sm:$0xfc]
    %v787 = vld [vmem:[#allocation2 + $0x20] sm:$0xff]
    %v788 = vld [vmem:[#allocation2 + $0x28] sm:$0xff]
    %v789 = vld [vmem:[#allocation2 + $0x30] sm:$0xff]
    %v790 = vld [vmem:[#allocation2 + $0x38] sm:$0xff]
    %v791 = vld [vmem:[#allocation2 + $0x40] sm:$0x3]
    %v792 = vld [vmem:[#allocation2 + $0x48] sm:$0x3]
    %v793 = vld [vmem:[#allocation2 + $0x50] sm:$0x3]
    %v794 = vld [vmem:[#allocation2 + $0x58] sm:$0x3]
    %v795 = vld [vmem:[#allocation2 + $0x60] sm:$0xfc]
    %v796 = vld [vmem:[#allocation2 + $0x68] sm:$0xfc]
    %v797 = vld [vmem:[#allocation2 + $0x70] sm:$0xfc]
    %v798 = vld [vmem:[#allocation2 + $0x78] sm:$0xfc]
    %v799 = vld [vmem:[#allocation2 + $0x80] sm:$0xff]
    %v800 = vld [vmem:[#allocation2 + $0x88] sm:$0xff]
    %v801 = vld [vmem:[#allocation2 + $0x90] sm:$0xff]
    %v802 = vld [vmem:[#allocation2 + $0x98] sm:$0xff]
    %v803 = vld [vmem:[#allocation2 + $0xa0] sm:$0x3]
    %v804 = vld [vmem:[#allocation2 + $0xa8] sm:$0x3]
    %v805 = vld [vmem:[#allocation2 + $0xb0] sm:$0x3]
    %v806 = vld [vmem:[#allocation2 + $0xb8] sm:$0x3]
    %v807 = vld [vmem:[#allocation2 + $0xc0] sm:$0xfc]
    %v808 = vld [vmem:[#allocation2 + $0xc8] sm:$0xfc]
    %v809 = vld [vmem:[#allocation2 + $0xd0] sm:$0xfc]
    %v810 = vld [vmem:[#allocation2 + $0xd8] sm:$0xfc]
    %v811 = vld [vmem:[#allocation2 + $0xe0] sm:$0xff]
    %v812 = vld [vmem:[#allocation2 + $0xe8] sm:$0xff]
    %v813 = vld [vmem:[#allocation2 + $0xf0] sm:$0xff]
    %v814 = vld [vmem:[#allocation2 + $0xf8] sm:$0xff]
    %v815 = vld [vmem:[#allocation2 + $0x100] sm:$0x3]
    %v816 = vld [vmem:[#allocation2 + $0x108] sm:$0x3]
    %v817 = vld [vmem:[#allocation2 + $0x110] sm:$0x3]
    %v818 = vld [vmem:[#allocation2 + $0x118] sm:$0x3]
    %v819 = vld [vmem:[#allocation2 + $0x120] sm:$0xfc]
    %v820 = vld [vmem:[#allocation2 + $0x128] sm:$0xfc]
    %v821 = vld [vmem:[#allocation2 + $0x130] sm:$0xfc]
    %v822 = vld [vmem:[#allocation2 + $0x138] sm:$0xfc]
    %v823 = vld [vmem:[#allocation2 + $0x140] sm:$0xff]
    %v824 = vld [vmem:[#allocation2 + $0x148] sm:$0xff]
    %v825 = vld [vmem:[#allocation2 + $0x150] sm:$0xff]
    %v826 = vld [vmem:[#allocation2 + $0x158] sm:$0xff]
    %v827 = vld [vmem:[#allocation2 + $0x160] sm:$0x3]
    %v828 = vld [vmem:[#allocation2 + $0x168] sm:$0x3]
    %v829 = vld [vmem:[#allocation2 + $0x170] sm:$0x3]
    %v830 = vld [vmem:[#allocation2 + $0x178] sm:$0x3]
    %vm879 = vcmask 1045504
    %v880 = vrot.slane %v783, 2
    %v881 = vrot.slane %v787, 2
    %v882 = vsel %vm879, %v880, %v881
    %v883 = vrot.slane %v784, 2
    %v884 = vrot.slane %v788, 2
    %v885 = vsel %vm879, %v883, %v884
    %v886 = vrot.slane %v785, 2
    %v887 = vrot.slane %v789, 2
    %v888 = vsel %vm879, %v886, %v887
    %v889 = vrot.slane %v786, 2
    %v890 = vrot.slane %v790, 2
    %v891 = vsel %vm879, %v889, %v890
    %v892 = vrot.slane %v791, 2
    %v893 = vsel %vm879, %v881, %v892
    %v894 = vrot.slane %v792, 2
    %v895 = vsel %vm879, %v884, %v894
    %v896 = vrot.slane %v793, 2
    %v897 = vsel %vm879, %v887, %v896
    %v898 = vrot.slane %v794, 2
    %v899 = vsel %vm879, %v890, %v898
    %v900 = vrot.slane %v795, 2
    %v901 = vrot.slane %v799, 2
    %v902 = vsel %vm879, %v900, %v901
    %v903 = vrot.slane %v796, 2
    %v904 = vrot.slane %v800, 2
    %v905 = vsel %vm879, %v903, %v904
    %v906 = vrot.slane %v797, 2
    %v907 = vrot.slane %v801, 2
    %v908 = vsel %vm879, %v906, %v907
    %v909 = vrot.slane %v798, 2
    %v910 = vrot.slane %v802, 2
    %v911 = vsel %vm879, %v909, %v910
    %v912 = vrot.slane %v803, 2
    %v913 = vsel %vm879, %v901, %v912
    %v914 = vrot.slane %v804, 2
    %v915 = vsel %vm879, %v904, %v914
    %v916 = vrot.slane %v805, 2
    %v917 = vsel %vm879, %v907, %v916
    %v918 = vrot.slane %v806, 2
    %v919 = vsel %vm879, %v910, %v918
    %v920 = vrot.slane %v807, 2
    %v921 = vrot.slane %v811, 2
    %v922 = vsel %vm879, %v920, %v921
    %v923 = vrot.slane %v808, 2
    %v924 = vrot.slane %v812, 2
    %v925 = vsel %vm879, %v923, %v924
    %v926 = vrot.slane %v809, 2
    %v927 = vrot.slane %v813, 2
    %v928 = vsel %vm879, %v926, %v927
    %v929 = vrot.slane %v810, 2
    %v930 = vrot.slane %v814, 2
    %v931 = vsel %vm879, %v929, %v930
    %v932 = vrot.slane %v815, 2
    %v933 = vsel %vm879, %v921, %v932
    %v934 = vrot.slane %v816, 2
    %v935 = vsel %vm879, %v924, %v934
    %v936 = vrot.slane %v817, 2
    %v937 = vsel %vm879, %v927, %v936
    %v938 = vrot.slane %v818, 2
    %v939 = vsel %vm879, %v930, %v938
    %v940 = vrot.slane %v819, 2
    %v941 = vrot.slane %v823, 2
    %v942 = vsel %vm879, %v940, %v941
    %v943 = vrot.slane %v820, 2
    %v944 = vrot.slane %v824, 2
    %v945 = vsel %vm879, %v943, %v944
    %v946 = vrot.slane %v821, 2
    %v947 = vrot.slane %v825, 2
    %v948 = vsel %vm879, %v946, %v947
    %v949 = vrot.slane %v822, 2
    %v950 = vrot.slane %v826, 2
    %v951 = vsel %vm879, %v949, %v950
    %v952 = vrot.slane %v827, 2
    %v953 = vsel %vm879, %v941, %v952
    %v954 = vrot.slane %v828, 2
    %v955 = vsel %vm879, %v944, %v954
    %v956 = vrot.slane %v829, 2
    %v957 = vsel %vm879, %v947, %v956
    %v958 = vrot.slane %v830, 2
    %v959 = vsel %vm879, %v950, %v958
    %v992 = vpack.c.bf16 %v893, %v882
    %v993 = vpack.c.bf16 %v895, %v885
    %v994 = vpack.c.bf16 %v897, %v888
    %v995 = vpack.c.bf16 %v899, %v891
    %v996 = vpack.c.bf16 %v913, %v902
    %v997 = vpack.c.bf16 %v915, %v905
    %v998 = vpack.c.bf16 %v917, %v908
    %v999 = vpack.c.bf16 %v919, %v911
    %v1000 = vpack.c.bf16 %v933, %v922
    %v1001 = vpack.c.bf16 %v935, %v925
    %v1002 = vpack.c.bf16 %v937, %v928
    %v1003 = vpack.c.bf16 %v939, %v931
    %v1004 = vpack.c.bf16 %v953, %v942
    %v1005 = vpack.c.bf16 %v955, %v945
    %v1006 = vpack.c.bf16 %v957, %v948
    %v1007 = vpack.c.bf16 %v959, %v951
    %1008 = vst [vmem:[#allocation3 + $0x40] sm:$0xff] %v992
    %1009 = vst [vmem:[#allocation3 + $0x48] sm:$0xff] %v993
    %1010 = vst [vmem:[#allocation3 + $0x50] sm:$0xff] %v994
    %1011 = vst [vmem:[#allocation3 + $0x58] sm:$0xff] %v995
    %1012 = vst [vmem:[#allocation3 + $0xa0] sm:$0xff] %v996
    %1013 = vst [vmem:[#allocation3 + $0xa8] sm:$0xff] %v997
    %1014 = vst [vmem:[#allocation3 + $0xb0] sm:$0xff] %v998
    %1015 = vst [vmem:[#allocation3 + $0xb8] sm:$0xff] %v999
    %1016 = vst [vmem:[#allocation3 + $0x100] sm:$0xff] %v1000
    %1017 = vst [vmem:[#allocation3 + $0x108] sm:$0xff] %v1001
    %1018 = vst [vmem:[#allocation3 + $0x110] sm:$0xff] %v1002
    %1019 = vst [vmem:[#allocation3 + $0x118] sm:$0xff] %v1003
    %1020 = vst [vmem:[#allocation3 + $0x160] sm:$0xff] %v1004
    %1021 = vst [vmem:[#allocation3 + $0x168] sm:$0xff] %v1005
    %1022 = vst [vmem:[#allocation3 + $0x170] sm:$0xff] %v1006
    %1023 = vst [vmem:[#allocation3 + $0x178] sm:$0xff] %v1007
    %v1024 = vld [vmem:[#allocation3] sm:$0xff]
    %v1025 = vld [vmem:[#allocation3 + $0x8] sm:$0xff]
    %v1026 = vld [vmem:[#allocation3 + $0x10] sm:$0xff]
    %v1027 = vld [vmem:[#allocation3 + $0x18] sm:$0xff]
    %v1028 = vld [vmem:[#allocation3 + $0x20] sm:$0xff]
    %v1029 = vld [vmem:[#allocation3 + $0x28] sm:$0xff]
    %v1030 = vld [vmem:[#allocation3 + $0x30] sm:$0xff]
    %v1031 = vld [vmem:[#allocation3 + $0x38] sm:$0xff]
    %v1032 = vld [vmem:[#allocation3 + $0x40] sm:$0xff]
    %v1033 = vld [vmem:[#allocation3 + $0x48] sm:$0xff]
    %v1034 = vld [vmem:[#allocation3 + $0x50] sm:$0xff]
    %v1035 = vld [vmem:[#allocation3 + $0x58] sm:$0xff]
    %v1036 = vld [vmem:[#allocation3 + $0x60] sm:$0xff]
    %v1037 = vld [vmem:[#allocation3 + $0x68] sm:$0xff]
    %v1038 = vld [vmem:[#allocation3 + $0x70] sm:$0xff]
    %v1039 = vld [vmem:[#allocation3 + $0x78] sm:$0xff]
    %v1040 = vld [vmem:[#allocation3 + $0x80] sm:$0xff]
    %v1041 = vld [vmem:[#allocation3 + $0x88] sm:$0xff]
    %v1042 = vld [vmem:[#allocation3 + $0x90] sm:$0xff]
    %v1043 = vld [vmem:[#allocation3 + $0x98] sm:$0xff]
    %v1044 = vld [vmem:[#allocation3 + $0xa0] sm:$0xff]
    %v1045 = vld [vmem:[#allocation3 + $0xa8] sm:$0xff]
    %v1046 = vld [vmem:[#allocation3 + $0xb0] sm:$0xff]
    %v1047 = vld [vmem:[#allocation3 + $0xb8] sm:$0xff]
    %v1048 = vld [vmem:[#allocation3 + $0xc0] sm:$0xff]
    %v1049 = vld [vmem:[#allocation3 + $0xc8] sm:$0xff]
    %v1050 = vld [vmem:[#allocation3 + $0xd0] sm:$0xff]
    %v1051 = vld [vmem:[#allocation3 + $0xd8] sm:$0xff]
    %v1052 = vld [vmem:[#allocation3 + $0xe0] sm:$0xff]
    %v1053 = vld [vmem:[#allocation3 + $0xe8] sm:$0xff]
    %v1054 = vld [vmem:[#allocation3 + $0xf0] sm:$0xff]
    %v1055 = vld [vmem:[#allocation3 + $0xf8] sm:$0xff]
    %v1056 = vld [vmem:[#allocation3 + $0x100] sm:$0xff]
    %v1057 = vld [vmem:[#allocation3 + $0x108] sm:$0xff]
    %v1058 = vld [vmem:[#allocation3 + $0x110] sm:$0xff]
    %v1059 = vld [vmem:[#allocation3 + $0x118] sm:$0xff]
    %v1060 = vld [vmem:[#allocation3 + $0x120] sm:$0xff]
    %v1061 = vld [vmem:[#allocation3 + $0x128] sm:$0xff]
    %v1062 = vld [vmem:[#allocation3 + $0x130] sm:$0xff]
    %v1063 = vld [vmem:[#allocation3 + $0x138] sm:$0xff]
    %v1064 = vld [vmem:[#allocation3 + $0x140] sm:$0xff]
    %v1065 = vld [vmem:[#allocation3 + $0x148] sm:$0xff]
    %v1066 = vld [vmem:[#allocation3 + $0x150] sm:$0xff]
    %v1067 = vld [vmem:[#allocation3 + $0x158] sm:$0xff]
    %v1068 = vld [vmem:[#allocation3 + $0x160] sm:$0xff]
    %v1069 = vld [vmem:[#allocation3 + $0x168] sm:$0xff]
    %v1070 = vld [vmem:[#allocation3 + $0x170] sm:$0xff]
    %v1071 = vld [vmem:[#allocation3 + $0x178] sm:$0xff]
    %v1072 = vld [vmem:[#allocation8] sm:$0xff]
    %v1073 = vld [vmem:[#allocation8 + $0x8] sm:$0xff]
    %v1074 = vld [vmem:[#allocation8 + $0x10] sm:$0xff]
    %v1075 = vld [vmem:[#allocation8 + $0x18] sm:$0xff]
    %v1076 = vld [vmem:[#allocation8 + $0x20] sm:$0xff]
    %v1077 = vld [vmem:[#allocation8 + $0x28] sm:$0xff]
    %v1078 = vld [vmem:[#allocation8 + $0x30] sm:$0xff]
    %v1079 = vld [vmem:[#allocation8 + $0x38] sm:$0xff]
    %v1080 = vld [vmem:[#allocation8 + $0x40] sm:$0xff]
    %v1081 = vld [vmem:[#allocation8 + $0x48] sm:$0xff]
    %v1082 = vld [vmem:[#allocation8 + $0x50] sm:$0xff]
    %v1083 = vld [vmem:[#allocation8 + $0x58] sm:$0xff]
    %v1084 = vld [vmem:[#allocation8 + $0x60] sm:$0xff]
    %v1085 = vld [vmem:[#allocation8 + $0x68] sm:$0xff]
    %v1086 = vld [vmem:[#allocation8 + $0x70] sm:$0xff]
    %v1087 = vld [vmem:[#allocation8 + $0x78] sm:$0xff]
    %v1088 = vld [vmem:[#allocation8 + $0x80] sm:$0xff]
    %v1089 = vld [vmem:[#allocation8 + $0x88] sm:$0xff]
    %v1090 = vld [vmem:[#allocation8 + $0x90] sm:$0xff]
    %v1091 = vld [vmem:[#allocation8 + $0x98] sm:$0xff]
    %v1092 = vld [vmem:[#allocation8 + $0xa0] sm:$0xff]
    %v1093 = vld [vmem:[#allocation8 + $0xa8] sm:$0xff]
    %v1094 = vld [vmem:[#allocation8 + $0xb0] sm:$0xff]
    %v1095 = vld [vmem:[#allocation8 + $0xb8] sm:$0xff]
    %v1096 = vld [vmem:[#allocation8 + $0xc0] sm:$0xff]
    %v1097 = vld [vmem:[#allocation8 + $0xc8] sm:$0xff]
    %v1098 = vld [vmem:[#allocation8 + $0xd0] sm:$0xff]
    %v1099 = vld [vmem:[#allocation8 + $0xd8] sm:$0xff]
    %v1100 = vld [vmem:[#allocation8 + $0xe0] sm:$0xff]
    %v1101 = vld [vmem:[#allocation8 + $0xe8] sm:$0xff]
    %v1102 = vld [vmem:[#allocation8 + $0xf0] sm:$0xff]
    %v1103 = vld [vmem:[#allocation8 + $0xf8] sm:$0xff]
    %v1104 = vld [vmem:[#allocation8 + $0x100] sm:$0xff]
    %v1105 = vld [vmem:[#allocation8 + $0x108] sm:$0xff]
    %v1106 = vld [vmem:[#allocation8 + $0x110] sm:$0xff]
    %v1107 = vld [vmem:[#allocation8 + $0x118] sm:$0xff]
    %v1108 = vld [vmem:[#allocation8 + $0x120] sm:$0xff]
    %v1109 = vld [vmem:[#allocation8 + $0x128] sm:$0xff]
    %v1110 = vld [vmem:[#allocation8 + $0x130] sm:$0xff]
    %v1111 = vld [vmem:[#allocation8 + $0x138] sm:$0xff]
    %v1112 = vld [vmem:[#allocation8 + $0x140] sm:$0xff]
    %v1113 = vld [vmem:[#allocation8 + $0x148] sm:$0xff]
    %v1114 = vld [vmem:[#allocation8 + $0x150] sm:$0xff]
    %v1115 = vld [vmem:[#allocation8 + $0x158] sm:$0xff]
    %v1116 = vld [vmem:[#allocation8 + $0x160] sm:$0xff]
    %v1117 = vld [vmem:[#allocation8 + $0x168] sm:$0xff]
    %v1118 = vld [vmem:[#allocation8 + $0x170] sm:$0xff]
    %v1119 = vld [vmem:[#allocation8 + $0x178] sm:$0xff]
    %v1120 = vld [vmem:[#allocation8 + $0x180] sm:$0xff]
    %v1121 = vld [vmem:[#allocation8 + $0x188] sm:$0xff]
    %v1122 = vld [vmem:[#allocation8 + $0x190] sm:$0xff]
    %v1123 = vld [vmem:[#allocation8 + $0x198] sm:$0xff]
    %v1124 = vld [vmem:[#allocation8 + $0x1a0] sm:$0xff]
    %v1125 = vld [vmem:[#allocation8 + $0x1a8] sm:$0xff]
    %v1126 = vld [vmem:[#allocation8 + $0x1b0] sm:$0xff]
    %v1127 = vld [vmem:[#allocation8 + $0x1b8] sm:$0xff]
    %v1128 = vld [vmem:[#allocation8 + $0x1c0] sm:$0xff]
    %v1129 = vld [vmem:[#allocation8 + $0x1c8] sm:$0xff]
    %v1130 = vld [vmem:[#allocation8 + $0x1d0] sm:$0xff]
    %v1131 = vld [vmem:[#allocation8 + $0x1d8] sm:$0xff]
    %v1132 = vld [vmem:[#allocation8 + $0x1e0] sm:$0xff]
    %v1133 = vld [vmem:[#allocation8 + $0x1e8] sm:$0xff]
    %v1134 = vld [vmem:[#allocation8 + $0x1f0] sm:$0xff]
    %v1135 = vld [vmem:[#allocation8 + $0x1f8] sm:$0xff]
    %v1136 = vld [vmem:[#allocation8 + $0x200] sm:$0xff]
    %v1137 = vld [vmem:[#allocation8 + $0x208] sm:$0xff]
    %v1138 = vld [vmem:[#allocation8 + $0x210] sm:$0xff]
    %v1139 = vld [vmem:[#allocation8 + $0x218] sm:$0xff]
    %v1140 = vld [vmem:[#allocation8 + $0x220] sm:$0xff]
    %v1141 = vld [vmem:[#allocation8 + $0x228] sm:$0xff]
    %v1142 = vld [vmem:[#allocation8 + $0x230] sm:$0xff]
    %v1143 = vld [vmem:[#allocation8 + $0x238] sm:$0xff]
    %v1144 = vld [vmem:[#allocation8 + $0x240] sm:$0xff]
    %v1145 = vld [vmem:[#allocation8 + $0x248] sm:$0xff]
    %v1146 = vld [vmem:[#allocation8 + $0x250] sm:$0xff]
    %v1147 = vld [vmem:[#allocation8 + $0x258] sm:$0xff]
    %v1148 = vld [vmem:[#allocation8 + $0x260] sm:$0xff]
    %v1149 = vld [vmem:[#allocation8 + $0x268] sm:$0xff]
    %v1150 = vld [vmem:[#allocation8 + $0x270] sm:$0xff]
    %v1151 = vld [vmem:[#allocation8 + $0x278] sm:$0xff]
    %v1152 = vld [vmem:[#allocation8 + $0x280] sm:$0xff]
    %v1153 = vld [vmem:[#allocation8 + $0x288] sm:$0xff]
    %v1154 = vld [vmem:[#allocation8 + $0x290] sm:$0xff]
    %v1155 = vld [vmem:[#allocation8 + $0x298] sm:$0xff]
    %v1156 = vld [vmem:[#allocation8 + $0x2a0] sm:$0xff]
    %v1157 = vld [vmem:[#allocation8 + $0x2a8] sm:$0xff]
    %v1158 = vld [vmem:[#allocation8 + $0x2b0] sm:$0xff]
    %v1159 = vld [vmem:[#allocation8 + $0x2b8] sm:$0xff]
    %v1160 = vld [vmem:[#allocation8 + $0x2c0] sm:$0xff]
    %v1161 = vld [vmem:[#allocation8 + $0x2c8] sm:$0xff]
    %v1162 = vld [vmem:[#allocation8 + $0x2d0] sm:$0xff]
    %v1163 = vld [vmem:[#allocation8 + $0x2d8] sm:$0xff]
    %v1164 = vld [vmem:[#allocation8 + $0x2e0] sm:$0xff]
    %v1165 = vld [vmem:[#allocation8 + $0x2e8] sm:$0xff]
    %v1166 = vld [vmem:[#allocation8 + $0x2f0] sm:$0xff]
    %v1167 = vld [vmem:[#allocation8 + $0x2f8] sm:$0xff]
    %v1168 = vld [vmem:[#allocation8 + $0x300] sm:$0xff]
    %v1169 = vld [vmem:[#allocation8 + $0x308] sm:$0xff]
    %v1170 = vld [vmem:[#allocation8 + $0x310] sm:$0xff]
    %v1171 = vld [vmem:[#allocation8 + $0x318] sm:$0xff]
    %v1172 = vld [vmem:[#allocation8 + $0x320] sm:$0xff]
    %v1173 = vld [vmem:[#allocation8 + $0x328] sm:$0xff]
    %v1174 = vld [vmem:[#allocation8 + $0x330] sm:$0xff]
    %v1175 = vld [vmem:[#allocation8 + $0x338] sm:$0xff]
    %v1176 = vld [vmem:[#allocation8 + $0x340] sm:$0xff]
    %v1177 = vld [vmem:[#allocation8 + $0x348] sm:$0xff]
    %v1178 = vld [vmem:[#allocation8 + $0x350] sm:$0xff]
    %v1179 = vld [vmem:[#allocation8 + $0x358] sm:$0xff]
    %v1180 = vld [vmem:[#allocation8 + $0x360] sm:$0xff]
    %v1181 = vld [vmem:[#allocation8 + $0x368] sm:$0xff]
    %v1182 = vld [vmem:[#allocation8 + $0x370] sm:$0xff]
    %v1183 = vld [vmem:[#allocation8 + $0x378] sm:$0xff]
    %v1184 = vld [vmem:[#allocation8 + $0x380] sm:$0xff]
    %v1185 = vld [vmem:[#allocation8 + $0x388] sm:$0xff]
    %v1186 = vld [vmem:[#allocation8 + $0x390] sm:$0xff]
    %v1187 = vld [vmem:[#allocation8 + $0x398] sm:$0xff]
    %v1188 = vld [vmem:[#allocation8 + $0x3a0] sm:$0xff]
    %v1189 = vld [vmem:[#allocation8 + $0x3a8] sm:$0xff]
    %v1190 = vld [vmem:[#allocation8 + $0x3b0] sm:$0xff]
    %v1191 = vld [vmem:[#allocation8 + $0x3b8] sm:$0xff]
    %v1192 = vld [vmem:[#allocation8 + $0x3c0] sm:$0xff]
    %v1193 = vld [vmem:[#allocation8 + $0x3c8] sm:$0xff]
    %v1194 = vld [vmem:[#allocation8 + $0x3d0] sm:$0xff]
    %v1195 = vld [vmem:[#allocation8 + $0x3d8] sm:$0xff]
    %v1196 = vld [vmem:[#allocation8 + $0x3e0] sm:$0xff]
    %v1197 = vld [vmem:[#allocation8 + $0x3e8] sm:$0xff]
    %v1198 = vld [vmem:[#allocation8 + $0x3f0] sm:$0xff]
    %v1199 = vld [vmem:[#allocation8 + $0x3f8] sm:$0xff]
    %v1200 = vld [vmem:[#allocation8 + $0x400] sm:$0xff]
    %v1201 = vld [vmem:[#allocation8 + $0x408] sm:$0xff]
    %v1202 = vld [vmem:[#allocation8 + $0x410] sm:$0xff]
    %v1203 = vld [vmem:[#allocation8 + $0x418] sm:$0xff]
    %v1204 = vld [vmem:[#allocation8 + $0x420] sm:$0xff]
    %v1205 = vld [vmem:[#allocation8 + $0x428] sm:$0xff]
    %v1206 = vld [vmem:[#allocation8 + $0x430] sm:$0xff]
    %v1207 = vld [vmem:[#allocation8 + $0x438] sm:$0xff]
    %v1208 = vld [vmem:[#allocation8 + $0x440] sm:$0xff]
    %v1209 = vld [vmem:[#allocation8 + $0x448] sm:$0xff]
    %v1210 = vld [vmem:[#allocation8 + $0x450] sm:$0xff]
    %v1211 = vld [vmem:[#allocation8 + $0x458] sm:$0xff]
    %v1212 = vld [vmem:[#allocation8 + $0x460] sm:$0xff]
    %v1213 = vld [vmem:[#allocation8 + $0x468] sm:$0xff]
    %v1214 = vld [vmem:[#allocation8 + $0x470] sm:$0xff]
    %v1215 = vld [vmem:[#allocation8 + $0x478] sm:$0xff]
    %v1216 = vld [vmem:[#allocation8 + $0x480] sm:$0xff]
    %v1217 = vld [vmem:[#allocation8 + $0x488] sm:$0xff]
    %v1218 = vld [vmem:[#allocation8 + $0x490] sm:$0xff]
    %v1219 = vld [vmem:[#allocation8 + $0x498] sm:$0xff]
    %v1220 = vld [vmem:[#allocation8 + $0x4a0] sm:$0xff]
    %v1221 = vld [vmem:[#allocation8 + $0x4a8] sm:$0xff]
    %v1222 = vld [vmem:[#allocation8 + $0x4b0] sm:$0xff]
    %v1223 = vld [vmem:[#allocation8 + $0x4b8] sm:$0xff]
    %v1224 = vld [vmem:[#allocation8 + $0x4c0] sm:$0xff]
    %v1225 = vld [vmem:[#allocation8 + $0x4c8] sm:$0xff]
    %v1226 = vld [vmem:[#allocation8 + $0x4d0] sm:$0xff]
    %v1227 = vld [vmem:[#allocation8 + $0x4d8] sm:$0xff]
    %v1228 = vld [vmem:[#allocation8 + $0x4e0] sm:$0xff]
    %v1229 = vld [vmem:[#allocation8 + $0x4e8] sm:$0xff]
    %v1230 = vld [vmem:[#allocation8 + $0x4f0] sm:$0xff]
    %v1231 = vld [vmem:[#allocation8 + $0x4f8] sm:$0xff]
    %v1232 = vld [vmem:[#allocation8 + $0x500] sm:$0xff]
    %v1233 = vld [vmem:[#allocation8 + $0x508] sm:$0xff]
    %v1234 = vld [vmem:[#allocation8 + $0x510] sm:$0xff]
    %v1235 = vld [vmem:[#allocation8 + $0x518] sm:$0xff]
    %v1236 = vld [vmem:[#allocation8 + $0x520] sm:$0xff]
    %v1237 = vld [vmem:[#allocation8 + $0x528] sm:$0xff]
    %v1238 = vld [vmem:[#allocation8 + $0x530] sm:$0xff]
    %v1239 = vld [vmem:[#allocation8 + $0x538] sm:$0xff]
    %v1240 = vld [vmem:[#allocation8 + $0x540] sm:$0xff]
    %v1241 = vld [vmem:[#allocation8 + $0x548] sm:$0xff]
    %v1242 = vld [vmem:[#allocation8 + $0x550] sm:$0xff]
    %v1243 = vld [vmem:[#allocation8 + $0x558] sm:$0xff]
    %v1244 = vld [vmem:[#allocation8 + $0x560] sm:$0xff]
    %v1245 = vld [vmem:[#allocation8 + $0x568] sm:$0xff]
    %v1246 = vld [vmem:[#allocation8 + $0x570] sm:$0xff]
    %v1247 = vld [vmem:[#allocation8 + $0x578] sm:$0xff]
    %v1248 = vld [vmem:[#allocation8 + $0x580] sm:$0xff]
    %v1249 = vld [vmem:[#allocation8 + $0x588] sm:$0xff]
    %v1250 = vld [vmem:[#allocation8 + $0x590] sm:$0xff]
    %v1251 = vld [vmem:[#allocation8 + $0x598] sm:$0xff]
    %v1252 = vld [vmem:[#allocation8 + $0x5a0] sm:$0xff]
    %v1253 = vld [vmem:[#allocation8 + $0x5a8] sm:$0xff]
    %v1254 = vld [vmem:[#allocation8 + $0x5b0] sm:$0xff]
    %v1255 = vld [vmem:[#allocation8 + $0x5b8] sm:$0xff]
    %v1256 = vld [vmem:[#allocation8 + $0x5c0] sm:$0xff]
    %v1257 = vld [vmem:[#allocation8 + $0x5c8] sm:$0xff]
    %v1258 = vld [vmem:[#allocation8 + $0x5d0] sm:$0xff]
    %v1259 = vld [vmem:[#allocation8 + $0x5d8] sm:$0xff]
    %v1260 = vld [vmem:[#allocation8 + $0x5e0] sm:$0xff]
    %v1261 = vld [vmem:[#allocation8 + $0x5e8] sm:$0xff]
    %v1262 = vld [vmem:[#allocation8 + $0x5f0] sm:$0xff]
    %v1263 = vld [vmem:[#allocation8 + $0x5f8] sm:$0xff]
    %v1264 = vld [vmem:[#allocation8 + $0x600] sm:$0xff]
    %v1265 = vld [vmem:[#allocation8 + $0x608] sm:$0xff]
    %v1266 = vld [vmem:[#allocation8 + $0x610] sm:$0xff]
    %v1267 = vld [vmem:[#allocation8 + $0x618] sm:$0xff]
    %v1268 = vld [vmem:[#allocation8 + $0x620] sm:$0xff]
    %v1269 = vld [vmem:[#allocation8 + $0x628] sm:$0xff]
    %v1270 = vld [vmem:[#allocation8 + $0x630] sm:$0xff]
    %v1271 = vld [vmem:[#allocation8 + $0x638] sm:$0xff]
    %v1272 = vld [vmem:[#allocation8 + $0x640] sm:$0xff]
    %v1273 = vld [vmem:[#allocation8 + $0x648] sm:$0xff]
    %v1274 = vld [vmem:[#allocation8 + $0x650] sm:$0xff]
    %v1275 = vld [vmem:[#allocation8 + $0x658] sm:$0xff]
    %v1276 = vld [vmem:[#allocation8 + $0x660] sm:$0xff]
    %v1277 = vld [vmem:[#allocation8 + $0x668] sm:$0xff]
    %v1278 = vld [vmem:[#allocation8 + $0x670] sm:$0xff]
    %v1279 = vld [vmem:[#allocation8 + $0x678] sm:$0xff]
    %v1280 = vld [vmem:[#allocation8 + $0x680] sm:$0xff]
    %v1281 = vld [vmem:[#allocation8 + $0x688] sm:$0xff]
    %v1282 = vld [vmem:[#allocation8 + $0x690] sm:$0xff]
    %v1283 = vld [vmem:[#allocation8 + $0x698] sm:$0xff]
    %v1284 = vld [vmem:[#allocation8 + $0x6a0] sm:$0xff]
    %v1285 = vld [vmem:[#allocation8 + $0x6a8] sm:$0xff]
    %v1286 = vld [vmem:[#allocation8 + $0x6b0] sm:$0xff]
    %v1287 = vld [vmem:[#allocation8 + $0x6b8] sm:$0xff]
    %v1288 = vld [vmem:[#allocation8 + $0x6c0] sm:$0xff]
    %v1289 = vld [vmem:[#allocation8 + $0x6c8] sm:$0xff]
    %v1290 = vld [vmem:[#allocation8 + $0x6d0] sm:$0xff]
    %v1291 = vld [vmem:[#allocation8 + $0x6d8] sm:$0xff]
    %v1292 = vld [vmem:[#allocation8 + $0x6e0] sm:$0xff]
    %v1293 = vld [vmem:[#allocation8 + $0x6e8] sm:$0xff]
    %v1294 = vld [vmem:[#allocation8 + $0x6f0] sm:$0xff]
    %v1295 = vld [vmem:[#allocation8 + $0x6f8] sm:$0xff]
    %v1296 = vld [vmem:[#allocation8 + $0x700] sm:$0xff]
    %v1297 = vld [vmem:[#allocation8 + $0x708] sm:$0xff]
    %v1298 = vld [vmem:[#allocation8 + $0x710] sm:$0xff]
    %v1299 = vld [vmem:[#allocation8 + $0x718] sm:$0xff]
    %v1300 = vld [vmem:[#allocation8 + $0x720] sm:$0xff]
    %v1301 = vld [vmem:[#allocation8 + $0x728] sm:$0xff]
    %v1302 = vld [vmem:[#allocation8 + $0x730] sm:$0xff]
    %v1303 = vld [vmem:[#allocation8 + $0x738] sm:$0xff]
    %v1304 = vld [vmem:[#allocation8 + $0x740] sm:$0xff]
    %v1305 = vld [vmem:[#allocation8 + $0x748] sm:$0xff]
    %v1306 = vld [vmem:[#allocation8 + $0x750] sm:$0xff]
    %v1307 = vld [vmem:[#allocation8 + $0x758] sm:$0xff]
    %v1308 = vld [vmem:[#allocation8 + $0x760] sm:$0xff]
    %v1309 = vld [vmem:[#allocation8 + $0x768] sm:$0xff]
    %v1310 = vld [vmem:[#allocation8 + $0x770] sm:$0xff]
    %v1311 = vld [vmem:[#allocation8 + $0x778] sm:$0xff]
    %v1312 = vld [vmem:[#allocation8 + $0x780] sm:$0xff]
    %v1313 = vld [vmem:[#allocation8 + $0x788] sm:$0xff]
    %v1314 = vld [vmem:[#allocation8 + $0x790] sm:$0xff]
    %v1315 = vld [vmem:[#allocation8 + $0x798] sm:$0xff]
    %v1316 = vld [vmem:[#allocation8 + $0x7a0] sm:$0xff]
    %v1317 = vld [vmem:[#allocation8 + $0x7a8] sm:$0xff]
    %v1318 = vld [vmem:[#allocation8 + $0x7b0] sm:$0xff]
    %v1319 = vld [vmem:[#allocation8 + $0x7b8] sm:$0xff]
    %v1320 = vld [vmem:[#allocation8 + $0x7c0] sm:$0xff]
    %v1321 = vld [vmem:[#allocation8 + $0x7c8] sm:$0xff]
    %v1322 = vld [vmem:[#allocation8 + $0x7d0] sm:$0xff]
    %v1323 = vld [vmem:[#allocation8 + $0x7d8] sm:$0xff]
    %v1324 = vld [vmem:[#allocation8 + $0x7e0] sm:$0xff]
    %v1325 = vld [vmem:[#allocation8 + $0x7e8] sm:$0xff]
    %v1326 = vld [vmem:[#allocation8 + $0x7f0] sm:$0xff]
    %v1327 = vld [vmem:[#allocation8 + $0x7f8] sm:$0xff]
    %v1328 = vld [vmem:[#allocation8 + $0x800] sm:$0xff]
    %v1329 = vld [vmem:[#allocation8 + $0x808] sm:$0xff]
    %v1330 = vld [vmem:[#allocation8 + $0x810] sm:$0xff]
    %v1331 = vld [vmem:[#allocation8 + $0x818] sm:$0xff]
    %v1332 = vld [vmem:[#allocation8 + $0x820] sm:$0xff]
    %v1333 = vld [vmem:[#allocation8 + $0x828] sm:$0xff]
    %v1334 = vld [vmem:[#allocation8 + $0x830] sm:$0xff]
    %v1335 = vld [vmem:[#allocation8 + $0x838] sm:$0xff]
    %v1336 = vld [vmem:[#allocation8 + $0x840] sm:$0xff]
    %v1337 = vld [vmem:[#allocation8 + $0x848] sm:$0xff]
    %v1338 = vld [vmem:[#allocation8 + $0x850] sm:$0xff]
    %v1339 = vld [vmem:[#allocation8 + $0x858] sm:$0xff]
    %v1340 = vld [vmem:[#allocation8 + $0x860] sm:$0xff]
    %v1341 = vld [vmem:[#allocation8 + $0x868] sm:$0xff]
    %v1342 = vld [vmem:[#allocation8 + $0x870] sm:$0xff]
    %v1343 = vld [vmem:[#allocation8 + $0x878] sm:$0xff]
    %v1344 = vld [vmem:[#allocation8 + $0x880] sm:$0xff]
    %v1345 = vld [vmem:[#allocation8 + $0x888] sm:$0xff]
    %v1346 = vld [vmem:[#allocation8 + $0x890] sm:$0xff]
    %v1347 = vld [vmem:[#allocation8 + $0x898] sm:$0xff]
    %v1348 = vld [vmem:[#allocation8 + $0x8a0] sm:$0xff]
    %v1349 = vld [vmem:[#allocation8 + $0x8a8] sm:$0xff]
    %v1350 = vld [vmem:[#allocation8 + $0x8b0] sm:$0xff]
    %v1351 = vld [vmem:[#allocation8 + $0x8b8] sm:$0xff]
    %v1352 = vld [vmem:[#allocation8 + $0x8c0] sm:$0xff]
    %v1353 = vld [vmem:[#allocation8 + $0x8c8] sm:$0xff]
    %v1354 = vld [vmem:[#allocation8 + $0x8d0] sm:$0xff]
    %v1355 = vld [vmem:[#allocation8 + $0x8d8] sm:$0xff]
    %v1356 = vld [vmem:[#allocation8 + $0x8e0] sm:$0xff]
    %v1357 = vld [vmem:[#allocation8 + $0x8e8] sm:$0xff]
    %v1358 = vld [vmem:[#allocation8 + $0x8f0] sm:$0xff]
    %v1359 = vld [vmem:[#allocation8 + $0x8f8] sm:$0xff]
    %v1360 = vld [vmem:[#allocation8 + $0x900] sm:$0xff]
    %v1361 = vld [vmem:[#allocation8 + $0x908] sm:$0xff]
    %v1362 = vld [vmem:[#allocation8 + $0x910] sm:$0xff]
    %v1363 = vld [vmem:[#allocation8 + $0x918] sm:$0xff]
    %v1364 = vld [vmem:[#allocation8 + $0x920] sm:$0xff]
    %v1365 = vld [vmem:[#allocation8 + $0x928] sm:$0xff]
    %v1366 = vld [vmem:[#allocation8 + $0x930] sm:$0xff]
    %v1367 = vld [vmem:[#allocation8 + $0x938] sm:$0xff]
    %v1368 = vld [vmem:[#allocation8 + $0x940] sm:$0xff]
    %v1369 = vld [vmem:[#allocation8 + $0x948] sm:$0xff]
    %v1370 = vld [vmem:[#allocation8 + $0x950] sm:$0xff]
    %v1371 = vld [vmem:[#allocation8 + $0x958] sm:$0xff]
    %v1372 = vld [vmem:[#allocation8 + $0x960] sm:$0xff]
    %v1373 = vld [vmem:[#allocation8 + $0x968] sm:$0xff]
    %v1374 = vld [vmem:[#allocation8 + $0x970] sm:$0xff]
    %v1375 = vld [vmem:[#allocation8 + $0x978] sm:$0xff]
    %v1376 = vld [vmem:[#allocation8 + $0x980] sm:$0xff]
    %v1377 = vld [vmem:[#allocation8 + $0x988] sm:$0xff]
    %v1378 = vld [vmem:[#allocation8 + $0x990] sm:$0xff]
    %v1379 = vld [vmem:[#allocation8 + $0x998] sm:$0xff]
    %v1380 = vld [vmem:[#allocation8 + $0x9a0] sm:$0xff]
    %v1381 = vld [vmem:[#allocation8 + $0x9a8] sm:$0xff]
    %v1382 = vld [vmem:[#allocation8 + $0x9b0] sm:$0xff]
    %v1383 = vld [vmem:[#allocation8 + $0x9b8] sm:$0xff]
    %v1384 = vld [vmem:[#allocation8 + $0x9c0] sm:$0xff]
    %v1385 = vld [vmem:[#allocation8 + $0x9c8] sm:$0xff]
    %v1386 = vld [vmem:[#allocation8 + $0x9d0] sm:$0xff]
    %v1387 = vld [vmem:[#allocation8 + $0x9d8] sm:$0xff]
    %v1388 = vld [vmem:[#allocation8 + $0x9e0] sm:$0xff]
    %v1389 = vld [vmem:[#allocation8 + $0x9e8] sm:$0xff]
    %v1390 = vld [vmem:[#allocation8 + $0x9f0] sm:$0xff]
    %v1391 = vld [vmem:[#allocation8 + $0x9f8] sm:$0xff]
    %v1392 = vld [vmem:[#allocation8 + $0xa00] sm:$0xff]
    %v1393 = vld [vmem:[#allocation8 + $0xa08] sm:$0xff]
    %v1394 = vld [vmem:[#allocation8 + $0xa10] sm:$0xff]
    %v1395 = vld [vmem:[#allocation8 + $0xa18] sm:$0xff]
    %v1396 = vld [vmem:[#allocation8 + $0xa20] sm:$0xff]
    %v1397 = vld [vmem:[#allocation8 + $0xa28] sm:$0xff]
    %v1398 = vld [vmem:[#allocation8 + $0xa30] sm:$0xff]
    %v1399 = vld [vmem:[#allocation8 + $0xa38] sm:$0xff]
    %v1400 = vld [vmem:[#allocation8 + $0xa40] sm:$0xff]
    %v1401 = vld [vmem:[#allocation8 + $0xa48] sm:$0xff]
    %v1402 = vld [vmem:[#allocation8 + $0xa50] sm:$0xff]
    %v1403 = vld [vmem:[#allocation8 + $0xa58] sm:$0xff]
    %v1404 = vld [vmem:[#allocation8 + $0xa60] sm:$0xff]
    %v1405 = vld [vmem:[#allocation8 + $0xa68] sm:$0xff]
    %v1406 = vld [vmem:[#allocation8 + $0xa70] sm:$0xff]
    %v1407 = vld [vmem:[#allocation8 + $0xa78] sm:$0xff]
    %v1408 = vld [vmem:[#allocation8 + $0xa80] sm:$0xff]
    %v1409 = vld [vmem:[#allocation8 + $0xa88] sm:$0xff]
    %v1410 = vld [vmem:[#allocation8 + $0xa90] sm:$0xff]
    %v1411 = vld [vmem:[#allocation8 + $0xa98] sm:$0xff]
    %v1412 = vld [vmem:[#allocation8 + $0xaa0] sm:$0xff]
    %v1413 = vld [vmem:[#allocation8 + $0xaa8] sm:$0xff]
    %v1414 = vld [vmem:[#allocation8 + $0xab0] sm:$0xff]
    %v1415 = vld [vmem:[#allocation8 + $0xab8] sm:$0xff]
    %v1416 = vld [vmem:[#allocation8 + $0xac0] sm:$0xff]
    %v1417 = vld [vmem:[#allocation8 + $0xac8] sm:$0xff]
    %v1418 = vld [vmem:[#allocation8 + $0xad0] sm:$0xff]
    %v1419 = vld [vmem:[#allocation8 + $0xad8] sm:$0xff]
    %v1420 = vld [vmem:[#allocation8 + $0xae0] sm:$0xff]
    %v1421 = vld [vmem:[#allocation8 + $0xae8] sm:$0xff]
    %v1422 = vld [vmem:[#allocation8 + $0xaf0] sm:$0xff]
    %v1423 = vld [vmem:[#allocation8 + $0xaf8] sm:$0xff]
    %v1424 = vld [vmem:[#allocation8 + $0xb00] sm:$0xff]
    %v1425 = vld [vmem:[#allocation8 + $0xb08] sm:$0xff]
    %v1426 = vld [vmem:[#allocation8 + $0xb10] sm:$0xff]
    %v1427 = vld [vmem:[#allocation8 + $0xb18] sm:$0xff]
    %v1428 = vld [vmem:[#allocation8 + $0xb20] sm:$0xff]
    %v1429 = vld [vmem:[#allocation8 + $0xb28] sm:$0xff]
    %v1430 = vld [vmem:[#allocation8 + $0xb30] sm:$0xff]
    %v1431 = vld [vmem:[#allocation8 + $0xb38] sm:$0xff]
    %v1432 = vld [vmem:[#allocation8 + $0xb40] sm:$0xff]
    %v1433 = vld [vmem:[#allocation8 + $0xb48] sm:$0xff]
    %v1434 = vld [vmem:[#allocation8 + $0xb50] sm:$0xff]
    %v1435 = vld [vmem:[#allocation8 + $0xb58] sm:$0xff]
    %v1436 = vld [vmem:[#allocation8 + $0xb60] sm:$0xff]
    %v1437 = vld [vmem:[#allocation8 + $0xb68] sm:$0xff]
    %v1438 = vld [vmem:[#allocation8 + $0xb70] sm:$0xff]
    %v1439 = vld [vmem:[#allocation8 + $0xb78] sm:$0xff]
    %v1440 = vld [vmem:[#allocation8 + $0xb80] sm:$0xff]
    %v1441 = vld [vmem:[#allocation8 + $0xb88] sm:$0xff]
    %v1442 = vld [vmem:[#allocation8 + $0xb90] sm:$0xff]
    %v1443 = vld [vmem:[#allocation8 + $0xb98] sm:$0xff]
    %v1444 = vld [vmem:[#allocation8 + $0xba0] sm:$0xff]
    %v1445 = vld [vmem:[#allocation8 + $0xba8] sm:$0xff]
    %v1446 = vld [vmem:[#allocation8 + $0xbb0] sm:$0xff]
    %v1447 = vld [vmem:[#allocation8 + $0xbb8] sm:$0xff]
    %v1448 = vld [vmem:[#allocation8 + $0xbc0] sm:$0xff]
    %v1449 = vld [vmem:[#allocation8 + $0xbc8] sm:$0xff]
    %v1450 = vld [vmem:[#allocation8 + $0xbd0] sm:$0xff]
    %v1451 = vld [vmem:[#allocation8 + $0xbd8] sm:$0xff]
    %v1452 = vld [vmem:[#allocation8 + $0xbe0] sm:$0xff]
    %v1453 = vld [vmem:[#allocation8 + $0xbe8] sm:$0xff]
    %v1454 = vld [vmem:[#allocation8 + $0xbf0] sm:$0xff]
    %v1455 = vld [vmem:[#allocation8 + $0xbf8] sm:$0xff]
    %v1840 = vunpack.c.l.b16 %v1072
    %v1841 = vunpack.c.h.b16 %v1072
    %v1842 = vunpack.c.l.b16 %v1073
    %v1843 = vunpack.c.h.b16 %v1073
    %v1844 = vunpack.c.l.b16 %v1074
    %v1845 = vunpack.c.h.b16 %v1074
    %v1846 = vunpack.c.l.b16 %v1075
    %v1847 = vunpack.c.h.b16 %v1075
    %v1848 = vunpack.c.l.b16 %v1076
    %v1849 = vunpack.c.h.b16 %v1076
    %v1850 = vunpack.c.l.b16 %v1077
    %v1851 = vunpack.c.h.b16 %v1077
    %v1852 = vunpack.c.l.b16 %v1078
    %v1853 = vunpack.c.h.b16 %v1078
    %v1854 = vunpack.c.l.b16 %v1079
    %v1855 = vunpack.c.h.b16 %v1079
    %v1856 = vunpack.c.l.b16 %v1080
    %v1857 = vunpack.c.h.b16 %v1080
    %v1858 = vunpack.c.l.b16 %v1081
    %v1859 = vunpack.c.h.b16 %v1081
    %v1860 = vunpack.c.l.b16 %v1082
    %v1861 = vunpack.c.h.b16 %v1082
    %v1862 = vunpack.c.l.b16 %v1083
    %v1863 = vunpack.c.h.b16 %v1083
    %v1864 = vunpack.c.l.b16 %v1084
    %v1865 = vunpack.c.h.b16 %v1084
    %v1866 = vunpack.c.l.b16 %v1085
    %v1867 = vunpack.c.h.b16 %v1085
    %v1868 = vunpack.c.l.b16 %v1086
    %v1869 = vunpack.c.h.b16 %v1086
    %v1870 = vunpack.c.l.b16 %v1087
    %v1871 = vunpack.c.h.b16 %v1087
    %v1872 = vunpack.c.l.b16 %v1088
    %v1873 = vunpack.c.h.b16 %v1088
    %v1874 = vunpack.c.l.b16 %v1089
    %v1875 = vunpack.c.h.b16 %v1089
    %v1876 = vunpack.c.l.b16 %v1090
    %v1877 = vunpack.c.h.b16 %v1090
    %v1878 = vunpack.c.l.b16 %v1091
    %v1879 = vunpack.c.h.b16 %v1091
    %v1880 = vunpack.c.l.b16 %v1092
    %v1881 = vunpack.c.h.b16 %v1092
    %v1882 = vunpack.c.l.b16 %v1093
    %v1883 = vunpack.c.h.b16 %v1093
    %v1884 = vunpack.c.l.b16 %v1094
    %v1885 = vunpack.c.h.b16 %v1094
    %v1886 = vunpack.c.l.b16 %v1095
    %v1887 = vunpack.c.h.b16 %v1095
    %v1888 = vunpack.c.l.b16 %v1096
    %v1889 = vunpack.c.h.b16 %v1096
    %v1890 = vunpack.c.l.b16 %v1097
    %v1891 = vunpack.c.h.b16 %v1097
    %v1892 = vunpack.c.l.b16 %v1098
    %v1893 = vunpack.c.h.b16 %v1098
    %v1894 = vunpack.c.l.b16 %v1099
    %v1895 = vunpack.c.h.b16 %v1099
    %v1896 = vunpack.c.l.b16 %v1100
    %v1897 = vunpack.c.h.b16 %v1100
    %v1898 = vunpack.c.l.b16 %v1101
    %v1899 = vunpack.c.h.b16 %v1101
    %v1900 = vunpack.c.l.b16 %v1102
    %v1901 = vunpack.c.h.b16 %v1102
    %v1902 = vunpack.c.l.b16 %v1103
    %v1903 = vunpack.c.h.b16 %v1103
    %v1904 = vunpack.c.l.b16 %v1104
    %v1905 = vunpack.c.h.b16 %v1104
    %v1906 = vunpack.c.l.b16 %v1105
    %v1907 = vunpack.c.h.b16 %v1105
    %v1908 = vunpack.c.l.b16 %v1106
    %v1909 = vunpack.c.h.b16 %v1106
    %v1910 = vunpack.c.l.b16 %v1107
    %v1911 = vunpack.c.h.b16 %v1107
    %v1912 = vunpack.c.l.b16 %v1108
    %v1913 = vunpack.c.h.b16 %v1108
    %v1914 = vunpack.c.l.b16 %v1109
    %v1915 = vunpack.c.h.b16 %v1109
    %v1916 = vunpack.c.l.b16 %v1110
    %v1917 = vunpack.c.h.b16 %v1110
    %v1918 = vunpack.c.l.b16 %v1111
    %v1919 = vunpack.c.h.b16 %v1111
    %v1920 = vunpack.c.l.b16 %v1112
    %v1921 = vunpack.c.h.b16 %v1112
    %v1922 = vunpack.c.l.b16 %v1113
    %v1923 = vunpack.c.h.b16 %v1113
    %v1924 = vunpack.c.l.b16 %v1114
    %v1925 = vunpack.c.h.b16 %v1114
    %v1926 = vunpack.c.l.b16 %v1115
    %v1927 = vunpack.c.h.b16 %v1115
    %v1928 = vunpack.c.l.b16 %v1116
    %v1929 = vunpack.c.h.b16 %v1116
    %v1930 = vunpack.c.l.b16 %v1117
    %v1931 = vunpack.c.h.b16 %v1117
    %v1932 = vunpack.c.l.b16 %v1118
    %v1933 = vunpack.c.h.b16 %v1118
    %v1934 = vunpack.c.l.b16 %v1119
    %v1935 = vunpack.c.h.b16 %v1119
    %v1936 = vunpack.c.l.b16 %v1120
    %v1937 = vunpack.c.h.b16 %v1120
    %v1938 = vunpack.c.l.b16 %v1121
    %v1939 = vunpack.c.h.b16 %v1121
    %v1940 = vunpack.c.l.b16 %v1122
    %v1941 = vunpack.c.h.b16 %v1122
    %v1942 = vunpack.c.l.b16 %v1123
    %v1943 = vunpack.c.h.b16 %v1123
    %v1944 = vunpack.c.l.b16 %v1124
    %v1945 = vunpack.c.h.b16 %v1124
    %v1946 = vunpack.c.l.b16 %v1125
    %v1947 = vunpack.c.h.b16 %v1125
    %v1948 = vunpack.c.l.b16 %v1126
    %v1949 = vunpack.c.h.b16 %v1126
    %v1950 = vunpack.c.l.b16 %v1127
    %v1951 = vunpack.c.h.b16 %v1127
    %v1952 = vunpack.c.l.b16 %v1128
    %v1953 = vunpack.c.h.b16 %v1128
    %v1954 = vunpack.c.l.b16 %v1129
    %v1955 = vunpack.c.h.b16 %v1129
    %v1956 = vunpack.c.l.b16 %v1130
    %v1957 = vunpack.c.h.b16 %v1130
    %v1958 = vunpack.c.l.b16 %v1131
    %v1959 = vunpack.c.h.b16 %v1131
    %v1960 = vunpack.c.l.b16 %v1132
    %v1961 = vunpack.c.h.b16 %v1132
    %v1962 = vunpack.c.l.b16 %v1133
    %v1963 = vunpack.c.h.b16 %v1133
    %v1964 = vunpack.c.l.b16 %v1134
    %v1965 = vunpack.c.h.b16 %v1134
    %v1966 = vunpack.c.l.b16 %v1135
    %v1967 = vunpack.c.h.b16 %v1135
    %v1968 = vunpack.c.l.b16 %v1136
    %v1969 = vunpack.c.h.b16 %v1136
    %v1970 = vunpack.c.l.b16 %v1137
    %v1971 = vunpack.c.h.b16 %v1137
    %v1972 = vunpack.c.l.b16 %v1138
    %v1973 = vunpack.c.h.b16 %v1138
    %v1974 = vunpack.c.l.b16 %v1139
    %v1975 = vunpack.c.h.b16 %v1139
    %v1976 = vunpack.c.l.b16 %v1140
    %v1977 = vunpack.c.h.b16 %v1140
    %v1978 = vunpack.c.l.b16 %v1141
    %v1979 = vunpack.c.h.b16 %v1141
    %v1980 = vunpack.c.l.b16 %v1142
    %v1981 = vunpack.c.h.b16 %v1142
    %v1982 = vunpack.c.l.b16 %v1143
    %v1983 = vunpack.c.h.b16 %v1143
    %v1984 = vunpack.c.l.b16 %v1144
    %v1985 = vunpack.c.h.b16 %v1144
    %v1986 = vunpack.c.l.b16 %v1145
    %v1987 = vunpack.c.h.b16 %v1145
    %v1988 = vunpack.c.l.b16 %v1146
    %v1989 = vunpack.c.h.b16 %v1146
    %v1990 = vunpack.c.l.b16 %v1147
    %v1991 = vunpack.c.h.b16 %v1147
    %v1992 = vunpack.c.l.b16 %v1148
    %v1993 = vunpack.c.h.b16 %v1148
    %v1994 = vunpack.c.l.b16 %v1149
    %v1995 = vunpack.c.h.b16 %v1149
    %v1996 = vunpack.c.l.b16 %v1150
    %v1997 = vunpack.c.h.b16 %v1150
    %v1998 = vunpack.c.l.b16 %v1151
    %v1999 = vunpack.c.h.b16 %v1151
    %v2000 = vunpack.c.l.b16 %v1152
    %v2001 = vunpack.c.h.b16 %v1152
    %v2002 = vunpack.c.l.b16 %v1153
    %v2003 = vunpack.c.h.b16 %v1153
    %v2004 = vunpack.c.l.b16 %v1154
    %v2005 = vunpack.c.h.b16 %v1154
    %v2006 = vunpack.c.l.b16 %v1155
    %v2007 = vunpack.c.h.b16 %v1155
    %v2008 = vunpack.c.l.b16 %v1156
    %v2009 = vunpack.c.h.b16 %v1156
    %v2010 = vunpack.c.l.b16 %v1157
    %v2011 = vunpack.c.h.b16 %v1157
    %v2012 = vunpack.c.l.b16 %v1158
    %v2013 = vunpack.c.h.b16 %v1158
    %v2014 = vunpack.c.l.b16 %v1159
    %v2015 = vunpack.c.h.b16 %v1159
    %v2016 = vunpack.c.l.b16 %v1160
    %v2017 = vunpack.c.h.b16 %v1160
    %v2018 = vunpack.c.l.b16 %v1161
    %v2019 = vunpack.c.h.b16 %v1161
    %v2020 = vunpack.c.l.b16 %v1162
    %v2021 = vunpack.c.h.b16 %v1162
    %v2022 = vunpack.c.l.b16 %v1163
    %v2023 = vunpack.c.h.b16 %v1163
    %v2024 = vunpack.c.l.b16 %v1164
    %v2025 = vunpack.c.h.b16 %v1164
    %v2026 = vunpack.c.l.b16 %v1165
    %v2027 = vunpack.c.h.b16 %v1165
    %v2028 = vunpack.c.l.b16 %v1166
    %v2029 = vunpack.c.h.b16 %v1166
    %v2030 = vunpack.c.l.b16 %v1167
    %v2031 = vunpack.c.h.b16 %v1167
    %v2032 = vunpack.c.l.b16 %v1168
    %v2033 = vunpack.c.h.b16 %v1168
    %v2034 = vunpack.c.l.b16 %v1169
    %v2035 = vunpack.c.h.b16 %v1169
    %v2036 = vunpack.c.l.b16 %v1170
    %v2037 = vunpack.c.h.b16 %v1170
    %v2038 = vunpack.c.l.b16 %v1171
    %v2039 = vunpack.c.h.b16 %v1171
    %v2040 = vunpack.c.l.b16 %v1172
    %v2041 = vunpack.c.h.b16 %v1172
    %v2042 = vunpack.c.l.b16 %v1173
    %v2043 = vunpack.c.h.b16 %v1173
    %v2044 = vunpack.c.l.b16 %v1174
    %v2045 = vunpack.c.h.b16 %v1174
    %v2046 = vunpack.c.l.b16 %v1175
    %v2047 = vunpack.c.h.b16 %v1175
    %v2048 = vunpack.c.l.b16 %v1176
    %v2049 = vunpack.c.h.b16 %v1176
    %v2050 = vunpack.c.l.b16 %v1177
    %v2051 = vunpack.c.h.b16 %v1177
    %v2052 = vunpack.c.l.b16 %v1178
    %v2053 = vunpack.c.h.b16 %v1178
    %v2054 = vunpack.c.l.b16 %v1179
    %v2055 = vunpack.c.h.b16 %v1179
    %v2056 = vunpack.c.l.b16 %v1180
    %v2057 = vunpack.c.h.b16 %v1180
    %v2058 = vunpack.c.l.b16 %v1181
    %v2059 = vunpack.c.h.b16 %v1181
    %v2060 = vunpack.c.l.b16 %v1182
    %v2061 = vunpack.c.h.b16 %v1182
    %v2062 = vunpack.c.l.b16 %v1183
    %v2063 = vunpack.c.h.b16 %v1183
    %v2064 = vunpack.c.l.b16 %v1184
    %v2065 = vunpack.c.h.b16 %v1184
    %v2066 = vunpack.c.l.b16 %v1185
    %v2067 = vunpack.c.h.b16 %v1185
    %v2068 = vunpack.c.l.b16 %v1186
    %v2069 = vunpack.c.h.b16 %v1186
    %v2070 = vunpack.c.l.b16 %v1187
    %v2071 = vunpack.c.h.b16 %v1187
    %v2072 = vunpack.c.l.b16 %v1188
    %v2073 = vunpack.c.h.b16 %v1188
    %v2074 = vunpack.c.l.b16 %v1189
    %v2075 = vunpack.c.h.b16 %v1189
    %v2076 = vunpack.c.l.b16 %v1190
    %v2077 = vunpack.c.h.b16 %v1190
    %v2078 = vunpack.c.l.b16 %v1191
    %v2079 = vunpack.c.h.b16 %v1191
    %v2080 = vunpack.c.l.b16 %v1192
    %v2081 = vunpack.c.h.b16 %v1192
    %v2082 = vunpack.c.l.b16 %v1193
    %v2083 = vunpack.c.h.b16 %v1193
    %v2084 = vunpack.c.l.b16 %v1194
    %v2085 = vunpack.c.h.b16 %v1194
    %v2086 = vunpack.c.l.b16 %v1195
    %v2087 = vunpack.c.h.b16 %v1195
    %v2088 = vunpack.c.l.b16 %v1196
    %v2089 = vunpack.c.h.b16 %v1196
    %v2090 = vunpack.c.l.b16 %v1197
    %v2091 = vunpack.c.h.b16 %v1197
    %v2092 = vunpack.c.l.b16 %v1198
    %v2093 = vunpack.c.h.b16 %v1198
    %v2094 = vunpack.c.l.b16 %v1199
    %v2095 = vunpack.c.h.b16 %v1199
    %v2096 = vunpack.c.l.b16 %v1200
    %v2097 = vunpack.c.h.b16 %v1200
    %v2098 = vunpack.c.l.b16 %v1201
    %v2099 = vunpack.c.h.b16 %v1201
    %v2100 = vunpack.c.l.b16 %v1202
    %v2101 = vunpack.c.h.b16 %v1202
    %v2102 = vunpack.c.l.b16 %v1203
    %v2103 = vunpack.c.h.b16 %v1203
    %v2104 = vunpack.c.l.b16 %v1204
    %v2105 = vunpack.c.h.b16 %v1204
    %v2106 = vunpack.c.l.b16 %v1205
    %v2107 = vunpack.c.h.b16 %v1205
    %v2108 = vunpack.c.l.b16 %v1206
    %v2109 = vunpack.c.h.b16 %v1206
    %v2110 = vunpack.c.l.b16 %v1207
    %v2111 = vunpack.c.h.b16 %v1207
    %v2112 = vunpack.c.l.b16 %v1208
    %v2113 = vunpack.c.h.b16 %v1208
    %v2114 = vunpack.c.l.b16 %v1209
    %v2115 = vunpack.c.h.b16 %v1209
    %v2116 = vunpack.c.l.b16 %v1210
    %v2117 = vunpack.c.h.b16 %v1210
    %v2118 = vunpack.c.l.b16 %v1211
    %v2119 = vunpack.c.h.b16 %v1211
    %v2120 = vunpack.c.l.b16 %v1212
    %v2121 = vunpack.c.h.b16 %v1212
    %v2122 = vunpack.c.l.b16 %v1213
    %v2123 = vunpack.c.h.b16 %v1213
    %v2124 = vunpack.c.l.b16 %v1214
    %v2125 = vunpack.c.h.b16 %v1214
    %v2126 = vunpack.c.l.b16 %v1215
    %v2127 = vunpack.c.h.b16 %v1215
    %v2128 = vunpack.c.l.b16 %v1216
    %v2129 = vunpack.c.h.b16 %v1216
    %v2130 = vunpack.c.l.b16 %v1217
    %v2131 = vunpack.c.h.b16 %v1217
    %v2132 = vunpack.c.l.b16 %v1218
    %v2133 = vunpack.c.h.b16 %v1218
    %v2134 = vunpack.c.l.b16 %v1219
    %v2135 = vunpack.c.h.b16 %v1219
    %v2136 = vunpack.c.l.b16 %v1220
    %v2137 = vunpack.c.h.b16 %v1220
    %v2138 = vunpack.c.l.b16 %v1221
    %v2139 = vunpack.c.h.b16 %v1221
    %v2140 = vunpack.c.l.b16 %v1222
    %v2141 = vunpack.c.h.b16 %v1222
    %v2142 = vunpack.c.l.b16 %v1223
    %v2143 = vunpack.c.h.b16 %v1223
    %v2144 = vunpack.c.l.b16 %v1224
    %v2145 = vunpack.c.h.b16 %v1224
    %v2146 = vunpack.c.l.b16 %v1225
    %v2147 = vunpack.c.h.b16 %v1225
    %v2148 = vunpack.c.l.b16 %v1226
    %v2149 = vunpack.c.h.b16 %v1226
    %v2150 = vunpack.c.l.b16 %v1227
    %v2151 = vunpack.c.h.b16 %v1227
    %v2152 = vunpack.c.l.b16 %v1228
    %v2153 = vunpack.c.h.b16 %v1228
    %v2154 = vunpack.c.l.b16 %v1229
    %v2155 = vunpack.c.h.b16 %v1229
    %v2156 = vunpack.c.l.b16 %v1230
    %v2157 = vunpack.c.h.b16 %v1230
    %v2158 = vunpack.c.l.b16 %v1231
    %v2159 = vunpack.c.h.b16 %v1231
    %v2160 = vunpack.c.l.b16 %v1232
    %v2161 = vunpack.c.h.b16 %v1232
    %v2162 = vunpack.c.l.b16 %v1233
    %v2163 = vunpack.c.h.b16 %v1233
    %v2164 = vunpack.c.l.b16 %v1234
    %v2165 = vunpack.c.h.b16 %v1234
    %v2166 = vunpack.c.l.b16 %v1235
    %v2167 = vunpack.c.h.b16 %v1235
    %v2168 = vunpack.c.l.b16 %v1236
    %v2169 = vunpack.c.h.b16 %v1236
    %v2170 = vunpack.c.l.b16 %v1237
    %v2171 = vunpack.c.h.b16 %v1237
    %v2172 = vunpack.c.l.b16 %v1238
    %v2173 = vunpack.c.h.b16 %v1238
    %v2174 = vunpack.c.l.b16 %v1239
    %v2175 = vunpack.c.h.b16 %v1239
    %v2176 = vunpack.c.l.b16 %v1240
    %v2177 = vunpack.c.h.b16 %v1240
    %v2178 = vunpack.c.l.b16 %v1241
    %v2179 = vunpack.c.h.b16 %v1241
    %v2180 = vunpack.c.l.b16 %v1242
    %v2181 = vunpack.c.h.b16 %v1242
    %v2182 = vunpack.c.l.b16 %v1243
    %v2183 = vunpack.c.h.b16 %v1243
    %v2184 = vunpack.c.l.b16 %v1244
    %v2185 = vunpack.c.h.b16 %v1244
    %v2186 = vunpack.c.l.b16 %v1245
    %v2187 = vunpack.c.h.b16 %v1245
    %v2188 = vunpack.c.l.b16 %v1246
    %v2189 = vunpack.c.h.b16 %v1246
    %v2190 = vunpack.c.l.b16 %v1247
    %v2191 = vunpack.c.h.b16 %v1247
    %v2192 = vunpack.c.l.b16 %v1248
    %v2193 = vunpack.c.h.b16 %v1248
    %v2194 = vunpack.c.l.b16 %v1249
    %v2195 = vunpack.c.h.b16 %v1249
    %v2196 = vunpack.c.l.b16 %v1250
    %v2197 = vunpack.c.h.b16 %v1250
    %v2198 = vunpack.c.l.b16 %v1251
    %v2199 = vunpack.c.h.b16 %v1251
    %v2200 = vunpack.c.l.b16 %v1252
    %v2201 = vunpack.c.h.b16 %v1252
    %v2202 = vunpack.c.l.b16 %v1253
    %v2203 = vunpack.c.h.b16 %v1253
    %v2204 = vunpack.c.l.b16 %v1254
    %v2205 = vunpack.c.h.b16 %v1254
    %v2206 = vunpack.c.l.b16 %v1255
    %v2207 = vunpack.c.h.b16 %v1255
    %v2208 = vunpack.c.l.b16 %v1256
    %v2209 = vunpack.c.h.b16 %v1256
    %v2210 = vunpack.c.l.b16 %v1257
    %v2211 = vunpack.c.h.b16 %v1257
    %v2212 = vunpack.c.l.b16 %v1258
    %v2213 = vunpack.c.h.b16 %v1258
    %v2214 = vunpack.c.l.b16 %v1259
    %v2215 = vunpack.c.h.b16 %v1259
    %v2216 = vunpack.c.l.b16 %v1260
    %v2217 = vunpack.c.h.b16 %v1260
    %v2218 = vunpack.c.l.b16 %v1261
    %v2219 = vunpack.c.h.b16 %v1261
    %v2220 = vunpack.c.l.b16 %v1262
    %v2221 = vunpack.c.h.b16 %v1262
    %v2222 = vunpack.c.l.b16 %v1263
    %v2223 = vunpack.c.h.b16 %v1263
    %v2224 = vunpack.c.l.b16 %v1264
    %v2225 = vunpack.c.h.b16 %v1264
    %v2226 = vunpack.c.l.b16 %v1265
    %v2227 = vunpack.c.h.b16 %v1265
    %v2228 = vunpack.c.l.b16 %v1266
    %v2229 = vunpack.c.h.b16 %v1266
    %v2230 = vunpack.c.l.b16 %v1267
    %v2231 = vunpack.c.h.b16 %v1267
    %v2232 = vunpack.c.l.b16 %v1268
    %v2233 = vunpack.c.h.b16 %v1268
    %v2234 = vunpack.c.l.b16 %v1269
    %v2235 = vunpack.c.h.b16 %v1269
    %v2236 = vunpack.c.l.b16 %v1270
    %v2237 = vunpack.c.h.b16 %v1270
    %v2238 = vunpack.c.l.b16 %v1271
    %v2239 = vunpack.c.h.b16 %v1271
    %v2240 = vunpack.c.l.b16 %v1272
    %v2241 = vunpack.c.h.b16 %v1272
    %v2242 = vunpack.c.l.b16 %v1273
    %v2243 = vunpack.c.h.b16 %v1273
    %v2244 = vunpack.c.l.b16 %v1274
    %v2245 = vunpack.c.h.b16 %v1274
    %v2246 = vunpack.c.l.b16 %v1275
    %v2247 = vunpack.c.h.b16 %v1275
    %v2248 = vunpack.c.l.b16 %v1276
    %v2249 = vunpack.c.h.b16 %v1276
    %v2250 = vunpack.c.l.b16 %v1277
    %v2251 = vunpack.c.h.b16 %v1277
    %v2252 = vunpack.c.l.b16 %v1278
    %v2253 = vunpack.c.h.b16 %v1278
    %v2254 = vunpack.c.l.b16 %v1279
    %v2255 = vunpack.c.h.b16 %v1279
    %v2256 = vunpack.c.l.b16 %v1280
    %v2257 = vunpack.c.h.b16 %v1280
    %v2258 = vunpack.c.l.b16 %v1281
    %v2259 = vunpack.c.h.b16 %v1281
    %v2260 = vunpack.c.l.b16 %v1282
    %v2261 = vunpack.c.h.b16 %v1282
    %v2262 = vunpack.c.l.b16 %v1283
    %v2263 = vunpack.c.h.b16 %v1283
    %v2264 = vunpack.c.l.b16 %v1284
    %v2265 = vunpack.c.h.b16 %v1284
    %v2266 = vunpack.c.l.b16 %v1285
    %v2267 = vunpack.c.h.b16 %v1285
    %v2268 = vunpack.c.l.b16 %v1286
    %v2269 = vunpack.c.h.b16 %v1286
    %v2270 = vunpack.c.l.b16 %v1287
    %v2271 = vunpack.c.h.b16 %v1287
    %v2272 = vunpack.c.l.b16 %v1288
    %v2273 = vunpack.c.h.b16 %v1288
    %v2274 = vunpack.c.l.b16 %v1289
    %v2275 = vunpack.c.h.b16 %v1289
    %v2276 = vunpack.c.l.b16 %v1290
    %v2277 = vunpack.c.h.b16 %v1290
    %v2278 = vunpack.c.l.b16 %v1291
    %v2279 = vunpack.c.h.b16 %v1291
    %v2280 = vunpack.c.l.b16 %v1292
    %v2281 = vunpack.c.h.b16 %v1292
    %v2282 = vunpack.c.l.b16 %v1293
    %v2283 = vunpack.c.h.b16 %v1293
    %v2284 = vunpack.c.l.b16 %v1294
    %v2285 = vunpack.c.h.b16 %v1294
    %v2286 = vunpack.c.l.b16 %v1295
    %v2287 = vunpack.c.h.b16 %v1295
    %v2288 = vunpack.c.l.b16 %v1296
    %v2289 = vunpack.c.h.b16 %v1296
    %v2290 = vunpack.c.l.b16 %v1297
    %v2291 = vunpack.c.h.b16 %v1297
    %v2292 = vunpack.c.l.b16 %v1298
    %v2293 = vunpack.c.h.b16 %v1298
    %v2294 = vunpack.c.l.b16 %v1299
    %v2295 = vunpack.c.h.b16 %v1299
    %v2296 = vunpack.c.l.b16 %v1300
    %v2297 = vunpack.c.h.b16 %v1300
    %v2298 = vunpack.c.l.b16 %v1301
    %v2299 = vunpack.c.h.b16 %v1301
    %v2300 = vunpack.c.l.b16 %v1302
    %v2301 = vunpack.c.h.b16 %v1302
    %v2302 = vunpack.c.l.b16 %v1303
    %v2303 = vunpack.c.h.b16 %v1303
    %v2304 = vunpack.c.l.b16 %v1304
    %v2305 = vunpack.c.h.b16 %v1304
    %v2306 = vunpack.c.l.b16 %v1305
    %v2307 = vunpack.c.h.b16 %v1305
    %v2308 = vunpack.c.l.b16 %v1306
    %v2309 = vunpack.c.h.b16 %v1306
    %v2310 = vunpack.c.l.b16 %v1307
    %v2311 = vunpack.c.h.b16 %v1307
    %v2312 = vunpack.c.l.b16 %v1308
    %v2313 = vunpack.c.h.b16 %v1308
    %v2314 = vunpack.c.l.b16 %v1309
    %v2315 = vunpack.c.h.b16 %v1309
    %v2316 = vunpack.c.l.b16 %v1310
    %v2317 = vunpack.c.h.b16 %v1310
    %v2318 = vunpack.c.l.b16 %v1311
    %v2319 = vunpack.c.h.b16 %v1311
    %v2320 = vunpack.c.l.b16 %v1312
    %v2321 = vunpack.c.h.b16 %v1312
    %v2322 = vunpack.c.l.b16 %v1313
    %v2323 = vunpack.c.h.b16 %v1313
    %v2324 = vunpack.c.l.b16 %v1314
    %v2325 = vunpack.c.h.b16 %v1314
    %v2326 = vunpack.c.l.b16 %v1315
    %v2327 = vunpack.c.h.b16 %v1315
    %v2328 = vunpack.c.l.b16 %v1316
    %v2329 = vunpack.c.h.b16 %v1316
    %v2330 = vunpack.c.l.b16 %v1317
    %v2331 = vunpack.c.h.b16 %v1317
    %v2332 = vunpack.c.l.b16 %v1318
    %v2333 = vunpack.c.h.b16 %v1318
    %v2334 = vunpack.c.l.b16 %v1319
    %v2335 = vunpack.c.h.b16 %v1319
    %v2336 = vunpack.c.l.b16 %v1320
    %v2337 = vunpack.c.h.b16 %v1320
    %v2338 = vunpack.c.l.b16 %v1321
    %v2339 = vunpack.c.h.b16 %v1321
    %v2340 = vunpack.c.l.b16 %v1322
    %v2341 = vunpack.c.h.b16 %v1322
    %v2342 = vunpack.c.l.b16 %v1323
    %v2343 = vunpack.c.h.b16 %v1323
    %v2344 = vunpack.c.l.b16 %v1324
    %v2345 = vunpack.c.h.b16 %v1324
    %v2346 = vunpack.c.l.b16 %v1325
    %v2347 = vunpack.c.h.b16 %v1325
    %v2348 = vunpack.c.l.b16 %v1326
    %v2349 = vunpack.c.h.b16 %v1326
    %v2350 = vunpack.c.l.b16 %v1327
    %v2351 = vunpack.c.h.b16 %v1327
    %v2352 = vunpack.c.l.b16 %v1328
    %v2353 = vunpack.c.h.b16 %v1328
    %v2354 = vunpack.c.l.b16 %v1329
    %v2355 = vunpack.c.h.b16 %v1329
    %v2356 = vunpack.c.l.b16 %v1330
    %v2357 = vunpack.c.h.b16 %v1330
    %v2358 = vunpack.c.l.b16 %v1331
    %v2359 = vunpack.c.h.b16 %v1331
    %v2360 = vunpack.c.l.b16 %v1332
    %v2361 = vunpack.c.h.b16 %v1332
    %v2362 = vunpack.c.l.b16 %v1333
    %v2363 = vunpack.c.h.b16 %v1333
    %v2364 = vunpack.c.l.b16 %v1334
    %v2365 = vunpack.c.h.b16 %v1334
    %v2366 = vunpack.c.l.b16 %v1335
    %v2367 = vunpack.c.h.b16 %v1335
    %v2368 = vunpack.c.l.b16 %v1336
    %v2369 = vunpack.c.h.b16 %v1336
    %v2370 = vunpack.c.l.b16 %v1337
    %v2371 = vunpack.c.h.b16 %v1337
    %v2372 = vunpack.c.l.b16 %v1338
    %v2373 = vunpack.c.h.b16 %v1338
    %v2374 = vunpack.c.l.b16 %v1339
    %v2375 = vunpack.c.h.b16 %v1339
    %v2376 = vunpack.c.l.b16 %v1340
    %v2377 = vunpack.c.h.b16 %v1340
    %v2378 = vunpack.c.l.b16 %v1341
    %v2379 = vunpack.c.h.b16 %v1341
    %v2380 = vunpack.c.l.b16 %v1342
    %v2381 = vunpack.c.h.b16 %v1342
    %v2382 = vunpack.c.l.b16 %v1343
    %v2383 = vunpack.c.h.b16 %v1343
    %v2384 = vunpack.c.l.b16 %v1344
    %v2385 = vunpack.c.h.b16 %v1344
    %v2386 = vunpack.c.l.b16 %v1345
    %v2387 = vunpack.c.h.b16 %v1345
    %v2388 = vunpack.c.l.b16 %v1346
    %v2389 = vunpack.c.h.b16 %v1346
    %v2390 = vunpack.c.l.b16 %v1347
    %v2391 = vunpack.c.h.b16 %v1347
    %v2392 = vunpack.c.l.b16 %v1348
    %v2393 = vunpack.c.h.b16 %v1348
    %v2394 = vunpack.c.l.b16 %v1349
    %v2395 = vunpack.c.h.b16 %v1349
    %v2396 = vunpack.c.l.b16 %v1350
    %v2397 = vunpack.c.h.b16 %v1350
    %v2398 = vunpack.c.l.b16 %v1351
    %v2399 = vunpack.c.h.b16 %v1351
    %v2400 = vunpack.c.l.b16 %v1352
    %v2401 = vunpack.c.h.b16 %v1352
    %v2402 = vunpack.c.l.b16 %v1353
    %v2403 = vunpack.c.h.b16 %v1353
    %v2404 = vunpack.c.l.b16 %v1354
    %v2405 = vunpack.c.h.b16 %v1354
    %v2406 = vunpack.c.l.b16 %v1355
    %v2407 = vunpack.c.h.b16 %v1355
    %v2408 = vunpack.c.l.b16 %v1356
    %v2409 = vunpack.c.h.b16 %v1356
    %v2410 = vunpack.c.l.b16 %v1357
    %v2411 = vunpack.c.h.b16 %v1357
    %v2412 = vunpack.c.l.b16 %v1358
    %v2413 = vunpack.c.h.b16 %v1358
    %v2414 = vunpack.c.l.b16 %v1359
    %v2415 = vunpack.c.h.b16 %v1359
    %v2416 = vunpack.c.l.b16 %v1360
    %v2417 = vunpack.c.h.b16 %v1360
    %v2418 = vunpack.c.l.b16 %v1361
    %v2419 = vunpack.c.h.b16 %v1361
    %v2420 = vunpack.c.l.b16 %v1362
    %v2421 = vunpack.c.h.b16 %v1362
    %v2422 = vunpack.c.l.b16 %v1363
    %v2423 = vunpack.c.h.b16 %v1363
    %v2424 = vunpack.c.l.b16 %v1364
    %v2425 = vunpack.c.h.b16 %v1364
    %v2426 = vunpack.c.l.b16 %v1365
    %v2427 = vunpack.c.h.b16 %v1365
    %v2428 = vunpack.c.l.b16 %v1366
    %v2429 = vunpack.c.h.b16 %v1366
    %v2430 = vunpack.c.l.b16 %v1367
    %v2431 = vunpack.c.h.b16 %v1367
    %v2432 = vunpack.c.l.b16 %v1368
    %v2433 = vunpack.c.h.b16 %v1368
    %v2434 = vunpack.c.l.b16 %v1369
    %v2435 = vunpack.c.h.b16 %v1369
    %v2436 = vunpack.c.l.b16 %v1370
    %v2437 = vunpack.c.h.b16 %v1370
    %v2438 = vunpack.c.l.b16 %v1371
    %v2439 = vunpack.c.h.b16 %v1371
    %v2440 = vunpack.c.l.b16 %v1372
    %v2441 = vunpack.c.h.b16 %v1372
    %v2442 = vunpack.c.l.b16 %v1373
    %v2443 = vunpack.c.h.b16 %v1373
    %v2444 = vunpack.c.l.b16 %v1374
    %v2445 = vunpack.c.h.b16 %v1374
    %v2446 = vunpack.c.l.b16 %v1375
    %v2447 = vunpack.c.h.b16 %v1375
    %v2448 = vunpack.c.l.b16 %v1376
    %v2449 = vunpack.c.h.b16 %v1376
    %v2450 = vunpack.c.l.b16 %v1377
    %v2451 = vunpack.c.h.b16 %v1377
    %v2452 = vunpack.c.l.b16 %v1378
    %v2453 = vunpack.c.h.b16 %v1378
    %v2454 = vunpack.c.l.b16 %v1379
    %v2455 = vunpack.c.h.b16 %v1379
    %v2456 = vunpack.c.l.b16 %v1380
    %v2457 = vunpack.c.h.b16 %v1380
    %v2458 = vunpack.c.l.b16 %v1381
    %v2459 = vunpack.c.h.b16 %v1381
    %v2460 = vunpack.c.l.b16 %v1382
    %v2461 = vunpack.c.h.b16 %v1382
    %v2462 = vunpack.c.l.b16 %v1383
    %v2463 = vunpack.c.h.b16 %v1383
    %v2464 = vunpack.c.l.b16 %v1384
    %v2465 = vunpack.c.h.b16 %v1384
    %v2466 = vunpack.c.l.b16 %v1385
    %v2467 = vunpack.c.h.b16 %v1385
    %v2468 = vunpack.c.l.b16 %v1386
    %v2469 = vunpack.c.h.b16 %v1386
    %v2470 = vunpack.c.l.b16 %v1387
    %v2471 = vunpack.c.h.b16 %v1387
    %v2472 = vunpack.c.l.b16 %v1388
    %v2473 = vunpack.c.h.b16 %v1388
    %v2474 = vunpack.c.l.b16 %v1389
    %v2475 = vunpack.c.h.b16 %v1389
    %v2476 = vunpack.c.l.b16 %v1390
    %v2477 = vunpack.c.h.b16 %v1390
    %v2478 = vunpack.c.l.b16 %v1391
    %v2479 = vunpack.c.h.b16 %v1391
    %v2480 = vunpack.c.l.b16 %v1392
    %v2481 = vunpack.c.h.b16 %v1392
    %v2482 = vunpack.c.l.b16 %v1393
    %v2483 = vunpack.c.h.b16 %v1393
    %v2484 = vunpack.c.l.b16 %v1394
    %v2485 = vunpack.c.h.b16 %v1394
    %v2486 = vunpack.c.l.b16 %v1395
    %v2487 = vunpack.c.h.b16 %v1395
    %v2488 = vunpack.c.l.b16 %v1396
    %v2489 = vunpack.c.h.b16 %v1396
    %v2490 = vunpack.c.l.b16 %v1397
    %v2491 = vunpack.c.h.b16 %v1397
    %v2492 = vunpack.c.l.b16 %v1398
    %v2493 = vunpack.c.h.b16 %v1398
    %v2494 = vunpack.c.l.b16 %v1399
    %v2495 = vunpack.c.h.b16 %v1399
    %v2496 = vunpack.c.l.b16 %v1400
    %v2497 = vunpack.c.h.b16 %v1400
    %v2498 = vunpack.c.l.b16 %v1401
    %v2499 = vunpack.c.h.b16 %v1401
    %v2500 = vunpack.c.l.b16 %v1402
    %v2501 = vunpack.c.h.b16 %v1402
    %v2502 = vunpack.c.l.b16 %v1403
    %v2503 = vunpack.c.h.b16 %v1403
    %v2504 = vunpack.c.l.b16 %v1404
    %v2505 = vunpack.c.h.b16 %v1404
    %v2506 = vunpack.c.l.b16 %v1405
    %v2507 = vunpack.c.h.b16 %v1405
    %v2508 = vunpack.c.l.b16 %v1406
    %v2509 = vunpack.c.h.b16 %v1406
    %v2510 = vunpack.c.l.b16 %v1407
    %v2511 = vunpack.c.h.b16 %v1407
    %v2512 = vunpack.c.l.b16 %v1408
    %v2513 = vunpack.c.h.b16 %v1408
    %v2514 = vunpack.c.l.b16 %v1409
    %v2515 = vunpack.c.h.b16 %v1409
    %v2516 = vunpack.c.l.b16 %v1410
    %v2517 = vunpack.c.h.b16 %v1410
    %v2518 = vunpack.c.l.b16 %v1411
    %v2519 = vunpack.c.h.b16 %v1411
    %v2520 = vunpack.c.l.b16 %v1412
    %v2521 = vunpack.c.h.b16 %v1412
    %v2522 = vunpack.c.l.b16 %v1413
    %v2523 = vunpack.c.h.b16 %v1413
    %v2524 = vunpack.c.l.b16 %v1414
    %v2525 = vunpack.c.h.b16 %v1414
    %v2526 = vunpack.c.l.b16 %v1415
    %v2527 = vunpack.c.h.b16 %v1415
    %v2528 = vunpack.c.l.b16 %v1416
    %v2529 = vunpack.c.h.b16 %v1416
    %v2530 = vunpack.c.l.b16 %v1417
    %v2531 = vunpack.c.h.b16 %v1417
    %v2532 = vunpack.c.l.b16 %v1418
    %v2533 = vunpack.c.h.b16 %v1418
    %v2534 = vunpack.c.l.b16 %v1419
    %v2535 = vunpack.c.h.b16 %v1419
    %v2536 = vunpack.c.l.b16 %v1420
    %v2537 = vunpack.c.h.b16 %v1420
    %v2538 = vunpack.c.l.b16 %v1421
    %v2539 = vunpack.c.h.b16 %v1421
    %v2540 = vunpack.c.l.b16 %v1422
    %v2541 = vunpack.c.h.b16 %v1422
    %v2542 = vunpack.c.l.b16 %v1423
    %v2543 = vunpack.c.h.b16 %v1423
    %v2544 = vunpack.c.l.b16 %v1424
    %v2545 = vunpack.c.h.b16 %v1424
    %v2546 = vunpack.c.l.b16 %v1425
    %v2547 = vunpack.c.h.b16 %v1425
    %v2548 = vunpack.c.l.b16 %v1426
    %v2549 = vunpack.c.h.b16 %v1426
    %v2550 = vunpack.c.l.b16 %v1427
    %v2551 = vunpack.c.h.b16 %v1427
    %v2552 = vunpack.c.l.b16 %v1428
    %v2553 = vunpack.c.h.b16 %v1428
    %v2554 = vunpack.c.l.b16 %v1429
    %v2555 = vunpack.c.h.b16 %v1429
    %v2556 = vunpack.c.l.b16 %v1430
    %v2557 = vunpack.c.h.b16 %v1430
    %v2558 = vunpack.c.l.b16 %v1431
    %v2559 = vunpack.c.h.b16 %v1431
    %v2560 = vunpack.c.l.b16 %v1432
    %v2561 = vunpack.c.h.b16 %v1432
    %v2562 = vunpack.c.l.b16 %v1433
    %v2563 = vunpack.c.h.b16 %v1433
    %v2564 = vunpack.c.l.b16 %v1434
    %v2565 = vunpack.c.h.b16 %v1434
    %v2566 = vunpack.c.l.b16 %v1435
    %v2567 = vunpack.c.h.b16 %v1435
    %v2568 = vunpack.c.l.b16 %v1436
    %v2569 = vunpack.c.h.b16 %v1436
    %v2570 = vunpack.c.l.b16 %v1437
    %v2571 = vunpack.c.h.b16 %v1437
    %v2572 = vunpack.c.l.b16 %v1438
    %v2573 = vunpack.c.h.b16 %v1438
    %v2574 = vunpack.c.l.b16 %v1439
    %v2575 = vunpack.c.h.b16 %v1439
    %v2576 = vunpack.c.l.b16 %v1440
    %v2577 = vunpack.c.h.b16 %v1440
    %v2578 = vunpack.c.l.b16 %v1441
    %v2579 = vunpack.c.h.b16 %v1441
    %v2580 = vunpack.c.l.b16 %v1442
    %v2581 = vunpack.c.h.b16 %v1442
    %v2582 = vunpack.c.l.b16 %v1443
    %v2583 = vunpack.c.h.b16 %v1443
    %v2584 = vunpack.c.l.b16 %v1444
    %v2585 = vunpack.c.h.b16 %v1444
    %v2586 = vunpack.c.l.b16 %v1445
    %v2587 = vunpack.c.h.b16 %v1445
    %v2588 = vunpack.c.l.b16 %v1446
    %v2589 = vunpack.c.h.b16 %v1446
    %v2590 = vunpack.c.l.b16 %v1447
    %v2591 = vunpack.c.h.b16 %v1447
    %v2592 = vunpack.c.l.b16 %v1448
    %v2593 = vunpack.c.h.b16 %v1448
    %v2594 = vunpack.c.l.b16 %v1449
    %v2595 = vunpack.c.h.b16 %v1449
    %v2596 = vunpack.c.l.b16 %v1450
    %v2597 = vunpack.c.h.b16 %v1450
    %v2598 = vunpack.c.l.b16 %v1451
    %v2599 = vunpack.c.h.b16 %v1451
    %v2600 = vunpack.c.l.b16 %v1452
    %v2601 = vunpack.c.h.b16 %v1452
    %v2602 = vunpack.c.l.b16 %v1453
    %v2603 = vunpack.c.h.b16 %v1453
    %v2604 = vunpack.c.l.b16 %v1454
    %v2605 = vunpack.c.h.b16 %v1454
    %v2606 = vunpack.c.l.b16 %v1455
    %v2607 = vunpack.c.h.b16 %v1455
    %v2608 = vpack.c.b16 %v1844, %v1840
    %v2609 = vpack.c.b16 %v1845, %v1841
    %v2610 = vpack.c.b16 %v1846, %v1842
    %v2611 = vpack.c.b16 %v1847, %v1843
    %v2612 = vpack.c.b16 %v1852, %v1848
    %v2613 = vpack.c.b16 %v1853, %v1849
    %v2614 = vpack.c.b16 %v1854, %v1850
    %v2615 = vpack.c.b16 %v1855, %v1851
    %v2616 = vpack.c.b16 %v1860, %v1856
    %v2617 = vpack.c.b16 %v1861, %v1857
    %v2618 = vpack.c.b16 %v1862, %v1858
    %v2619 = vpack.c.b16 %v1863, %v1859
    %v2620 = vpack.c.b16 %v1868, %v1864
    %v2621 = vpack.c.b16 %v1869, %v1865
    %v2622 = vpack.c.b16 %v1870, %v1866
    %v2623 = vpack.c.b16 %v1871, %v1867
    %v2624 = vpack.c.b16 %v1876, %v1872
    %v2625 = vpack.c.b16 %v1877, %v1873
    %v2626 = vpack.c.b16 %v1878, %v1874
    %v2627 = vpack.c.b16 %v1879, %v1875
    %v2628 = vpack.c.b16 %v1884, %v1880
    %v2629 = vpack.c.b16 %v1885, %v1881
    %v2630 = vpack.c.b16 %v1886, %v1882
    %v2631 = vpack.c.b16 %v1887, %v1883
    %v2632 = vpack.c.b16 %v1892, %v1888
    %v2633 = vpack.c.b16 %v1893, %v1889
    %v2634 = vpack.c.b16 %v1894, %v1890
    %v2635 = vpack.c.b16 %v1895, %v1891
    %v2636 = vpack.c.b16 %v1900, %v1896
    %v2637 = vpack.c.b16 %v1901, %v1897
    %v2638 = vpack.c.b16 %v1902, %v1898
    %v2639 = vpack.c.b16 %v1903, %v1899
    %v2640 = vpack.c.b16 %v1908, %v1904
    %v2641 = vpack.c.b16 %v1909, %v1905
    %v2642 = vpack.c.b16 %v1910, %v1906
    %v2643 = vpack.c.b16 %v1911, %v1907
    %v2644 = vpack.c.b16 %v1916, %v1912
    %v2645 = vpack.c.b16 %v1917, %v1913
    %v2646 = vpack.c.b16 %v1918, %v1914
    %v2647 = vpack.c.b16 %v1919, %v1915
    %v2648 = vpack.c.b16 %v1924, %v1920
    %v2649 = vpack.c.b16 %v1925, %v1921
    %v2650 = vpack.c.b16 %v1926, %v1922
    %v2651 = vpack.c.b16 %v1927, %v1923
    %v2652 = vpack.c.b16 %v1932, %v1928
    %v2653 = vpack.c.b16 %v1933, %v1929
    %v2654 = vpack.c.b16 %v1934, %v1930
    %v2655 = vpack.c.b16 %v1935, %v1931
    %v2656 = vpack.c.b16 %v1940, %v1936
    %v2657 = vpack.c.b16 %v1941, %v1937
    %v2658 = vpack.c.b16 %v1942, %v1938
    %v2659 = vpack.c.b16 %v1943, %v1939
    %v2660 = vpack.c.b16 %v1948, %v1944
    %v2661 = vpack.c.b16 %v1949, %v1945
    %v2662 = vpack.c.b16 %v1950, %v1946
    %v2663 = vpack.c.b16 %v1951, %v1947
    %v2664 = vpack.c.b16 %v1956, %v1952
    %v2665 = vpack.c.b16 %v1957, %v1953
    %v2666 = vpack.c.b16 %v1958, %v1954
    %v2667 = vpack.c.b16 %v1959, %v1955
    %v2668 = vpack.c.b16 %v1964, %v1960
    %v2669 = vpack.c.b16 %v1965, %v1961
    %v2670 = vpack.c.b16 %v1966, %v1962
    %v2671 = vpack.c.b16 %v1967, %v1963
    %v2672 = vpack.c.b16 %v1972, %v1968
    %v2673 = vpack.c.b16 %v1973, %v1969
    %v2674 = vpack.c.b16 %v1974, %v1970
    %v2675 = vpack.c.b16 %v1975, %v1971
    %v2676 = vpack.c.b16 %v1980, %v1976
    %v2677 = vpack.c.b16 %v1981, %v1977
    %v2678 = vpack.c.b16 %v1982, %v1978
    %v2679 = vpack.c.b16 %v1983, %v1979
    %v2680 = vpack.c.b16 %v1988, %v1984
    %v2681 = vpack.c.b16 %v1989, %v1985
    %v2682 = vpack.c.b16 %v1990, %v1986
    %v2683 = vpack.c.b16 %v1991, %v1987
    %v2684 = vpack.c.b16 %v1996, %v1992
    %v2685 = vpack.c.b16 %v1997, %v1993
    %v2686 = vpack.c.b16 %v1998, %v1994
    %v2687 = vpack.c.b16 %v1999, %v1995
    %v2688 = vpack.c.b16 %v2004, %v2000
    %v2689 = vpack.c.b16 %v2005, %v2001
    %v2690 = vpack.c.b16 %v2006, %v2002
    %v2691 = vpack.c.b16 %v2007, %v2003
    %v2692 = vpack.c.b16 %v2012, %v2008
    %v2693 = vpack.c.b16 %v2013, %v2009
    %v2694 = vpack.c.b16 %v2014, %v2010
    %v2695 = vpack.c.b16 %v2015, %v2011
    %v2696 = vpack.c.b16 %v2020, %v2016
    %v2697 = vpack.c.b16 %v2021, %v2017
    %v2698 = vpack.c.b16 %v2022, %v2018
    %v2699 = vpack.c.b16 %v2023, %v2019
    %v2700 = vpack.c.b16 %v2028, %v2024
    %v2701 = vpack.c.b16 %v2029, %v2025
    %v2702 = vpack.c.b16 %v2030, %v2026
    %v2703 = vpack.c.b16 %v2031, %v2027
    %v2704 = vpack.c.b16 %v2036, %v2032
    %v2705 = vpack.c.b16 %v2037, %v2033
    %v2706 = vpack.c.b16 %v2038, %v2034
    %v2707 = vpack.c.b16 %v2039, %v2035
    %v2708 = vpack.c.b16 %v2044, %v2040
    %v2709 = vpack.c.b16 %v2045, %v2041
    %v2710 = vpack.c.b16 %v2046, %v2042
    %v2711 = vpack.c.b16 %v2047, %v2043
    %v2712 = vpack.c.b16 %v2052, %v2048
    %v2713 = vpack.c.b16 %v2053, %v2049
    %v2714 = vpack.c.b16 %v2054, %v2050
    %v2715 = vpack.c.b16 %v2055, %v2051
    %v2716 = vpack.c.b16 %v2060, %v2056
    %v2717 = vpack.c.b16 %v2061, %v2057
    %v2718 = vpack.c.b16 %v2062, %v2058
    %v2719 = vpack.c.b16 %v2063, %v2059
    %v2720 = vpack.c.b16 %v2068, %v2064
    %v2721 = vpack.c.b16 %v2069, %v2065
    %v2722 = vpack.c.b16 %v2070, %v2066
    %v2723 = vpack.c.b16 %v2071, %v2067
    %v2724 = vpack.c.b16 %v2076, %v2072
    %v2725 = vpack.c.b16 %v2077, %v2073
    %v2726 = vpack.c.b16 %v2078, %v2074
    %v2727 = vpack.c.b16 %v2079, %v2075
    %v2728 = vpack.c.b16 %v2084, %v2080
    %v2729 = vpack.c.b16 %v2085, %v2081
    %v2730 = vpack.c.b16 %v2086, %v2082
    %v2731 = vpack.c.b16 %v2087, %v2083
    %v2732 = vpack.c.b16 %v2092, %v2088
    %v2733 = vpack.c.b16 %v2093, %v2089
    %v2734 = vpack.c.b16 %v2094, %v2090
    %v2735 = vpack.c.b16 %v2095, %v2091
    %v2736 = vpack.c.b16 %v2100, %v2096
    %v2737 = vpack.c.b16 %v2101, %v2097
    %v2738 = vpack.c.b16 %v2102, %v2098
    %v2739 = vpack.c.b16 %v2103, %v2099
    %v2740 = vpack.c.b16 %v2108, %v2104
    %v2741 = vpack.c.b16 %v2109, %v2105
    %v2742 = vpack.c.b16 %v2110, %v2106
    %v2743 = vpack.c.b16 %v2111, %v2107
    %v2744 = vpack.c.b16 %v2116, %v2112
    %v2745 = vpack.c.b16 %v2117, %v2113
    %v2746 = vpack.c.b16 %v2118, %v2114
    %v2747 = vpack.c.b16 %v2119, %v2115
    %v2748 = vpack.c.b16 %v2124, %v2120
    %v2749 = vpack.c.b16 %v2125, %v2121
    %v2750 = vpack.c.b16 %v2126, %v2122
    %v2751 = vpack.c.b16 %v2127, %v2123
    %v2752 = vpack.c.b16 %v2132, %v2128
    %v2753 = vpack.c.b16 %v2133, %v2129
    %v2754 = vpack.c.b16 %v2134, %v2130
    %v2755 = vpack.c.b16 %v2135, %v2131
    %v2756 = vpack.c.b16 %v2140, %v2136
    %v2757 = vpack.c.b16 %v2141, %v2137
    %v2758 = vpack.c.b16 %v2142, %v2138
    %v2759 = vpack.c.b16 %v2143, %v2139
    %v2760 = vpack.c.b16 %v2148, %v2144
    %v2761 = vpack.c.b16 %v2149, %v2145
    %v2762 = vpack.c.b16 %v2150, %v2146
    %v2763 = vpack.c.b16 %v2151, %v2147
    %v2764 = vpack.c.b16 %v2156, %v2152
    %v2765 = vpack.c.b16 %v2157, %v2153
    %v2766 = vpack.c.b16 %v2158, %v2154
    %v2767 = vpack.c.b16 %v2159, %v2155
    %v2768 = vpack.c.b16 %v2164, %v2160
    %v2769 = vpack.c.b16 %v2165, %v2161
    %v2770 = vpack.c.b16 %v2166, %v2162
    %v2771 = vpack.c.b16 %v2167, %v2163
    %v2772 = vpack.c.b16 %v2172, %v2168
    %v2773 = vpack.c.b16 %v2173, %v2169
    %v2774 = vpack.c.b16 %v2174, %v2170
    %v2775 = vpack.c.b16 %v2175, %v2171
    %v2776 = vpack.c.b16 %v2180, %v2176
    %v2777 = vpack.c.b16 %v2181, %v2177
    %v2778 = vpack.c.b16 %v2182, %v2178
    %v2779 = vpack.c.b16 %v2183, %v2179
    %v2780 = vpack.c.b16 %v2188, %v2184
    %v2781 = vpack.c.b16 %v2189, %v2185
    %v2782 = vpack.c.b16 %v2190, %v2186
    %v2783 = vpack.c.b16 %v2191, %v2187
    %v2784 = vpack.c.b16 %v2196, %v2192
    %v2785 = vpack.c.b16 %v2197, %v2193
    %v2786 = vpack.c.b16 %v2198, %v2194
    %v2787 = vpack.c.b16 %v2199, %v2195
    %v2788 = vpack.c.b16 %v2204, %v2200
    %v2789 = vpack.c.b16 %v2205, %v2201
    %v2790 = vpack.c.b16 %v2206, %v2202
    %v2791 = vpack.c.b16 %v2207, %v2203
    %v2792 = vpack.c.b16 %v2212, %v2208
    %v2793 = vpack.c.b16 %v2213, %v2209
    %v2794 = vpack.c.b16 %v2214, %v2210
    %v2795 = vpack.c.b16 %v2215, %v2211
    %v2796 = vpack.c.b16 %v2220, %v2216
    %v2797 = vpack.c.b16 %v2221, %v2217
    %v2798 = vpack.c.b16 %v2222, %v2218
    %v2799 = vpack.c.b16 %v2223, %v2219
    %v2800 = vpack.c.b16 %v2228, %v2224
    %v2801 = vpack.c.b16 %v2229, %v2225
    %v2802 = vpack.c.b16 %v2230, %v2226
    %v2803 = vpack.c.b16 %v2231, %v2227
    %v2804 = vpack.c.b16 %v2236, %v2232
    %v2805 = vpack.c.b16 %v2237, %v2233
    %v2806 = vpack.c.b16 %v2238, %v2234
    %v2807 = vpack.c.b16 %v2239, %v2235
    %v2808 = vpack.c.b16 %v2244, %v2240
    %v2809 = vpack.c.b16 %v2245, %v2241
    %v2810 = vpack.c.b16 %v2246, %v2242
    %v2811 = vpack.c.b16 %v2247, %v2243
    %v2812 = vpack.c.b16 %v2252, %v2248
    %v2813 = vpack.c.b16 %v2253, %v2249
    %v2814 = vpack.c.b16 %v2254, %v2250
    %v2815 = vpack.c.b16 %v2255, %v2251
    %v2816 = vpack.c.b16 %v2260, %v2256
    %v2817 = vpack.c.b16 %v2261, %v2257
    %v2818 = vpack.c.b16 %v2262, %v2258
    %v2819 = vpack.c.b16 %v2263, %v2259
    %v2820 = vpack.c.b16 %v2268, %v2264
    %v2821 = vpack.c.b16 %v2269, %v2265
    %v2822 = vpack.c.b16 %v2270, %v2266
    %v2823 = vpack.c.b16 %v2271, %v2267
    %v2824 = vpack.c.b16 %v2276, %v2272
    %v2825 = vpack.c.b16 %v2277, %v2273
    %v2826 = vpack.c.b16 %v2278, %v2274
    %v2827 = vpack.c.b16 %v2279, %v2275
    %v2828 = vpack.c.b16 %v2284, %v2280
    %v2829 = vpack.c.b16 %v2285, %v2281
    %v2830 = vpack.c.b16 %v2286, %v2282
    %v2831 = vpack.c.b16 %v2287, %v2283
    %v2832 = vpack.c.b16 %v2292, %v2288
    %v2833 = vpack.c.b16 %v2293, %v2289
    %v2834 = vpack.c.b16 %v2294, %v2290
    %v2835 = vpack.c.b16 %v2295, %v2291
    %v2836 = vpack.c.b16 %v2300, %v2296
    %v2837 = vpack.c.b16 %v2301, %v2297
    %v2838 = vpack.c.b16 %v2302, %v2298
    %v2839 = vpack.c.b16 %v2303, %v2299
    %v2840 = vpack.c.b16 %v2308, %v2304
    %v2841 = vpack.c.b16 %v2309, %v2305
    %v2842 = vpack.c.b16 %v2310, %v2306
    %v2843 = vpack.c.b16 %v2311, %v2307
    %v2844 = vpack.c.b16 %v2316, %v2312
    %v2845 = vpack.c.b16 %v2317, %v2313
    %v2846 = vpack.c.b16 %v2318, %v2314
    %v2847 = vpack.c.b16 %v2319, %v2315
    %v2848 = vpack.c.b16 %v2324, %v2320
    %v2849 = vpack.c.b16 %v2325, %v2321
    %v2850 = vpack.c.b16 %v2326, %v2322
    %v2851 = vpack.c.b16 %v2327, %v2323
    %v2852 = vpack.c.b16 %v2332, %v2328
    %v2853 = vpack.c.b16 %v2333, %v2329
    %v2854 = vpack.c.b16 %v2334, %v2330
    %v2855 = vpack.c.b16 %v2335, %v2331
    %v2856 = vpack.c.b16 %v2340, %v2336
    %v2857 = vpack.c.b16 %v2341, %v2337
    %v2858 = vpack.c.b16 %v2342, %v2338
    %v2859 = vpack.c.b16 %v2343, %v2339
    %v2860 = vpack.c.b16 %v2348, %v2344
    %v2861 = vpack.c.b16 %v2349, %v2345
    %v2862 = vpack.c.b16 %v2350, %v2346
    %v2863 = vpack.c.b16 %v2351, %v2347
    %v2864 = vpack.c.b16 %v2356, %v2352
    %v2865 = vpack.c.b16 %v2357, %v2353
    %v2866 = vpack.c.b16 %v2358, %v2354
    %v2867 = vpack.c.b16 %v2359, %v2355
    %v2868 = vpack.c.b16 %v2364, %v2360
    %v2869 = vpack.c.b16 %v2365, %v2361
    %v2870 = vpack.c.b16 %v2366, %v2362
    %v2871 = vpack.c.b16 %v2367, %v2363
    %v2872 = vpack.c.b16 %v2372, %v2368
    %v2873 = vpack.c.b16 %v2373, %v2369
    %v2874 = vpack.c.b16 %v2374, %v2370
    %v2875 = vpack.c.b16 %v2375, %v2371
    %v2876 = vpack.c.b16 %v2380, %v2376
    %v2877 = vpack.c.b16 %v2381, %v2377
    %v2878 = vpack.c.b16 %v2382, %v2378
    %v2879 = vpack.c.b16 %v2383, %v2379
    %v2880 = vpack.c.b16 %v2388, %v2384
    %v2881 = vpack.c.b16 %v2389, %v2385
    %v2882 = vpack.c.b16 %v2390, %v2386
    %v2883 = vpack.c.b16 %v2391, %v2387
    %v2884 = vpack.c.b16 %v2396, %v2392
    %v2885 = vpack.c.b16 %v2397, %v2393
    %v2886 = vpack.c.b16 %v2398, %v2394
    %v2887 = vpack.c.b16 %v2399, %v2395
    %v2888 = vpack.c.b16 %v2404, %v2400
    %v2889 = vpack.c.b16 %v2405, %v2401
    %v2890 = vpack.c.b16 %v2406, %v2402
    %v2891 = vpack.c.b16 %v2407, %v2403
    %v2892 = vpack.c.b16 %v2412, %v2408
    %v2893 = vpack.c.b16 %v2413, %v2409
    %v2894 = vpack.c.b16 %v2414, %v2410
    %v2895 = vpack.c.b16 %v2415, %v2411
    %v2896 = vpack.c.b16 %v2420, %v2416
    %v2897 = vpack.c.b16 %v2421, %v2417
    %v2898 = vpack.c.b16 %v2422, %v2418
    %v2899 = vpack.c.b16 %v2423, %v2419
    %v2900 = vpack.c.b16 %v2428, %v2424
    %v2901 = vpack.c.b16 %v2429, %v2425
    %v2902 = vpack.c.b16 %v2430, %v2426
    %v2903 = vpack.c.b16 %v2431, %v2427
    %v2904 = vpack.c.b16 %v2436, %v2432
    %v2905 = vpack.c.b16 %v2437, %v2433
    %v2906 = vpack.c.b16 %v2438, %v2434
    %v2907 = vpack.c.b16 %v2439, %v2435
    %v2908 = vpack.c.b16 %v2444, %v2440
    %v2909 = vpack.c.b16 %v2445, %v2441
    %v2910 = vpack.c.b16 %v2446, %v2442
    %v2911 = vpack.c.b16 %v2447, %v2443
    %v2912 = vpack.c.b16 %v2452, %v2448
    %v2913 = vpack.c.b16 %v2453, %v2449
    %v2914 = vpack.c.b16 %v2454, %v2450
    %v2915 = vpack.c.b16 %v2455, %v2451
    %v2916 = vpack.c.b16 %v2460, %v2456
    %v2917 = vpack.c.b16 %v2461, %v2457
    %v2918 = vpack.c.b16 %v2462, %v2458
    %v2919 = vpack.c.b16 %v2463, %v2459
    %v2920 = vpack.c.b16 %v2468, %v2464
    %v2921 = vpack.c.b16 %v2469, %v2465
    %v2922 = vpack.c.b16 %v2470, %v2466
    %v2923 = vpack.c.b16 %v2471, %v2467
    %v2924 = vpack.c.b16 %v2476, %v2472
    %v2925 = vpack.c.b16 %v2477, %v2473
    %v2926 = vpack.c.b16 %v2478, %v2474
    %v2927 = vpack.c.b16 %v2479, %v2475
    %v2928 = vpack.c.b16 %v2484, %v2480
    %v2929 = vpack.c.b16 %v2485, %v2481
    %v2930 = vpack.c.b16 %v2486, %v2482
    %v2931 = vpack.c.b16 %v2487, %v2483
    %v2932 = vpack.c.b16 %v2492, %v2488
    %v2933 = vpack.c.b16 %v2493, %v2489
    %v2934 = vpack.c.b16 %v2494, %v2490
    %v2935 = vpack.c.b16 %v2495, %v2491
    %v2936 = vpack.c.b16 %v2500, %v2496
    %v2937 = vpack.c.b16 %v2501, %v2497
    %v2938 = vpack.c.b16 %v2502, %v2498
    %v2939 = vpack.c.b16 %v2503, %v2499
    %v2940 = vpack.c.b16 %v2508, %v2504
    %v2941 = vpack.c.b16 %v2509, %v2505
    %v2942 = vpack.c.b16 %v2510, %v2506
    %v2943 = vpack.c.b16 %v2511, %v2507
    %v2944 = vpack.c.b16 %v2516, %v2512
    %v2945 = vpack.c.b16 %v2517, %v2513
    %v2946 = vpack.c.b16 %v2518, %v2514
    %v2947 = vpack.c.b16 %v2519, %v2515
    %v2948 = vpack.c.b16 %v2524, %v2520
    %v2949 = vpack.c.b16 %v2525, %v2521
    %v2950 = vpack.c.b16 %v2526, %v2522
    %v2951 = vpack.c.b16 %v2527, %v2523
    %v2952 = vpack.c.b16 %v2532, %v2528
    %v2953 = vpack.c.b16 %v2533, %v2529
    %v2954 = vpack.c.b16 %v2534, %v2530
    %v2955 = vpack.c.b16 %v2535, %v2531
    %v2956 = vpack.c.b16 %v2540, %v2536
    %v2957 = vpack.c.b16 %v2541, %v2537
    %v2958 = vpack.c.b16 %v2542, %v2538
    %v2959 = vpack.c.b16 %v2543, %v2539
    %v2960 = vpack.c.b16 %v2548, %v2544
    %v2961 = vpack.c.b16 %v2549, %v2545
    %v2962 = vpack.c.b16 %v2550, %v2546
    %v2963 = vpack.c.b16 %v2551, %v2547
    %v2964 = vpack.c.b16 %v2556, %v2552
    %v2965 = vpack.c.b16 %v2557, %v2553
    %v2966 = vpack.c.b16 %v2558, %v2554
    %v2967 = vpack.c.b16 %v2559, %v2555
    %v2968 = vpack.c.b16 %v2564, %v2560
    %v2969 = vpack.c.b16 %v2565, %v2561
    %v2970 = vpack.c.b16 %v2566, %v2562
    %v2971 = vpack.c.b16 %v2567, %v2563
    %v2972 = vpack.c.b16 %v2572, %v2568
    %v2973 = vpack.c.b16 %v2573, %v2569
    %v2974 = vpack.c.b16 %v2574, %v2570
    %v2975 = vpack.c.b16 %v2575, %v2571
    %v2976 = vpack.c.b16 %v2580, %v2576
    %v2977 = vpack.c.b16 %v2581, %v2577
    %v2978 = vpack.c.b16 %v2582, %v2578
    %v2979 = vpack.c.b16 %v2583, %v2579
    %v2980 = vpack.c.b16 %v2588, %v2584
    %v2981 = vpack.c.b16 %v2589, %v2585
    %v2982 = vpack.c.b16 %v2590, %v2586
    %v2983 = vpack.c.b16 %v2591, %v2587
    %v2984 = vpack.c.b16 %v2596, %v2592
    %v2985 = vpack.c.b16 %v2597, %v2593
    %v2986 = vpack.c.b16 %v2598, %v2594
    %v2987 = vpack.c.b16 %v2599, %v2595
    %v2988 = vpack.c.b16 %v2604, %v2600
    %v2989 = vpack.c.b16 %v2605, %v2601
    %v2990 = vpack.c.b16 %v2606, %v2602
    %v2991 = vpack.c.b16 %v2607, %v2603
    %3376 = vmatprep.subr.bf16.mxu0 %v2609
    %3377 = vmatpush1.bf16.msra.mxu0 %v2608
    %3378 = vmatprep.subr.bf16.mxu0 %v2613
    %3379 = vmatpush1.bf16.msra.mxu0 %v2612
    %3380 = vmatprep.subr.bf16.mxu0 %v2617
    %3381 = vmatpush1.bf16.msra.mxu0 %v2616
    %3382 = vmatprep.subr.bf16.mxu0 %v2621
    %3383 = vmatpush1.bf16.msra.mxu0 %v2620
    %3384 = vmatprep.subr.bf16.mxu0 %v2625
    %3385 = vmatpush1.bf16.msra.mxu0 %v2624
    %3386 = vmatprep.subr.bf16.mxu0 %v2629
    %3387 = vmatpush1.bf16.msra.mxu0 %v2628
    %3388 = vmatprep.subr.bf16.mxu0 %v2633
    %3389 = vmatpush1.bf16.msra.mxu0 %v2632
    %3390 = vmatprep.subr.bf16.mxu0 %v2637
    %3391 = vmatpush1.bf16.msra.mxu0 %v2636
    %3392 = vmatprep.subr.bf16.mxu0 %v2641
    %3393 = vmatpush1.bf16.msra.mxu0 %v2640
    %3394 = vmatprep.subr.bf16.mxu0 %v2645
    %3395 = vmatpush1.bf16.msra.mxu0 %v2644
    %3396 = vmatprep.subr.bf16.mxu0 %v2649
    %3397 = vmatpush1.bf16.msra.mxu0 %v2648
    %3398 = vmatprep.subr.bf16.mxu0 %v2653
    %3399 = vmatpush1.bf16.msra.mxu0 %v2652
    %3400 = vmatprep.subr.bf16.mxu0 %v2657
    %3401 = vmatpush1.bf16.msra.mxu0 %v2656
    %3402 = vmatprep.subr.bf16.mxu0 %v2661
    %3403 = vmatpush1.bf16.msra.mxu0 %v2660
    %3404 = vmatprep.subr.bf16.mxu0 %v2665
    %3405 = vmatpush1.bf16.msra.mxu0 %v2664
    %3406 = vmatprep.subr.bf16.mxu0 %v2669
    %3407 = vmatpush1.bf16.msra.mxu0 %v2668
    %3408 = vmatprep.mubr.bf16.mxu0 %v1025
    %3409 = vmatmul.mubr.bf16.gmra.mrb[0].mxu0 %v1024
    %v3410 = vpop.f32.mrb[0].mxu0
    %v3411 = vadd.f32 0.0, %v3410
    %v3412 = vpop.f32.mrb[0].mxu0
    %v3413 = vadd.f32 0.0, %v3412
    %v3414 = vpop.f32.mrb[0].mxu0
    %v3415 = vadd.f32 0.0, %v3414
    %v3416 = vpop.f32.mrb[0].mxu0
    %v3417 = vadd.f32 0.0, %v3416
    %3418 = vmatprep.mubr.bf16.mxu0 %v1037
    %3419 = vmatmul.mubr.bf16.gmra.mrb[0].mxu0 %v1036
    %v3420 = vpop.f32.mrb[0].mxu0
    %v3421 = vadd.f32 0.0, %v3420
    %v3422 = vpop.f32.mrb[0].mxu0
    %v3423 = vadd.f32 0.0, %v3422
    %v3424 = vpop.f32.mrb[0].mxu0
    %v3425 = vadd.f32 0.0, %v3424
    %v3426 = vpop.f32.mrb[0].mxu0
    %v3427 = vadd.f32 0.0, %v3426
    %3428 = vmatprep.mubr.bf16.mxu0 %v1049
    %3429 = vmatmul.mubr.bf16.gmra.mrb[0].mxu0 %v1048
    %v3430 = vpop.f32.mrb[0].mxu0
    %v3431 = vadd.f32 0.0, %v3430
    %v3432 = vpop.f32.mrb[0].mxu0
    %v3433 = vadd.f32 0.0, %v3432
    %v3434 = vpop.f32.mrb[0].mxu0
    %v3435 = vadd.f32 0.0, %v3434
    %v3436 = vpop.f32.mrb[0].mxu0
    %v3437 = vadd.f32 0.0, %v3436
    %3438 = vmatprep.mubr.bf16.mxu0 %v1061
    %3439 = vmatmul.mubr.bf16.gmra.mrb[0].mxu0 %v1060
    %v3440 = vpop.f32.mrb[0].mxu0
    %v3441 = vadd.f32 0.0, %v3440
    %v3442 = vpop.f32.mrb[0].mxu0
    %v3443 = vadd.f32 0.0, %v3442
    %v3444 = vpop.f32.mrb[0].mxu0
    %v3445 = vadd.f32 0.0, %v3444
    %v3446 = vpop.f32.mrb[0].mxu0
    %v3447 = vadd.f32 0.0, %v3446
    %3448 = vdwg.mxu0
    %3449 = vmatprep.subr.bf16.mxu0 %v2673
    %3450 = vmatpush1.bf16.msra.mxu0 %v2672
    %3451 = vmatprep.subr.bf16.mxu0 %v2677
    %3452 = vmatpush1.bf16.msra.mxu0 %v2676
    %3453 = vmatprep.subr.bf16.mxu0 %v2681
    %3454 = vmatpush1.bf16.msra.mxu0 %v2680
    %3455 = vmatprep.subr.bf16.mxu0 %v2685
    %3456 = vmatpush1.bf16.msra.mxu0 %v2684
    %3457 = vmatprep.subr.bf16.mxu0 %v2689
    %3458 = vmatpush1.bf16.msra.mxu0 %v2688
    %3459 = vmatprep.subr.bf16.mxu0 %v2693
    %3460 = vmatpush1.bf16.msra.mxu0 %v2692
    %3461 = vmatprep.subr.bf16.mxu0 %v2697
    %3462 = vmatpush1.bf16.msra.mxu0 %v2696
    %3463 = vmatprep.subr.bf16.mxu0 %v2701
    %3464 = vmatpush1.bf16.msra.mxu0 %v2700
    %3465 = vmatprep.subr.bf16.mxu0 %v2705
    %3466 = vmatpush1.bf16.msra.mxu0 %v2704
    %3467 = vmatprep.subr.bf16.mxu0 %v2709
    %3468 = vmatpush1.bf16.msra.mxu0 %v2708
    %3469 = vmatprep.subr.bf16.mxu0 %v2713
    %3470 = vmatpush1.bf16.msra.mxu0 %v2712
    %3471 = vmatprep.subr.bf16.mxu0 %v2717
    %3472 = vmatpush1.bf16.msra.mxu0 %v2716
    %3473 = vmatprep.subr.bf16.mxu0 %v2721
    %3474 = vmatpush1.bf16.msra.mxu0 %v2720
    %3475 = vmatprep.subr.bf16.mxu0 %v2725
    %3476 = vmatpush1.bf16.msra.mxu0 %v2724
    %3477 = vmatprep.subr.bf16.mxu0 %v2729
    %3478 = vmatpush1.bf16.msra.mxu0 %v2728
    %3479 = vmatprep.subr.bf16.mxu0 %v2733
    %3480 = vmatpush1.bf16.msra.mxu0 %v2732
    %3481 = vmatprep.mubr.bf16.mxu0 %v1027
    %3482 = vmatmul.mubr.bf16.gmra.mrb[0].mxu0 %v1026
    %v3483 = vpop.f32.mrb[0].mxu0
    %v3484 = vadd.f32 %v3411, %v3483
    %v3485 = vpop.f32.mrb[0].mxu0
    %v3486 = vadd.f32 %v3413, %v3485
    %v3487 = vpop.f32.mrb[0].mxu0
    %v3488 = vadd.f32 %v3415, %v3487
    %v3489 = vpop.f32.mrb[0].mxu0
    %v3490 = vadd.f32 %v3417, %v3489
    %3491 = vmatprep.mubr.bf16.mxu0 %v1039
    %3492 = vmatmul.mubr.bf16.gmra.mrb[0].mxu0 %v1038
    %v3493 = vpop.f32.mrb[0].mxu0
    %v3494 = vadd.f32 %v3421, %v3493
    %v3495 = vpop.f32.mrb[0].mxu0
    %v3496 = vadd.f32 %v3423, %v3495
    %v3497 = vpop.f32.mrb[0].mxu0
    %v3498 = vadd.f32 %v3425, %v3497
    %v3499 = vpop.f32.mrb[0].mxu0
    %v3500 = vadd.f32 %v3427, %v3499
    %3501 = vmatprep.mubr.bf16.mxu0 %v1051
    %3502 = vmatmul.mubr.bf16.gmra.mrb[0].mxu0 %v1050
    %v3503 = vpop.f32.mrb[0].mxu0
    %v3504 = vadd.f32 %v3431, %v3503
    %v3505 = vpop.f32.mrb[0].mxu0
    %v3506 = vadd.f32 %v3433, %v3505
    %v3507 = vpop.f32.mrb[0].mxu0
    %v3508 = vadd.f32 %v3435, %v3507
    %v3509 = vpop.f32.mrb[0].mxu0
    %v3510 = vadd.f32 %v3437, %v3509
    %3511 = vmatprep.mubr.bf16.mxu0 %v1063
    %3512 = vmatmul.mubr.bf16.gmra.mrb[0].mxu0 %v1062
    %v3513 = vpop.f32.mrb[0].mxu0
    %v3514 = vadd.f32 %v3441, %v3513
    %v3515 = vpop.f32.mrb[0].mxu0
    %v3516 = vadd.f32 %v3443, %v3515
    %v3517 = vpop.f32.mrb[0].mxu0
    %v3518 = vadd.f32 %v3445, %v3517
    %v3519 = vpop.f32.mrb[0].mxu0
    %v3520 = vadd.f32 %v3447, %v3519
    %3521 = vdwg.mxu0
    %3522 = vmatprep.subr.bf16.mxu0 %v2737
    %3523 = vmatpush1.bf16.msra.mxu0 %v2736
    %3524 = vmatprep.subr.bf16.mxu0 %v2741
    %3525 = vmatpush1.bf16.msra.mxu0 %v2740
    %3526 = vmatprep.subr.bf16.mxu0 %v2745
    %3527 = vmatpush1.bf16.msra.mxu0 %v2744
    %3528 = vmatprep.subr.bf16.mxu0 %v2749
    %3529 = vmatpush1.bf16.msra.mxu0 %v2748
    %3530 = vmatprep.subr.bf16.mxu0 %v2753
    %3531 = vmatpush1.bf16.msra.mxu0 %v2752
    %3532 = vmatprep.subr.bf16.mxu0 %v2757
    %3533 = vmatpush1.bf16.msra.mxu0 %v2756
    %3534 = vmatprep.subr.bf16.mxu0 %v2761
    %3535 = vmatpush1.bf16.msra.mxu0 %v2760
    %3536 = vmatprep.subr.bf16.mxu0 %v2765
    %3537 = vmatpush1.bf16.msra.mxu0 %v2764
    %3538 = vmatprep.subr.bf16.mxu0 %v2769
    %3539 = vmatpush1.bf16.msra.mxu0 %v2768
    %3540 = vmatprep.subr.bf16.mxu0 %v2773
    %3541 = vmatpush1.bf16.msra.mxu0 %v2772
    %3542 = vmatprep.subr.bf16.mxu0 %v2777
    %3543 = vmatpush1.bf16.msra.mxu0 %v2776
    %3544 = vmatprep.subr.bf16.mxu0 %v2781
    %3545 = vmatpush1.bf16.msra.mxu0 %v2780
    %3546 = vmatprep.subr.bf16.mxu0 %v2785
    %3547 = vmatpush1.bf16.msra.mxu0 %v2784
    %3548 = vmatprep.subr.bf16.mxu0 %v2789
    %3549 = vmatpush1.bf16.msra.mxu0 %v2788
    %3550 = vmatprep.subr.bf16.mxu0 %v2793
    %3551 = vmatpush1.bf16.msra.mxu0 %v2792
    %3552 = vmatprep.subr.bf16.mxu0 %v2797
    %3553 = vmatpush1.bf16.msra.mxu0 %v2796
    %3554 = vmatprep.mubr.bf16.mxu0 %v1029
    %3555 = vmatmul.mubr.bf16.gmra.mrb[0].mxu0 %v1028
    %v3556 = vpop.f32.mrb[0].mxu0
    %v3557 = vadd.f32 %v3484, %v3556
    %v3558 = vpop.f32.mrb[0].mxu0
    %v3559 = vadd.f32 %v3486, %v3558
    %v3560 = vpop.f32.mrb[0].mxu0
    %v3561 = vadd.f32 %v3488, %v3560
    %v3562 = vpop.f32.mrb[0].mxu0
    %v3563 = vadd.f32 %v3490, %v3562
    %3564 = vmatprep.mubr.bf16.mxu0 %v1041
    %3565 = vmatmul.mubr.bf16.gmra.mrb[0].mxu0 %v1040
    %v3566 = vpop.f32.mrb[0].mxu0
    %v3567 = vadd.f32 %v3494, %v3566
    %v3568 = vpop.f32.mrb[0].mxu0
    %v3569 = vadd.f32 %v3496, %v3568
    %v3570 = vpop.f32.mrb[0].mxu0
    %v3571 = vadd.f32 %v3498, %v3570
    %v3572 = vpop.f32.mrb[0].mxu0
    %v3573 = vadd.f32 %v3500, %v3572
    %3574 = vmatprep.mubr.bf16.mxu0 %v1053
    %3575 = vmatmul.mubr.bf16.gmra.mrb[0].mxu0 %v1052
    %v3576 = vpop.f32.mrb[0].mxu0
    %v3577 = vadd.f32 %v3504, %v3576
    %v3578 = vpop.f32.mrb[0].mxu0
    %v3579 = vadd.f32 %v3506, %v3578
    %v3580 = vpop.f32.mrb[0].mxu0
    %v3581 = vadd.f32 %v3508, %v3580
    %v3582 = vpop.f32.mrb[0].mxu0
    %v3583 = vadd.f32 %v3510, %v3582
    %3584 = vmatprep.mubr.bf16.mxu0 %v1065
    %3585 = vmatmul.mubr.bf16.gmra.mrb[0].mxu0 %v1064
    %v3586 = vpop.f32.mrb[0].mxu0
    %v3587 = vadd.f32 %v3514, %v3586
    %v3588 = vpop.f32.mrb[0].mxu0
    %v3589 = vadd.f32 %v3516, %v3588
    %v3590 = vpop.f32.mrb[0].mxu0
    %v3591 = vadd.f32 %v3518, %v3590
    %v3592 = vpop.f32.mrb[0].mxu0
    %v3593 = vadd.f32 %v3520, %v3592
    %3594 = vdwg.mxu0
    %3595 = vmatprep.subr.bf16.mxu0 %v2801
    %3596 = vmatpush1.bf16.msra.mxu0 %v2800
    %3597 = vmatprep.subr.bf16.mxu0 %v2805
    %3598 = vmatpush1.bf16.msra.mxu0 %v2804
    %3599 = vmatprep.subr.bf16.mxu0 %v2809
    %3600 = vmatpush1.bf16.msra.mxu0 %v2808
    %3601 = vmatprep.subr.bf16.mxu0 %v2813
    %3602 = vmatpush1.bf16.msra.mxu0 %v2812
    %3603 = vmatprep.subr.bf16.mxu0 %v2817
    %3604 = vmatpush1.bf16.msra.mxu0 %v2816
    %3605 = vmatprep.subr.bf16.mxu0 %v2821
    %3606 = vmatpush1.bf16.msra.mxu0 %v2820
    %3607 = vmatprep.subr.bf16.mxu0 %v2825
    %3608 = vmatpush1.bf16.msra.mxu0 %v2824
    %3609 = vmatprep.subr.bf16.mxu0 %v2829
    %3610 = vmatpush1.bf16.msra.mxu0 %v2828
    %3611 = vmatprep.subr.bf16.mxu0 %v2833
    %3612 = vmatpush1.bf16.msra.mxu0 %v2832
    %3613 = vmatprep.subr.bf16.mxu0 %v2837
    %3614 = vmatpush1.bf16.msra.mxu0 %v2836
    %3615 = vmatprep.subr.bf16.mxu0 %v2841
    %3616 = vmatpush1.bf16.msra.mxu0 %v2840
    %3617 = vmatprep.subr.bf16.mxu0 %v2845
    %3618 = vmatpush1.bf16.msra.mxu0 %v2844
    %3619 = vmatprep.subr.bf16.mxu0 %v2849
    %3620 = vmatpush1.bf16.msra.mxu0 %v2848
    %3621 = vmatprep.subr.bf16.mxu0 %v2853
    %3622 = vmatpush1.bf16.msra.mxu0 %v2852
    %3623 = vmatprep.subr.bf16.mxu0 %v2857
    %3624 = vmatpush1.bf16.msra.mxu0 %v2856
    %3625 = vmatprep.subr.bf16.mxu0 %v2861
    %3626 = vmatpush1.bf16.msra.mxu0 %v2860
    %3627 = vmatprep.mubr.bf16.mxu0 %v1031
    %3628 = vmatmul.mubr.bf16.gmra.mrb[0].mxu0 %v1030
    %v3629 = vpop.f32.mrb[0].mxu0
    %v3630 = vadd.f32 %v3557, %v3629
    %v3631 = vpop.f32.mrb[0].mxu0
    %v3632 = vadd.f32 %v3559, %v3631
    %v3633 = vpop.f32.mrb[0].mxu0
    %v3634 = vadd.f32 %v3561, %v3633
    %v3635 = vpop.f32.mrb[0].mxu0
    %v3636 = vadd.f32 %v3563, %v3635
    %3637 = vmatprep.mubr.bf16.mxu0 %v1043
    %3638 = vmatmul.mubr.bf16.gmra.mrb[0].mxu0 %v1042
    %v3639 = vpop.f32.mrb[0].mxu0
    %v3640 = vadd.f32 %v3567, %v3639
    %v3641 = vpop.f32.mrb[0].mxu0
    %v3642 = vadd.f32 %v3569, %v3641
    %v3643 = vpop.f32.mrb[0].mxu0
    %v3644 = vadd.f32 %v3571, %v3643
    %v3645 = vpop.f32.mrb[0].mxu0
    %v3646 = vadd.f32 %v3573, %v3645
    %3647 = vmatprep.mubr.bf16.mxu0 %v1055
    %3648 = vmatmul.mubr.bf16.gmra.mrb[0].mxu0 %v1054
    %v3649 = vpop.f32.mrb[0].mxu0
    %v3650 = vadd.f32 %v3577, %v3649
    %v3651 = vpop.f32.mrb[0].mxu0
    %v3652 = vadd.f32 %v3579, %v3651
    %v3653 = vpop.f32.mrb[0].mxu0
    %v3654 = vadd.f32 %v3581, %v3653
    %v3655 = vpop.f32.mrb[0].mxu0
    %v3656 = vadd.f32 %v3583, %v3655
    %3657 = vmatprep.mubr.bf16.mxu0 %v1067
    %3658 = vmatmul.mubr.bf16.gmra.mrb[0].mxu0 %v1066
    %v3659 = vpop.f32.mrb[0].mxu0
    %v3660 = vadd.f32 %v3587, %v3659
    %v3661 = vpop.f32.mrb[0].mxu0
    %v3662 = vadd.f32 %v3589, %v3661
    %v3663 = vpop.f32.mrb[0].mxu0
    %v3664 = vadd.f32 %v3591, %v3663
    %v3665 = vpop.f32.mrb[0].mxu0
    %v3666 = vadd.f32 %v3593, %v3665
    %3667 = vdwg.mxu0
    %3668 = vmatprep.subr.bf16.mxu0 %v2865
    %3669 = vmatpush1.bf16.msra.mxu0 %v2864
    %3670 = vmatprep.subr.bf16.mxu0 %v2869
    %3671 = vmatpush1.bf16.msra.mxu0 %v2868
    %3672 = vmatprep.subr.bf16.mxu0 %v2873
    %3673 = vmatpush1.bf16.msra.mxu0 %v2872
    %3674 = vmatprep.subr.bf16.mxu0 %v2877
    %3675 = vmatpush1.bf16.msra.mxu0 %v2876
    %3676 = vmatprep.subr.bf16.mxu0 %v2881
    %3677 = vmatpush1.bf16.msra.mxu0 %v2880
    %3678 = vmatprep.subr.bf16.mxu0 %v2885
    %3679 = vmatpush1.bf16.msra.mxu0 %v2884
    %3680 = vmatprep.subr.bf16.mxu0 %v2889
    %3681 = vmatpush1.bf16.msra.mxu0 %v2888
    %3682 = vmatprep.subr.bf16.mxu0 %v2893
    %3683 = vmatpush1.bf16.msra.mxu0 %v2892
    %3684 = vmatprep.subr.bf16.mxu0 %v2897
    %3685 = vmatpush1.bf16.msra.mxu0 %v2896
    %3686 = vmatprep.subr.bf16.mxu0 %v2901
    %3687 = vmatpush1.bf16.msra.mxu0 %v2900
    %3688 = vmatprep.subr.bf16.mxu0 %v2905
    %3689 = vmatpush1.bf16.msra.mxu0 %v2904
    %3690 = vmatprep.subr.bf16.mxu0 %v2909
    %3691 = vmatpush1.bf16.msra.mxu0 %v2908
    %3692 = vmatprep.subr.bf16.mxu0 %v2913
    %3693 = vmatpush1.bf16.msra.mxu0 %v2912
    %3694 = vmatprep.subr.bf16.mxu0 %v2917
    %3695 = vmatpush1.bf16.msra.mxu0 %v2916
    %3696 = vmatprep.subr.bf16.mxu0 %v2921
    %3697 = vmatpush1.bf16.msra.mxu0 %v2920
    %3698 = vmatprep.subr.bf16.mxu0 %v2925
    %3699 = vmatpush1.bf16.msra.mxu0 %v2924
    %3700 = vmatprep.mubr.bf16.mxu0 %v1033
    %3701 = vmatmul.mubr.bf16.gmra.mrb[0].mxu0 %v1032
    %v3702 = vpop.f32.mrb[0].mxu0
    %v3703 = vadd.f32 %v3630, %v3702
    %v3704 = vpop.f32.mrb[0].mxu0
    %v3705 = vadd.f32 %v3632, %v3704
    %v3706 = vpop.f32.mrb[0].mxu0
    %v3707 = vadd.f32 %v3634, %v3706
    %v3708 = vpop.f32.mrb[0].mxu0
    %v3709 = vadd.f32 %v3636, %v3708
    %3710 = vmatprep.mubr.bf16.mxu0 %v1045
    %3711 = vmatmul.mubr.bf16.gmra.mrb[0].mxu0 %v1044
    %v3712 = vpop.f32.mrb[0].mxu0
    %v3713 = vadd.f32 %v3640, %v3712
    %v3714 = vpop.f32.mrb[0].mxu0
    %v3715 = vadd.f32 %v3642, %v3714
    %v3716 = vpop.f32.mrb[0].mxu0
    %v3717 = vadd.f32 %v3644, %v3716
    %v3718 = vpop.f32.mrb[0].mxu0
    %v3719 = vadd.f32 %v3646, %v3718
    %3720 = vmatprep.mubr.bf16.mxu0 %v1057
    %3721 = vmatmul.mubr.bf16.gmra.mrb[0].mxu0 %v1056
    %v3722 = vpop.f32.mrb[0].mxu0
    %v3723 = vadd.f32 %v3650, %v3722
    %v3724 = vpop.f32.mrb[0].mxu0
    %v3725 = vadd.f32 %v3652, %v3724
    %v3726 = vpop.f32.mrb[0].mxu0
    %v3727 = vadd.f32 %v3654, %v3726
    %v3728 = vpop.f32.mrb[0].mxu0
    %v3729 = vadd.f32 %v3656, %v3728
    %3730 = vmatprep.mubr.bf16.mxu0 %v1069
    %3731 = vmatmul.mubr.bf16.gmra.mrb[0].mxu0 %v1068
    %v3732 = vpop.f32.mrb[0].mxu0
    %v3733 = vadd.f32 %v3660, %v3732
    %v3734 = vpop.f32.mrb[0].mxu0
    %v3735 = vadd.f32 %v3662, %v3734
    %v3736 = vpop.f32.mrb[0].mxu0
    %v3737 = vadd.f32 %v3664, %v3736
    %v3738 = vpop.f32.mrb[0].mxu0
    %v3739 = vadd.f32 %v3666, %v3738
    %3740 = vdwg.mxu0
    %3741 = vmatprep.subr.bf16.mxu0 %v2929
    %3742 = vmatpush1.bf16.msra.mxu0 %v2928
    %3743 = vmatprep.subr.bf16.mxu0 %v2933
    %3744 = vmatpush1.bf16.msra.mxu0 %v2932
    %3745 = vmatprep.subr.bf16.mxu0 %v2937
    %3746 = vmatpush1.bf16.msra.mxu0 %v2936
    %3747 = vmatprep.subr.bf16.mxu0 %v2941
    %3748 = vmatpush1.bf16.msra.mxu0 %v2940
    %3749 = vmatprep.subr.bf16.mxu0 %v2945
    %3750 = vmatpush1.bf16.msra.mxu0 %v2944
    %3751 = vmatprep.subr.bf16.mxu0 %v2949
    %3752 = vmatpush1.bf16.msra.mxu0 %v2948
    %3753 = vmatprep.subr.bf16.mxu0 %v2953
    %3754 = vmatpush1.bf16.msra.mxu0 %v2952
    %3755 = vmatprep.subr.bf16.mxu0 %v2957
    %3756 = vmatpush1.bf16.msra.mxu0 %v2956
    %3757 = vmatprep.subr.bf16.mxu0 %v2961
    %3758 = vmatpush1.bf16.msra.mxu0 %v2960
    %3759 = vmatprep.subr.bf16.mxu0 %v2965
    %3760 = vmatpush1.bf16.msra.mxu0 %v2964
    %3761 = vmatprep.subr.bf16.mxu0 %v2969
    %3762 = vmatpush1.bf16.msra.mxu0 %v2968
    %3763 = vmatprep.subr.bf16.mxu0 %v2973
    %3764 = vmatpush1.bf16.msra.mxu0 %v2972
    %3765 = vmatprep.subr.bf16.mxu0 %v2977
    %3766 = vmatpush1.bf16.msra.mxu0 %v2976
    %3767 = vmatprep.subr.bf16.mxu0 %v2981
    %3768 = vmatpush1.bf16.msra.mxu0 %v2980
    %3769 = vmatprep.subr.bf16.mxu0 %v2985
    %3770 = vmatpush1.bf16.msra.mxu0 %v2984
    %3771 = vmatprep.subr.bf16.mxu0 %v2989
    %3772 = vmatpush1.bf16.msra.mxu0 %v2988
    %3773 = vmatprep.mubr.bf16.mxu0 %v1035
    %3774 = vmatmul.mubr.bf16.gmra.mrb[0].mxu0 %v1034
    %v3775 = vpop.f32.mrb[0].mxu0
    %v3776 = vadd.f32 %v3703, %v3775
    %v3777 = vpop.f32.mrb[0].mxu0
    %v3778 = vadd.f32 %v3705, %v3777
    %v3779 = vpop.f32.mrb[0].mxu0
    %v3780 = vadd.f32 %v3707, %v3779
    %v3781 = vpop.f32.mrb[0].mxu0
    %v3782 = vadd.f32 %v3709, %v3781
    %3783 = vmatprep.mubr.bf16.mxu0 %v1047
    %3784 = vmatmul.mubr.bf16.gmra.mrb[0].mxu0 %v1046
    %v3785 = vpop.f32.mrb[0].mxu0
    %v3786 = vadd.f32 %v3713, %v3785
    %v3787 = vpop.f32.mrb[0].mxu0
    %v3788 = vadd.f32 %v3715, %v3787
    %v3789 = vpop.f32.mrb[0].mxu0
    %v3790 = vadd.f32 %v3717, %v3789
    %v3791 = vpop.f32.mrb[0].mxu0
    %v3792 = vadd.f32 %v3719, %v3791
    %3793 = vmatprep.mubr.bf16.mxu0 %v1059
    %3794 = vmatmul.mubr.bf16.gmra.mrb[0].mxu0 %v1058
    %v3795 = vpop.f32.mrb[0].mxu0
    %v3796 = vadd.f32 %v3723, %v3795
    %v3797 = vpop.f32.mrb[0].mxu0
    %v3798 = vadd.f32 %v3725, %v3797
    %v3799 = vpop.f32.mrb[0].mxu0
    %v3800 = vadd.f32 %v3727, %v3799
    %v3801 = vpop.f32.mrb[0].mxu0
    %v3802 = vadd.f32 %v3729, %v3801
    %3803 = vmatprep.mubr.bf16.mxu0 %v1071
    %3804 = vmatmul.mubr.bf16.gmra.mrb[0].mxu0 %v1070
    %v3805 = vpop.f32.mrb[0].mxu0
    %v3806 = vadd.f32 %v3733, %v3805
    %v3807 = vpop.f32.mrb[0].mxu0
    %v3808 = vadd.f32 %v3735, %v3807
    %v3809 = vpop.f32.mrb[0].mxu0
    %v3810 = vadd.f32 %v3737, %v3809
    %v3811 = vpop.f32.mrb[0].mxu0
    %v3812 = vadd.f32 %v3739, %v3811
    %3813 = vdwg.mxu0
    %3814 = vmatprep.subr.bf16.mxu0 %v2611
    %3815 = vmatpush1.bf16.msra.mxu0 %v2610
    %3816 = vmatprep.subr.bf16.mxu0 %v2615
    %3817 = vmatpush1.bf16.msra.mxu0 %v2614
    %3818 = vmatprep.subr.bf16.mxu0 %v2619
    %3819 = vmatpush1.bf16.msra.mxu0 %v2618
    %3820 = vmatprep.subr.bf16.mxu0 %v2623
    %3821 = vmatpush1.bf16.msra.mxu0 %v2622
    %3822 = vmatprep.subr.bf16.mxu0 %v2627
    %3823 = vmatpush1.bf16.msra.mxu0 %v2626
    %3824 = vmatprep.subr.bf16.mxu0 %v2631
    %3825 = vmatpush1.bf16.msra.mxu0 %v2630
    %3826 = vmatprep.subr.bf16.mxu0 %v2635
    %3827 = vmatpush1.bf16.msra.mxu0 %v2634
    %3828 = vmatprep.subr.bf16.mxu0 %v2639
    %3829 = vmatpush1.bf16.msra.mxu0 %v2638
    %3830 = vmatprep.subr.bf16.mxu0 %v2643
    %3831 = vmatpush1.bf16.msra.mxu0 %v2642
    %3832 = vmatprep.subr.bf16.mxu0 %v2647
    %3833 = vmatpush1.bf16.msra.mxu0 %v2646
    %3834 = vmatprep.subr.bf16.mxu0 %v2651
    %3835 = vmatpush1.bf16.msra.mxu0 %v2650
    %3836 = vmatprep.subr.bf16.mxu0 %v2655
    %3837 = vmatpush1.bf16.msra.mxu0 %v2654
    %3838 = vmatprep.subr.bf16.mxu0 %v2659
    %3839 = vmatpush1.bf16.msra.mxu0 %v2658
    %3840 = vmatprep.subr.bf16.mxu0 %v2663
    %3841 = vmatpush1.bf16.msra.mxu0 %v2662
    %3842 = vmatprep.subr.bf16.mxu0 %v2667
    %3843 = vmatpush1.bf16.msra.mxu0 %v2666
    %3844 = vmatprep.subr.bf16.mxu0 %v2671
    %3845 = vmatpush1.bf16.msra.mxu0 %v2670
    %3846 = vmatprep.mubr.bf16.mxu0 %v1025
    %3847 = vmatmul.mubr.bf16.gmra.mrb[0].mxu0 %v1024
    %v3848 = vpop.f32.mrb[0].mxu0
    %v3849 = vadd.f32 0.0, %v3848
    %v3850 = vpop.f32.mrb[0].mxu0
    %v3851 = vadd.f32 0.0, %v3850
    %v3852 = vpop.f32.mrb[0].mxu0
    %v3853 = vadd.f32 0.0, %v3852
    %v3854 = vpop.f32.mrb[0].mxu0
    %v3855 = vadd.f32 0.0, %v3854
    %3856 = vmatprep.mubr.bf16.mxu0 %v1037
    %3857 = vmatmul.mubr.bf16.gmra.mrb[0].mxu0 %v1036
    %v3858 = vpop.f32.mrb[0].mxu0
    %v3859 = vadd.f32 0.0, %v3858
    %v3860 = vpop.f32.mrb[0].mxu0
    %v3861 = vadd.f32 0.0, %v3860
    %v3862 = vpop.f32.mrb[0].mxu0
    %v3863 = vadd.f32 0.0, %v3862
    %v3864 = vpop.f32.mrb[0].mxu0
    %v3865 = vadd.f32 0.0, %v3864
    %3866 = vmatprep.mubr.bf16.mxu0 %v1049
    %3867 = vmatmul.mubr.bf16.gmra.mrb[0].mxu0 %v1048
    %v3868 = vpop.f32.mrb[0].mxu0
    %v3869 = vadd.f32 0.0, %v3868
    %v3870 = vpop.f32.mrb[0].mxu0
    %v3871 = vadd.f32 0.0, %v3870
    %v3872 = vpop.f32.mrb[0].mxu0
    %v3873 = vadd.f32 0.0, %v3872
    %v3874 = vpop.f32.mrb[0].mxu0
    %v3875 = vadd.f32 0.0, %v3874
    %3876 = vmatprep.mubr.bf16.mxu0 %v1061
    %3877 = vmatmul.mubr.bf16.gmra.mrb[0].mxu0 %v1060
    %v3878 = vpop.f32.mrb[0].mxu0
    %v3879 = vadd.f32 0.0, %v3878
    %v3880 = vpop.f32.mrb[0].mxu0
    %v3881 = vadd.f32 0.0, %v3880
    %v3882 = vpop.f32.mrb[0].mxu0
    %v3883 = vadd.f32 0.0, %v3882
    %v3884 = vpop.f32.mrb[0].mxu0
    %v3885 = vadd.f32 0.0, %v3884
    %3886 = vdwg.mxu0
    %3887 = vmatprep.subr.bf16.mxu0 %v2675
    %3888 = vmatpush1.bf16.msra.mxu0 %v2674
    %3889 = vmatprep.subr.bf16.mxu0 %v2679
    %3890 = vmatpush1.bf16.msra.mxu0 %v2678
    %3891 = vmatprep.subr.bf16.mxu0 %v2683
    %3892 = vmatpush1.bf16.msra.mxu0 %v2682
    %3893 = vmatprep.subr.bf16.mxu0 %v2687
    %3894 = vmatpush1.bf16.msra.mxu0 %v2686
    %3895 = vmatprep.subr.bf16.mxu0 %v2691
    %3896 = vmatpush1.bf16.msra.mxu0 %v2690
    %3897 = vmatprep.subr.bf16.mxu0 %v2695
    %3898 = vmatpush1.bf16.msra.mxu0 %v2694
    %3899 = vmatprep.subr.bf16.mxu0 %v2699
    %3900 = vmatpush1.bf16.msra.mxu0 %v2698
    %3901 = vmatprep.subr.bf16.mxu0 %v2703
    %3902 = vmatpush1.bf16.msra.mxu0 %v2702
    %3903 = vmatprep.subr.bf16.mxu0 %v2707
    %3904 = vmatpush1.bf16.msra.mxu0 %v2706
    %3905 = vmatprep.subr.bf16.mxu0 %v2711
    %3906 = vmatpush1.bf16.msra.mxu0 %v2710
    %3907 = vmatprep.subr.bf16.mxu0 %v2715
    %3908 = vmatpush1.bf16.msra.mxu0 %v2714
    %3909 = vmatprep.subr.bf16.mxu0 %v2719
    %3910 = vmatpush1.bf16.msra.mxu0 %v2718
    %3911 = vmatprep.subr.bf16.mxu0 %v2723
    %3912 = vmatpush1.bf16.msra.mxu0 %v2722
    %3913 = vmatprep.subr.bf16.mxu0 %v2727
    %3914 = vmatpush1.bf16.msra.mxu0 %v2726
    %3915 = vmatprep.subr.bf16.mxu0 %v2731
    %3916 = vmatpush1.bf16.msra.mxu0 %v2730
    %3917 = vmatprep.subr.bf16.mxu0 %v2735
    %3918 = vmatpush1.bf16.msra.mxu0 %v2734
    %3919 = vmatprep.mubr.bf16.mxu0 %v1027
    %3920 = vmatmul.mubr.bf16.gmra.mrb[0].mxu0 %v1026
    %v3921 = vpop.f32.mrb[0].mxu0
    %v3922 = vadd.f32 %v3849, %v3921
    %v3923 = vpop.f32.mrb[0].mxu0
    %v3924 = vadd.f32 %v3851, %v3923
    %v3925 = vpop.f32.mrb[0].mxu0
    %v3926 = vadd.f32 %v3853, %v3925
    %v3927 = vpop.f32.mrb[0].mxu0
    %v3928 = vadd.f32 %v3855, %v3927
    %3929 = vmatprep.mubr.bf16.mxu0 %v1039
    %3930 = vmatmul.mubr.bf16.gmra.mrb[0].mxu0 %v1038
    %v3931 = vpop.f32.mrb[0].mxu0
    %v3932 = vadd.f32 %v3859, %v3931
    %v3933 = vpop.f32.mrb[0].mxu0
    %v3934 = vadd.f32 %v3861, %v3933
    %v3935 = vpop.f32.mrb[0].mxu0
    %v3936 = vadd.f32 %v3863, %v3935
    %v3937 = vpop.f32.mrb[0].mxu0
    %v3938 = vadd.f32 %v3865, %v3937
    %3939 = vmatprep.mubr.bf16.mxu0 %v1051
    %3940 = vmatmul.mubr.bf16.gmra.mrb[0].mxu0 %v1050
    %v3941 = vpop.f32.mrb[0].mxu0
    %v3942 = vadd.f32 %v3869, %v3941
    %v3943 = vpop.f32.mrb[0].mxu0
    %v3944 = vadd.f32 %v3871, %v3943
    %v3945 = vpop.f32.mrb[0].mxu0
    %v3946 = vadd.f32 %v3873, %v3945
    %v3947 = vpop.f32.mrb[0].mxu0
    %v3948 = vadd.f32 %v3875, %v3947
    %3949 = vmatprep.mubr.bf16.mxu0 %v1063
    %3950 = vmatmul.mubr.bf16.gmra.mrb[0].mxu0 %v1062
    %v3951 = vpop.f32.mrb[0].mxu0
    %v3952 = vadd.f32 %v3879, %v3951
    %v3953 = vpop.f32.mrb[0].mxu0
    %v3954 = vadd.f32 %v3881, %v3953
    %v3955 = vpop.f32.mrb[0].mxu0
    %v3956 = vadd.f32 %v3883, %v3955
    %v3957 = vpop.f32.mrb[0].mxu0
    %v3958 = vadd.f32 %v3885, %v3957
    %3959 = vdwg.mxu0
    %3960 = vmatprep.subr.bf16.mxu0 %v2739
    %3961 = vmatpush1.bf16.msra.mxu0 %v2738
    %3962 = vmatprep.subr.bf16.mxu0 %v2743
    %3963 = vmatpush1.bf16.msra.mxu0 %v2742
    %3964 = vmatprep.subr.bf16.mxu0 %v2747
    %3965 = vmatpush1.bf16.msra.mxu0 %v2746
    %3966 = vmatprep.subr.bf16.mxu0 %v2751
    %3967 = vmatpush1.bf16.msra.mxu0 %v2750
    %3968 = vmatprep.subr.bf16.mxu0 %v2755
    %3969 = vmatpush1.bf16.msra.mxu0 %v2754
    %3970 = vmatprep.subr.bf16.mxu0 %v2759
    %3971 = vmatpush1.bf16.msra.mxu0 %v2758
    %3972 = vmatprep.subr.bf16.mxu0 %v2763
    %3973 = vmatpush1.bf16.msra.mxu0 %v2762
    %3974 = vmatprep.subr.bf16.mxu0 %v2767
    %3975 = vmatpush1.bf16.msra.mxu0 %v2766
    %3976 = vmatprep.subr.bf16.mxu0 %v2771
    %3977 = vmatpush1.bf16.msra.mxu0 %v2770
    %3978 = vmatprep.subr.bf16.mxu0 %v2775
    %3979 = vmatpush1.bf16.msra.mxu0 %v2774
    %3980 = vmatprep.subr.bf16.mxu0 %v2779
    %3981 = vmatpush1.bf16.msra.mxu0 %v2778
    %3982 = vmatprep.subr.bf16.mxu0 %v2783
    %3983 = vmatpush1.bf16.msra.mxu0 %v2782
    %3984 = vmatprep.subr.bf16.mxu0 %v2787
    %3985 = vmatpush1.bf16.msra.mxu0 %v2786
    %3986 = vmatprep.subr.bf16.mxu0 %v2791
    %3987 = vmatpush1.bf16.msra.mxu0 %v2790
    %3988 = vmatprep.subr.bf16.mxu0 %v2795
    %3989 = vmatpush1.bf16.msra.mxu0 %v2794
    %3990 = vmatprep.subr.bf16.mxu0 %v2799
    %3991 = vmatpush1.bf16.msra.mxu0 %v2798
    %3992 = vmatprep.mubr.bf16.mxu0 %v1029
    %3993 = vmatmul.mubr.bf16.gmra.mrb[0].mxu0 %v1028
    %v3994 = vpop.f32.mrb[0].mxu0
    %v3995 = vadd.f32 %v3922, %v3994
    %v3996 = vpop.f32.mrb[0].mxu0
    %v3997 = vadd.f32 %v3924, %v3996
    %v3998 = vpop.f32.mrb[0].mxu0
    %v3999 = vadd.f32 %v3926, %v3998
    %v4000 = vpop.f32.mrb[0].mxu0
    %v4001 = vadd.f32 %v3928, %v4000
    %4002 = vmatprep.mubr.bf16.mxu0 %v1041
    %4003 = vmatmul.mubr.bf16.gmra.mrb[0].mxu0 %v1040
    %v4004 = vpop.f32.mrb[0].mxu0
    %v4005 = vadd.f32 %v3932, %v4004
    %v4006 = vpop.f32.mrb[0].mxu0
    %v4007 = vadd.f32 %v3934, %v4006
    %v4008 = vpop.f32.mrb[0].mxu0
    %v4009 = vadd.f32 %v3936, %v4008
    %v4010 = vpop.f32.mrb[0].mxu0
    %v4011 = vadd.f32 %v3938, %v4010
    %4012 = vmatprep.mubr.bf16.mxu0 %v1053
    %4013 = vmatmul.mubr.bf16.gmra.mrb[0].mxu0 %v1052
    %v4014 = vpop.f32.mrb[0].mxu0
    %v4015 = vadd.f32 %v3942, %v4014
    %v4016 = vpop.f32.mrb[0].mxu0
    %v4017 = vadd.f32 %v3944, %v4016
    %v4018 = vpop.f32.mrb[0].mxu0
    %v4019 = vadd.f32 %v3946, %v4018
    %v4020 = vpop.f32.mrb[0].mxu0
    %v4021 = vadd.f32 %v3948, %v4020
    %4022 = vmatprep.mubr.bf16.mxu0 %v1065
    %4023 = vmatmul.mubr.bf16.gmra.mrb[0].mxu0 %v1064
    %v4024 = vpop.f32.mrb[0].mxu0
    %v4025 = vadd.f32 %v3952, %v4024
    %v4026 = vpop.f32.mrb[0].mxu0
    %v4027 = vadd.f32 %v3954, %v4026
    %v4028 = vpop.f32.mrb[0].mxu0
    %v4029 = vadd.f32 %v3956, %v4028
    %v4030 = vpop.f32.mrb[0].mxu0
    %v4031 = vadd.f32 %v3958, %v4030
    %4032 = vdwg.mxu0
    %4033 = vmatprep.subr.bf16.mxu0 %v2803
    %4034 = vmatpush1.bf16.msra.mxu0 %v2802
    %4035 = vmatprep.subr.bf16.mxu0 %v2807
    %4036 = vmatpush1.bf16.msra.mxu0 %v2806
    %4037 = vmatprep.subr.bf16.mxu0 %v2811
    %4038 = vmatpush1.bf16.msra.mxu0 %v2810
    %4039 = vmatprep.subr.bf16.mxu0 %v2815
    %4040 = vmatpush1.bf16.msra.mxu0 %v2814
    %4041 = vmatprep.subr.bf16.mxu0 %v2819
    %4042 = vmatpush1.bf16.msra.mxu0 %v2818
    %4043 = vmatprep.subr.bf16.mxu0 %v2823
    %4044 = vmatpush1.bf16.msra.mxu0 %v2822
    %4045 = vmatprep.subr.bf16.mxu0 %v2827
    %4046 = vmatpush1.bf16.msra.mxu0 %v2826
    %4047 = vmatprep.subr.bf16.mxu0 %v2831
    %4048 = vmatpush1.bf16.msra.mxu0 %v2830
    %4049 = vmatprep.subr.bf16.mxu0 %v2835
    %4050 = vmatpush1.bf16.msra.mxu0 %v2834
    %4051 = vmatprep.subr.bf16.mxu0 %v2839
    %4052 = vmatpush1.bf16.msra.mxu0 %v2838
    %4053 = vmatprep.subr.bf16.mxu0 %v2843
    %4054 = vmatpush1.bf16.msra.mxu0 %v2842
    %4055 = vmatprep.subr.bf16.mxu0 %v2847
    %4056 = vmatpush1.bf16.msra.mxu0 %v2846
    %4057 = vmatprep.subr.bf16.mxu0 %v2851
    %4058 = vmatpush1.bf16.msra.mxu0 %v2850
    %4059 = vmatprep.subr.bf16.mxu0 %v2855
    %4060 = vmatpush1.bf16.msra.mxu0 %v2854
    %4061 = vmatprep.subr.bf16.mxu0 %v2859
    %4062 = vmatpush1.bf16.msra.mxu0 %v2858
    %4063 = vmatprep.subr.bf16.mxu0 %v2863
    %4064 = vmatpush1.bf16.msra.mxu0 %v2862
    %4065 = vmatprep.mubr.bf16.mxu0 %v1031
    %4066 = vmatmul.mubr.bf16.gmra.mrb[0].mxu0 %v1030
    %v4067 = vpop.f32.mrb[0].mxu0
    %v4068 = vadd.f32 %v3995, %v4067
    %v4069 = vpop.f32.mrb[0].mxu0
    %v4070 = vadd.f32 %v3997, %v4069
    %v4071 = vpop.f32.mrb[0].mxu0
    %v4072 = vadd.f32 %v3999, %v4071
    %v4073 = vpop.f32.mrb[0].mxu0
    %v4074 = vadd.f32 %v4001, %v4073
    %4075 = vmatprep.mubr.bf16.mxu0 %v1043
    %4076 = vmatmul.mubr.bf16.gmra.mrb[0].mxu0 %v1042
    %v4077 = vpop.f32.mrb[0].mxu0
    %v4078 = vadd.f32 %v4005, %v4077
    %v4079 = vpop.f32.mrb[0].mxu0
    %v4080 = vadd.f32 %v4007, %v4079
    %v4081 = vpop.f32.mrb[0].mxu0
    %v4082 = vadd.f32 %v4009, %v4081
    %v4083 = vpop.f32.mrb[0].mxu0
    %v4084 = vadd.f32 %v4011, %v4083
    %4085 = vmatprep.mubr.bf16.mxu0 %v1055
    %4086 = vmatmul.mubr.bf16.gmra.mrb[0].mxu0 %v1054
    %v4087 = vpop.f32.mrb[0].mxu0
    %v4088 = vadd.f32 %v4015, %v4087
    %v4089 = vpop.f32.mrb[0].mxu0
    %v4090 = vadd.f32 %v4017, %v4089
    %v4091 = vpop.f32.mrb[0].mxu0
    %v4092 = vadd.f32 %v4019, %v4091
    %v4093 = vpop.f32.mrb[0].mxu0
    %v4094 = vadd.f32 %v4021, %v4093
    %4095 = vmatprep.mubr.bf16.mxu0 %v1067
    %4096 = vmatmul.mubr.bf16.gmra.mrb[0].mxu0 %v1066
    %v4097 = vpop.f32.mrb[0].mxu0
    %v4098 = vadd.f32 %v4025, %v4097
    %v4099 = vpop.f32.mrb[0].mxu0
    %v4100 = vadd.f32 %v4027, %v4099
    %v4101 = vpop.f32.mrb[0].mxu0
    %v4102 = vadd.f32 %v4029, %v4101
    %v4103 = vpop.f32.mrb[0].mxu0
    %v4104 = vadd.f32 %v4031, %v4103
    %4105 = vdwg.mxu0
    %4106 = vmatprep.subr.bf16.mxu0 %v2867
    %4107 = vmatpush1.bf16.msra.mxu0 %v2866
    %4108 = vmatprep.subr.bf16.mxu0 %v2871
    %4109 = vmatpush1.bf16.msra.mxu0 %v2870
    %4110 = vmatprep.subr.bf16.mxu0 %v2875
    %4111 = vmatpush1.bf16.msra.mxu0 %v2874
    %4112 = vmatprep.subr.bf16.mxu0 %v2879
    %4113 = vmatpush1.bf16.msra.mxu0 %v2878
    %4114 = vmatprep.subr.bf16.mxu0 %v2883
    %4115 = vmatpush1.bf16.msra.mxu0 %v2882
    %4116 = vmatprep.subr.bf16.mxu0 %v2887
    %4117 = vmatpush1.bf16.msra.mxu0 %v2886
    %4118 = vmatprep.subr.bf16.mxu0 %v2891
    %4119 = vmatpush1.bf16.msra.mxu0 %v2890
    %4120 = vmatprep.subr.bf16.mxu0 %v2895
    %4121 = vmatpush1.bf16.msra.mxu0 %v2894
    %4122 = vmatprep.subr.bf16.mxu0 %v2899
    %4123 = vmatpush1.bf16.msra.mxu0 %v2898
    %4124 = vmatprep.subr.bf16.mxu0 %v2903
    %4125 = vmatpush1.bf16.msra.mxu0 %v2902
    %4126 = vmatprep.subr.bf16.mxu0 %v2907
    %4127 = vmatpush1.bf16.msra.mxu0 %v2906
    %4128 = vmatprep.subr.bf16.mxu0 %v2911
    %4129 = vmatpush1.bf16.msra.mxu0 %v2910
    %4130 = vmatprep.subr.bf16.mxu0 %v2915
    %4131 = vmatpush1.bf16.msra.mxu0 %v2914
    %4132 = vmatprep.subr.bf16.mxu0 %v2919
    %4133 = vmatpush1.bf16.msra.mxu0 %v2918
    %4134 = vmatprep.subr.bf16.mxu0 %v2923
    %4135 = vmatpush1.bf16.msra.mxu0 %v2922
    %4136 = vmatprep.subr.bf16.mxu0 %v2927
    %4137 = vmatpush1.bf16.msra.mxu0 %v2926
    %4138 = vmatprep.mubr.bf16.mxu0 %v1033
    %4139 = vmatmul.mubr.bf16.gmra.mrb[0].mxu0 %v1032
    %v4140 = vpop.f32.mrb[0].mxu0
    %v4141 = vadd.f32 %v4068, %v4140
    %v4142 = vpop.f32.mrb[0].mxu0
    %v4143 = vadd.f32 %v4070, %v4142
    %v4144 = vpop.f32.mrb[0].mxu0
    %v4145 = vadd.f32 %v4072, %v4144
    %v4146 = vpop.f32.mrb[0].mxu0
    %v4147 = vadd.f32 %v4074, %v4146
    %4148 = vmatprep.mubr.bf16.mxu0 %v1045
    %4149 = vmatmul.mubr.bf16.gmra.mrb[0].mxu0 %v1044
    %v4150 = vpop.f32.mrb[0].mxu0
    %v4151 = vadd.f32 %v4078, %v4150
    %v4152 = vpop.f32.mrb[0].mxu0
    %v4153 = vadd.f32 %v4080, %v4152
    %v4154 = vpop.f32.mrb[0].mxu0
    %v4155 = vadd.f32 %v4082, %v4154
    %v4156 = vpop.f32.mrb[0].mxu0
    %v4157 = vadd.f32 %v4084, %v4156
    %4158 = vmatprep.mubr.bf16.mxu0 %v1057
    %4159 = vmatmul.mubr.bf16.gmra.mrb[0].mxu0 %v1056
    %v4160 = vpop.f32.mrb[0].mxu0
    %v4161 = vadd.f32 %v4088, %v4160
    %v4162 = vpop.f32.mrb[0].mxu0
    %v4163 = vadd.f32 %v4090, %v4162
    %v4164 = vpop.f32.mrb[0].mxu0
    %v4165 = vadd.f32 %v4092, %v4164
    %v4166 = vpop.f32.mrb[0].mxu0
    %v4167 = vadd.f32 %v4094, %v4166
    %4168 = vmatprep.mubr.bf16.mxu0 %v1069
    %4169 = vmatmul.mubr.bf16.gmra.mrb[0].mxu0 %v1068
    %v4170 = vpop.f32.mrb[0].mxu0
    %v4171 = vadd.f32 %v4098, %v4170
    %v4172 = vpop.f32.mrb[0].mxu0
    %v4173 = vadd.f32 %v4100, %v4172
    %v4174 = vpop.f32.mrb[0].mxu0
    %v4175 = vadd.f32 %v4102, %v4174
    %v4176 = vpop.f32.mrb[0].mxu0
    %v4177 = vadd.f32 %v4104, %v4176
    %4178 = vdwg.mxu0
    %4179 = vmatprep.subr.bf16.mxu0 %v2931
    %4180 = vmatpush1.bf16.msra.mxu0 %v2930
    %4181 = vmatprep.subr.bf16.mxu0 %v2935
    %4182 = vmatpush1.bf16.msra.mxu0 %v2934
    %4183 = vmatprep.subr.bf16.mxu0 %v2939
    %4184 = vmatpush1.bf16.msra.mxu0 %v2938
    %4185 = vmatprep.subr.bf16.mxu0 %v2943
    %4186 = vmatpush1.bf16.msra.mxu0 %v2942
    %4187 = vmatprep.subr.bf16.mxu0 %v2947
    %4188 = vmatpush1.bf16.msra.mxu0 %v2946
    %4189 = vmatprep.subr.bf16.mxu0 %v2951
    %4190 = vmatpush1.bf16.msra.mxu0 %v2950
    %4191 = vmatprep.subr.bf16.mxu0 %v2955
    %4192 = vmatpush1.bf16.msra.mxu0 %v2954
    %4193 = vmatprep.subr.bf16.mxu0 %v2959
    %4194 = vmatpush1.bf16.msra.mxu0 %v2958
    %4195 = vmatprep.subr.bf16.mxu0 %v2963
    %4196 = vmatpush1.bf16.msra.mxu0 %v2962
    %4197 = vmatprep.subr.bf16.mxu0 %v2967
    %4198 = vmatpush1.bf16.msra.mxu0 %v2966
    %4199 = vmatprep.subr.bf16.mxu0 %v2971
    %4200 = vmatpush1.bf16.msra.mxu0 %v2970
    %4201 = vmatprep.subr.bf16.mxu0 %v2975
    %4202 = vmatpush1.bf16.msra.mxu0 %v2974
    %4203 = vmatprep.subr.bf16.mxu0 %v2979
    %4204 = vmatpush1.bf16.msra.mxu0 %v2978
    %4205 = vmatprep.subr.bf16.mxu0 %v2983
    %4206 = vmatpush1.bf16.msra.mxu0 %v2982
    %4207 = vmatprep.subr.bf16.mxu0 %v2987
    %4208 = vmatpush1.bf16.msra.mxu0 %v2986
    %4209 = vmatprep.subr.bf16.mxu0 %v2991
    %4210 = vmatpush1.bf16.msra.mxu0 %v2990
    %4211 = vmatprep.mubr.bf16.mxu0 %v1035
    %4212 = vmatmul.mubr.bf16.gmra.mrb[0].mxu0 %v1034
    %v4213 = vpop.f32.mrb[0].mxu0
    %v4214 = vadd.f32 %v4141, %v4213
    %v4215 = vpop.f32.mrb[0].mxu0
    %v4216 = vadd.f32 %v4143, %v4215
    %v4217 = vpop.f32.mrb[0].mxu0
    %v4218 = vadd.f32 %v4145, %v4217
    %v4219 = vpop.f32.mrb[0].mxu0
    %v4220 = vadd.f32 %v4147, %v4219
    %4221 = vmatprep.mubr.bf16.mxu0 %v1047
    %4222 = vmatmul.mubr.bf16.gmra.mrb[0].mxu0 %v1046
    %v4223 = vpop.f32.mrb[0].mxu0
    %v4224 = vadd.f32 %v4151, %v4223
    %v4225 = vpop.f32.mrb[0].mxu0
    %v4226 = vadd.f32 %v4153, %v4225
    %v4227 = vpop.f32.mrb[0].mxu0
    %v4228 = vadd.f32 %v4155, %v4227
    %v4229 = vpop.f32.mrb[0].mxu0
    %v4230 = vadd.f32 %v4157, %v4229
    %4231 = vmatprep.mubr.bf16.mxu0 %v1059
    %4232 = vmatmul.mubr.bf16.gmra.mrb[0].mxu0 %v1058
    %v4233 = vpop.f32.mrb[0].mxu0
    %v4234 = vadd.f32 %v4161, %v4233
    %v4235 = vpop.f32.mrb[0].mxu0
    %v4236 = vadd.f32 %v4163, %v4235
    %v4237 = vpop.f32.mrb[0].mxu0
    %v4238 = vadd.f32 %v4165, %v4237
    %v4239 = vpop.f32.mrb[0].mxu0
    %v4240 = vadd.f32 %v4167, %v4239
    %4241 = vmatprep.mubr.bf16.mxu0 %v1071
    %4242 = vmatmul.mubr.bf16.gmra.mrb[0].mxu0 %v1070
    %v4243 = vpop.f32.mrb[0].mxu0
    %v4244 = vadd.f32 %v4171, %v4243
    %v4245 = vpop.f32.mrb[0].mxu0
    %v4246 = vadd.f32 %v4173, %v4245
    %v4247 = vpop.f32.mrb[0].mxu0
    %v4248 = vadd.f32 %v4175, %v4247
    %v4249 = vpop.f32.mrb[0].mxu0
    %v4250 = vadd.f32 %v4177, %v4249
    %4251 = vdwg.mxu0
    %s4252 = scalar_lea.vmem [#allocation11], 2
    %v4253 = vld [vmem:[%s4252] ss:$8 sm:$0xf]
    %v4255 = vlaneseq
    %v4256 = vshrl.u32 %v4255, 7
    %v4257 = vsub.s32 0, %v4256
    %v4258 = vrot.slane %v4253, %v4257
    %v4259 = vlaneseq
    %v4260 = vshrl.u32 %v4259, 7
    %v4261 = vsub.s32 1, %v4260
    %v4262 = vrot.slane %v4253, %v4261
    %v4263 = vlaneseq
    %v4264 = vshrl.u32 %v4263, 7
    %v4265 = vsub.s32 2, %v4264
    %v4266 = vrot.slane %v4253, %v4265
    %v4267 = vlaneseq
    %v4268 = vshrl.u32 %v4267, 7
    %v4269 = vsub.s32 3, %v4268
    %v4270 = vrot.slane %v4253, %v4269
    %v4275 = vmul.f32 %v3776, %v4258
    %v4276 = vmul.f32 %v3778, %v4262
    %v4277 = vmul.f32 %v4214, %v4266
    %v4278 = vmul.f32 %v4216, %v4270
    %v4279 = vmul.f32 %v3780, %v4258
    %v4280 = vmul.f32 %v3782, %v4262
    %v4281 = vmul.f32 %v4218, %v4266
    %v4282 = vmul.f32 %v4220, %v4270
    %v4283 = vmul.f32 %v3786, %v4258
    %v4284 = vmul.f32 %v3788, %v4262
    %v4285 = vmul.f32 %v4224, %v4266
    %v4286 = vmul.f32 %v4226, %v4270
    %v4287 = vmul.f32 %v3790, %v4258
    %v4288 = vmul.f32 %v3792, %v4262
    %v4289 = vmul.f32 %v4228, %v4266
    %v4290 = vmul.f32 %v4230, %v4270
    %v4291 = vmul.f32 %v3796, %v4258
    %v4292 = vmul.f32 %v3798, %v4262
    %v4293 = vmul.f32 %v4234, %v4266
    %v4294 = vmul.f32 %v4236, %v4270
    %v4295 = vmul.f32 %v3800, %v4258
    %v4296 = vmul.f32 %v3802, %v4262
    %v4297 = vmul.f32 %v4238, %v4266
    %v4298 = vmul.f32 %v4240, %v4270
    %v4299 = vmul.f32 %v3806, %v4258
    %v4300 = vmul.f32 %v3808, %v4262
    %v4301 = vmul.f32 %v4244, %v4266
    %v4302 = vmul.f32 %v4246, %v4270
    %v4303 = vmul.f32 %v3810, %v4258
    %v4304 = vmul.f32 %v3812, %v4262
    %v4305 = vmul.f32 %v4248, %v4266
    %v4306 = vmul.f32 %v4250, %v4270
    %s4307 = scalar_lea.vmem [#allocation11], 3
    %v4308 = vld [vmem:[%s4307] ss:$8 sm:$0xf]
    %v4310 = vlaneseq
    %v4311 = vshrl.u32 %v4310, 7
    %v4312 = vsub.s32 0, %v4311
    %v4313 = vrot.slane %v4308, %v4312
    %v4314 = vlaneseq
    %v4315 = vshrl.u32 %v4314, 7
    %v4316 = vsub.s32 1, %v4315
    %v4317 = vrot.slane %v4308, %v4316
    %v4318 = vlaneseq
    %v4319 = vshrl.u32 %v4318, 7
    %v4320 = vsub.s32 2, %v4319
    %v4321 = vrot.slane %v4308, %v4320
    %v4322 = vlaneseq
    %v4323 = vshrl.u32 %v4322, 7
    %v4324 = vsub.s32 3, %v4323
    %v4325 = vrot.slane %v4308, %v4324
    %v4330 = vadd.f32 %v4275, %v4313
    %v4331 = vadd.f32 %v4276, %v4317
    %v4332 = vadd.f32 %v4277, %v4321
    %v4333 = vadd.f32 %v4278, %v4325
    %v4334 = vadd.f32 %v4279, %v4313
    %v4335 = vadd.f32 %v4280, %v4317
    %v4336 = vadd.f32 %v4281, %v4321
    %v4337 = vadd.f32 %v4282, %v4325
    %v4338 = vadd.f32 %v4283, %v4313
    %v4339 = vadd.f32 %v4284, %v4317
    %v4340 = vadd.f32 %v4285, %v4321
    %v4341 = vadd.f32 %v4286, %v4325
    %v4342 = vadd.f32 %v4287, %v4313
    %v4343 = vadd.f32 %v4288, %v4317
    %v4344 = vadd.f32 %v4289, %v4321
    %v4345 = vadd.f32 %v4290, %v4325
    %v4346 = vadd.f32 %v4291, %v4313
    %v4347 = vadd.f32 %v4292, %v4317
    %v4348 = vadd.f32 %v4293, %v4321
    %v4349 = vadd.f32 %v4294, %v4325
    %v4350 = vadd.f32 %v4295, %v4313
    %v4351 = vadd.f32 %v4296, %v4317
    %v4352 = vadd.f32 %v4297, %v4321
    %v4353 = vadd.f32 %v4298, %v4325
    %v4354 = vadd.f32 %v4299, %v4313
    %v4355 = vadd.f32 %v4300, %v4317
    %v4356 = vadd.f32 %v4301, %v4321
    %v4357 = vadd.f32 %v4302, %v4325
    %v4358 = vadd.f32 %v4303, %v4313
    %v4359 = vadd.f32 %v4304, %v4317
    %v4360 = vadd.f32 %v4305, %v4321
    %v4361 = vadd.f32 %v4306, %v4325
    %vm4362 = vcmp.ge.f32.partialorder %v4330, 0.0
    %vm4363 = vcmp.ge.f32.partialorder %v4331, 0.0
    %vm4364 = vcmp.ge.f32.partialorder %v4332, 0.0
    %vm4365 = vcmp.ge.f32.partialorder %v4333, 0.0
    %vm4366 = vcmp.ge.f32.partialorder %v4334, 0.0
    %vm4367 = vcmp.ge.f32.partialorder %v4335, 0.0
    %vm4368 = vcmp.ge.f32.partialorder %v4336, 0.0
    %vm4369 = vcmp.ge.f32.partialorder %v4337, 0.0
    %vm4370 = vcmp.ge.f32.partialorder %v4338, 0.0
    %vm4371 = vcmp.ge.f32.partialorder %v4339, 0.0
    %vm4372 = vcmp.ge.f32.partialorder %v4340, 0.0
    %vm4373 = vcmp.ge.f32.partialorder %v4341, 0.0
    %vm4374 = vcmp.ge.f32.partialorder %v4342, 0.0
    %vm4375 = vcmp.ge.f32.partialorder %v4343, 0.0
    %vm4376 = vcmp.ge.f32.partialorder %v4344, 0.0
    %vm4377 = vcmp.ge.f32.partialorder %v4345, 0.0
    %vm4378 = vcmp.ge.f32.partialorder %v4346, 0.0
    %vm4379 = vcmp.ge.f32.partialorder %v4347, 0.0
    %vm4380 = vcmp.ge.f32.partialorder %v4348, 0.0
    %vm4381 = vcmp.ge.f32.partialorder %v4349, 0.0
    %vm4382 = vcmp.ge.f32.partialorder %v4350, 0.0
    %vm4383 = vcmp.ge.f32.partialorder %v4351, 0.0
    %vm4384 = vcmp.ge.f32.partialorder %v4352, 0.0
    %vm4385 = vcmp.ge.f32.partialorder %v4353, 0.0
    %vm4386 = vcmp.ge.f32.partialorder %v4354, 0.0
    %vm4387 = vcmp.ge.f32.partialorder %v4355, 0.0
    %vm4388 = vcmp.ge.f32.partialorder %v4356, 0.0
    %vm4389 = vcmp.ge.f32.partialorder %v4357, 0.0
    %vm4390 = vcmp.ge.f32.partialorder %v4358, 0.0
    %vm4391 = vcmp.ge.f32.partialorder %v4359, 0.0
    %vm4392 = vcmp.ge.f32.partialorder %v4360, 0.0
    %vm4393 = vcmp.ge.f32.partialorder %v4361, 0.0
    %v4394 = vstv %s131
    %v4395 = vmul.f32 %v4394, %v4330
    %v4396 = vmul.f32 %v4394, %v4331
    %v4397 = vmul.f32 %v4394, %v4332
    %v4398 = vmul.f32 %v4394, %v4333
    %v4399 = vmul.f32 %v4394, %v4334
    %v4400 = vmul.f32 %v4394, %v4335
    %v4401 = vmul.f32 %v4394, %v4336
    %v4402 = vmul.f32 %v4394, %v4337
    %v4403 = vmul.f32 %v4394, %v4338
    %v4404 = vmul.f32 %v4394, %v4339
    %v4405 = vmul.f32 %v4394, %v4340
    %v4406 = vmul.f32 %v4394, %v4341
    %v4407 = vmul.f32 %v4394, %v4342
    %v4408 = vmul.f32 %v4394, %v4343
    %v4409 = vmul.f32 %v4394, %v4344
    %v4410 = vmul.f32 %v4394, %v4345
    %v4411 = vmul.f32 %v4394, %v4346
    %v4412 = vmul.f32 %v4394, %v4347
    %v4413 = vmul.f32 %v4394, %v4348
    %v4414 = vmul.f32 %v4394, %v4349
    %v4415 = vmul.f32 %v4394, %v4350
    %v4416 = vmul.f32 %v4394, %v4351
    %v4417 = vmul.f32 %v4394, %v4352
    %v4418 = vmul.f32 %v4394, %v4353
    %v4419 = vmul.f32 %v4394, %v4354
    %v4420 = vmul.f32 %v4394, %v4355
    %v4421 = vmul.f32 %v4394, %v4356
    %v4422 = vmul.f32 %v4394, %v4357
    %v4423 = vmul.f32 %v4394, %v4358
    %v4424 = vmul.f32 %v4394, %v4359
    %v4425 = vmul.f32 %v4394, %v4360
    %v4426 = vmul.f32 %v4394, %v4361
    %v4427 = vsel %vm4362, %v4330, %v4395
    %v4428 = vsel %vm4363, %v4331, %v4396
    %v4429 = vsel %vm4364, %v4332, %v4397
    %v4430 = vsel %vm4365, %v4333, %v4398
    %v4431 = vsel %vm4366, %v4334, %v4399
    %v4432 = vsel %vm4367, %v4335, %v4400
    %v4433 = vsel %vm4368, %v4336, %v4401
    %v4434 = vsel %vm4369, %v4337, %v4402
    %v4435 = vsel %vm4370, %v4338, %v4403
    %v4436 = vsel %vm4371, %v4339, %v4404
    %v4437 = vsel %vm4372, %v4340, %v4405
    %v4438 = vsel %vm4373, %v4341, %v4406
    %v4439 = vsel %vm4374, %v4342, %v4407
    %v4440 = vsel %vm4375, %v4343, %v4408
    %v4441 = vsel %vm4376, %v4344, %v4409
    %v4442 = vsel %vm4377, %v4345, %v4410
    %v4443 = vsel %vm4378, %v4346, %v4411
    %v4444 = vsel %vm4379, %v4347, %v4412
    %v4445 = vsel %vm4380, %v4348, %v4413
    %v4446 = vsel %vm4381, %v4349, %v4414
    %v4447 = vsel %vm4382, %v4350, %v4415
    %v4448 = vsel %vm4383, %v4351, %v4416
    %v4449 = vsel %vm4384, %v4352, %v4417
    %v4450 = vsel %vm4385, %v4353, %v4418
    %v4451 = vsel %vm4386, %v4354, %v4419
    %v4452 = vsel %vm4387, %v4355, %v4420
    %v4453 = vsel %vm4388, %v4356, %v4421
    %v4454 = vsel %vm4389, %v4357, %v4422
    %v4455 = vsel %vm4390, %v4358, %v4423
    %v4456 = vsel %vm4391, %v4359, %v4424
    %v4457 = vsel %vm4392, %v4360, %v4425
    %v4458 = vsel %vm4393, %v4361, %v4426
    %v4491 = vrot.slane %v4427, 7
    %v4492 = vrot.slane %v4428, 7
    %v4493 = vrot.slane %v4429, 7
    %v4494 = vrot.slane %v4430, 7
    %v4495 = vrot.slane %v4431, 7
    %v4496 = vsel %vm333, %v4491, %v4495
    %v4497 = vrot.slane %v4432, 7
    %v4498 = vsel %vm333, %v4492, %v4497
    %v4499 = vrot.slane %v4433, 7
    %v4500 = vsel %vm333, %v4493, %v4499
    %v4501 = vrot.slane %v4434, 7
    %v4502 = vsel %vm333, %v4494, %v4501
    %v4503 = vrot.slane %v4435, 7
    %v4504 = vrot.slane %v4436, 7
    %v4505 = vrot.slane %v4437, 7
    %v4506 = vrot.slane %v4438, 7
    %v4507 = vrot.slane %v4439, 7
    %v4508 = vsel %vm333, %v4503, %v4507
    %v4509 = vrot.slane %v4440, 7
    %v4510 = vsel %vm333, %v4504, %v4509
    %v4511 = vrot.slane %v4441, 7
    %v4512 = vsel %vm333, %v4505, %v4511
    %v4513 = vrot.slane %v4442, 7
    %v4514 = vsel %vm333, %v4506, %v4513
    %v4515 = vrot.slane %v4443, 7
    %v4516 = vrot.slane %v4444, 7
    %v4517 = vrot.slane %v4445, 7
    %v4518 = vrot.slane %v4446, 7
    %v4519 = vrot.slane %v4447, 7
    %v4520 = vsel %vm333, %v4515, %v4519
    %v4521 = vrot.slane %v4448, 7
    %v4522 = vsel %vm333, %v4516, %v4521
    %v4523 = vrot.slane %v4449, 7
    %v4524 = vsel %vm333, %v4517, %v4523
    %v4525 = vrot.slane %v4450, 7
    %v4526 = vsel %vm333, %v4518, %v4525
    %v4527 = vrot.slane %v4451, 7
    %v4528 = vrot.slane %v4452, 7
    %v4529 = vrot.slane %v4453, 7
    %v4530 = vrot.slane %v4454, 7
    %v4531 = vrot.slane %v4455, 7
    %v4532 = vsel %vm333, %v4527, %v4531
    %v4533 = vrot.slane %v4456, 7
    %v4534 = vsel %vm333, %v4528, %v4533
    %v4535 = vrot.slane %v4457, 7
    %v4536 = vsel %vm333, %v4529, %v4535
    %v4537 = vrot.slane %v4458, 7
    %v4538 = vsel %vm333, %v4530, %v4537
    %4587 = vst [vmem:[#allocation2] sm:$0xfe] %v4491
    %4588 = vst [vmem:[#allocation2 + $0x8] sm:$0xfe] %v4492
    %4589 = vst [vmem:[#allocation2 + $0x10] sm:$0xfe] %v4493
    %4590 = vst [vmem:[#allocation2 + $0x18] sm:$0xfe] %v4494
    %4591 = vst [vmem:[#allocation2 + $0x20] sm:$0xff] %v4496
    %4592 = vst [vmem:[#allocation2 + $0x28] sm:$0xff] %v4498
    %4593 = vst [vmem:[#allocation2 + $0x30] sm:$0xff] %v4500
    %4594 = vst [vmem:[#allocation2 + $0x38] sm:$0xff] %v4502
    %4595 = vst [vmem:[#allocation2 + $0x40] sm:$0x1] %v4495
    %4596 = vst [vmem:[#allocation2 + $0x48] sm:$0x1] %v4497
    %4597 = vst [vmem:[#allocation2 + $0x50] sm:$0x1] %v4499
    %4598 = vst [vmem:[#allocation2 + $0x58] sm:$0x1] %v4501
    %4599 = vst [vmem:[#allocation2 + $0x60] sm:$0xfe] %v4503
    %4600 = vst [vmem:[#allocation2 + $0x68] sm:$0xfe] %v4504
    %4601 = vst [vmem:[#allocation2 + $0x70] sm:$0xfe] %v4505
    %4602 = vst [vmem:[#allocation2 + $0x78] sm:$0xfe] %v4506
    %4603 = vst [vmem:[#allocation2 + $0x80] sm:$0xff] %v4508
    %4604 = vst [vmem:[#allocation2 + $0x88] sm:$0xff] %v4510
    %4605 = vst [vmem:[#allocation2 + $0x90] sm:$0xff] %v4512
    %4606 = vst [vmem:[#allocation2 + $0x98] sm:$0xff] %v4514
    %4607 = vst [vmem:[#allocation2 + $0xa0] sm:$0x1] %v4507
    %4608 = vst [vmem:[#allocation2 + $0xa8] sm:$0x1] %v4509
    %4609 = vst [vmem:[#allocation2 + $0xb0] sm:$0x1] %v4511
    %4610 = vst [vmem:[#allocation2 + $0xb8] sm:$0x1] %v4513
    %4611 = vst [vmem:[#allocation2 + $0xc0] sm:$0xfe] %v4515
    %4612 = vst [vmem:[#allocation2 + $0xc8] sm:$0xfe] %v4516
    %4613 = vst [vmem:[#allocation2 + $0xd0] sm:$0xfe] %v4517
    %4614 = vst [vmem:[#allocation2 + $0xd8] sm:$0xfe] %v4518
    %4615 = vst [vmem:[#allocation2 + $0xe0] sm:$0xff] %v4520
    %4616 = vst [vmem:[#allocation2 + $0xe8] sm:$0xff] %v4522
    %4617 = vst [vmem:[#allocation2 + $0xf0] sm:$0xff] %v4524
    %4618 = vst [vmem:[#allocation2 + $0xf8] sm:$0xff] %v4526
    %4619 = vst [vmem:[#allocation2 + $0x100] sm:$0x1] %v4519
    %4620 = vst [vmem:[#allocation2 + $0x108] sm:$0x1] %v4521
    %4621 = vst [vmem:[#allocation2 + $0x110] sm:$0x1] %v4523
    %4622 = vst [vmem:[#allocation2 + $0x118] sm:$0x1] %v4525
    %4623 = vst [vmem:[#allocation2 + $0x120] sm:$0xfe] %v4527
    %4624 = vst [vmem:[#allocation2 + $0x128] sm:$0xfe] %v4528
    %4625 = vst [vmem:[#allocation2 + $0x130] sm:$0xfe] %v4529
    %4626 = vst [vmem:[#allocation2 + $0x138] sm:$0xfe] %v4530
    %4627 = vst [vmem:[#allocation2 + $0x140] sm:$0xff] %v4532
    %4628 = vst [vmem:[#allocation2 + $0x148] sm:$0xff] %v4534
    %4629 = vst [vmem:[#allocation2 + $0x150] sm:$0xff] %v4536
    %4630 = vst [vmem:[#allocation2 + $0x158] sm:$0xff] %v4538
    %4631 = vst [vmem:[#allocation2 + $0x160] sm:$0x1] %v4531
    %4632 = vst [vmem:[#allocation2 + $0x168] sm:$0x1] %v4533
    %4633 = vst [vmem:[#allocation2 + $0x170] sm:$0x1] %v4535
    %4634 = vst [vmem:[#allocation2 + $0x178] sm:$0x1] %v4537
    %v4635 = vld [vmem:[#allocation2] sm:$0xff]
    %v4636 = vld [vmem:[#allocation2 + $0x8] sm:$0xff]
    %v4637 = vld [vmem:[#allocation2 + $0x10] sm:$0xff]
    %v4638 = vld [vmem:[#allocation2 + $0x18] sm:$0xff]
    %v4639 = vld [vmem:[#allocation2 + $0x20] sm:$0xff]
    %v4640 = vld [vmem:[#allocation2 + $0x28] sm:$0xff]
    %v4641 = vld [vmem:[#allocation2 + $0x30] sm:$0xff]
    %v4642 = vld [vmem:[#allocation2 + $0x38] sm:$0xff]
    %v4643 = vld [vmem:[#allocation2 + $0x60] sm:$0xff]
    %v4644 = vld [vmem:[#allocation2 + $0x68] sm:$0xff]
    %v4645 = vld [vmem:[#allocation2 + $0x70] sm:$0xff]
    %v4646 = vld [vmem:[#allocation2 + $0x78] sm:$0xff]
    %v4647 = vld [vmem:[#allocation2 + $0x80] sm:$0xff]
    %v4648 = vld [vmem:[#allocation2 + $0x88] sm:$0xff]
    %v4649 = vld [vmem:[#allocation2 + $0x90] sm:$0xff]
    %v4650 = vld [vmem:[#allocation2 + $0x98] sm:$0xff]
    %v4651 = vld [vmem:[#allocation2 + $0xc0] sm:$0xff]
    %v4652 = vld [vmem:[#allocation2 + $0xc8] sm:$0xff]
    %v4653 = vld [vmem:[#allocation2 + $0xd0] sm:$0xff]
    %v4654 = vld [vmem:[#allocation2 + $0xd8] sm:$0xff]
    %v4655 = vld [vmem:[#allocation2 + $0xe0] sm:$0xff]
    %v4656 = vld [vmem:[#allocation2 + $0xe8] sm:$0xff]
    %v4657 = vld [vmem:[#allocation2 + $0xf0] sm:$0xff]
    %v4658 = vld [vmem:[#allocation2 + $0xf8] sm:$0xff]
    %v4659 = vld [vmem:[#allocation2 + $0x120] sm:$0xff]
    %v4660 = vld [vmem:[#allocation2 + $0x128] sm:$0xff]
    %v4661 = vld [vmem:[#allocation2 + $0x130] sm:$0xff]
    %v4662 = vld [vmem:[#allocation2 + $0x138] sm:$0xff]
    %v4663 = vld [vmem:[#allocation2 + $0x140] sm:$0xff]
    %v4664 = vld [vmem:[#allocation2 + $0x148] sm:$0xff]
    %v4665 = vld [vmem:[#allocation2 + $0x150] sm:$0xff]
    %v4666 = vld [vmem:[#allocation2 + $0x158] sm:$0xff]
    %v4667 = vpack.c.bf16 %v4639, %v4635
    %v4668 = vpack.c.bf16 %v4640, %v4636
    %v4669 = vpack.c.bf16 %v4641, %v4637
    %v4670 = vpack.c.bf16 %v4642, %v4638
    %v4671 = vpack.c.bf16 %v4647, %v4643
    %v4672 = vpack.c.bf16 %v4648, %v4644
    %v4673 = vpack.c.bf16 %v4649, %v4645
    %v4674 = vpack.c.bf16 %v4650, %v4646
    %v4675 = vpack.c.bf16 %v4655, %v4651
    %v4676 = vpack.c.bf16 %v4656, %v4652
    %v4677 = vpack.c.bf16 %v4657, %v4653
    %v4678 = vpack.c.bf16 %v4658, %v4654
    %v4679 = vpack.c.bf16 %v4663, %v4659
    %v4680 = vpack.c.bf16 %v4664, %v4660
    %v4681 = vpack.c.bf16 %v4665, %v4661
    %v4682 = vpack.c.bf16 %v4666, %v4662
    %4683 = vst [vmem:[#allocation3] sm:$0xff] %v4667
    %4684 = vst [vmem:[#allocation3 + $0x8] sm:$0xff] %v4668
    %4685 = vst [vmem:[#allocation3 + $0x10] sm:$0xff] %v4669
    %4686 = vst [vmem:[#allocation3 + $0x18] sm:$0xff] %v4670
    %4687 = vst [vmem:[#allocation3 + $0x60] sm:$0xff] %v4671
    %4688 = vst [vmem:[#allocation3 + $0x68] sm:$0xff] %v4672
    %4689 = vst [vmem:[#allocation3 + $0x70] sm:$0xff] %v4673
    %4690 = vst [vmem:[#allocation3 + $0x78] sm:$0xff] %v4674
    %4691 = vst [vmem:[#allocation3 + $0xc0] sm:$0xff] %v4675
    %4692 = vst [vmem:[#allocation3 + $0xc8] sm:$0xff] %v4676
    %4693 = vst [vmem:[#allocation3 + $0xd0] sm:$0xff] %v4677
    %4694 = vst [vmem:[#allocation3 + $0xd8] sm:$0xff] %v4678
    %4695 = vst [vmem:[#allocation3 + $0x120] sm:$0xff] %v4679
    %4696 = vst [vmem:[#allocation3 + $0x128] sm:$0xff] %v4680
    %4697 = vst [vmem:[#allocation3 + $0x130] sm:$0xff] %v4681
    %4698 = vst [vmem:[#allocation3 + $0x138] sm:$0xff] %v4682
    %v4699 = vld [vmem:[#allocation2] sm:$0xfe]
    %v4700 = vld [vmem:[#allocation2 + $0x8] sm:$0xfe]
    %v4701 = vld [vmem:[#allocation2 + $0x10] sm:$0xfe]
    %v4702 = vld [vmem:[#allocation2 + $0x18] sm:$0xfe]
    %v4703 = vld [vmem:[#allocation2 + $0x20] sm:$0xff]
    %v4704 = vld [vmem:[#allocation2 + $0x28] sm:$0xff]
    %v4705 = vld [vmem:[#allocation2 + $0x30] sm:$0xff]
    %v4706 = vld [vmem:[#allocation2 + $0x38] sm:$0xff]
    %v4707 = vld [vmem:[#allocation2 + $0x40] sm:$0x1]
    %v4708 = vld [vmem:[#allocation2 + $0x48] sm:$0x1]
    %v4709 = vld [vmem:[#allocation2 + $0x50] sm:$0x1]
    %v4710 = vld [vmem:[#allocation2 + $0x58] sm:$0x1]
    %v4711 = vld [vmem:[#allocation2 + $0x60] sm:$0xfe]
    %v4712 = vld [vmem:[#allocation2 + $0x68] sm:$0xfe]
    %v4713 = vld [vmem:[#allocation2 + $0x70] sm:$0xfe]
    %v4714 = vld [vmem:[#allocation2 + $0x78] sm:$0xfe]
    %v4715 = vld [vmem:[#allocation2 + $0x80] sm:$0xff]
    %v4716 = vld [vmem:[#allocation2 + $0x88] sm:$0xff]
    %v4717 = vld [vmem:[#allocation2 + $0x90] sm:$0xff]
    %v4718 = vld [vmem:[#allocation2 + $0x98] sm:$0xff]
    %v4719 = vld [vmem:[#allocation2 + $0xa0] sm:$0x1]
    %v4720 = vld [vmem:[#allocation2 + $0xa8] sm:$0x1]
    %v4721 = vld [vmem:[#allocation2 + $0xb0] sm:$0x1]
    %v4722 = vld [vmem:[#allocation2 + $0xb8] sm:$0x1]
    %v4723 = vld [vmem:[#allocation2 + $0xc0] sm:$0xfe]
    %v4724 = vld [vmem:[#allocation2 + $0xc8] sm:$0xfe]
    %v4725 = vld [vmem:[#allocation2 + $0xd0] sm:$0xfe]
    %v4726 = vld [vmem:[#allocation2 + $0xd8] sm:$0xfe]
    %v4727 = vld [vmem:[#allocation2 + $0xe0] sm:$0xff]
    %v4728 = vld [vmem:[#allocation2 + $0xe8] sm:$0xff]
    %v4729 = vld [vmem:[#allocation2 + $0xf0] sm:$0xff]
    %v4730 = vld [vmem:[#allocation2 + $0xf8] sm:$0xff]
    %v4731 = vld [vmem:[#allocation2 + $0x100] sm:$0x1]
    %v4732 = vld [vmem:[#allocation2 + $0x108] sm:$0x1]
    %v4733 = vld [vmem:[#allocation2 + $0x110] sm:$0x1]
    %v4734 = vld [vmem:[#allocation2 + $0x118] sm:$0x1]
    %v4735 = vld [vmem:[#allocation2 + $0x120] sm:$0xfe]
    %v4736 = vld [vmem:[#allocation2 + $0x128] sm:$0xfe]
    %v4737 = vld [vmem:[#allocation2 + $0x130] sm:$0xfe]
    %v4738 = vld [vmem:[#allocation2 + $0x138] sm:$0xfe]
    %v4739 = vld [vmem:[#allocation2 + $0x140] sm:$0xff]
    %v4740 = vld [vmem:[#allocation2 + $0x148] sm:$0xff]
    %v4741 = vld [vmem:[#allocation2 + $0x150] sm:$0xff]
    %v4742 = vld [vmem:[#allocation2 + $0x158] sm:$0xff]
    %v4743 = vld [vmem:[#allocation2 + $0x160] sm:$0x1]
    %v4744 = vld [vmem:[#allocation2 + $0x168] sm:$0x1]
    %v4745 = vld [vmem:[#allocation2 + $0x170] sm:$0x1]
    %v4746 = vld [vmem:[#allocation2 + $0x178] sm:$0x1]
    %v4795 = vrot.slane %v4699, 1
    %v4796 = vrot.slane %v4703, 1
    %v4797 = vsel %vm638, %v4795, %v4796
    %v4798 = vrot.slane %v4700, 1
    %v4799 = vrot.slane %v4704, 1
    %v4800 = vsel %vm638, %v4798, %v4799
    %v4801 = vrot.slane %v4701, 1
    %v4802 = vrot.slane %v4705, 1
    %v4803 = vsel %vm638, %v4801, %v4802
    %v4804 = vrot.slane %v4702, 1
    %v4805 = vrot.slane %v4706, 1
    %v4806 = vsel %vm638, %v4804, %v4805
    %v4807 = vrot.slane %v4707, 1
    %v4808 = vsel %vm638, %v4796, %v4807
    %v4809 = vrot.slane %v4708, 1
    %v4810 = vsel %vm638, %v4799, %v4809
    %v4811 = vrot.slane %v4709, 1
    %v4812 = vsel %vm638, %v4802, %v4811
    %v4813 = vrot.slane %v4710, 1
    %v4814 = vsel %vm638, %v4805, %v4813
    %v4815 = vrot.slane %v4711, 1
    %v4816 = vrot.slane %v4715, 1
    %v4817 = vsel %vm638, %v4815, %v4816
    %v4818 = vrot.slane %v4712, 1
    %v4819 = vrot.slane %v4716, 1
    %v4820 = vsel %vm638, %v4818, %v4819
    %v4821 = vrot.slane %v4713, 1
    %v4822 = vrot.slane %v4717, 1
    %v4823 = vsel %vm638, %v4821, %v4822
    %v4824 = vrot.slane %v4714, 1
    %v4825 = vrot.slane %v4718, 1
    %v4826 = vsel %vm638, %v4824, %v4825
    %v4827 = vrot.slane %v4719, 1
    %v4828 = vsel %vm638, %v4816, %v4827
    %v4829 = vrot.slane %v4720, 1
    %v4830 = vsel %vm638, %v4819, %v4829
    %v4831 = vrot.slane %v4721, 1
    %v4832 = vsel %vm638, %v4822, %v4831
    %v4833 = vrot.slane %v4722, 1
    %v4834 = vsel %vm638, %v4825, %v4833
    %v4835 = vrot.slane %v4723, 1
    %v4836 = vrot.slane %v4727, 1
    %v4837 = vsel %vm638, %v4835, %v4836
    %v4838 = vrot.slane %v4724, 1
    %v4839 = vrot.slane %v4728, 1
    %v4840 = vsel %vm638, %v4838, %v4839
    %v4841 = vrot.slane %v4725, 1
    %v4842 = vrot.slane %v4729, 1
    %v4843 = vsel %vm638, %v4841, %v4842
    %v4844 = vrot.slane %v4726, 1
    %v4845 = vrot.slane %v4730, 1
    %v4846 = vsel %vm638, %v4844, %v4845
    %v4847 = vrot.slane %v4731, 1
    %v4848 = vsel %vm638, %v4836, %v4847
    %v4849 = vrot.slane %v4732, 1
    %v4850 = vsel %vm638, %v4839, %v4849
    %v4851 = vrot.slane %v4733, 1
    %v4852 = vsel %vm638, %v4842, %v4851
    %v4853 = vrot.slane %v4734, 1
    %v4854 = vsel %vm638, %v4845, %v4853
    %v4855 = vrot.slane %v4735, 1
    %v4856 = vrot.slane %v4739, 1
    %v4857 = vsel %vm638, %v4855, %v4856
    %v4858 = vrot.slane %v4736, 1
    %v4859 = vrot.slane %v4740, 1
    %v4860 = vsel %vm638, %v4858, %v4859
    %v4861 = vrot.slane %v4737, 1
    %v4862 = vrot.slane %v4741, 1
    %v4863 = vsel %vm638, %v4861, %v4862
    %v4864 = vrot.slane %v4738, 1
    %v4865 = vrot.slane %v4742, 1
    %v4866 = vsel %vm638, %v4864, %v4865
    %v4867 = vrot.slane %v4743, 1
    %v4868 = vsel %vm638, %v4856, %v4867
    %v4869 = vrot.slane %v4744, 1
    %v4870 = vsel %vm638, %v4859, %v4869
    %v4871 = vrot.slane %v4745, 1
    %v4872 = vsel %vm638, %v4862, %v4871
    %v4873 = vrot.slane %v4746, 1
    %v4874 = vsel %vm638, %v4865, %v4873
    %v4907 = vpack.c.bf16 %v4808, %v4797
    %v4908 = vpack.c.bf16 %v4810, %v4800
    %v4909 = vpack.c.bf16 %v4812, %v4803
    %v4910 = vpack.c.bf16 %v4814, %v4806
    %v4911 = vpack.c.bf16 %v4828, %v4817
    %v4912 = vpack.c.bf16 %v4830, %v4820
    %v4913 = vpack.c.bf16 %v4832, %v4823
    %v4914 = vpack.c.bf16 %v4834, %v4826
    %v4915 = vpack.c.bf16 %v4848, %v4837
    %v4916 = vpack.c.bf16 %v4850, %v4840
    %v4917 = vpack.c.bf16 %v4852, %v4843
    %v4918 = vpack.c.bf16 %v4854, %v4846
    %v4919 = vpack.c.bf16 %v4868, %v4857
    %v4920 = vpack.c.bf16 %v4870, %v4860
    %v4921 = vpack.c.bf16 %v4872, %v4863
    %v4922 = vpack.c.bf16 %v4874, %v4866
    %4923 = vst [vmem:[#allocation3 + $0x20] sm:$0xff] %v4907
    %4924 = vst [vmem:[#allocation3 + $0x28] sm:$0xff] %v4908
    %4925 = vst [vmem:[#allocation3 + $0x30] sm:$0xff] %v4909
    %4926 = vst [vmem:[#allocation3 + $0x38] sm:$0xff] %v4910
    %4927 = vst [vmem:[#allocation3 + $0x80] sm:$0xff] %v4911
    %4928 = vst [vmem:[#allocation3 + $0x88] sm:$0xff] %v4912
    %4929 = vst [vmem:[#allocation3 + $0x90] sm:$0xff] %v4913
    %4930 = vst [vmem:[#allocation3 + $0x98] sm:$0xff] %v4914
    %4931 = vst [vmem:[#allocation3 + $0xe0] sm:$0xff] %v4915
    %4932 = vst [vmem:[#allocation3 + $0xe8] sm:$0xff] %v4916
    %4933 = vst [vmem:[#allocation3 + $0xf0] sm:$0xff] %v4917
    %4934 = vst [vmem:[#allocation3 + $0xf8] sm:$0xff] %v4918
    %4935 = vst [vmem:[#allocation3 + $0x140] sm:$0xff] %v4919
    %4936 = vst [vmem:[#allocation3 + $0x148] sm:$0xff] %v4920
    %4937 = vst [vmem:[#allocation3 + $0x150] sm:$0xff] %v4921
    %4938 = vst [vmem:[#allocation3 + $0x158] sm:$0xff] %v4922
    %v4939 = vld [vmem:[#allocation2] sm:$0xfc]
    %v4940 = vld [vmem:[#allocation2 + $0x8] sm:$0xfc]
    %v4941 = vld [vmem:[#allocation2 + $0x10] sm:$0xfc]
    %v4942 = vld [vmem:[#allocation2 + $0x18] sm:$0xfc]
    %v4943 = vld [vmem:[#allocation2 + $0x20] sm:$0xff]
    %v4944 = vld [vmem:[#allocation2 + $0x28] sm:$0xff]
    %v4945 = vld [vmem:[#allocation2 + $0x30] sm:$0xff]
    %v4946 = vld [vmem:[#allocation2 + $0x38] sm:$0xff]
    %v4947 = vld [vmem:[#allocation2 + $0x40] sm:$0x3]
    %v4948 = vld [vmem:[#allocation2 + $0x48] sm:$0x3]
    %v4949 = vld [vmem:[#allocation2 + $0x50] sm:$0x3]
    %v4950 = vld [vmem:[#allocation2 + $0x58] sm:$0x3]
    %v4951 = vld [vmem:[#allocation2 + $0x60] sm:$0xfc]
    %v4952 = vld [vmem:[#allocation2 + $0x68] sm:$0xfc]
    %v4953 = vld [vmem:[#allocation2 + $0x70] sm:$0xfc]
    %v4954 = vld [vmem:[#allocation2 + $0x78] sm:$0xfc]
    %v4955 = vld [vmem:[#allocation2 + $0x80] sm:$0xff]
    %v4956 = vld [vmem:[#allocation2 + $0x88] sm:$0xff]
    %v4957 = vld [vmem:[#allocation2 + $0x90] sm:$0xff]
    %v4958 = vld [vmem:[#allocation2 + $0x98] sm:$0xff]
    %v4959 = vld [vmem:[#allocation2 + $0xa0] sm:$0x3]
    %v4960 = vld [vmem:[#allocation2 + $0xa8] sm:$0x3]
    %v4961 = vld [vmem:[#allocation2 + $0xb0] sm:$0x3]
    %v4962 = vld [vmem:[#allocation2 + $0xb8] sm:$0x3]
    %v4963 = vld [vmem:[#allocation2 + $0xc0] sm:$0xfc]
    %v4964 = vld [vmem:[#allocation2 + $0xc8] sm:$0xfc]
    %v4965 = vld [vmem:[#allocation2 + $0xd0] sm:$0xfc]
    %v4966 = vld [vmem:[#allocation2 + $0xd8] sm:$0xfc]
    %v4967 = vld [vmem:[#allocation2 + $0xe0] sm:$0xff]
    %v4968 = vld [vmem:[#allocation2 + $0xe8] sm:$0xff]
    %v4969 = vld [vmem:[#allocation2 + $0xf0] sm:$0xff]
    %v4970 = vld [vmem:[#allocation2 + $0xf8] sm:$0xff]
    %v4971 = vld [vmem:[#allocation2 + $0x100] sm:$0x3]
    %v4972 = vld [vmem:[#allocation2 + $0x108] sm:$0x3]
    %v4973 = vld [vmem:[#allocation2 + $0x110] sm:$0x3]
    %v4974 = vld [vmem:[#allocation2 + $0x118] sm:$0x3]
    %v4975 = vld [vmem:[#allocation2 + $0x120] sm:$0xfc]
    %v4976 = vld [vmem:[#allocation2 + $0x128] sm:$0xfc]
    %v4977 = vld [vmem:[#allocation2 + $0x130] sm:$0xfc]
    %v4978 = vld [vmem:[#allocation2 + $0x138] sm:$0xfc]
    %v4979 = vld [vmem:[#allocation2 + $0x140] sm:$0xff]
    %v4980 = vld [vmem:[#allocation2 + $0x148] sm:$0xff]
    %v4981 = vld [vmem:[#allocation2 + $0x150] sm:$0xff]
    %v4982 = vld [vmem:[#allocation2 + $0x158] sm:$0xff]
    %v4983 = vld [vmem:[#allocation2 + $0x160] sm:$0x3]
    %v4984 = vld [vmem:[#allocation2 + $0x168] sm:$0x3]
    %v4985 = vld [vmem:[#allocation2 + $0x170] sm:$0x3]
    %v4986 = vld [vmem:[#allocation2 + $0x178] sm:$0x3]
    %v5035 = vrot.slane %v4939, 2
    %v5036 = vrot.slane %v4943, 2
    %v5037 = vsel %vm879, %v5035, %v5036
    %v5038 = vrot.slane %v4940, 2
    %v5039 = vrot.slane %v4944, 2
    %v5040 = vsel %vm879, %v5038, %v5039
    %v5041 = vrot.slane %v4941, 2
    %v5042 = vrot.slane %v4945, 2
    %v5043 = vsel %vm879, %v5041, %v5042
    %v5044 = vrot.slane %v4942, 2
    %v5045 = vrot.slane %v4946, 2
    %v5046 = vsel %vm879, %v5044, %v5045
    %v5047 = vrot.slane %v4947, 2
    %v5048 = vsel %vm879, %v5036, %v5047
    %v5049 = vrot.slane %v4948, 2
    %v5050 = vsel %vm879, %v5039, %v5049
    %v5051 = vrot.slane %v4949, 2
    %v5052 = vsel %vm879, %v5042, %v5051
    %v5053 = vrot.slane %v4950, 2
    %v5054 = vsel %vm879, %v5045, %v5053
    %v5055 = vrot.slane %v4951, 2
    %v5056 = vrot.slane %v4955, 2
    %v5057 = vsel %vm879, %v5055, %v5056
    %v5058 = vrot.slane %v4952, 2
    %v5059 = vrot.slane %v4956, 2
    %v5060 = vsel %vm879, %v5058, %v5059
    %v5061 = vrot.slane %v4953, 2
    %v5062 = vrot.slane %v4957, 2
    %v5063 = vsel %vm879, %v5061, %v5062
    %v5064 = vrot.slane %v4954, 2
    %v5065 = vrot.slane %v4958, 2
    %v5066 = vsel %vm879, %v5064, %v5065
    %v5067 = vrot.slane %v4959, 2
    %v5068 = vsel %vm879, %v5056, %v5067
    %v5069 = vrot.slane %v4960, 2
    %v5070 = vsel %vm879, %v5059, %v5069
    %v5071 = vrot.slane %v4961, 2
    %v5072 = vsel %vm879, %v5062, %v5071
    %v5073 = vrot.slane %v4962, 2
    %v5074 = vsel %vm879, %v5065, %v5073
    %v5075 = vrot.slane %v4963, 2
    %v5076 = vrot.slane %v4967, 2
    %v5077 = vsel %vm879, %v5075, %v5076
    %v5078 = vrot.slane %v4964, 2
    %v5079 = vrot.slane %v4968, 2
    %v5080 = vsel %vm879, %v5078, %v5079
    %v5081 = vrot.slane %v4965, 2
    %v5082 = vrot.slane %v4969, 2
    %v5083 = vsel %vm879, %v5081, %v5082
    %v5084 = vrot.slane %v4966, 2
    %v5085 = vrot.slane %v4970, 2
    %v5086 = vsel %vm879, %v5084, %v5085
    %v5087 = vrot.slane %v4971, 2
    %v5088 = vsel %vm879, %v5076, %v5087
    %v5089 = vrot.slane %v4972, 2
    %v5090 = vsel %vm879, %v5079, %v5089
    %v5091 = vrot.slane %v4973, 2
    %v5092 = vsel %vm879, %v5082, %v5091
    %v5093 = vrot.slane %v4974, 2
    %v5094 = vsel %vm879, %v5085, %v5093
    %v5095 = vrot.slane %v4975, 2
    %v5096 = vrot.slane %v4979, 2
    %v5097 = vsel %vm879, %v5095, %v5096
    %v5098 = vrot.slane %v4976, 2
    %v5099 = vrot.slane %v4980, 2
    %v5100 = vsel %vm879, %v5098, %v5099
    %v5101 = vrot.slane %v4977, 2
    %v5102 = vrot.slane %v4981, 2
    %v5103 = vsel %vm879, %v5101, %v5102
    %v5104 = vrot.slane %v4978, 2
    %v5105 = vrot.slane %v4982, 2
    %v5106 = vsel %vm879, %v5104, %v5105
    %v5107 = vrot.slane %v4983, 2
    %v5108 = vsel %vm879, %v5096, %v5107
    %v5109 = vrot.slane %v4984, 2
    %v5110 = vsel %vm879, %v5099, %v5109
    %v5111 = vrot.slane %v4985, 2
    %v5112 = vsel %vm879, %v5102, %v5111
    %v5113 = vrot.slane %v4986, 2
    %v5114 = vsel %vm879, %v5105, %v5113
    %v5147 = vpack.c.bf16 %v5048, %v5037
    %v5148 = vpack.c.bf16 %v5050, %v5040
    %v5149 = vpack.c.bf16 %v5052, %v5043
    %v5150 = vpack.c.bf16 %v5054, %v5046
    %v5151 = vpack.c.bf16 %v5068, %v5057
    %v5152 = vpack.c.bf16 %v5070, %v5060
    %v5153 = vpack.c.bf16 %v5072, %v5063
    %v5154 = vpack.c.bf16 %v5074, %v5066
    %v5155 = vpack.c.bf16 %v5088, %v5077
    %v5156 = vpack.c.bf16 %v5090, %v5080
    %v5157 = vpack.c.bf16 %v5092, %v5083
    %v5158 = vpack.c.bf16 %v5094, %v5086
    %v5159 = vpack.c.bf16 %v5108, %v5097
    %v5160 = vpack.c.bf16 %v5110, %v5100
    %v5161 = vpack.c.bf16 %v5112, %v5103
    %v5162 = vpack.c.bf16 %v5114, %v5106
    %5163 = vst [vmem:[#allocation3 + $0x40] sm:$0xff] %v5147
    %5164 = vst [vmem:[#allocation3 + $0x48] sm:$0xff] %v5148
    %5165 = vst [vmem:[#allocation3 + $0x50] sm:$0xff] %v5149
    %5166 = vst [vmem:[#allocation3 + $0x58] sm:$0xff] %v5150
    %5167 = vst [vmem:[#allocation3 + $0xa0] sm:$0xff] %v5151
    %5168 = vst [vmem:[#allocation3 + $0xa8] sm:$0xff] %v5152
    %5169 = vst [vmem:[#allocation3 + $0xb0] sm:$0xff] %v5153
    %5170 = vst [vmem:[#allocation3 + $0xb8] sm:$0xff] %v5154
    %5171 = vst [vmem:[#allocation3 + $0x100] sm:$0xff] %v5155
    %5172 = vst [vmem:[#allocation3 + $0x108] sm:$0xff] %v5156
    %5173 = vst [vmem:[#allocation3 + $0x110] sm:$0xff] %v5157
    %5174 = vst [vmem:[#allocation3 + $0x118] sm:$0xff] %v5158
    %5175 = vst [vmem:[#allocation3 + $0x160] sm:$0xff] %v5159
    %5176 = vst [vmem:[#allocation3 + $0x168] sm:$0xff] %v5160
    %5177 = vst [vmem:[#allocation3 + $0x170] sm:$0xff] %v5161
    %5178 = vst [vmem:[#allocation3 + $0x178] sm:$0xff] %v5162
    %v5179 = vld [vmem:[#allocation3] sm:$0xff]
    %v5180 = vld [vmem:[#allocation3 + $0x8] sm:$0xff]
    %v5181 = vld [vmem:[#allocation3 + $0x10] sm:$0xff]
    %v5182 = vld [vmem:[#allocation3 + $0x18] sm:$0xff]
    %v5183 = vld [vmem:[#allocation3 + $0x20] sm:$0xff]
    %v5184 = vld [vmem:[#allocation3 + $0x28] sm:$0xff]
    %v5185 = vld [vmem:[#allocation3 + $0x30] sm:$0xff]
    %v5186 = vld [vmem:[#allocation3 + $0x38] sm:$0xff]
    %v5187 = vld [vmem:[#allocation3 + $0x40] sm:$0xff]
    %v5188 = vld [vmem:[#allocation3 + $0x48] sm:$0xff]
    %v5189 = vld [vmem:[#allocation3 + $0x50] sm:$0xff]
    %v5190 = vld [vmem:[#allocation3 + $0x58] sm:$0xff]
    %v5191 = vld [vmem:[#allocation3 + $0x60] sm:$0xff]
    %v5192 = vld [vmem:[#allocation3 + $0x68] sm:$0xff]
    %v5193 = vld [vmem:[#allocation3 + $0x70] sm:$0xff]
    %v5194 = vld [vmem:[#allocation3 + $0x78] sm:$0xff]
    %v5195 = vld [vmem:[#allocation3 + $0x80] sm:$0xff]
    %v5196 = vld [vmem:[#allocation3 + $0x88] sm:$0xff]
    %v5197 = vld [vmem:[#allocation3 + $0x90] sm:$0xff]
    %v5198 = vld [vmem:[#allocation3 + $0x98] sm:$0xff]
    %v5199 = vld [vmem:[#allocation3 + $0xa0] sm:$0xff]
    %v5200 = vld [vmem:[#allocation3 + $0xa8] sm:$0xff]
    %v5201 = vld [vmem:[#allocation3 + $0xb0] sm:$0xff]
    %v5202 = vld [vmem:[#allocation3 + $0xb8] sm:$0xff]
    %v5203 = vld [vmem:[#allocation3 + $0xc0] sm:$0xff]
    %v5204 = vld [vmem:[#allocation3 + $0xc8] sm:$0xff]
    %v5205 = vld [vmem:[#allocation3 + $0xd0] sm:$0xff]
    %v5206 = vld [vmem:[#allocation3 + $0xd8] sm:$0xff]
    %v5207 = vld [vmem:[#allocation3 + $0xe0] sm:$0xff]
    %v5208 = vld [vmem:[#allocation3 + $0xe8] sm:$0xff]
    %v5209 = vld [vmem:[#allocation3 + $0xf0] sm:$0xff]
    %v5210 = vld [vmem:[#allocation3 + $0xf8] sm:$0xff]
    %v5211 = vld [vmem:[#allocation3 + $0x100] sm:$0xff]
    %v5212 = vld [vmem:[#allocation3 + $0x108] sm:$0xff]
    %v5213 = vld [vmem:[#allocation3 + $0x110] sm:$0xff]
    %v5214 = vld [vmem:[#allocation3 + $0x118] sm:$0xff]
    %v5215 = vld [vmem:[#allocation3 + $0x120] sm:$0xff]
    %v5216 = vld [vmem:[#allocation3 + $0x128] sm:$0xff]
    %v5217 = vld [vmem:[#allocation3 + $0x130] sm:$0xff]
    %v5218 = vld [vmem:[#allocation3 + $0x138] sm:$0xff]
    %v5219 = vld [vmem:[#allocation3 + $0x140] sm:$0xff]
    %v5220 = vld [vmem:[#allocation3 + $0x148] sm:$0xff]
    %v5221 = vld [vmem:[#allocation3 + $0x150] sm:$0xff]
    %v5222 = vld [vmem:[#allocation3 + $0x158] sm:$0xff]
    %v5223 = vld [vmem:[#allocation3 + $0x160] sm:$0xff]
    %v5224 = vld [vmem:[#allocation3 + $0x168] sm:$0xff]
    %v5225 = vld [vmem:[#allocation3 + $0x170] sm:$0xff]
    %v5226 = vld [vmem:[#allocation3 + $0x178] sm:$0xff]
    %v5227 = vld [vmem:[#allocation10] sm:$0xff]
    %v5228 = vld [vmem:[#allocation10 + $0x8] sm:$0xff]
    %v5229 = vld [vmem:[#allocation10 + $0x10] sm:$0xff]
    %v5230 = vld [vmem:[#allocation10 + $0x18] sm:$0xff]
    %v5231 = vld [vmem:[#allocation10 + $0x20] sm:$0xff]
    %v5232 = vld [vmem:[#allocation10 + $0x28] sm:$0xff]
    %v5233 = vld [vmem:[#allocation10 + $0x30] sm:$0xff]
    %v5234 = vld [vmem:[#allocation10 + $0x38] sm:$0xff]
    %v5235 = vld [vmem:[#allocation10 + $0x40] sm:$0xff]
    %v5236 = vld [vmem:[#allocation10 + $0x48] sm:$0xff]
    %v5237 = vld [vmem:[#allocation10 + $0x50] sm:$0xff]
    %v5238 = vld [vmem:[#allocation10 + $0x58] sm:$0xff]
    %v5239 = vld [vmem:[#allocation10 + $0x60] sm:$0xff]
    %v5240 = vld [vmem:[#allocation10 + $0x68] sm:$0xff]
    %v5241 = vld [vmem:[#allocation10 + $0x70] sm:$0xff]
    %v5242 = vld [vmem:[#allocation10 + $0x78] sm:$0xff]
    %v5243 = vld [vmem:[#allocation10 + $0x80] sm:$0xff]
    %v5244 = vld [vmem:[#allocation10 + $0x88] sm:$0xff]
    %v5245 = vld [vmem:[#allocation10 + $0x90] sm:$0xff]
    %v5246 = vld [vmem:[#allocation10 + $0x98] sm:$0xff]
    %v5247 = vld [vmem:[#allocation10 + $0xa0] sm:$0xff]
    %v5248 = vld [vmem:[#allocation10 + $0xa8] sm:$0xff]
    %v5249 = vld [vmem:[#allocation10 + $0xb0] sm:$0xff]
    %v5250 = vld [vmem:[#allocation10 + $0xb8] sm:$0xff]
    %v5251 = vld [vmem:[#allocation10 + $0xc0] sm:$0xff]
    %v5252 = vld [vmem:[#allocation10 + $0xc8] sm:$0xff]
    %v5253 = vld [vmem:[#allocation10 + $0xd0] sm:$0xff]
    %v5254 = vld [vmem:[#allocation10 + $0xd8] sm:$0xff]
    %v5255 = vld [vmem:[#allocation10 + $0xe0] sm:$0xff]
    %v5256 = vld [vmem:[#allocation10 + $0xe8] sm:$0xff]
    %v5257 = vld [vmem:[#allocation10 + $0xf0] sm:$0xff]
    %v5258 = vld [vmem:[#allocation10 + $0xf8] sm:$0xff]
    %v5259 = vld [vmem:[#allocation10 + $0x100] sm:$0xff]
    %v5260 = vld [vmem:[#allocation10 + $0x108] sm:$0xff]
    %v5261 = vld [vmem:[#allocation10 + $0x110] sm:$0xff]
    %v5262 = vld [vmem:[#allocation10 + $0x118] sm:$0xff]
    %v5263 = vld [vmem:[#allocation10 + $0x120] sm:$0xff]
    %v5264 = vld [vmem:[#allocation10 + $0x128] sm:$0xff]
    %v5265 = vld [vmem:[#allocation10 + $0x130] sm:$0xff]
    %v5266 = vld [vmem:[#allocation10 + $0x138] sm:$0xff]
    %v5267 = vld [vmem:[#allocation10 + $0x140] sm:$0xff]
    %v5268 = vld [vmem:[#allocation10 + $0x148] sm:$0xff]
    %v5269 = vld [vmem:[#allocation10 + $0x150] sm:$0xff]
    %v5270 = vld [vmem:[#allocation10 + $0x158] sm:$0xff]
    %v5271 = vld [vmem:[#allocation10 + $0x160] sm:$0xff]
    %v5272 = vld [vmem:[#allocation10 + $0x168] sm:$0xff]
    %v5273 = vld [vmem:[#allocation10 + $0x170] sm:$0xff]
    %v5274 = vld [vmem:[#allocation10 + $0x178] sm:$0xff]
    %v5275 = vld [vmem:[#allocation10 + $0x180] sm:$0xff]
    %v5276 = vld [vmem:[#allocation10 + $0x188] sm:$0xff]
    %v5277 = vld [vmem:[#allocation10 + $0x190] sm:$0xff]
    %v5278 = vld [vmem:[#allocation10 + $0x198] sm:$0xff]
    %v5279 = vld [vmem:[#allocation10 + $0x1a0] sm:$0xff]
    %v5280 = vld [vmem:[#allocation10 + $0x1a8] sm:$0xff]
    %v5281 = vld [vmem:[#allocation10 + $0x1b0] sm:$0xff]
    %v5282 = vld [vmem:[#allocation10 + $0x1b8] sm:$0xff]
    %v5283 = vld [vmem:[#allocation10 + $0x1c0] sm:$0xff]
    %v5284 = vld [vmem:[#allocation10 + $0x1c8] sm:$0xff]
    %v5285 = vld [vmem:[#allocation10 + $0x1d0] sm:$0xff]
    %v5286 = vld [vmem:[#allocation10 + $0x1d8] sm:$0xff]
    %v5287 = vld [vmem:[#allocation10 + $0x1e0] sm:$0xff]
    %v5288 = vld [vmem:[#allocation10 + $0x1e8] sm:$0xff]
    %v5289 = vld [vmem:[#allocation10 + $0x1f0] sm:$0xff]
    %v5290 = vld [vmem:[#allocation10 + $0x1f8] sm:$0xff]
    %v5291 = vld [vmem:[#allocation10 + $0x200] sm:$0xff]
    %v5292 = vld [vmem:[#allocation10 + $0x208] sm:$0xff]
    %v5293 = vld [vmem:[#allocation10 + $0x210] sm:$0xff]
    %v5294 = vld [vmem:[#allocation10 + $0x218] sm:$0xff]
    %v5295 = vld [vmem:[#allocation10 + $0x220] sm:$0xff]
    %v5296 = vld [vmem:[#allocation10 + $0x228] sm:$0xff]
    %v5297 = vld [vmem:[#allocation10 + $0x230] sm:$0xff]
    %v5298 = vld [vmem:[#allocation10 + $0x238] sm:$0xff]
    %v5299 = vld [vmem:[#allocation10 + $0x240] sm:$0xff]
    %v5300 = vld [vmem:[#allocation10 + $0x248] sm:$0xff]
    %v5301 = vld [vmem:[#allocation10 + $0x250] sm:$0xff]
    %v5302 = vld [vmem:[#allocation10 + $0x258] sm:$0xff]
    %v5303 = vld [vmem:[#allocation10 + $0x260] sm:$0xff]
    %v5304 = vld [vmem:[#allocation10 + $0x268] sm:$0xff]
    %v5305 = vld [vmem:[#allocation10 + $0x270] sm:$0xff]
    %v5306 = vld [vmem:[#allocation10 + $0x278] sm:$0xff]
    %v5307 = vld [vmem:[#allocation10 + $0x280] sm:$0xff]
    %v5308 = vld [vmem:[#allocation10 + $0x288] sm:$0xff]
    %v5309 = vld [vmem:[#allocation10 + $0x290] sm:$0xff]
    %v5310 = vld [vmem:[#allocation10 + $0x298] sm:$0xff]
    %v5311 = vld [vmem:[#allocation10 + $0x2a0] sm:$0xff]
    %v5312 = vld [vmem:[#allocation10 + $0x2a8] sm:$0xff]
    %v5313 = vld [vmem:[#allocation10 + $0x2b0] sm:$0xff]
    %v5314 = vld [vmem:[#allocation10 + $0x2b8] sm:$0xff]
    %v5315 = vld [vmem:[#allocation10 + $0x2c0] sm:$0xff]
    %v5316 = vld [vmem:[#allocation10 + $0x2c8] sm:$0xff]
    %v5317 = vld [vmem:[#allocation10 + $0x2d0] sm:$0xff]
    %v5318 = vld [vmem:[#allocation10 + $0x2d8] sm:$0xff]
    %v5319 = vld [vmem:[#allocation10 + $0x2e0] sm:$0xff]
    %v5320 = vld [vmem:[#allocation10 + $0x2e8] sm:$0xff]
    %v5321 = vld [vmem:[#allocation10 + $0x2f0] sm:$0xff]
    %v5322 = vld [vmem:[#allocation10 + $0x2f8] sm:$0xff]
    %v5323 = vld [vmem:[#allocation10 + $0x300] sm:$0xff]
    %v5324 = vld [vmem:[#allocation10 + $0x308] sm:$0xff]
    %v5325 = vld [vmem:[#allocation10 + $0x310] sm:$0xff]
    %v5326 = vld [vmem:[#allocation10 + $0x318] sm:$0xff]
    %v5327 = vld [vmem:[#allocation10 + $0x320] sm:$0xff]
    %v5328 = vld [vmem:[#allocation10 + $0x328] sm:$0xff]
    %v5329 = vld [vmem:[#allocation10 + $0x330] sm:$0xff]
    %v5330 = vld [vmem:[#allocation10 + $0x338] sm:$0xff]
    %v5331 = vld [vmem:[#allocation10 + $0x340] sm:$0xff]
    %v5332 = vld [vmem:[#allocation10 + $0x348] sm:$0xff]
    %v5333 = vld [vmem:[#allocation10 + $0x350] sm:$0xff]
    %v5334 = vld [vmem:[#allocation10 + $0x358] sm:$0xff]
    %v5335 = vld [vmem:[#allocation10 + $0x360] sm:$0xff]
    %v5336 = vld [vmem:[#allocation10 + $0x368] sm:$0xff]
    %v5337 = vld [vmem:[#allocation10 + $0x370] sm:$0xff]
    %v5338 = vld [vmem:[#allocation10 + $0x378] sm:$0xff]
    %v5339 = vld [vmem:[#allocation10 + $0x380] sm:$0xff]
    %v5340 = vld [vmem:[#allocation10 + $0x388] sm:$0xff]
    %v5341 = vld [vmem:[#allocation10 + $0x390] sm:$0xff]
    %v5342 = vld [vmem:[#allocation10 + $0x398] sm:$0xff]
    %v5343 = vld [vmem:[#allocation10 + $0x3a0] sm:$0xff]
    %v5344 = vld [vmem:[#allocation10 + $0x3a8] sm:$0xff]
    %v5345 = vld [vmem:[#allocation10 + $0x3b0] sm:$0xff]
    %v5346 = vld [vmem:[#allocation10 + $0x3b8] sm:$0xff]
    %v5347 = vld [vmem:[#allocation10 + $0x3c0] sm:$0xff]
    %v5348 = vld [vmem:[#allocation10 + $0x3c8] sm:$0xff]
    %v5349 = vld [vmem:[#allocation10 + $0x3d0] sm:$0xff]
    %v5350 = vld [vmem:[#allocation10 + $0x3d8] sm:$0xff]
    %v5351 = vld [vmem:[#allocation10 + $0x3e0] sm:$0xff]
    %v5352 = vld [vmem:[#allocation10 + $0x3e8] sm:$0xff]
    %v5353 = vld [vmem:[#allocation10 + $0x3f0] sm:$0xff]
    %v5354 = vld [vmem:[#allocation10 + $0x3f8] sm:$0xff]
    %v5355 = vld [vmem:[#allocation10 + $0x400] sm:$0xff]
    %v5356 = vld [vmem:[#allocation10 + $0x408] sm:$0xff]
    %v5357 = vld [vmem:[#allocation10 + $0x410] sm:$0xff]
    %v5358 = vld [vmem:[#allocation10 + $0x418] sm:$0xff]
    %v5359 = vld [vmem:[#allocation10 + $0x420] sm:$0xff]
    %v5360 = vld [vmem:[#allocation10 + $0x428] sm:$0xff]
    %v5361 = vld [vmem:[#allocation10 + $0x430] sm:$0xff]
    %v5362 = vld [vmem:[#allocation10 + $0x438] sm:$0xff]
    %v5363 = vld [vmem:[#allocation10 + $0x440] sm:$0xff]
    %v5364 = vld [vmem:[#allocation10 + $0x448] sm:$0xff]
    %v5365 = vld [vmem:[#allocation10 + $0x450] sm:$0xff]
    %v5366 = vld [vmem:[#allocation10 + $0x458] sm:$0xff]
    %v5367 = vld [vmem:[#allocation10 + $0x460] sm:$0xff]
    %v5368 = vld [vmem:[#allocation10 + $0x468] sm:$0xff]
    %v5369 = vld [vmem:[#allocation10 + $0x470] sm:$0xff]
    %v5370 = vld [vmem:[#allocation10 + $0x478] sm:$0xff]
    %v5371 = vld [vmem:[#allocation10 + $0x480] sm:$0xff]
    %v5372 = vld [vmem:[#allocation10 + $0x488] sm:$0xff]
    %v5373 = vld [vmem:[#allocation10 + $0x490] sm:$0xff]
    %v5374 = vld [vmem:[#allocation10 + $0x498] sm:$0xff]
    %v5375 = vld [vmem:[#allocation10 + $0x4a0] sm:$0xff]
    %v5376 = vld [vmem:[#allocation10 + $0x4a8] sm:$0xff]
    %v5377 = vld [vmem:[#allocation10 + $0x4b0] sm:$0xff]
    %v5378 = vld [vmem:[#allocation10 + $0x4b8] sm:$0xff]
    %v5379 = vld [vmem:[#allocation10 + $0x4c0] sm:$0xff]
    %v5380 = vld [vmem:[#allocation10 + $0x4c8] sm:$0xff]
    %v5381 = vld [vmem:[#allocation10 + $0x4d0] sm:$0xff]
    %v5382 = vld [vmem:[#allocation10 + $0x4d8] sm:$0xff]
    %v5383 = vld [vmem:[#allocation10 + $0x4e0] sm:$0xff]
    %v5384 = vld [vmem:[#allocation10 + $0x4e8] sm:$0xff]
    %v5385 = vld [vmem:[#allocation10 + $0x4f0] sm:$0xff]
    %v5386 = vld [vmem:[#allocation10 + $0x4f8] sm:$0xff]
    %v5387 = vld [vmem:[#allocation10 + $0x500] sm:$0xff]
    %v5388 = vld [vmem:[#allocation10 + $0x508] sm:$0xff]
    %v5389 = vld [vmem:[#allocation10 + $0x510] sm:$0xff]
    %v5390 = vld [vmem:[#allocation10 + $0x518] sm:$0xff]
    %v5391 = vld [vmem:[#allocation10 + $0x520] sm:$0xff]
    %v5392 = vld [vmem:[#allocation10 + $0x528] sm:$0xff]
    %v5393 = vld [vmem:[#allocation10 + $0x530] sm:$0xff]
    %v5394 = vld [vmem:[#allocation10 + $0x538] sm:$0xff]
    %v5395 = vld [vmem:[#allocation10 + $0x540] sm:$0xff]
    %v5396 = vld [vmem:[#allocation10 + $0x548] sm:$0xff]
    %v5397 = vld [vmem:[#allocation10 + $0x550] sm:$0xff]
    %v5398 = vld [vmem:[#allocation10 + $0x558] sm:$0xff]
    %v5399 = vld [vmem:[#allocation10 + $0x560] sm:$0xff]
    %v5400 = vld [vmem:[#allocation10 + $0x568] sm:$0xff]
    %v5401 = vld [vmem:[#allocation10 + $0x570] sm:$0xff]
    %v5402 = vld [vmem:[#allocation10 + $0x578] sm:$0xff]
    %v5403 = vld [vmem:[#allocation10 + $0x580] sm:$0xff]
    %v5404 = vld [vmem:[#allocation10 + $0x588] sm:$0xff]
    %v5405 = vld [vmem:[#allocation10 + $0x590] sm:$0xff]
    %v5406 = vld [vmem:[#allocation10 + $0x598] sm:$0xff]
    %v5407 = vld [vmem:[#allocation10 + $0x5a0] sm:$0xff]
    %v5408 = vld [vmem:[#allocation10 + $0x5a8] sm:$0xff]
    %v5409 = vld [vmem:[#allocation10 + $0x5b0] sm:$0xff]
    %v5410 = vld [vmem:[#allocation10 + $0x5b8] sm:$0xff]
    %v5411 = vld [vmem:[#allocation10 + $0x5c0] sm:$0xff]
    %v5412 = vld [vmem:[#allocation10 + $0x5c8] sm:$0xff]
    %v5413 = vld [vmem:[#allocation10 + $0x5d0] sm:$0xff]
    %v5414 = vld [vmem:[#allocation10 + $0x5d8] sm:$0xff]
    %v5415 = vld [vmem:[#allocation10 + $0x5e0] sm:$0xff]
    %v5416 = vld [vmem:[#allocation10 + $0x5e8] sm:$0xff]
    %v5417 = vld [vmem:[#allocation10 + $0x5f0] sm:$0xff]
    %v5418 = vld [vmem:[#allocation10 + $0x5f8] sm:$0xff]
    %v5419 = vld [vmem:[#allocation10 + $0x600] sm:$0xff]
    %v5420 = vld [vmem:[#allocation10 + $0x608] sm:$0xff]
    %v5421 = vld [vmem:[#allocation10 + $0x610] sm:$0xff]
    %v5422 = vld [vmem:[#allocation10 + $0x618] sm:$0xff]
    %v5423 = vld [vmem:[#allocation10 + $0x620] sm:$0xff]
    %v5424 = vld [vmem:[#allocation10 + $0x628] sm:$0xff]
    %v5425 = vld [vmem:[#allocation10 + $0x630] sm:$0xff]
    %v5426 = vld [vmem:[#allocation10 + $0x638] sm:$0xff]
    %v5427 = vld [vmem:[#allocation10 + $0x640] sm:$0xff]
    %v5428 = vld [vmem:[#allocation10 + $0x648] sm:$0xff]
    %v5429 = vld [vmem:[#allocation10 + $0x650] sm:$0xff]
    %v5430 = vld [vmem:[#allocation10 + $0x658] sm:$0xff]
    %v5431 = vld [vmem:[#allocation10 + $0x660] sm:$0xff]
    %v5432 = vld [vmem:[#allocation10 + $0x668] sm:$0xff]
    %v5433 = vld [vmem:[#allocation10 + $0x670] sm:$0xff]
    %v5434 = vld [vmem:[#allocation10 + $0x678] sm:$0xff]
    %v5435 = vld [vmem:[#allocation10 + $0x680] sm:$0xff]
    %v5436 = vld [vmem:[#allocation10 + $0x688] sm:$0xff]
    %v5437 = vld [vmem:[#allocation10 + $0x690] sm:$0xff]
    %v5438 = vld [vmem:[#allocation10 + $0x698] sm:$0xff]
    %v5439 = vld [vmem:[#allocation10 + $0x6a0] sm:$0xff]
    %v5440 = vld [vmem:[#allocation10 + $0x6a8] sm:$0xff]
    %v5441 = vld [vmem:[#allocation10 + $0x6b0] sm:$0xff]
    %v5442 = vld [vmem:[#allocation10 + $0x6b8] sm:$0xff]
    %v5443 = vld [vmem:[#allocation10 + $0x6c0] sm:$0xff]
    %v5444 = vld [vmem:[#allocation10 + $0x6c8] sm:$0xff]
    %v5445 = vld [vmem:[#allocation10 + $0x6d0] sm:$0xff]
    %v5446 = vld [vmem:[#allocation10 + $0x6d8] sm:$0xff]
    %v5447 = vld [vmem:[#allocation10 + $0x6e0] sm:$0xff]
    %v5448 = vld [vmem:[#allocation10 + $0x6e8] sm:$0xff]
    %v5449 = vld [vmem:[#allocation10 + $0x6f0] sm:$0xff]
    %v5450 = vld [vmem:[#allocation10 + $0x6f8] sm:$0xff]
    %v5451 = vld [vmem:[#allocation10 + $0x700] sm:$0xff]
    %v5452 = vld [vmem:[#allocation10 + $0x708] sm:$0xff]
    %v5453 = vld [vmem:[#allocation10 + $0x710] sm:$0xff]
    %v5454 = vld [vmem:[#allocation10 + $0x718] sm:$0xff]
    %v5455 = vld [vmem:[#allocation10 + $0x720] sm:$0xff]
    %v5456 = vld [vmem:[#allocation10 + $0x728] sm:$0xff]
    %v5457 = vld [vmem:[#allocation10 + $0x730] sm:$0xff]
    %v5458 = vld [vmem:[#allocation10 + $0x738] sm:$0xff]
    %v5459 = vld [vmem:[#allocation10 + $0x740] sm:$0xff]
    %v5460 = vld [vmem:[#allocation10 + $0x748] sm:$0xff]
    %v5461 = vld [vmem:[#allocation10 + $0x750] sm:$0xff]
    %v5462 = vld [vmem:[#allocation10 + $0x758] sm:$0xff]
    %v5463 = vld [vmem:[#allocation10 + $0x760] sm:$0xff]
    %v5464 = vld [vmem:[#allocation10 + $0x768] sm:$0xff]
    %v5465 = vld [vmem:[#allocation10 + $0x770] sm:$0xff]
    %v5466 = vld [vmem:[#allocation10 + $0x778] sm:$0xff]
    %v5467 = vld [vmem:[#allocation10 + $0x780] sm:$0xff]
    %v5468 = vld [vmem:[#allocation10 + $0x788] sm:$0xff]
    %v5469 = vld [vmem:[#allocation10 + $0x790] sm:$0xff]
    %v5470 = vld [vmem:[#allocation10 + $0x798] sm:$0xff]
    %v5471 = vld [vmem:[#allocation10 + $0x7a0] sm:$0xff]
    %v5472 = vld [vmem:[#allocation10 + $0x7a8] sm:$0xff]
    %v5473 = vld [vmem:[#allocation10 + $0x7b0] sm:$0xff]
    %v5474 = vld [vmem:[#allocation10 + $0x7b8] sm:$0xff]
    %v5475 = vld [vmem:[#allocation10 + $0x7c0] sm:$0xff]
    %v5476 = vld [vmem:[#allocation10 + $0x7c8] sm:$0xff]
    %v5477 = vld [vmem:[#allocation10 + $0x7d0] sm:$0xff]
    %v5478 = vld [vmem:[#allocation10 + $0x7d8] sm:$0xff]
    %v5479 = vld [vmem:[#allocation10 + $0x7e0] sm:$0xff]
    %v5480 = vld [vmem:[#allocation10 + $0x7e8] sm:$0xff]
    %v5481 = vld [vmem:[#allocation10 + $0x7f0] sm:$0xff]
    %v5482 = vld [vmem:[#allocation10 + $0x7f8] sm:$0xff]
    %v5483 = vld [vmem:[#allocation10 + $0x800] sm:$0xff]
    %v5484 = vld [vmem:[#allocation10 + $0x808] sm:$0xff]
    %v5485 = vld [vmem:[#allocation10 + $0x810] sm:$0xff]
    %v5486 = vld [vmem:[#allocation10 + $0x818] sm:$0xff]
    %v5487 = vld [vmem:[#allocation10 + $0x820] sm:$0xff]
    %v5488 = vld [vmem:[#allocation10 + $0x828] sm:$0xff]
    %v5489 = vld [vmem:[#allocation10 + $0x830] sm:$0xff]
    %v5490 = vld [vmem:[#allocation10 + $0x838] sm:$0xff]
    %v5491 = vld [vmem:[#allocation10 + $0x840] sm:$0xff]
    %v5492 = vld [vmem:[#allocation10 + $0x848] sm:$0xff]
    %v5493 = vld [vmem:[#allocation10 + $0x850] sm:$0xff]
    %v5494 = vld [vmem:[#allocation10 + $0x858] sm:$0xff]
    %v5495 = vld [vmem:[#allocation10 + $0x860] sm:$0xff]
    %v5496 = vld [vmem:[#allocation10 + $0x868] sm:$0xff]
    %v5497 = vld [vmem:[#allocation10 + $0x870] sm:$0xff]
    %v5498 = vld [vmem:[#allocation10 + $0x878] sm:$0xff]
    %v5499 = vld [vmem:[#allocation10 + $0x880] sm:$0xff]
    %v5500 = vld [vmem:[#allocation10 + $0x888] sm:$0xff]
    %v5501 = vld [vmem:[#allocation10 + $0x890] sm:$0xff]
    %v5502 = vld [vmem:[#allocation10 + $0x898] sm:$0xff]
    %v5503 = vld [vmem:[#allocation10 + $0x8a0] sm:$0xff]
    %v5504 = vld [vmem:[#allocation10 + $0x8a8] sm:$0xff]
    %v5505 = vld [vmem:[#allocation10 + $0x8b0] sm:$0xff]
    %v5506 = vld [vmem:[#allocation10 + $0x8b8] sm:$0xff]
    %v5507 = vld [vmem:[#allocation10 + $0x8c0] sm:$0xff]
    %v5508 = vld [vmem:[#allocation10 + $0x8c8] sm:$0xff]
    %v5509 = vld [vmem:[#allocation10 + $0x8d0] sm:$0xff]
    %v5510 = vld [vmem:[#allocation10 + $0x8d8] sm:$0xff]
    %v5511 = vld [vmem:[#allocation10 + $0x8e0] sm:$0xff]
    %v5512 = vld [vmem:[#allocation10 + $0x8e8] sm:$0xff]
    %v5513 = vld [vmem:[#allocation10 + $0x8f0] sm:$0xff]
    %v5514 = vld [vmem:[#allocation10 + $0x8f8] sm:$0xff]
    %v5515 = vld [vmem:[#allocation10 + $0x900] sm:$0xff]
    %v5516 = vld [vmem:[#allocation10 + $0x908] sm:$0xff]
    %v5517 = vld [vmem:[#allocation10 + $0x910] sm:$0xff]
    %v5518 = vld [vmem:[#allocation10 + $0x918] sm:$0xff]
    %v5519 = vld [vmem:[#allocation10 + $0x920] sm:$0xff]
    %v5520 = vld [vmem:[#allocation10 + $0x928] sm:$0xff]
    %v5521 = vld [vmem:[#allocation10 + $0x930] sm:$0xff]
    %v5522 = vld [vmem:[#allocation10 + $0x938] sm:$0xff]
    %v5523 = vld [vmem:[#allocation10 + $0x940] sm:$0xff]
    %v5524 = vld [vmem:[#allocation10 + $0x948] sm:$0xff]
    %v5525 = vld [vmem:[#allocation10 + $0x950] sm:$0xff]
    %v5526 = vld [vmem:[#allocation10 + $0x958] sm:$0xff]
    %v5527 = vld [vmem:[#allocation10 + $0x960] sm:$0xff]
    %v5528 = vld [vmem:[#allocation10 + $0x968] sm:$0xff]
    %v5529 = vld [vmem:[#allocation10 + $0x970] sm:$0xff]
    %v5530 = vld [vmem:[#allocation10 + $0x978] sm:$0xff]
    %v5531 = vld [vmem:[#allocation10 + $0x980] sm:$0xff]
    %v5532 = vld [vmem:[#allocation10 + $0x988] sm:$0xff]
    %v5533 = vld [vmem:[#allocation10 + $0x990] sm:$0xff]
    %v5534 = vld [vmem:[#allocation10 + $0x998] sm:$0xff]
    %v5535 = vld [vmem:[#allocation10 + $0x9a0] sm:$0xff]
    %v5536 = vld [vmem:[#allocation10 + $0x9a8] sm:$0xff]
    %v5537 = vld [vmem:[#allocation10 + $0x9b0] sm:$0xff]
    %v5538 = vld [vmem:[#allocation10 + $0x9b8] sm:$0xff]
    %v5539 = vld [vmem:[#allocation10 + $0x9c0] sm:$0xff]
    %v5540 = vld [vmem:[#allocation10 + $0x9c8] sm:$0xff]
    %v5541 = vld [vmem:[#allocation10 + $0x9d0] sm:$0xff]
    %v5542 = vld [vmem:[#allocation10 + $0x9d8] sm:$0xff]
    %v5543 = vld [vmem:[#allocation10 + $0x9e0] sm:$0xff]
    %v5544 = vld [vmem:[#allocation10 + $0x9e8] sm:$0xff]
    %v5545 = vld [vmem:[#allocation10 + $0x9f0] sm:$0xff]
    %v5546 = vld [vmem:[#allocation10 + $0x9f8] sm:$0xff]
    %v5547 = vld [vmem:[#allocation10 + $0xa00] sm:$0xff]
    %v5548 = vld [vmem:[#allocation10 + $0xa08] sm:$0xff]
    %v5549 = vld [vmem:[#allocation10 + $0xa10] sm:$0xff]
    %v5550 = vld [vmem:[#allocation10 + $0xa18] sm:$0xff]
    %v5551 = vld [vmem:[#allocation10 + $0xa20] sm:$0xff]
    %v5552 = vld [vmem:[#allocation10 + $0xa28] sm:$0xff]
    %v5553 = vld [vmem:[#allocation10 + $0xa30] sm:$0xff]
    %v5554 = vld [vmem:[#allocation10 + $0xa38] sm:$0xff]
    %v5555 = vld [vmem:[#allocation10 + $0xa40] sm:$0xff]
    %v5556 = vld [vmem:[#allocation10 + $0xa48] sm:$0xff]
    %v5557 = vld [vmem:[#allocation10 + $0xa50] sm:$0xff]
    %v5558 = vld [vmem:[#allocation10 + $0xa58] sm:$0xff]
    %v5559 = vld [vmem:[#allocation10 + $0xa60] sm:$0xff]
    %v5560 = vld [vmem:[#allocation10 + $0xa68] sm:$0xff]
    %v5561 = vld [vmem:[#allocation10 + $0xa70] sm:$0xff]
    %v5562 = vld [vmem:[#allocation10 + $0xa78] sm:$0xff]
    %v5563 = vld [vmem:[#allocation10 + $0xa80] sm:$0xff]
    %v5564 = vld [vmem:[#allocation10 + $0xa88] sm:$0xff]
    %v5565 = vld [vmem:[#allocation10 + $0xa90] sm:$0xff]
    %v5566 = vld [vmem:[#allocation10 + $0xa98] sm:$0xff]
    %v5567 = vld [vmem:[#allocation10 + $0xaa0] sm:$0xff]
    %v5568 = vld [vmem:[#allocation10 + $0xaa8] sm:$0xff]
    %v5569 = vld [vmem:[#allocation10 + $0xab0] sm:$0xff]
    %v5570 = vld [vmem:[#allocation10 + $0xab8] sm:$0xff]
    %v5571 = vld [vmem:[#allocation10 + $0xac0] sm:$0xff]
    %v5572 = vld [vmem:[#allocation10 + $0xac8] sm:$0xff]
    %v5573 = vld [vmem:[#allocation10 + $0xad0] sm:$0xff]
    %v5574 = vld [vmem:[#allocation10 + $0xad8] sm:$0xff]
    %v5575 = vld [vmem:[#allocation10 + $0xae0] sm:$0xff]
    %v5576 = vld [vmem:[#allocation10 + $0xae8] sm:$0xff]
    %v5577 = vld [vmem:[#allocation10 + $0xaf0] sm:$0xff]
    %v5578 = vld [vmem:[#allocation10 + $0xaf8] sm:$0xff]
    %v5579 = vld [vmem:[#allocation10 + $0xb00] sm:$0xff]
    %v5580 = vld [vmem:[#allocation10 + $0xb08] sm:$0xff]
    %v5581 = vld [vmem:[#allocation10 + $0xb10] sm:$0xff]
    %v5582 = vld [vmem:[#allocation10 + $0xb18] sm:$0xff]
    %v5583 = vld [vmem:[#allocation10 + $0xb20] sm:$0xff]
    %v5584 = vld [vmem:[#allocation10 + $0xb28] sm:$0xff]
    %v5585 = vld [vmem:[#allocation10 + $0xb30] sm:$0xff]
    %v5586 = vld [vmem:[#allocation10 + $0xb38] sm:$0xff]
    %v5587 = vld [vmem:[#allocation10 + $0xb40] sm:$0xff]
    %v5588 = vld [vmem:[#allocation10 + $0xb48] sm:$0xff]
    %v5589 = vld [vmem:[#allocation10 + $0xb50] sm:$0xff]
    %v5590 = vld [vmem:[#allocation10 + $0xb58] sm:$0xff]
    %v5591 = vld [vmem:[#allocation10 + $0xb60] sm:$0xff]
    %v5592 = vld [vmem:[#allocation10 + $0xb68] sm:$0xff]
    %v5593 = vld [vmem:[#allocation10 + $0xb70] sm:$0xff]
    %v5594 = vld [vmem:[#allocation10 + $0xb78] sm:$0xff]
    %v5595 = vld [vmem:[#allocation10 + $0xb80] sm:$0xff]
    %v5596 = vld [vmem:[#allocation10 + $0xb88] sm:$0xff]
    %v5597 = vld [vmem:[#allocation10 + $0xb90] sm:$0xff]
    %v5598 = vld [vmem:[#allocation10 + $0xb98] sm:$0xff]
    %v5599 = vld [vmem:[#allocation10 + $0xba0] sm:$0xff]
    %v5600 = vld [vmem:[#allocation10 + $0xba8] sm:$0xff]
    %v5601 = vld [vmem:[#allocation10 + $0xbb0] sm:$0xff]
    %v5602 = vld [vmem:[#allocation10 + $0xbb8] sm:$0xff]
    %v5603 = vld [vmem:[#allocation10 + $0xbc0] sm:$0xff]
    %v5604 = vld [vmem:[#allocation10 + $0xbc8] sm:$0xff]
    %v5605 = vld [vmem:[#allocation10 + $0xbd0] sm:$0xff]
    %v5606 = vld [vmem:[#allocation10 + $0xbd8] sm:$0xff]
    %v5607 = vld [vmem:[#allocation10 + $0xbe0] sm:$0xff]
    %v5608 = vld [vmem:[#allocation10 + $0xbe8] sm:$0xff]
    %v5609 = vld [vmem:[#allocation10 + $0xbf0] sm:$0xff]
    %v5610 = vld [vmem:[#allocation10 + $0xbf8] sm:$0xff]
    %v5995 = vunpack.c.l.b16 %v5227
    %v5996 = vunpack.c.h.b16 %v5227
    %v5997 = vunpack.c.l.b16 %v5228
    %v5998 = vunpack.c.h.b16 %v5228
    %v5999 = vunpack.c.l.b16 %v5229
    %v6000 = vunpack.c.h.b16 %v5229
    %v6001 = vunpack.c.l.b16 %v5230
    %v6002 = vunpack.c.h.b16 %v5230
    %v6003 = vunpack.c.l.b16 %v5231
    %v6004 = vunpack.c.h.b16 %v5231
    %v6005 = vunpack.c.l.b16 %v5232
    %v6006 = vunpack.c.h.b16 %v5232
    %v6007 = vunpack.c.l.b16 %v5233
    %v6008 = vunpack.c.h.b16 %v5233
    %v6009 = vunpack.c.l.b16 %v5234
    %v6010 = vunpack.c.h.b16 %v5234
    %v6011 = vunpack.c.l.b16 %v5235
    %v6012 = vunpack.c.h.b16 %v5235
    %v6013 = vunpack.c.l.b16 %v5236
    %v6014 = vunpack.c.h.b16 %v5236
    %v6015 = vunpack.c.l.b16 %v5237
    %v6016 = vunpack.c.h.b16 %v5237
    %v6017 = vunpack.c.l.b16 %v5238
    %v6018 = vunpack.c.h.b16 %v5238
    %v6019 = vunpack.c.l.b16 %v5239
    %v6020 = vunpack.c.h.b16 %v5239
    %v6021 = vunpack.c.l.b16 %v5240
    %v6022 = vunpack.c.h.b16 %v5240
    %v6023 = vunpack.c.l.b16 %v5241
    %v6024 = vunpack.c.h.b16 %v5241
    %v6025 = vunpack.c.l.b16 %v5242
    %v6026 = vunpack.c.h.b16 %v5242
    %v6027 = vunpack.c.l.b16 %v5243
    %v6028 = vunpack.c.h.b16 %v5243
    %v6029 = vunpack.c.l.b16 %v5244
    %v6030 = vunpack.c.h.b16 %v5244
    %v6031 = vunpack.c.l.b16 %v5245
    %v6032 = vunpack.c.h.b16 %v5245
    %v6033 = vunpack.c.l.b16 %v5246
    %v6034 = vunpack.c.h.b16 %v5246
    %v6035 = vunpack.c.l.b16 %v5247
    %v6036 = vunpack.c.h.b16 %v5247
    %v6037 = vunpack.c.l.b16 %v5248
    %v6038 = vunpack.c.h.b16 %v5248
    %v6039 = vunpack.c.l.b16 %v5249
    %v6040 = vunpack.c.h.b16 %v5249
    %v6041 = vunpack.c.l.b16 %v5250
    %v6042 = vunpack.c.h.b16 %v5250
    %v6043 = vunpack.c.l.b16 %v5251
    %v6044 = vunpack.c.h.b16 %v5251
    %v6045 = vunpack.c.l.b16 %v5252
    %v6046 = vunpack.c.h.b16 %v5252
    %v6047 = vunpack.c.l.b16 %v5253
    %v6048 = vunpack.c.h.b16 %v5253
    %v6049 = vunpack.c.l.b16 %v5254
    %v6050 = vunpack.c.h.b16 %v5254
    %v6051 = vunpack.c.l.b16 %v5255
    %v6052 = vunpack.c.h.b16 %v5255
    %v6053 = vunpack.c.l.b16 %v5256
    %v6054 = vunpack.c.h.b16 %v5256
    %v6055 = vunpack.c.l.b16 %v5257
    %v6056 = vunpack.c.h.b16 %v5257
    %v6057 = vunpack.c.l.b16 %v5258
    %v6058 = vunpack.c.h.b16 %v5258
    %v6059 = vunpack.c.l.b16 %v5259
    %v6060 = vunpack.c.h.b16 %v5259
    %v6061 = vunpack.c.l.b16 %v5260
    %v6062 = vunpack.c.h.b16 %v5260
    %v6063 = vunpack.c.l.b16 %v5261
    %v6064 = vunpack.c.h.b16 %v5261
    %v6065 = vunpack.c.l.b16 %v5262
    %v6066 = vunpack.c.h.b16 %v5262
    %v6067 = vunpack.c.l.b16 %v5263
    %v6068 = vunpack.c.h.b16 %v5263
    %v6069 = vunpack.c.l.b16 %v5264
    %v6070 = vunpack.c.h.b16 %v5264
    %v6071 = vunpack.c.l.b16 %v5265
    %v6072 = vunpack.c.h.b16 %v5265
    %v6073 = vunpack.c.l.b16 %v5266
    %v6074 = vunpack.c.h.b16 %v5266
    %v6075 = vunpack.c.l.b16 %v5267
    %v6076 = vunpack.c.h.b16 %v5267
    %v6077 = vunpack.c.l.b16 %v5268
    %v6078 = vunpack.c.h.b16 %v5268
    %v6079 = vunpack.c.l.b16 %v5269
    %v6080 = vunpack.c.h.b16 %v5269
    %v6081 = vunpack.c.l.b16 %v5270
    %v6082 = vunpack.c.h.b16 %v5270
    %v6083 = vunpack.c.l.b16 %v5271
    %v6084 = vunpack.c.h.b16 %v5271
    %v6085 = vunpack.c.l.b16 %v5272
    %v6086 = vunpack.c.h.b16 %v5272
    %v6087 = vunpack.c.l.b16 %v5273
    %v6088 = vunpack.c.h.b16 %v5273
    %v6089 = vunpack.c.l.b16 %v5274
    %v6090 = vunpack.c.h.b16 %v5274
    %v6091 = vunpack.c.l.b16 %v5275
    %v6092 = vunpack.c.h.b16 %v5275
    %v6093 = vunpack.c.l.b16 %v5276
    %v6094 = vunpack.c.h.b16 %v5276
    %v6095 = vunpack.c.l.b16 %v5277
    %v6096 = vunpack.c.h.b16 %v5277
    %v6097 = vunpack.c.l.b16 %v5278
    %v6098 = vunpack.c.h.b16 %v5278
    %v6099 = vunpack.c.l.b16 %v5279
    %v6100 = vunpack.c.h.b16 %v5279
    %v6101 = vunpack.c.l.b16 %v5280
    %v6102 = vunpack.c.h.b16 %v5280
    %v6103 = vunpack.c.l.b16 %v5281
    %v6104 = vunpack.c.h.b16 %v5281
    %v6105 = vunpack.c.l.b16 %v5282
    %v6106 = vunpack.c.h.b16 %v5282
    %v6107 = vunpack.c.l.b16 %v5283
    %v6108 = vunpack.c.h.b16 %v5283
    %v6109 = vunpack.c.l.b16 %v5284
    %v6110 = vunpack.c.h.b16 %v5284
    %v6111 = vunpack.c.l.b16 %v5285
    %v6112 = vunpack.c.h.b16 %v5285
    %v6113 = vunpack.c.l.b16 %v5286
    %v6114 = vunpack.c.h.b16 %v5286
    %v6115 = vunpack.c.l.b16 %v5287
    %v6116 = vunpack.c.h.b16 %v5287
    %v6117 = vunpack.c.l.b16 %v5288
    %v6118 = vunpack.c.h.b16 %v5288
    %v6119 = vunpack.c.l.b16 %v5289
    %v6120 = vunpack.c.h.b16 %v5289
    %v6121 = vunpack.c.l.b16 %v5290
    %v6122 = vunpack.c.h.b16 %v5290
    %v6123 = vunpack.c.l.b16 %v5291
    %v6124 = vunpack.c.h.b16 %v5291
    %v6125 = vunpack.c.l.b16 %v5292
    %v6126 = vunpack.c.h.b16 %v5292
    %v6127 = vunpack.c.l.b16 %v5293
    %v6128 = vunpack.c.h.b16 %v5293
    %v6129 = vunpack.c.l.b16 %v5294
    %v6130 = vunpack.c.h.b16 %v5294
    %v6131 = vunpack.c.l.b16 %v5295
    %v6132 = vunpack.c.h.b16 %v5295
    %v6133 = vunpack.c.l.b16 %v5296
    %v6134 = vunpack.c.h.b16 %v5296
    %v6135 = vunpack.c.l.b16 %v5297
    %v6136 = vunpack.c.h.b16 %v5297
    %v6137 = vunpack.c.l.b16 %v5298
    %v6138 = vunpack.c.h.b16 %v5298
    %v6139 = vunpack.c.l.b16 %v5299
    %v6140 = vunpack.c.h.b16 %v5299
    %v6141 = vunpack.c.l.b16 %v5300
    %v6142 = vunpack.c.h.b16 %v5300
    %v6143 = vunpack.c.l.b16 %v5301
    %v6144 = vunpack.c.h.b16 %v5301
    %v6145 = vunpack.c.l.b16 %v5302
    %v6146 = vunpack.c.h.b16 %v5302
    %v6147 = vunpack.c.l.b16 %v5303
    %v6148 = vunpack.c.h.b16 %v5303
    %v6149 = vunpack.c.l.b16 %v5304
    %v6150 = vunpack.c.h.b16 %v5304
    %v6151 = vunpack.c.l.b16 %v5305
    %v6152 = vunpack.c.h.b16 %v5305
    %v6153 = vunpack.c.l.b16 %v5306
    %v6154 = vunpack.c.h.b16 %v5306
    %v6155 = vunpack.c.l.b16 %v5307
    %v6156 = vunpack.c.h.b16 %v5307
    %v6157 = vunpack.c.l.b16 %v5308
    %v6158 = vunpack.c.h.b16 %v5308
    %v6159 = vunpack.c.l.b16 %v5309
    %v6160 = vunpack.c.h.b16 %v5309
    %v6161 = vunpack.c.l.b16 %v5310
    %v6162 = vunpack.c.h.b16 %v5310
    %v6163 = vunpack.c.l.b16 %v5311
    %v6164 = vunpack.c.h.b16 %v5311
    %v6165 = vunpack.c.l.b16 %v5312
    %v6166 = vunpack.c.h.b16 %v5312
    %v6167 = vunpack.c.l.b16 %v5313
    %v6168 = vunpack.c.h.b16 %v5313
    %v6169 = vunpack.c.l.b16 %v5314
    %v6170 = vunpack.c.h.b16 %v5314
    %v6171 = vunpack.c.l.b16 %v5315
    %v6172 = vunpack.c.h.b16 %v5315
    %v6173 = vunpack.c.l.b16 %v5316
    %v6174 = vunpack.c.h.b16 %v5316
    %v6175 = vunpack.c.l.b16 %v5317
    %v6176 = vunpack.c.h.b16 %v5317
    %v6177 = vunpack.c.l.b16 %v5318
    %v6178 = vunpack.c.h.b16 %v5318
    %v6179 = vunpack.c.l.b16 %v5319
    %v6180 = vunpack.c.h.b16 %v5319
    %v6181 = vunpack.c.l.b16 %v5320
    %v6182 = vunpack.c.h.b16 %v5320
    %v6183 = vunpack.c.l.b16 %v5321
    %v6184 = vunpack.c.h.b16 %v5321
    %v6185 = vunpack.c.l.b16 %v5322
    %v6186 = vunpack.c.h.b16 %v5322
    %v6187 = vunpack.c.l.b16 %v5323
    %v6188 = vunpack.c.h.b16 %v5323
    %v6189 = vunpack.c.l.b16 %v5324
    %v6190 = vunpack.c.h.b16 %v5324
    %v6191 = vunpack.c.l.b16 %v5325
    %v6192 = vunpack.c.h.b16 %v5325
    %v6193 = vunpack.c.l.b16 %v5326
    %v6194 = vunpack.c.h.b16 %v5326
    %v6195 = vunpack.c.l.b16 %v5327
    %v6196 = vunpack.c.h.b16 %v5327
    %v6197 = vunpack.c.l.b16 %v5328
    %v6198 = vunpack.c.h.b16 %v5328
    %v6199 = vunpack.c.l.b16 %v5329
    %v6200 = vunpack.c.h.b16 %v5329
    %v6201 = vunpack.c.l.b16 %v5330
    %v6202 = vunpack.c.h.b16 %v5330
    %v6203 = vunpack.c.l.b16 %v5331
    %v6204 = vunpack.c.h.b16 %v5331
    %v6205 = vunpack.c.l.b16 %v5332
    %v6206 = vunpack.c.h.b16 %v5332
    %v6207 = vunpack.c.l.b16 %v5333
    %v6208 = vunpack.c.h.b16 %v5333
    %v6209 = vunpack.c.l.b16 %v5334
    %v6210 = vunpack.c.h.b16 %v5334
    %v6211 = vunpack.c.l.b16 %v5335
    %v6212 = vunpack.c.h.b16 %v5335
    %v6213 = vunpack.c.l.b16 %v5336
    %v6214 = vunpack.c.h.b16 %v5336
    %v6215 = vunpack.c.l.b16 %v5337
    %v6216 = vunpack.c.h.b16 %v5337
    %v6217 = vunpack.c.l.b16 %v5338
    %v6218 = vunpack.c.h.b16 %v5338
    %v6219 = vunpack.c.l.b16 %v5339
    %v6220 = vunpack.c.h.b16 %v5339
    %v6221 = vunpack.c.l.b16 %v5340
    %v6222 = vunpack.c.h.b16 %v5340
    %v6223 = vunpack.c.l.b16 %v5341
    %v6224 = vunpack.c.h.b16 %v5341
    %v6225 = vunpack.c.l.b16 %v5342
    %v6226 = vunpack.c.h.b16 %v5342
    %v6227 = vunpack.c.l.b16 %v5343
    %v6228 = vunpack.c.h.b16 %v5343
    %v6229 = vunpack.c.l.b16 %v5344
    %v6230 = vunpack.c.h.b16 %v5344
    %v6231 = vunpack.c.l.b16 %v5345
    %v6232 = vunpack.c.h.b16 %v5345
    %v6233 = vunpack.c.l.b16 %v5346
    %v6234 = vunpack.c.h.b16 %v5346
    %v6235 = vunpack.c.l.b16 %v5347
    %v6236 = vunpack.c.h.b16 %v5347
    %v6237 = vunpack.c.l.b16 %v5348
    %v6238 = vunpack.c.h.b16 %v5348
    %v6239 = vunpack.c.l.b16 %v5349
    %v6240 = vunpack.c.h.b16 %v5349
    %v6241 = vunpack.c.l.b16 %v5350
    %v6242 = vunpack.c.h.b16 %v5350
    %v6243 = vunpack.c.l.b16 %v5351
    %v6244 = vunpack.c.h.b16 %v5351
    %v6245 = vunpack.c.l.b16 %v5352
    %v6246 = vunpack.c.h.b16 %v5352
    %v6247 = vunpack.c.l.b16 %v5353
    %v6248 = vunpack.c.h.b16 %v5353
    %v6249 = vunpack.c.l.b16 %v5354
    %v6250 = vunpack.c.h.b16 %v5354
    %v6251 = vunpack.c.l.b16 %v5355
    %v6252 = vunpack.c.h.b16 %v5355
    %v6253 = vunpack.c.l.b16 %v5356
    %v6254 = vunpack.c.h.b16 %v5356
    %v6255 = vunpack.c.l.b16 %v5357
    %v6256 = vunpack.c.h.b16 %v5357
    %v6257 = vunpack.c.l.b16 %v5358
    %v6258 = vunpack.c.h.b16 %v5358
    %v6259 = vunpack.c.l.b16 %v5359
    %v6260 = vunpack.c.h.b16 %v5359
    %v6261 = vunpack.c.l.b16 %v5360
    %v6262 = vunpack.c.h.b16 %v5360
    %v6263 = vunpack.c.l.b16 %v5361
    %v6264 = vunpack.c.h.b16 %v5361
    %v6265 = vunpack.c.l.b16 %v5362
    %v6266 = vunpack.c.h.b16 %v5362
    %v6267 = vunpack.c.l.b16 %v5363
    %v6268 = vunpack.c.h.b16 %v5363
    %v6269 = vunpack.c.l.b16 %v5364
    %v6270 = vunpack.c.h.b16 %v5364
    %v6271 = vunpack.c.l.b16 %v5365
    %v6272 = vunpack.c.h.b16 %v5365
    %v6273 = vunpack.c.l.b16 %v5366
    %v6274 = vunpack.c.h.b16 %v5366
    %v6275 = vunpack.c.l.b16 %v5367
    %v6276 = vunpack.c.h.b16 %v5367
    %v6277 = vunpack.c.l.b16 %v5368
    %v6278 = vunpack.c.h.b16 %v5368
    %v6279 = vunpack.c.l.b16 %v5369
    %v6280 = vunpack.c.h.b16 %v5369
    %v6281 = vunpack.c.l.b16 %v5370
    %v6282 = vunpack.c.h.b16 %v5370
    %v6283 = vunpack.c.l.b16 %v5371
    %v6284 = vunpack.c.h.b16 %v5371
    %v6285 = vunpack.c.l.b16 %v5372
    %v6286 = vunpack.c.h.b16 %v5372
    %v6287 = vunpack.c.l.b16 %v5373
    %v6288 = vunpack.c.h.b16 %v5373
    %v6289 = vunpack.c.l.b16 %v5374
    %v6290 = vunpack.c.h.b16 %v5374
    %v6291 = vunpack.c.l.b16 %v5375
    %v6292 = vunpack.c.h.b16 %v5375
    %v6293 = vunpack.c.l.b16 %v5376
    %v6294 = vunpack.c.h.b16 %v5376
    %v6295 = vunpack.c.l.b16 %v5377
    %v6296 = vunpack.c.h.b16 %v5377
    %v6297 = vunpack.c.l.b16 %v5378
    %v6298 = vunpack.c.h.b16 %v5378
    %v6299 = vunpack.c.l.b16 %v5379
    %v6300 = vunpack.c.h.b16 %v5379
    %v6301 = vunpack.c.l.b16 %v5380
    %v6302 = vunpack.c.h.b16 %v5380
    %v6303 = vunpack.c.l.b16 %v5381
    %v6304 = vunpack.c.h.b16 %v5381
    %v6305 = vunpack.c.l.b16 %v5382
    %v6306 = vunpack.c.h.b16 %v5382
    %v6307 = vunpack.c.l.b16 %v5383
    %v6308 = vunpack.c.h.b16 %v5383
    %v6309 = vunpack.c.l.b16 %v5384
    %v6310 = vunpack.c.h.b16 %v5384
    %v6311 = vunpack.c.l.b16 %v5385
    %v6312 = vunpack.c.h.b16 %v5385
    %v6313 = vunpack.c.l.b16 %v5386
    %v6314 = vunpack.c.h.b16 %v5386
    %v6315 = vunpack.c.l.b16 %v5387
    %v6316 = vunpack.c.h.b16 %v5387
    %v6317 = vunpack.c.l.b16 %v5388
    %v6318 = vunpack.c.h.b16 %v5388
    %v6319 = vunpack.c.l.b16 %v5389
    %v6320 = vunpack.c.h.b16 %v5389
    %v6321 = vunpack.c.l.b16 %v5390
    %v6322 = vunpack.c.h.b16 %v5390
    %v6323 = vunpack.c.l.b16 %v5391
    %v6324 = vunpack.c.h.b16 %v5391
    %v6325 = vunpack.c.l.b16 %v5392
    %v6326 = vunpack.c.h.b16 %v5392
    %v6327 = vunpack.c.l.b16 %v5393
    %v6328 = vunpack.c.h.b16 %v5393
    %v6329 = vunpack.c.l.b16 %v5394
    %v6330 = vunpack.c.h.b16 %v5394
    %v6331 = vunpack.c.l.b16 %v5395
    %v6332 = vunpack.c.h.b16 %v5395
    %v6333 = vunpack.c.l.b16 %v5396
    %v6334 = vunpack.c.h.b16 %v5396
    %v6335 = vunpack.c.l.b16 %v5397
    %v6336 = vunpack.c.h.b16 %v5397
    %v6337 = vunpack.c.l.b16 %v5398
    %v6338 = vunpack.c.h.b16 %v5398
    %v6339 = vunpack.c.l.b16 %v5399
    %v6340 = vunpack.c.h.b16 %v5399
    %v6341 = vunpack.c.l.b16 %v5400
    %v6342 = vunpack.c.h.b16 %v5400
    %v6343 = vunpack.c.l.b16 %v5401
    %v6344 = vunpack.c.h.b16 %v5401
    %v6345 = vunpack.c.l.b16 %v5402
    %v6346 = vunpack.c.h.b16 %v5402
    %v6347 = vunpack.c.l.b16 %v5403
    %v6348 = vunpack.c.h.b16 %v5403
    %v6349 = vunpack.c.l.b16 %v5404
    %v6350 = vunpack.c.h.b16 %v5404
    %v6351 = vunpack.c.l.b16 %v5405
    %v6352 = vunpack.c.h.b16 %v5405
    %v6353 = vunpack.c.l.b16 %v5406
    %v6354 = vunpack.c.h.b16 %v5406
    %v6355 = vunpack.c.l.b16 %v5407
    %v6356 = vunpack.c.h.b16 %v5407
    %v6357 = vunpack.c.l.b16 %v5408
    %v6358 = vunpack.c.h.b16 %v5408
    %v6359 = vunpack.c.l.b16 %v5409
    %v6360 = vunpack.c.h.b16 %v5409
    %v6361 = vunpack.c.l.b16 %v5410
    %v6362 = vunpack.c.h.b16 %v5410
    %v6363 = vunpack.c.l.b16 %v5411
    %v6364 = vunpack.c.h.b16 %v5411
    %v6365 = vunpack.c.l.b16 %v5412
    %v6366 = vunpack.c.h.b16 %v5412
    %v6367 = vunpack.c.l.b16 %v5413
    %v6368 = vunpack.c.h.b16 %v5413
    %v6369 = vunpack.c.l.b16 %v5414
    %v6370 = vunpack.c.h.b16 %v5414
    %v6371 = vunpack.c.l.b16 %v5415
    %v6372 = vunpack.c.h.b16 %v5415
    %v6373 = vunpack.c.l.b16 %v5416
    %v6374 = vunpack.c.h.b16 %v5416
    %v6375 = vunpack.c.l.b16 %v5417
    %v6376 = vunpack.c.h.b16 %v5417
    %v6377 = vunpack.c.l.b16 %v5418
    %v6378 = vunpack.c.h.b16 %v5418
    %v6379 = vunpack.c.l.b16 %v5419
    %v6380 = vunpack.c.h.b16 %v5419
    %v6381 = vunpack.c.l.b16 %v5420
    %v6382 = vunpack.c.h.b16 %v5420
    %v6383 = vunpack.c.l.b16 %v5421
    %v6384 = vunpack.c.h.b16 %v5421
    %v6385 = vunpack.c.l.b16 %v5422
    %v6386 = vunpack.c.h.b16 %v5422
    %v6387 = vunpack.c.l.b16 %v5423
    %v6388 = vunpack.c.h.b16 %v5423
    %v6389 = vunpack.c.l.b16 %v5424
    %v6390 = vunpack.c.h.b16 %v5424
    %v6391 = vunpack.c.l.b16 %v5425
    %v6392 = vunpack.c.h.b16 %v5425
    %v6393 = vunpack.c.l.b16 %v5426
    %v6394 = vunpack.c.h.b16 %v5426
    %v6395 = vunpack.c.l.b16 %v5427
    %v6396 = vunpack.c.h.b16 %v5427
    %v6397 = vunpack.c.l.b16 %v5428
    %v6398 = vunpack.c.h.b16 %v5428
    %v6399 = vunpack.c.l.b16 %v5429
    %v6400 = vunpack.c.h.b16 %v5429
    %v6401 = vunpack.c.l.b16 %v5430
    %v6402 = vunpack.c.h.b16 %v5430
    %v6403 = vunpack.c.l.b16 %v5431
    %v6404 = vunpack.c.h.b16 %v5431
    %v6405 = vunpack.c.l.b16 %v5432
    %v6406 = vunpack.c.h.b16 %v5432
    %v6407 = vunpack.c.l.b16 %v5433
    %v6408 = vunpack.c.h.b16 %v5433
    %v6409 = vunpack.c.l.b16 %v5434
    %v6410 = vunpack.c.h.b16 %v5434
    %v6411 = vunpack.c.l.b16 %v5435
    %v6412 = vunpack.c.h.b16 %v5435
    %v6413 = vunpack.c.l.b16 %v5436
    %v6414 = vunpack.c.h.b16 %v5436
    %v6415 = vunpack.c.l.b16 %v5437
    %v6416 = vunpack.c.h.b16 %v5437
    %v6417 = vunpack.c.l.b16 %v5438
    %v6418 = vunpack.c.h.b16 %v5438
    %v6419 = vunpack.c.l.b16 %v5439
    %v6420 = vunpack.c.h.b16 %v5439
    %v6421 = vunpack.c.l.b16 %v5440
    %v6422 = vunpack.c.h.b16 %v5440
    %v6423 = vunpack.c.l.b16 %v5441
    %v6424 = vunpack.c.h.b16 %v5441
    %v6425 = vunpack.c.l.b16 %v5442
    %v6426 = vunpack.c.h.b16 %v5442
    %v6427 = vunpack.c.l.b16 %v5443
    %v6428 = vunpack.c.h.b16 %v5443
    %v6429 = vunpack.c.l.b16 %v5444
    %v6430 = vunpack.c.h.b16 %v5444
    %v6431 = vunpack.c.l.b16 %v5445
    %v6432 = vunpack.c.h.b16 %v5445
    %v6433 = vunpack.c.l.b16 %v5446
    %v6434 = vunpack.c.h.b16 %v5446
    %v6435 = vunpack.c.l.b16 %v5447
    %v6436 = vunpack.c.h.b16 %v5447
    %v6437 = vunpack.c.l.b16 %v5448
    %v6438 = vunpack.c.h.b16 %v5448
    %v6439 = vunpack.c.l.b16 %v5449
    %v6440 = vunpack.c.h.b16 %v5449
    %v6441 = vunpack.c.l.b16 %v5450
    %v6442 = vunpack.c.h.b16 %v5450
    %v6443 = vunpack.c.l.b16 %v5451
    %v6444 = vunpack.c.h.b16 %v5451
    %v6445 = vunpack.c.l.b16 %v5452
    %v6446 = vunpack.c.h.b16 %v5452
    %v6447 = vunpack.c.l.b16 %v5453
    %v6448 = vunpack.c.h.b16 %v5453
    %v6449 = vunpack.c.l.b16 %v5454
    %v6450 = vunpack.c.h.b16 %v5454
    %v6451 = vunpack.c.l.b16 %v5455
    %v6452 = vunpack.c.h.b16 %v5455
    %v6453 = vunpack.c.l.b16 %v5456
    %v6454 = vunpack.c.h.b16 %v5456
    %v6455 = vunpack.c.l.b16 %v5457
    %v6456 = vunpack.c.h.b16 %v5457
    %v6457 = vunpack.c.l.b16 %v5458
    %v6458 = vunpack.c.h.b16 %v5458
    %v6459 = vunpack.c.l.b16 %v5459
    %v6460 = vunpack.c.h.b16 %v5459
    %v6461 = vunpack.c.l.b16 %v5460
    %v6462 = vunpack.c.h.b16 %v5460
    %v6463 = vunpack.c.l.b16 %v5461
    %v6464 = vunpack.c.h.b16 %v5461
    %v6465 = vunpack.c.l.b16 %v5462
    %v6466 = vunpack.c.h.b16 %v5462
    %v6467 = vunpack.c.l.b16 %v5463
    %v6468 = vunpack.c.h.b16 %v5463
    %v6469 = vunpack.c.l.b16 %v5464
    %v6470 = vunpack.c.h.b16 %v5464
    %v6471 = vunpack.c.l.b16 %v5465
    %v6472 = vunpack.c.h.b16 %v5465
    %v6473 = vunpack.c.l.b16 %v5466
    %v6474 = vunpack.c.h.b16 %v5466
    %v6475 = vunpack.c.l.b16 %v5467
    %v6476 = vunpack.c.h.b16 %v5467
    %v6477 = vunpack.c.l.b16 %v5468
    %v6478 = vunpack.c.h.b16 %v5468
    %v6479 = vunpack.c.l.b16 %v5469
    %v6480 = vunpack.c.h.b16 %v5469
    %v6481 = vunpack.c.l.b16 %v5470
    %v6482 = vunpack.c.h.b16 %v5470
    %v6483 = vunpack.c.l.b16 %v5471
    %v6484 = vunpack.c.h.b16 %v5471
    %v6485 = vunpack.c.l.b16 %v5472
    %v6486 = vunpack.c.h.b16 %v5472
    %v6487 = vunpack.c.l.b16 %v5473
    %v6488 = vunpack.c.h.b16 %v5473
    %v6489 = vunpack.c.l.b16 %v5474
    %v6490 = vunpack.c.h.b16 %v5474
    %v6491 = vunpack.c.l.b16 %v5475
    %v6492 = vunpack.c.h.b16 %v5475
    %v6493 = vunpack.c.l.b16 %v5476
    %v6494 = vunpack.c.h.b16 %v5476
    %v6495 = vunpack.c.l.b16 %v5477
    %v6496 = vunpack.c.h.b16 %v5477
    %v6497 = vunpack.c.l.b16 %v5478
    %v6498 = vunpack.c.h.b16 %v5478
    %v6499 = vunpack.c.l.b16 %v5479
    %v6500 = vunpack.c.h.b16 %v5479
    %v6501 = vunpack.c.l.b16 %v5480
    %v6502 = vunpack.c.h.b16 %v5480
    %v6503 = vunpack.c.l.b16 %v5481
    %v6504 = vunpack.c.h.b16 %v5481
    %v6505 = vunpack.c.l.b16 %v5482
    %v6506 = vunpack.c.h.b16 %v5482
    %v6507 = vunpack.c.l.b16 %v5483
    %v6508 = vunpack.c.h.b16 %v5483
    %v6509 = vunpack.c.l.b16 %v5484
    %v6510 = vunpack.c.h.b16 %v5484
    %v6511 = vunpack.c.l.b16 %v5485
    %v6512 = vunpack.c.h.b16 %v5485
    %v6513 = vunpack.c.l.b16 %v5486
    %v6514 = vunpack.c.h.b16 %v5486
    %v6515 = vunpack.c.l.b16 %v5487
    %v6516 = vunpack.c.h.b16 %v5487
    %v6517 = vunpack.c.l.b16 %v5488
    %v6518 = vunpack.c.h.b16 %v5488
    %v6519 = vunpack.c.l.b16 %v5489
    %v6520 = vunpack.c.h.b16 %v5489
    %v6521 = vunpack.c.l.b16 %v5490
    %v6522 = vunpack.c.h.b16 %v5490
    %v6523 = vunpack.c.l.b16 %v5491
    %v6524 = vunpack.c.h.b16 %v5491
    %v6525 = vunpack.c.l.b16 %v5492
    %v6526 = vunpack.c.h.b16 %v5492
    %v6527 = vunpack.c.l.b16 %v5493
    %v6528 = vunpack.c.h.b16 %v5493
    %v6529 = vunpack.c.l.b16 %v5494
    %v6530 = vunpack.c.h.b16 %v5494
    %v6531 = vunpack.c.l.b16 %v5495
    %v6532 = vunpack.c.h.b16 %v5495
    %v6533 = vunpack.c.l.b16 %v5496
    %v6534 = vunpack.c.h.b16 %v5496
    %v6535 = vunpack.c.l.b16 %v5497
    %v6536 = vunpack.c.h.b16 %v5497
    %v6537 = vunpack.c.l.b16 %v5498
    %v6538 = vunpack.c.h.b16 %v5498
    %v6539 = vunpack.c.l.b16 %v5499
    %v6540 = vunpack.c.h.b16 %v5499
    %v6541 = vunpack.c.l.b16 %v5500
    %v6542 = vunpack.c.h.b16 %v5500
    %v6543 = vunpack.c.l.b16 %v5501
    %v6544 = vunpack.c.h.b16 %v5501
    %v6545 = vunpack.c.l.b16 %v5502
    %v6546 = vunpack.c.h.b16 %v5502
    %v6547 = vunpack.c.l.b16 %v5503
    %v6548 = vunpack.c.h.b16 %v5503
    %v6549 = vunpack.c.l.b16 %v5504
    %v6550 = vunpack.c.h.b16 %v5504
    %v6551 = vunpack.c.l.b16 %v5505
    %v6552 = vunpack.c.h.b16 %v5505
    %v6553 = vunpack.c.l.b16 %v5506
    %v6554 = vunpack.c.h.b16 %v5506
    %v6555 = vunpack.c.l.b16 %v5507
    %v6556 = vunpack.c.h.b16 %v5507
    %v6557 = vunpack.c.l.b16 %v5508
    %v6558 = vunpack.c.h.b16 %v5508
    %v6559 = vunpack.c.l.b16 %v5509
    %v6560 = vunpack.c.h.b16 %v5509
    %v6561 = vunpack.c.l.b16 %v5510
    %v6562 = vunpack.c.h.b16 %v5510
    %v6563 = vunpack.c.l.b16 %v5511
    %v6564 = vunpack.c.h.b16 %v5511
    %v6565 = vunpack.c.l.b16 %v5512
    %v6566 = vunpack.c.h.b16 %v5512
    %v6567 = vunpack.c.l.b16 %v5513
    %v6568 = vunpack.c.h.b16 %v5513
    %v6569 = vunpack.c.l.b16 %v5514
    %v6570 = vunpack.c.h.b16 %v5514
    %v6571 = vunpack.c.l.b16 %v5515
    %v6572 = vunpack.c.h.b16 %v5515
    %v6573 = vunpack.c.l.b16 %v5516
    %v6574 = vunpack.c.h.b16 %v5516
    %v6575 = vunpack.c.l.b16 %v5517
    %v6576 = vunpack.c.h.b16 %v5517
    %v6577 = vunpack.c.l.b16 %v5518
    %v6578 = vunpack.c.h.b16 %v5518
    %v6579 = vunpack.c.l.b16 %v5519
    %v6580 = vunpack.c.h.b16 %v5519
    %v6581 = vunpack.c.l.b16 %v5520
    %v6582 = vunpack.c.h.b16 %v5520
    %v6583 = vunpack.c.l.b16 %v5521
    %v6584 = vunpack.c.h.b16 %v5521
    %v6585 = vunpack.c.l.b16 %v5522
    %v6586 = vunpack.c.h.b16 %v5522
    %v6587 = vunpack.c.l.b16 %v5523
    %v6588 = vunpack.c.h.b16 %v5523
    %v6589 = vunpack.c.l.b16 %v5524
    %v6590 = vunpack.c.h.b16 %v5524
    %v6591 = vunpack.c.l.b16 %v5525
    %v6592 = vunpack.c.h.b16 %v5525
    %v6593 = vunpack.c.l.b16 %v5526
    %v6594 = vunpack.c.h.b16 %v5526
    %v6595 = vunpack.c.l.b16 %v5527
    %v6596 = vunpack.c.h.b16 %v5527
    %v6597 = vunpack.c.l.b16 %v5528
    %v6598 = vunpack.c.h.b16 %v5528
    %v6599 = vunpack.c.l.b16 %v5529
    %v6600 = vunpack.c.h.b16 %v5529
    %v6601 = vunpack.c.l.b16 %v5530
    %v6602 = vunpack.c.h.b16 %v5530
    %v6603 = vunpack.c.l.b16 %v5531
    %v6604 = vunpack.c.h.b16 %v5531
    %v6605 = vunpack.c.l.b16 %v5532
    %v6606 = vunpack.c.h.b16 %v5532
    %v6607 = vunpack.c.l.b16 %v5533
    %v6608 = vunpack.c.h.b16 %v5533
    %v6609 = vunpack.c.l.b16 %v5534
    %v6610 = vunpack.c.h.b16 %v5534
    %v6611 = vunpack.c.l.b16 %v5535
    %v6612 = vunpack.c.h.b16 %v5535
    %v6613 = vunpack.c.l.b16 %v5536
    %v6614 = vunpack.c.h.b16 %v5536
    %v6615 = vunpack.c.l.b16 %v5537
    %v6616 = vunpack.c.h.b16 %v5537
    %v6617 = vunpack.c.l.b16 %v5538
    %v6618 = vunpack.c.h.b16 %v5538
    %v6619 = vunpack.c.l.b16 %v5539
    %v6620 = vunpack.c.h.b16 %v5539
    %v6621 = vunpack.c.l.b16 %v5540
    %v6622 = vunpack.c.h.b16 %v5540
    %v6623 = vunpack.c.l.b16 %v5541
    %v6624 = vunpack.c.h.b16 %v5541
    %v6625 = vunpack.c.l.b16 %v5542
    %v6626 = vunpack.c.h.b16 %v5542
    %v6627 = vunpack.c.l.b16 %v5543
    %v6628 = vunpack.c.h.b16 %v5543
    %v6629 = vunpack.c.l.b16 %v5544
    %v6630 = vunpack.c.h.b16 %v5544
    %v6631 = vunpack.c.l.b16 %v5545
    %v6632 = vunpack.c.h.b16 %v5545
    %v6633 = vunpack.c.l.b16 %v5546
    %v6634 = vunpack.c.h.b16 %v5546
    %v6635 = vunpack.c.l.b16 %v5547
    %v6636 = vunpack.c.h.b16 %v5547
    %v6637 = vunpack.c.l.b16 %v5548
    %v6638 = vunpack.c.h.b16 %v5548
    %v6639 = vunpack.c.l.b16 %v5549
    %v6640 = vunpack.c.h.b16 %v5549
    %v6641 = vunpack.c.l.b16 %v5550
    %v6642 = vunpack.c.h.b16 %v5550
    %v6643 = vunpack.c.l.b16 %v5551
    %v6644 = vunpack.c.h.b16 %v5551
    %v6645 = vunpack.c.l.b16 %v5552
    %v6646 = vunpack.c.h.b16 %v5552
    %v6647 = vunpack.c.l.b16 %v5553
    %v6648 = vunpack.c.h.b16 %v5553
    %v6649 = vunpack.c.l.b16 %v5554
    %v6650 = vunpack.c.h.b16 %v5554
    %v6651 = vunpack.c.l.b16 %v5555
    %v6652 = vunpack.c.h.b16 %v5555
    %v6653 = vunpack.c.l.b16 %v5556
    %v6654 = vunpack.c.h.b16 %v5556
    %v6655 = vunpack.c.l.b16 %v5557
    %v6656 = vunpack.c.h.b16 %v5557
    %v6657 = vunpack.c.l.b16 %v5558
    %v6658 = vunpack.c.h.b16 %v5558
    %v6659 = vunpack.c.l.b16 %v5559
    %v6660 = vunpack.c.h.b16 %v5559
    %v6661 = vunpack.c.l.b16 %v5560
    %v6662 = vunpack.c.h.b16 %v5560
    %v6663 = vunpack.c.l.b16 %v5561
    %v6664 = vunpack.c.h.b16 %v5561
    %v6665 = vunpack.c.l.b16 %v5562
    %v6666 = vunpack.c.h.b16 %v5562
    %v6667 = vunpack.c.l.b16 %v5563
    %v6668 = vunpack.c.h.b16 %v5563
    %v6669 = vunpack.c.l.b16 %v5564
    %v6670 = vunpack.c.h.b16 %v5564
    %v6671 = vunpack.c.l.b16 %v5565
    %v6672 = vunpack.c.h.b16 %v5565
    %v6673 = vunpack.c.l.b16 %v5566
    %v6674 = vunpack.c.h.b16 %v5566
    %v6675 = vunpack.c.l.b16 %v5567
    %v6676 = vunpack.c.h.b16 %v5567
    %v6677 = vunpack.c.l.b16 %v5568
    %v6678 = vunpack.c.h.b16 %v5568
    %v6679 = vunpack.c.l.b16 %v5569
    %v6680 = vunpack.c.h.b16 %v5569
    %v6681 = vunpack.c.l.b16 %v5570
    %v6682 = vunpack.c.h.b16 %v5570
    %v6683 = vunpack.c.l.b16 %v5571
    %v6684 = vunpack.c.h.b16 %v5571
    %v6685 = vunpack.c.l.b16 %v5572
    %v6686 = vunpack.c.h.b16 %v5572
    %v6687 = vunpack.c.l.b16 %v5573
    %v6688 = vunpack.c.h.b16 %v5573
    %v6689 = vunpack.c.l.b16 %v5574
    %v6690 = vunpack.c.h.b16 %v5574
    %v6691 = vunpack.c.l.b16 %v5575
    %v6692 = vunpack.c.h.b16 %v5575
    %v6693 = vunpack.c.l.b16 %v5576
    %v6694 = vunpack.c.h.b16 %v5576
    %v6695 = vunpack.c.l.b16 %v5577
    %v6696 = vunpack.c.h.b16 %v5577
    %v6697 = vunpack.c.l.b16 %v5578
    %v6698 = vunpack.c.h.b16 %v5578
    %v6699 = vunpack.c.l.b16 %v5579
    %v6700 = vunpack.c.h.b16 %v5579
    %v6701 = vunpack.c.l.b16 %v5580
    %v6702 = vunpack.c.h.b16 %v5580
    %v6703 = vunpack.c.l.b16 %v5581
    %v6704 = vunpack.c.h.b16 %v5581
    %v6705 = vunpack.c.l.b16 %v5582
    %v6706 = vunpack.c.h.b16 %v5582
    %v6707 = vunpack.c.l.b16 %v5583
    %v6708 = vunpack.c.h.b16 %v5583
    %v6709 = vunpack.c.l.b16 %v5584
    %v6710 = vunpack.c.h.b16 %v5584
    %v6711 = vunpack.c.l.b16 %v5585
    %v6712 = vunpack.c.h.b16 %v5585
    %v6713 = vunpack.c.l.b16 %v5586
    %v6714 = vunpack.c.h.b16 %v5586
    %v6715 = vunpack.c.l.b16 %v5587
    %v6716 = vunpack.c.h.b16 %v5587
    %v6717 = vunpack.c.l.b16 %v5588
    %v6718 = vunpack.c.h.b16 %v5588
    %v6719 = vunpack.c.l.b16 %v5589
    %v6720 = vunpack.c.h.b16 %v5589
    %v6721 = vunpack.c.l.b16 %v5590
    %v6722 = vunpack.c.h.b16 %v5590
    %v6723 = vunpack.c.l.b16 %v5591
    %v6724 = vunpack.c.h.b16 %v5591
    %v6725 = vunpack.c.l.b16 %v5592
    %v6726 = vunpack.c.h.b16 %v5592
    %v6727 = vunpack.c.l.b16 %v5593
    %v6728 = vunpack.c.h.b16 %v5593
    %v6729 = vunpack.c.l.b16 %v5594
    %v6730 = vunpack.c.h.b16 %v5594
    %v6731 = vunpack.c.l.b16 %v5595
    %v6732 = vunpack.c.h.b16 %v5595
    %v6733 = vunpack.c.l.b16 %v5596
    %v6734 = vunpack.c.h.b16 %v5596
    %v6735 = vunpack.c.l.b16 %v5597
    %v6736 = vunpack.c.h.b16 %v5597
    %v6737 = vunpack.c.l.b16 %v5598
    %v6738 = vunpack.c.h.b16 %v5598
    %v6739 = vunpack.c.l.b16 %v5599
    %v6740 = vunpack.c.h.b16 %v5599
    %v6741 = vunpack.c.l.b16 %v5600
    %v6742 = vunpack.c.h.b16 %v5600
    %v6743 = vunpack.c.l.b16 %v5601
    %v6744 = vunpack.c.h.b16 %v5601
    %v6745 = vunpack.c.l.b16 %v5602
    %v6746 = vunpack.c.h.b16 %v5602
    %v6747 = vunpack.c.l.b16 %v5603
    %v6748 = vunpack.c.h.b16 %v5603
    %v6749 = vunpack.c.l.b16 %v5604
    %v6750 = vunpack.c.h.b16 %v5604
    %v6751 = vunpack.c.l.b16 %v5605
    %v6752 = vunpack.c.h.b16 %v5605
    %v6753 = vunpack.c.l.b16 %v5606
    %v6754 = vunpack.c.h.b16 %v5606
    %v6755 = vunpack.c.l.b16 %v5607
    %v6756 = vunpack.c.h.b16 %v5607
    %v6757 = vunpack.c.l.b16 %v5608
    %v6758 = vunpack.c.h.b16 %v5608
    %v6759 = vunpack.c.l.b16 %v5609
    %v6760 = vunpack.c.h.b16 %v5609
    %v6761 = vunpack.c.l.b16 %v5610
    %v6762 = vunpack.c.h.b16 %v5610
    %v6763 = vpack.c.b16 %v5999, %v5995
    %v6764 = vpack.c.b16 %v6000, %v5996
    %v6765 = vpack.c.b16 %v6001, %v5997
    %v6766 = vpack.c.b16 %v6002, %v5998
    %v6767 = vpack.c.b16 %v6007, %v6003
    %v6768 = vpack.c.b16 %v6008, %v6004
    %v6769 = vpack.c.b16 %v6009, %v6005
    %v6770 = vpack.c.b16 %v6010, %v6006
    %v6771 = vpack.c.b16 %v6015, %v6011
    %v6772 = vpack.c.b16 %v6016, %v6012
    %v6773 = vpack.c.b16 %v6017, %v6013
    %v6774 = vpack.c.b16 %v6018, %v6014
    %v6775 = vpack.c.b16 %v6023, %v6019
    %v6776 = vpack.c.b16 %v6024, %v6020
    %v6777 = vpack.c.b16 %v6025, %v6021
    %v6778 = vpack.c.b16 %v6026, %v6022
    %v6779 = vpack.c.b16 %v6031, %v6027
    %v6780 = vpack.c.b16 %v6032, %v6028
    %v6781 = vpack.c.b16 %v6033, %v6029
    %v6782 = vpack.c.b16 %v6034, %v6030
    %v6783 = vpack.c.b16 %v6039, %v6035
    %v6784 = vpack.c.b16 %v6040, %v6036
    %v6785 = vpack.c.b16 %v6041, %v6037
    %v6786 = vpack.c.b16 %v6042, %v6038
    %v6787 = vpack.c.b16 %v6047, %v6043
    %v6788 = vpack.c.b16 %v6048, %v6044
    %v6789 = vpack.c.b16 %v6049, %v6045
    %v6790 = vpack.c.b16 %v6050, %v6046
    %v6791 = vpack.c.b16 %v6055, %v6051
    %v6792 = vpack.c.b16 %v6056, %v6052
    %v6793 = vpack.c.b16 %v6057, %v6053
    %v6794 = vpack.c.b16 %v6058, %v6054
    %v6795 = vpack.c.b16 %v6063, %v6059
    %v6796 = vpack.c.b16 %v6064, %v6060
    %v6797 = vpack.c.b16 %v6065, %v6061
    %v6798 = vpack.c.b16 %v6066, %v6062
    %v6799 = vpack.c.b16 %v6071, %v6067
    %v6800 = vpack.c.b16 %v6072, %v6068
    %v6801 = vpack.c.b16 %v6073, %v6069
    %v6802 = vpack.c.b16 %v6074, %v6070
    %v6803 = vpack.c.b16 %v6079, %v6075
    %v6804 = vpack.c.b16 %v6080, %v6076
    %v6805 = vpack.c.b16 %v6081, %v6077
    %v6806 = vpack.c.b16 %v6082, %v6078
    %v6807 = vpack.c.b16 %v6087, %v6083
    %v6808 = vpack.c.b16 %v6088, %v6084
    %v6809 = vpack.c.b16 %v6089, %v6085
    %v6810 = vpack.c.b16 %v6090, %v6086
    %v6811 = vpack.c.b16 %v6095, %v6091
    %v6812 = vpack.c.b16 %v6096, %v6092
    %v6813 = vpack.c.b16 %v6097, %v6093
    %v6814 = vpack.c.b16 %v6098, %v6094
    %v6815 = vpack.c.b16 %v6103, %v6099
    %v6816 = vpack.c.b16 %v6104, %v6100
    %v6817 = vpack.c.b16 %v6105, %v6101
    %v6818 = vpack.c.b16 %v6106, %v6102
    %v6819 = vpack.c.b16 %v6111, %v6107
    %v6820 = vpack.c.b16 %v6112, %v6108
    %v6821 = vpack.c.b16 %v6113, %v6109
    %v6822 = vpack.c.b16 %v6114, %v6110
    %v6823 = vpack.c.b16 %v6119, %v6115
    %v6824 = vpack.c.b16 %v6120, %v6116
    %v6825 = vpack.c.b16 %v6121, %v6117
    %v6826 = vpack.c.b16 %v6122, %v6118
    %v6827 = vpack.c.b16 %v6127, %v6123
    %v6828 = vpack.c.b16 %v6128, %v6124
    %v6829 = vpack.c.b16 %v6129, %v6125
    %v6830 = vpack.c.b16 %v6130, %v6126
    %v6831 = vpack.c.b16 %v6135, %v6131
    %v6832 = vpack.c.b16 %v6136, %v6132
    %v6833 = vpack.c.b16 %v6137, %v6133
    %v6834 = vpack.c.b16 %v6138, %v6134
    %v6835 = vpack.c.b16 %v6143, %v6139
    %v6836 = vpack.c.b16 %v6144, %v6140
    %v6837 = vpack.c.b16 %v6145, %v6141
    %v6838 = vpack.c.b16 %v6146, %v6142
    %v6839 = vpack.c.b16 %v6151, %v6147
    %v6840 = vpack.c.b16 %v6152, %v6148
    %v6841 = vpack.c.b16 %v6153, %v6149
    %v6842 = vpack.c.b16 %v6154, %v6150
    %v6843 = vpack.c.b16 %v6159, %v6155
    %v6844 = vpack.c.b16 %v6160, %v6156
    %v6845 = vpack.c.b16 %v6161, %v6157
    %v6846 = vpack.c.b16 %v6162, %v6158
    %v6847 = vpack.c.b16 %v6167, %v6163
    %v6848 = vpack.c.b16 %v6168, %v6164
    %v6849 = vpack.c.b16 %v6169, %v6165
    %v6850 = vpack.c.b16 %v6170, %v6166
    %v6851 = vpack.c.b16 %v6175, %v6171
    %v6852 = vpack.c.b16 %v6176, %v6172
    %v6853 = vpack.c.b16 %v6177, %v6173
    %v6854 = vpack.c.b16 %v6178, %v6174
    %v6855 = vpack.c.b16 %v6183, %v6179
    %v6856 = vpack.c.b16 %v6184, %v6180
    %v6857 = vpack.c.b16 %v6185, %v6181
    %v6858 = vpack.c.b16 %v6186, %v6182
    %v6859 = vpack.c.b16 %v6191, %v6187
    %v6860 = vpack.c.b16 %v6192, %v6188
    %v6861 = vpack.c.b16 %v6193, %v6189
    %v6862 = vpack.c.b16 %v6194, %v6190
    %v6863 = vpack.c.b16 %v6199, %v6195
    %v6864 = vpack.c.b16 %v6200, %v6196
    %v6865 = vpack.c.b16 %v6201, %v6197
    %v6866 = vpack.c.b16 %v6202, %v6198
    %v6867 = vpack.c.b16 %v6207, %v6203
    %v6868 = vpack.c.b16 %v6208, %v6204
    %v6869 = vpack.c.b16 %v6209, %v6205
    %v6870 = vpack.c.b16 %v6210, %v6206
    %v6871 = vpack.c.b16 %v6215, %v6211
    %v6872 = vpack.c.b16 %v6216, %v6212
    %v6873 = vpack.c.b16 %v6217, %v6213
    %v6874 = vpack.c.b16 %v6218, %v6214
    %v6875 = vpack.c.b16 %v6223, %v6219
    %v6876 = vpack.c.b16 %v6224, %v6220
    %v6877 = vpack.c.b16 %v6225, %v6221
    %v6878 = vpack.c.b16 %v6226, %v6222
    %v6879 = vpack.c.b16 %v6231, %v6227
    %v6880 = vpack.c.b16 %v6232, %v6228
    %v6881 = vpack.c.b16 %v6233, %v6229
    %v6882 = vpack.c.b16 %v6234, %v6230
    %v6883 = vpack.c.b16 %v6239, %v6235
    %v6884 = vpack.c.b16 %v6240, %v6236
    %v6885 = vpack.c.b16 %v6241, %v6237
    %v6886 = vpack.c.b16 %v6242, %v6238
    %v6887 = vpack.c.b16 %v6247, %v6243
    %v6888 = vpack.c.b16 %v6248, %v6244
    %v6889 = vpack.c.b16 %v6249, %v6245
    %v6890 = vpack.c.b16 %v6250, %v6246
    %v6891 = vpack.c.b16 %v6255, %v6251
    %v6892 = vpack.c.b16 %v6256, %v6252
    %v6893 = vpack.c.b16 %v6257, %v6253
    %v6894 = vpack.c.b16 %v6258, %v6254
    %v6895 = vpack.c.b16 %v6263, %v6259
    %v6896 = vpack.c.b16 %v6264, %v6260
    %v6897 = vpack.c.b16 %v6265, %v6261
    %v6898 = vpack.c.b16 %v6266, %v6262
    %v6899 = vpack.c.b16 %v6271, %v6267
    %v6900 = vpack.c.b16 %v6272, %v6268
    %v6901 = vpack.c.b16 %v6273, %v6269
    %v6902 = vpack.c.b16 %v6274, %v6270
    %v6903 = vpack.c.b16 %v6279, %v6275
    %v6904 = vpack.c.b16 %v6280, %v6276
    %v6905 = vpack.c.b16 %v6281, %v6277
    %v6906 = vpack.c.b16 %v6282, %v6278
    %v6907 = vpack.c.b16 %v6287, %v6283
    %v6908 = vpack.c.b16 %v6288, %v6284
    %v6909 = vpack.c.b16 %v6289, %v6285
    %v6910 = vpack.c.b16 %v6290, %v6286
    %v6911 = vpack.c.b16 %v6295, %v6291
    %v6912 = vpack.c.b16 %v6296, %v6292
    %v6913 = vpack.c.b16 %v6297, %v6293
    %v6914 = vpack.c.b16 %v6298, %v6294
    %v6915 = vpack.c.b16 %v6303, %v6299
    %v6916 = vpack.c.b16 %v6304, %v6300
    %v6917 = vpack.c.b16 %v6305, %v6301
    %v6918 = vpack.c.b16 %v6306, %v6302
    %v6919 = vpack.c.b16 %v6311, %v6307
    %v6920 = vpack.c.b16 %v6312, %v6308
    %v6921 = vpack.c.b16 %v6313, %v6309
    %v6922 = vpack.c.b16 %v6314, %v6310
    %v6923 = vpack.c.b16 %v6319, %v6315
    %v6924 = vpack.c.b16 %v6320, %v6316
    %v6925 = vpack.c.b16 %v6321, %v6317
    %v6926 = vpack.c.b16 %v6322, %v6318
    %v6927 = vpack.c.b16 %v6327, %v6323
    %v6928 = vpack.c.b16 %v6328, %v6324
    %v6929 = vpack.c.b16 %v6329, %v6325
    %v6930 = vpack.c.b16 %v6330, %v6326
    %v6931 = vpack.c.b16 %v6335, %v6331
    %v6932 = vpack.c.b16 %v6336, %v6332
    %v6933 = vpack.c.b16 %v6337, %v6333
    %v6934 = vpack.c.b16 %v6338, %v6334
    %v6935 = vpack.c.b16 %v6343, %v6339
    %v6936 = vpack.c.b16 %v6344, %v6340
    %v6937 = vpack.c.b16 %v6345, %v6341
    %v6938 = vpack.c.b16 %v6346, %v6342
    %v6939 = vpack.c.b16 %v6351, %v6347
    %v6940 = vpack.c.b16 %v6352, %v6348
    %v6941 = vpack.c.b16 %v6353, %v6349
    %v6942 = vpack.c.b16 %v6354, %v6350
    %v6943 = vpack.c.b16 %v6359, %v6355
    %v6944 = vpack.c.b16 %v6360, %v6356
    %v6945 = vpack.c.b16 %v6361, %v6357
    %v6946 = vpack.c.b16 %v6362, %v6358
    %v6947 = vpack.c.b16 %v6367, %v6363
    %v6948 = vpack.c.b16 %v6368, %v6364
    %v6949 = vpack.c.b16 %v6369, %v6365
    %v6950 = vpack.c.b16 %v6370, %v6366
    %v6951 = vpack.c.b16 %v6375, %v6371
    %v6952 = vpack.c.b16 %v6376, %v6372
    %v6953 = vpack.c.b16 %v6377, %v6373
    %v6954 = vpack.c.b16 %v6378, %v6374
    %v6955 = vpack.c.b16 %v6383, %v6379
    %v6956 = vpack.c.b16 %v6384, %v6380
    %v6957 = vpack.c.b16 %v6385, %v6381
    %v6958 = vpack.c.b16 %v6386, %v6382
    %v6959 = vpack.c.b16 %v6391, %v6387
    %v6960 = vpack.c.b16 %v6392, %v6388
    %v6961 = vpack.c.b16 %v6393, %v6389
    %v6962 = vpack.c.b16 %v6394, %v6390
    %v6963 = vpack.c.b16 %v6399, %v6395
    %v6964 = vpack.c.b16 %v6400, %v6396
    %v6965 = vpack.c.b16 %v6401, %v6397
    %v6966 = vpack.c.b16 %v6402, %v6398
    %v6967 = vpack.c.b16 %v6407, %v6403
    %v6968 = vpack.c.b16 %v6408, %v6404
    %v6969 = vpack.c.b16 %v6409, %v6405
    %v6970 = vpack.c.b16 %v6410, %v6406
    %v6971 = vpack.c.b16 %v6415, %v6411
    %v6972 = vpack.c.b16 %v6416, %v6412
    %v6973 = vpack.c.b16 %v6417, %v6413
    %v6974 = vpack.c.b16 %v6418, %v6414
    %v6975 = vpack.c.b16 %v6423, %v6419
    %v6976 = vpack.c.b16 %v6424, %v6420
    %v6977 = vpack.c.b16 %v6425, %v6421
    %v6978 = vpack.c.b16 %v6426, %v6422
    %v6979 = vpack.c.b16 %v6431, %v6427
    %v6980 = vpack.c.b16 %v6432, %v6428
    %v6981 = vpack.c.b16 %v6433, %v6429
    %v6982 = vpack.c.b16 %v6434, %v6430
    %v6983 = vpack.c.b16 %v6439, %v6435
    %v6984 = vpack.c.b16 %v6440, %v6436
    %v6985 = vpack.c.b16 %v6441, %v6437
    %v6986 = vpack.c.b16 %v6442, %v6438
    %v6987 = vpack.c.b16 %v6447, %v6443
    %v6988 = vpack.c.b16 %v6448, %v6444
    %v6989 = vpack.c.b16 %v6449, %v6445
    %v6990 = vpack.c.b16 %v6450, %v6446
    %v6991 = vpack.c.b16 %v6455, %v6451
    %v6992 = vpack.c.b16 %v6456, %v6452
    %v6993 = vpack.c.b16 %v6457, %v6453
    %v6994 = vpack.c.b16 %v6458, %v6454
    %v6995 = vpack.c.b16 %v6463, %v6459
    %v6996 = vpack.c.b16 %v6464, %v6460
    %v6997 = vpack.c.b16 %v6465, %v6461
    %v6998 = vpack.c.b16 %v6466, %v6462
    %v6999 = vpack.c.b16 %v6471, %v6467
    %v7000 = vpack.c.b16 %v6472, %v6468
    %v7001 = vpack.c.b16 %v6473, %v6469
    %v7002 = vpack.c.b16 %v6474, %v6470
    %v7003 = vpack.c.b16 %v6479, %v6475
    %v7004 = vpack.c.b16 %v6480, %v6476
    %v7005 = vpack.c.b16 %v6481, %v6477
    %v7006 = vpack.c.b16 %v6482, %v6478
    %v7007 = vpack.c.b16 %v6487, %v6483
    %v7008 = vpack.c.b16 %v6488, %v6484
    %v7009 = vpack.c.b16 %v6489, %v6485
    %v7010 = vpack.c.b16 %v6490, %v6486
    %v7011 = vpack.c.b16 %v6495, %v6491
    %v7012 = vpack.c.b16 %v6496, %v6492
    %v7013 = vpack.c.b16 %v6497, %v6493
    %v7014 = vpack.c.b16 %v6498, %v6494
    %v7015 = vpack.c.b16 %v6503, %v6499
    %v7016 = vpack.c.b16 %v6504, %v6500
    %v7017 = vpack.c.b16 %v6505, %v6501
    %v7018 = vpack.c.b16 %v6506, %v6502
    %v7019 = vpack.c.b16 %v6511, %v6507
    %v7020 = vpack.c.b16 %v6512, %v6508
    %v7021 = vpack.c.b16 %v6513, %v6509
    %v7022 = vpack.c.b16 %v6514, %v6510
    %v7023 = vpack.c.b16 %v6519, %v6515
    %v7024 = vpack.c.b16 %v6520, %v6516
    %v7025 = vpack.c.b16 %v6521, %v6517
    %v7026 = vpack.c.b16 %v6522, %v6518
    %v7027 = vpack.c.b16 %v6527, %v6523
    %v7028 = vpack.c.b16 %v6528, %v6524
    %v7029 = vpack.c.b16 %v6529, %v6525
    %v7030 = vpack.c.b16 %v6530, %v6526
    %v7031 = vpack.c.b16 %v6535, %v6531
    %v7032 = vpack.c.b16 %v6536, %v6532
    %v7033 = vpack.c.b16 %v6537, %v6533
    %v7034 = vpack.c.b16 %v6538, %v6534
    %v7035 = vpack.c.b16 %v6543, %v6539
    %v7036 = vpack.c.b16 %v6544, %v6540
    %v7037 = vpack.c.b16 %v6545, %v6541
    %v7038 = vpack.c.b16 %v6546, %v6542
    %v7039 = vpack.c.b16 %v6551, %v6547
    %v7040 = vpack.c.b16 %v6552, %v6548
    %v7041 = vpack.c.b16 %v6553, %v6549
    %v7042 = vpack.c.b16 %v6554, %v6550
    %v7043 = vpack.c.b16 %v6559, %v6555
    %v7044 = vpack.c.b16 %v6560, %v6556
    %v7045 = vpack.c.b16 %v6561, %v6557
    %v7046 = vpack.c.b16 %v6562, %v6558
    %v7047 = vpack.c.b16 %v6567, %v6563
    %v7048 = vpack.c.b16 %v6568, %v6564
    %v7049 = vpack.c.b16 %v6569, %v6565
    %v7050 = vpack.c.b16 %v6570, %v6566
    %v7051 = vpack.c.b16 %v6575, %v6571
    %v7052 = vpack.c.b16 %v6576, %v6572
    %v7053 = vpack.c.b16 %v6577, %v6573
    %v7054 = vpack.c.b16 %v6578, %v6574
    %v7055 = vpack.c.b16 %v6583, %v6579
    %v7056 = vpack.c.b16 %v6584, %v6580
    %v7057 = vpack.c.b16 %v6585, %v6581
    %v7058 = vpack.c.b16 %v6586, %v6582
    %v7059 = vpack.c.b16 %v6591, %v6587
    %v7060 = vpack.c.b16 %v6592, %v6588
    %v7061 = vpack.c.b16 %v6593, %v6589
    %v7062 = vpack.c.b16 %v6594, %v6590
    %v7063 = vpack.c.b16 %v6599, %v6595
    %v7064 = vpack.c.b16 %v6600, %v6596
    %v7065 = vpack.c.b16 %v6601, %v6597
    %v7066 = vpack.c.b16 %v6602, %v6598
    %v7067 = vpack.c.b16 %v6607, %v6603
    %v7068 = vpack.c.b16 %v6608, %v6604
    %v7069 = vpack.c.b16 %v6609, %v6605
    %v7070 = vpack.c.b16 %v6610, %v6606
    %v7071 = vpack.c.b16 %v6615, %v6611
    %v7072 = vpack.c.b16 %v6616, %v6612
    %v7073 = vpack.c.b16 %v6617, %v6613
    %v7074 = vpack.c.b16 %v6618, %v6614
    %v7075 = vpack.c.b16 %v6623, %v6619
    %v7076 = vpack.c.b16 %v6624, %v6620
    %v7077 = vpack.c.b16 %v6625, %v6621
    %v7078 = vpack.c.b16 %v6626, %v6622
    %v7079 = vpack.c.b16 %v6631, %v6627
    %v7080 = vpack.c.b16 %v6632, %v6628
    %v7081 = vpack.c.b16 %v6633, %v6629
    %v7082 = vpack.c.b16 %v6634, %v6630
    %v7083 = vpack.c.b16 %v6639, %v6635
    %v7084 = vpack.c.b16 %v6640, %v6636
    %v7085 = vpack.c.b16 %v6641, %v6637
    %v7086 = vpack.c.b16 %v6642, %v6638
    %v7087 = vpack.c.b16 %v6647, %v6643
    %v7088 = vpack.c.b16 %v6648, %v6644
    %v7089 = vpack.c.b16 %v6649, %v6645
    %v7090 = vpack.c.b16 %v6650, %v6646
    %v7091 = vpack.c.b16 %v6655, %v6651
    %v7092 = vpack.c.b16 %v6656, %v6652
    %v7093 = vpack.c.b16 %v6657, %v6653
    %v7094 = vpack.c.b16 %v6658, %v6654
    %v7095 = vpack.c.b16 %v6663, %v6659
    %v7096 = vpack.c.b16 %v6664, %v6660
    %v7097 = vpack.c.b16 %v6665, %v6661
    %v7098 = vpack.c.b16 %v6666, %v6662
    %v7099 = vpack.c.b16 %v6671, %v6667
    %v7100 = vpack.c.b16 %v6672, %v6668
    %v7101 = vpack.c.b16 %v6673, %v6669
    %v7102 = vpack.c.b16 %v6674, %v6670
    %v7103 = vpack.c.b16 %v6679, %v6675
    %v7104 = vpack.c.b16 %v6680, %v6676
    %v7105 = vpack.c.b16 %v6681, %v6677
    %v7106 = vpack.c.b16 %v6682, %v6678
    %v7107 = vpack.c.b16 %v6687, %v6683
    %v7108 = vpack.c.b16 %v6688, %v6684
    %v7109 = vpack.c.b16 %v6689, %v6685
    %v7110 = vpack.c.b16 %v6690, %v6686
    %v7111 = vpack.c.b16 %v6695, %v6691
    %v7112 = vpack.c.b16 %v6696, %v6692
    %v7113 = vpack.c.b16 %v6697, %v6693
    %v7114 = vpack.c.b16 %v6698, %v6694
    %v7115 = vpack.c.b16 %v6703, %v6699
    %v7116 = vpack.c.b16 %v6704, %v6700
    %v7117 = vpack.c.b16 %v6705, %v6701
    %v7118 = vpack.c.b16 %v6706, %v6702
    %v7119 = vpack.c.b16 %v6711, %v6707
    %v7120 = vpack.c.b16 %v6712, %v6708
    %v7121 = vpack.c.b16 %v6713, %v6709
    %v7122 = vpack.c.b16 %v6714, %v6710
    %v7123 = vpack.c.b16 %v6719, %v6715
    %v7124 = vpack.c.b16 %v6720, %v6716
    %v7125 = vpack.c.b16 %v6721, %v6717
    %v7126 = vpack.c.b16 %v6722, %v6718
    %v7127 = vpack.c.b16 %v6727, %v6723
    %v7128 = vpack.c.b16 %v6728, %v6724
    %v7129 = vpack.c.b16 %v6729, %v6725
    %v7130 = vpack.c.b16 %v6730, %v6726
    %v7131 = vpack.c.b16 %v6735, %v6731
    %v7132 = vpack.c.b16 %v6736, %v6732
    %v7133 = vpack.c.b16 %v6737, %v6733
    %v7134 = vpack.c.b16 %v6738, %v6734
    %v7135 = vpack.c.b16 %v6743, %v6739
    %v7136 = vpack.c.b16 %v6744, %v6740
    %v7137 = vpack.c.b16 %v6745, %v6741
    %v7138 = vpack.c.b16 %v6746, %v6742
    %v7139 = vpack.c.b16 %v6751, %v6747
    %v7140 = vpack.c.b16 %v6752, %v6748
    %v7141 = vpack.c.b16 %v6753, %v6749
    %v7142 = vpack.c.b16 %v6754, %v6750
    %v7143 = vpack.c.b16 %v6759, %v6755
    %v7144 = vpack.c.b16 %v6760, %v6756
    %v7145 = vpack.c.b16 %v6761, %v6757
    %v7146 = vpack.c.b16 %v6762, %v6758
    %7531 = vmatprep.subr.bf16.mxu0 %v6764
    %7532 = vmatpush1.bf16.msra.mxu0 %v6763
    %7533 = vmatprep.subr.bf16.mxu0 %v6768
    %7534 = vmatpush1.bf16.msra.mxu0 %v6767
    %7535 = vmatprep.subr.bf16.mxu0 %v6772
    %7536 = vmatpush1.bf16.msra.mxu0 %v6771
    %7537 = vmatprep.subr.bf16.mxu0 %v6776
    %7538 = vmatpush1.bf16.msra.mxu0 %v6775
    %7539 = vmatprep.subr.bf16.mxu0 %v6780
    %7540 = vmatpush1.bf16.msra.mxu0 %v6779
    %7541 = vmatprep.subr.bf16.mxu0 %v6784
    %7542 = vmatpush1.bf16.msra.mxu0 %v6783
    %7543 = vmatprep.subr.bf16.mxu0 %v6788
    %7544 = vmatpush1.bf16.msra.mxu0 %v6787
    %7545 = vmatprep.subr.bf16.mxu0 %v6792
    %7546 = vmatpush1.bf16.msra.mxu0 %v6791
    %7547 = vmatprep.subr.bf16.mxu0 %v6796
    %7548 = vmatpush1.bf16.msra.mxu0 %v6795
    %7549 = vmatprep.subr.bf16.mxu0 %v6800
    %7550 = vmatpush1.bf16.msra.mxu0 %v6799
    %7551 = vmatprep.subr.bf16.mxu0 %v6804
    %7552 = vmatpush1.bf16.msra.mxu0 %v6803
    %7553 = vmatprep.subr.bf16.mxu0 %v6808
    %7554 = vmatpush1.bf16.msra.mxu0 %v6807
    %7555 = vmatprep.subr.bf16.mxu0 %v6812
    %7556 = vmatpush1.bf16.msra.mxu0 %v6811
    %7557 = vmatprep.subr.bf16.mxu0 %v6816
    %7558 = vmatpush1.bf16.msra.mxu0 %v6815
    %7559 = vmatprep.subr.bf16.mxu0 %v6820
    %7560 = vmatpush1.bf16.msra.mxu0 %v6819
    %7561 = vmatprep.subr.bf16.mxu0 %v6824
    %7562 = vmatpush1.bf16.msra.mxu0 %v6823
    %7563 = vmatprep.mubr.bf16.mxu0 %v5180
    %7564 = vmatmul.mubr.bf16.gmra.mrb[0].mxu0 %v5179
    %v7565 = vpop.f32.mrb[0].mxu0
    %v7566 = vadd.f32 0.0, %v7565
    %v7567 = vpop.f32.mrb[0].mxu0
    %v7568 = vadd.f32 0.0, %v7567
    %v7569 = vpop.f32.mrb[0].mxu0
    %v7570 = vadd.f32 0.0, %v7569
    %v7571 = vpop.f32.mrb[0].mxu0
    %v7572 = vadd.f32 0.0, %v7571
    %7573 = vmatprep.mubr.bf16.mxu0 %v5192
    %7574 = vmatmul.mubr.bf16.gmra.mrb[0].mxu0 %v5191
    %v7575 = vpop.f32.mrb[0].mxu0
    %v7576 = vadd.f32 0.0, %v7575
    %v7577 = vpop.f32.mrb[0].mxu0
    %v7578 = vadd.f32 0.0, %v7577
    %v7579 = vpop.f32.mrb[0].mxu0
    %v7580 = vadd.f32 0.0, %v7579
    %v7581 = vpop.f32.mrb[0].mxu0
    %v7582 = vadd.f32 0.0, %v7581
    %7583 = vmatprep.mubr.bf16.mxu0 %v5204
    %7584 = vmatmul.mubr.bf16.gmra.mrb[0].mxu0 %v5203
    %v7585 = vpop.f32.mrb[0].mxu0
    %v7586 = vadd.f32 0.0, %v7585
    %v7587 = vpop.f32.mrb[0].mxu0
    %v7588 = vadd.f32 0.0, %v7587
    %v7589 = vpop.f32.mrb[0].mxu0
    %v7590 = vadd.f32 0.0, %v7589
    %v7591 = vpop.f32.mrb[0].mxu0
    %v7592 = vadd.f32 0.0, %v7591
    %7593 = vmatprep.mubr.bf16.mxu0 %v5216
    %7594 = vmatmul.mubr.bf16.gmra.mrb[0].mxu0 %v5215
    %v7595 = vpop.f32.mrb[0].mxu0
    %v7596 = vadd.f32 0.0, %v7595
    %v7597 = vpop.f32.mrb[0].mxu0
    %v7598 = vadd.f32 0.0, %v7597
    %v7599 = vpop.f32.mrb[0].mxu0
    %v7600 = vadd.f32 0.0, %v7599
    %v7601 = vpop.f32.mrb[0].mxu0
    %v7602 = vadd.f32 0.0, %v7601
    %7603 = vdwg.mxu0
    %7604 = vmatprep.subr.bf16.mxu0 %v6828
    %7605 = vmatpush1.bf16.msra.mxu0 %v6827
    %7606 = vmatprep.subr.bf16.mxu0 %v6832
    %7607 = vmatpush1.bf16.msra.mxu0 %v6831
    %7608 = vmatprep.subr.bf16.mxu0 %v6836
    %7609 = vmatpush1.bf16.msra.mxu0 %v6835
    %7610 = vmatprep.subr.bf16.mxu0 %v6840
    %7611 = vmatpush1.bf16.msra.mxu0 %v6839
    %7612 = vmatprep.subr.bf16.mxu0 %v6844
    %7613 = vmatpush1.bf16.msra.mxu0 %v6843
    %7614 = vmatprep.subr.bf16.mxu0 %v6848
    %7615 = vmatpush1.bf16.msra.mxu0 %v6847
    %7616 = vmatprep.subr.bf16.mxu0 %v6852
    %7617 = vmatpush1.bf16.msra.mxu0 %v6851
    %7618 = vmatprep.subr.bf16.mxu0 %v6856
    %7619 = vmatpush1.bf16.msra.mxu0 %v6855
    %7620 = vmatprep.subr.bf16.mxu0 %v6860
    %7621 = vmatpush1.bf16.msra.mxu0 %v6859
    %7622 = vmatprep.subr.bf16.mxu0 %v6864
    %7623 = vmatpush1.bf16.msra.mxu0 %v6863
    %7624 = vmatprep.subr.bf16.mxu0 %v6868
    %7625 = vmatpush1.bf16.msra.mxu0 %v6867
    %7626 = vmatprep.subr.bf16.mxu0 %v6872
    %7627 = vmatpush1.bf16.msra.mxu0 %v6871
    %7628 = vmatprep.subr.bf16.mxu0 %v6876
    %7629 = vmatpush1.bf16.msra.mxu0 %v6875
    %7630 = vmatprep.subr.bf16.mxu0 %v6880
    %7631 = vmatpush1.bf16.msra.mxu0 %v6879
    %7632 = vmatprep.subr.bf16.mxu0 %v6884
    %7633 = vmatpush1.bf16.msra.mxu0 %v6883
    %7634 = vmatprep.subr.bf16.mxu0 %v6888
    %7635 = vmatpush1.bf16.msra.mxu0 %v6887
    %7636 = vmatprep.mubr.bf16.mxu0 %v5182
    %7637 = vmatmul.mubr.bf16.gmra.mrb[0].mxu0 %v5181
    %v7638 = vpop.f32.mrb[0].mxu0
    %v7639 = vadd.f32 %v7566, %v7638
    %v7640 = vpop.f32.mrb[0].mxu0
    %v7641 = vadd.f32 %v7568, %v7640
    %v7642 = vpop.f32.mrb[0].mxu0
    %v7643 = vadd.f32 %v7570, %v7642
    %v7644 = vpop.f32.mrb[0].mxu0
    %v7645 = vadd.f32 %v7572, %v7644
    %7646 = vmatprep.mubr.bf16.mxu0 %v5194
    %7647 = vmatmul.mubr.bf16.gmra.mrb[0].mxu0 %v5193
    %v7648 = vpop.f32.mrb[0].mxu0
    %v7649 = vadd.f32 %v7576, %v7648
    %v7650 = vpop.f32.mrb[0].mxu0
    %v7651 = vadd.f32 %v7578, %v7650
    %v7652 = vpop.f32.mrb[0].mxu0
    %v7653 = vadd.f32 %v7580, %v7652
    %v7654 = vpop.f32.mrb[0].mxu0
    %v7655 = vadd.f32 %v7582, %v7654
    %7656 = vmatprep.mubr.bf16.mxu0 %v5206
    %7657 = vmatmul.mubr.bf16.gmra.mrb[0].mxu0 %v5205
    %v7658 = vpop.f32.mrb[0].mxu0
    %v7659 = vadd.f32 %v7586, %v7658
    %v7660 = vpop.f32.mrb[0].mxu0
    %v7661 = vadd.f32 %v7588, %v7660
    %v7662 = vpop.f32.mrb[0].mxu0
    %v7663 = vadd.f32 %v7590, %v7662
    %v7664 = vpop.f32.mrb[0].mxu0
    %v7665 = vadd.f32 %v7592, %v7664
    %7666 = vmatprep.mubr.bf16.mxu0 %v5218
    %7667 = vmatmul.mubr.bf16.gmra.mrb[0].mxu0 %v5217
    %v7668 = vpop.f32.mrb[0].mxu0
    %v7669 = vadd.f32 %v7596, %v7668
    %v7670 = vpop.f32.mrb[0].mxu0
    %v7671 = vadd.f32 %v7598, %v7670
    %v7672 = vpop.f32.mrb[0].mxu0
    %v7673 = vadd.f32 %v7600, %v7672
    %v7674 = vpop.f32.mrb[0].mxu0
    %v7675 = vadd.f32 %v7602, %v7674
    %7676 = vdwg.mxu0
    %7677 = vmatprep.subr.bf16.mxu0 %v6892
    %7678 = vmatpush1.bf16.msra.mxu0 %v6891
    %7679 = vmatprep.subr.bf16.mxu0 %v6896
    %7680 = vmatpush1.bf16.msra.mxu0 %v6895
    %7681 = vmatprep.subr.bf16.mxu0 %v6900
    %7682 = vmatpush1.bf16.msra.mxu0 %v6899
    %7683 = vmatprep.subr.bf16.mxu0 %v6904
    %7684 = vmatpush1.bf16.msra.mxu0 %v6903
    %7685 = vmatprep.subr.bf16.mxu0 %v6908
    %7686 = vmatpush1.bf16.msra.mxu0 %v6907
    %7687 = vmatprep.subr.bf16.mxu0 %v6912
    %7688 = vmatpush1.bf16.msra.mxu0 %v6911
    %7689 = vmatprep.subr.bf16.mxu0 %v6916
    %7690 = vmatpush1.bf16.msra.mxu0 %v6915
    %7691 = vmatprep.subr.bf16.mxu0 %v6920
    %7692 = vmatpush1.bf16.msra.mxu0 %v6919
    %7693 = vmatprep.subr.bf16.mxu0 %v6924
    %7694 = vmatpush1.bf16.msra.mxu0 %v6923
    %7695 = vmatprep.subr.bf16.mxu0 %v6928
    %7696 = vmatpush1.bf16.msra.mxu0 %v6927
    %7697 = vmatprep.subr.bf16.mxu0 %v6932
    %7698 = vmatpush1.bf16.msra.mxu0 %v6931
    %7699 = vmatprep.subr.bf16.mxu0 %v6936
    %7700 = vmatpush1.bf16.msra.mxu0 %v6935
    %7701 = vmatprep.subr.bf16.mxu0 %v6940
    %7702 = vmatpush1.bf16.msra.mxu0 %v6939
    %7703 = vmatprep.subr.bf16.mxu0 %v6944
    %7704 = vmatpush1.bf16.msra.mxu0 %v6943
    %7705 = vmatprep.subr.bf16.mxu0 %v6948
    %7706 = vmatpush1.bf16.msra.mxu0 %v6947
    %7707 = vmatprep.subr.bf16.mxu0 %v6952
    %7708 = vmatpush1.bf16.msra.mxu0 %v6951
    %7709 = vmatprep.mubr.bf16.mxu0 %v5184
    %7710 = vmatmul.mubr.bf16.gmra.mrb[0].mxu0 %v5183
    %v7711 = vpop.f32.mrb[0].mxu0
    %v7712 = vadd.f32 %v7639, %v7711
    %v7713 = vpop.f32.mrb[0].mxu0
    %v7714 = vadd.f32 %v7641, %v7713
    %v7715 = vpop.f32.mrb[0].mxu0
    %v7716 = vadd.f32 %v7643, %v7715
    %v7717 = vpop.f32.mrb[0].mxu0
    %v7718 = vadd.f32 %v7645, %v7717
    %7719 = vmatprep.mubr.bf16.mxu0 %v5196
    %7720 = vmatmul.mubr.bf16.gmra.mrb[0].mxu0 %v5195
    %v7721 = vpop.f32.mrb[0].mxu0
    %v7722 = vadd.f32 %v7649, %v7721
    %v7723 = vpop.f32.mrb[0].mxu0
    %v7724 = vadd.f32 %v7651, %v7723
    %v7725 = vpop.f32.mrb[0].mxu0
    %v7726 = vadd.f32 %v7653, %v7725
    %v7727 = vpop.f32.mrb[0].mxu0
    %v7728 = vadd.f32 %v7655, %v7727
    %7729 = vmatprep.mubr.bf16.mxu0 %v5208
    %7730 = vmatmul.mubr.bf16.gmra.mrb[0].mxu0 %v5207
    %v7731 = vpop.f32.mrb[0].mxu0
    %v7732 = vadd.f32 %v7659, %v7731
    %v7733 = vpop.f32.mrb[0].mxu0
    %v7734 = vadd.f32 %v7661, %v7733
    %v7735 = vpop.f32.mrb[0].mxu0
    %v7736 = vadd.f32 %v7663, %v7735
    %v7737 = vpop.f32.mrb[0].mxu0
    %v7738 = vadd.f32 %v7665, %v7737
    %7739 = vmatprep.mubr.bf16.mxu0 %v5220
    %7740 = vmatmul.mubr.bf16.gmra.mrb[0].mxu0 %v5219
    %v7741 = vpop.f32.mrb[0].mxu0
    %v7742 = vadd.f32 %v7669, %v7741
    %v7743 = vpop.f32.mrb[0].mxu0
    %v7744 = vadd.f32 %v7671, %v7743
    %v7745 = vpop.f32.mrb[0].mxu0
    %v7746 = vadd.f32 %v7673, %v7745
    %v7747 = vpop.f32.mrb[0].mxu0
    %v7748 = vadd.f32 %v7675, %v7747
    %7749 = vdwg.mxu0
    %7750 = vmatprep.subr.bf16.mxu0 %v6956
    %7751 = vmatpush1.bf16.msra.mxu0 %v6955
    %7752 = vmatprep.subr.bf16.mxu0 %v6960
    %7753 = vmatpush1.bf16.msra.mxu0 %v6959
    %7754 = vmatprep.subr.bf16.mxu0 %v6964
    %7755 = vmatpush1.bf16.msra.mxu0 %v6963
    %7756 = vmatprep.subr.bf16.mxu0 %v6968
    %7757 = vmatpush1.bf16.msra.mxu0 %v6967
    %7758 = vmatprep.subr.bf16.mxu0 %v6972
    %7759 = vmatpush1.bf16.msra.mxu0 %v6971
    %7760 = vmatprep.subr.bf16.mxu0 %v6976
    %7761 = vmatpush1.bf16.msra.mxu0 %v6975
    %7762 = vmatprep.subr.bf16.mxu0 %v6980
    %7763 = vmatpush1.bf16.msra.mxu0 %v6979
    %7764 = vmatprep.subr.bf16.mxu0 %v6984
    %7765 = vmatpush1.bf16.msra.mxu0 %v6983
    %7766 = vmatprep.subr.bf16.mxu0 %v6988
    %7767 = vmatpush1.bf16.msra.mxu0 %v6987
    %7768 = vmatprep.subr.bf16.mxu0 %v6992
    %7769 = vmatpush1.bf16.msra.mxu0 %v6991
    %7770 = vmatprep.subr.bf16.mxu0 %v6996
    %7771 = vmatpush1.bf16.msra.mxu0 %v6995
    %7772 = vmatprep.subr.bf16.mxu0 %v7000
    %7773 = vmatpush1.bf16.msra.mxu0 %v6999
    %7774 = vmatprep.subr.bf16.mxu0 %v7004
    %7775 = vmatpush1.bf16.msra.mxu0 %v7003
    %7776 = vmatprep.subr.bf16.mxu0 %v7008
    %7777 = vmatpush1.bf16.msra.mxu0 %v7007
    %7778 = vmatprep.subr.bf16.mxu0 %v7012
    %7779 = vmatpush1.bf16.msra.mxu0 %v7011
    %7780 = vmatprep.subr.bf16.mxu0 %v7016
    %7781 = vmatpush1.bf16.msra.mxu0 %v7015
    %7782 = vmatprep.mubr.bf16.mxu0 %v5186
    %7783 = vmatmul.mubr.bf16.gmra.mrb[0].mxu0 %v5185
    %v7784 = vpop.f32.mrb[0].mxu0
    %v7785 = vadd.f32 %v7712, %v7784
    %v7786 = vpop.f32.mrb[0].mxu0
    %v7787 = vadd.f32 %v7714, %v7786
    %v7788 = vpop.f32.mrb[0].mxu0
    %v7789 = vadd.f32 %v7716, %v7788
    %v7790 = vpop.f32.mrb[0].mxu0
    %v7791 = vadd.f32 %v7718, %v7790
    %7792 = vmatprep.mubr.bf16.mxu0 %v5198
    %7793 = vmatmul.mubr.bf16.gmra.mrb[0].mxu0 %v5197
    %v7794 = vpop.f32.mrb[0].mxu0
    %v7795 = vadd.f32 %v7722, %v7794
    %v7796 = vpop.f32.mrb[0].mxu0
    %v7797 = vadd.f32 %v7724, %v7796
    %v7798 = vpop.f32.mrb[0].mxu0
    %v7799 = vadd.f32 %v7726, %v7798
    %v7800 = vpop.f32.mrb[0].mxu0
    %v7801 = vadd.f32 %v7728, %v7800
    %7802 = vmatprep.mubr.bf16.mxu0 %v5210
    %7803 = vmatmul.mubr.bf16.gmra.mrb[0].mxu0 %v5209
    %v7804 = vpop.f32.mrb[0].mxu0
    %v7805 = vadd.f32 %v7732, %v7804
    %v7806 = vpop.f32.mrb[0].mxu0
    %v7807 = vadd.f32 %v7734, %v7806
    %v7808 = vpop.f32.mrb[0].mxu0
    %v7809 = vadd.f32 %v7736, %v7808
    %v7810 = vpop.f32.mrb[0].mxu0
    %v7811 = vadd.f32 %v7738, %v7810
    %7812 = vmatprep.mubr.bf16.mxu0 %v5222
    %7813 = vmatmul.mubr.bf16.gmra.mrb[0].mxu0 %v5221
    %v7814 = vpop.f32.mrb[0].mxu0
    %v7815 = vadd.f32 %v7742, %v7814
    %v7816 = vpop.f32.mrb[0].mxu0
    %v7817 = vadd.f32 %v7744, %v7816
    %v7818 = vpop.f32.mrb[0].mxu0
    %v7819 = vadd.f32 %v7746, %v7818
    %v7820 = vpop.f32.mrb[0].mxu0
    %v7821 = vadd.f32 %v7748, %v7820
    %7822 = vdwg.mxu0
    %7823 = vmatprep.subr.bf16.mxu0 %v7020
    %7824 = vmatpush1.bf16.msra.mxu0 %v7019
    %7825 = vmatprep.subr.bf16.mxu0 %v7024
    %7826 = vmatpush1.bf16.msra.mxu0 %v7023
    %7827 = vmatprep.subr.bf16.mxu0 %v7028
    %7828 = vmatpush1.bf16.msra.mxu0 %v7027
    %7829 = vmatprep.subr.bf16.mxu0 %v7032
    %7830 = vmatpush1.bf16.msra.mxu0 %v7031
    %7831 = vmatprep.subr.bf16.mxu0 %v7036
    %7832 = vmatpush1.bf16.msra.mxu0 %v7035
    %7833 = vmatprep.subr.bf16.mxu0 %v7040
    %7834 = vmatpush1.bf16.msra.mxu0 %v7039
    %7835 = vmatprep.subr.bf16.mxu0 %v7044
    %7836 = vmatpush1.bf16.msra.mxu0 %v7043
    %7837 = vmatprep.subr.bf16.mxu0 %v7048
    %7838 = vmatpush1.bf16.msra.mxu0 %v7047
    %7839 = vmatprep.subr.bf16.mxu0 %v7052
    %7840 = vmatpush1.bf16.msra.mxu0 %v7051
    %7841 = vmatprep.subr.bf16.mxu0 %v7056
    %7842 = vmatpush1.bf16.msra.mxu0 %v7055
    %7843 = vmatprep.subr.bf16.mxu0 %v7060
    %7844 = vmatpush1.bf16.msra.mxu0 %v7059
    %7845 = vmatprep.subr.bf16.mxu0 %v7064
    %7846 = vmatpush1.bf16.msra.mxu0 %v7063
    %7847 = vmatprep.subr.bf16.mxu0 %v7068
    %7848 = vmatpush1.bf16.msra.mxu0 %v7067
    %7849 = vmatprep.subr.bf16.mxu0 %v7072
    %7850 = vmatpush1.bf16.msra.mxu0 %v7071
    %7851 = vmatprep.subr.bf16.mxu0 %v7076
    %7852 = vmatpush1.bf16.msra.mxu0 %v7075
    %7853 = vmatprep.subr.bf16.mxu0 %v7080
    %7854 = vmatpush1.bf16.msra.mxu0 %v7079
    %7855 = vmatprep.mubr.bf16.mxu0 %v5188
    %7856 = vmatmul.mubr.bf16.gmra.mrb[0].mxu0 %v5187
    %v7857 = vpop.f32.mrb[0].mxu0
    %v7858 = vadd.f32 %v7785, %v7857
    %v7859 = vpop.f32.mrb[0].mxu0
    %v7860 = vadd.f32 %v7787, %v7859
    %v7861 = vpop.f32.mrb[0].mxu0
    %v7862 = vadd.f32 %v7789, %v7861
    %v7863 = vpop.f32.mrb[0].mxu0
    %v7864 = vadd.f32 %v7791, %v7863
    %7865 = vmatprep.mubr.bf16.mxu0 %v5200
    %7866 = vmatmul.mubr.bf16.gmra.mrb[0].mxu0 %v5199
    %v7867 = vpop.f32.mrb[0].mxu0
    %v7868 = vadd.f32 %v7795, %v7867
    %v7869 = vpop.f32.mrb[0].mxu0
    %v7870 = vadd.f32 %v7797, %v7869
    %v7871 = vpop.f32.mrb[0].mxu0
    %v7872 = vadd.f32 %v7799, %v7871
    %v7873 = vpop.f32.mrb[0].mxu0
    %v7874 = vadd.f32 %v7801, %v7873
    %7875 = vmatprep.mubr.bf16.mxu0 %v5212
    %7876 = vmatmul.mubr.bf16.gmra.mrb[0].mxu0 %v5211
    %v7877 = vpop.f32.mrb[0].mxu0
    %v7878 = vadd.f32 %v7805, %v7877
    %v7879 = vpop.f32.mrb[0].mxu0
    %v7880 = vadd.f32 %v7807, %v7879
    %v7881 = vpop.f32.mrb[0].mxu0
    %v7882 = vadd.f32 %v7809, %v7881
    %v7883 = vpop.f32.mrb[0].mxu0
    %v7884 = vadd.f32 %v7811, %v7883
    %7885 = vmatprep.mubr.bf16.mxu0 %v5224
    %7886 = vmatmul.mubr.bf16.gmra.mrb[0].mxu0 %v5223
    %v7887 = vpop.f32.mrb[0].mxu0
    %v7888 = vadd.f32 %v7815, %v7887
    %v7889 = vpop.f32.mrb[0].mxu0
    %v7890 = vadd.f32 %v7817, %v7889
    %v7891 = vpop.f32.mrb[0].mxu0
    %v7892 = vadd.f32 %v7819, %v7891
    %v7893 = vpop.f32.mrb[0].mxu0
    %v7894 = vadd.f32 %v7821, %v7893
    %7895 = vdwg.mxu0
    %7896 = vmatprep.subr.bf16.mxu0 %v7084
    %7897 = vmatpush1.bf16.msra.mxu0 %v7083
    %7898 = vmatprep.subr.bf16.mxu0 %v7088
    %7899 = vmatpush1.bf16.msra.mxu0 %v7087
    %7900 = vmatprep.subr.bf16.mxu0 %v7092
    %7901 = vmatpush1.bf16.msra.mxu0 %v7091
    %7902 = vmatprep.subr.bf16.mxu0 %v7096
    %7903 = vmatpush1.bf16.msra.mxu0 %v7095
    %7904 = vmatprep.subr.bf16.mxu0 %v7100
    %7905 = vmatpush1.bf16.msra.mxu0 %v7099
    %7906 = vmatprep.subr.bf16.mxu0 %v7104
    %7907 = vmatpush1.bf16.msra.mxu0 %v7103
    %7908 = vmatprep.subr.bf16.mxu0 %v7108
    %7909 = vmatpush1.bf16.msra.mxu0 %v7107
    %7910 = vmatprep.subr.bf16.mxu0 %v7112
    %7911 = vmatpush1.bf16.msra.mxu0 %v7111
    %7912 = vmatprep.subr.bf16.mxu0 %v7116
    %7913 = vmatpush1.bf16.msra.mxu0 %v7115
    %7914 = vmatprep.subr.bf16.mxu0 %v7120
    %7915 = vmatpush1.bf16.msra.mxu0 %v7119
    %7916 = vmatprep.subr.bf16.mxu0 %v7124
    %7917 = vmatpush1.bf16.msra.mxu0 %v7123
    %7918 = vmatprep.subr.bf16.mxu0 %v7128
    %7919 = vmatpush1.bf16.msra.mxu0 %v7127
    %7920 = vmatprep.subr.bf16.mxu0 %v7132
    %7921 = vmatpush1.bf16.msra.mxu0 %v7131
    %7922 = vmatprep.subr.bf16.mxu0 %v7136
    %7923 = vmatpush1.bf16.msra.mxu0 %v7135
    %7924 = vmatprep.subr.bf16.mxu0 %v7140
    %7925 = vmatpush1.bf16.msra.mxu0 %v7139
    %7926 = vmatprep.subr.bf16.mxu0 %v7144
    %7927 = vmatpush1.bf16.msra.mxu0 %v7143
    %7928 = vmatprep.mubr.bf16.mxu0 %v5190
    %7929 = vmatmul.mubr.bf16.gmra.mrb[0].mxu0 %v5189
    %v7930 = vpop.f32.mrb[0].mxu0
    %v7931 = vadd.f32 %v7858, %v7930
    %v7932 = vpop.f32.mrb[0].mxu0
    %v7933 = vadd.f32 %v7860, %v7932
    %v7934 = vpop.f32.mrb[0].mxu0
    %v7935 = vadd.f32 %v7862, %v7934
    %v7936 = vpop.f32.mrb[0].mxu0
    %v7937 = vadd.f32 %v7864, %v7936
    %7938 = vmatprep.mubr.bf16.mxu0 %v5202
    %7939 = vmatmul.mubr.bf16.gmra.mrb[0].mxu0 %v5201
    %v7940 = vpop.f32.mrb[0].mxu0
    %v7941 = vadd.f32 %v7868, %v7940
    %v7942 = vpop.f32.mrb[0].mxu0
    %v7943 = vadd.f32 %v7870, %v7942
    %v7944 = vpop.f32.mrb[0].mxu0
    %v7945 = vadd.f32 %v7872, %v7944
    %v7946 = vpop.f32.mrb[0].mxu0
    %v7947 = vadd.f32 %v7874, %v7946
    %7948 = vmatprep.mubr.bf16.mxu0 %v5214
    %7949 = vmatmul.mubr.bf16.gmra.mrb[0].mxu0 %v5213
    %v7950 = vpop.f32.mrb[0].mxu0
    %v7951 = vadd.f32 %v7878, %v7950
    %v7952 = vpop.f32.mrb[0].mxu0
    %v7953 = vadd.f32 %v7880, %v7952
    %v7954 = vpop.f32.mrb[0].mxu0
    %v7955 = vadd.f32 %v7882, %v7954
    %v7956 = vpop.f32.mrb[0].mxu0
    %v7957 = vadd.f32 %v7884, %v7956
    %7958 = vmatprep.mubr.bf16.mxu0 %v5226
    %7959 = vmatmul.mubr.bf16.gmra.mrb[0].mxu0 %v5225
    %v7960 = vpop.f32.mrb[0].mxu0
    %v7961 = vadd.f32 %v7888, %v7960
    %v7962 = vpop.f32.mrb[0].mxu0
    %v7963 = vadd.f32 %v7890, %v7962
    %v7964 = vpop.f32.mrb[0].mxu0
    %v7965 = vadd.f32 %v7892, %v7964
    %v7966 = vpop.f32.mrb[0].mxu0
    %v7967 = vadd.f32 %v7894, %v7966
    %7968 = vdwg.mxu0
    %7969 = vmatprep.subr.bf16.mxu0 %v6766
    %7970 = vmatpush1.bf16.msra.mxu0 %v6765
    %7971 = vmatprep.subr.bf16.mxu0 %v6770
    %7972 = vmatpush1.bf16.msra.mxu0 %v6769
    %7973 = vmatprep.subr.bf16.mxu0 %v6774
    %7974 = vmatpush1.bf16.msra.mxu0 %v6773
    %7975 = vmatprep.subr.bf16.mxu0 %v6778
    %7976 = vmatpush1.bf16.msra.mxu0 %v6777
    %7977 = vmatprep.subr.bf16.mxu0 %v6782
    %7978 = vmatpush1.bf16.msra.mxu0 %v6781
    %7979 = vmatprep.subr.bf16.mxu0 %v6786
    %7980 = vmatpush1.bf16.msra.mxu0 %v6785
    %7981 = vmatprep.subr.bf16.mxu0 %v6790
    %7982 = vmatpush1.bf16.msra.mxu0 %v6789
    %7983 = vmatprep.subr.bf16.mxu0 %v6794
    %7984 = vmatpush1.bf16.msra.mxu0 %v6793
    %7985 = vmatprep.subr.bf16.mxu0 %v6798
    %7986 = vmatpush1.bf16.msra.mxu0 %v6797
    %7987 = vmatprep.subr.bf16.mxu0 %v6802
    %7988 = vmatpush1.bf16.msra.mxu0 %v6801
    %7989 = vmatprep.subr.bf16.mxu0 %v6806
    %7990 = vmatpush1.bf16.msra.mxu0 %v6805
    %7991 = vmatprep.subr.bf16.mxu0 %v6810
    %7992 = vmatpush1.bf16.msra.mxu0 %v6809
    %7993 = vmatprep.subr.bf16.mxu0 %v6814
    %7994 = vmatpush1.bf16.msra.mxu0 %v6813
    %7995 = vmatprep.subr.bf16.mxu0 %v6818
    %7996 = vmatpush1.bf16.msra.mxu0 %v6817
    %7997 = vmatprep.subr.bf16.mxu0 %v6822
    %7998 = vmatpush1.bf16.msra.mxu0 %v6821
    %7999 = vmatprep.subr.bf16.mxu0 %v6826
    %8000 = vmatpush1.bf16.msra.mxu0 %v6825
    %8001 = vmatprep.mubr.bf16.mxu0 %v5180
    %8002 = vmatmul.mubr.bf16.gmra.mrb[0].mxu0 %v5179
    %v8003 = vpop.f32.mrb[0].mxu0
    %v8004 = vadd.f32 0.0, %v8003
    %v8005 = vpop.f32.mrb[0].mxu0
    %v8006 = vadd.f32 0.0, %v8005
    %v8007 = vpop.f32.mrb[0].mxu0
    %v8008 = vadd.f32 0.0, %v8007
    %v8009 = vpop.f32.mrb[0].mxu0
    %v8010 = vadd.f32 0.0, %v8009
    %8011 = vmatprep.mubr.bf16.mxu0 %v5192
    %8012 = vmatmul.mubr.bf16.gmra.mrb[0].mxu0 %v5191
    %v8013 = vpop.f32.mrb[0].mxu0
    %v8014 = vadd.f32 0.0, %v8013
    %v8015 = vpop.f32.mrb[0].mxu0
    %v8016 = vadd.f32 0.0, %v8015
    %v8017 = vpop.f32.mrb[0].mxu0
    %v8018 = vadd.f32 0.0, %v8017
    %v8019 = vpop.f32.mrb[0].mxu0
    %v8020 = vadd.f32 0.0, %v8019
    %8021 = vmatprep.mubr.bf16.mxu0 %v5204
    %8022 = vmatmul.mubr.bf16.gmra.mrb[0].mxu0 %v5203
    %v8023 = vpop.f32.mrb[0].mxu0
    %v8024 = vadd.f32 0.0, %v8023
    %v8025 = vpop.f32.mrb[0].mxu0
    %v8026 = vadd.f32 0.0, %v8025
    %v8027 = vpop.f32.mrb[0].mxu0
    %v8028 = vadd.f32 0.0, %v8027
    %v8029 = vpop.f32.mrb[0].mxu0
    %v8030 = vadd.f32 0.0, %v8029
    %8031 = vmatprep.mubr.bf16.mxu0 %v5216
    %8032 = vmatmul.mubr.bf16.gmra.mrb[0].mxu0 %v5215
    %v8033 = vpop.f32.mrb[0].mxu0
    %v8034 = vadd.f32 0.0, %v8033
    %v8035 = vpop.f32.mrb[0].mxu0
    %v8036 = vadd.f32 0.0, %v8035
    %v8037 = vpop.f32.mrb[0].mxu0
    %v8038 = vadd.f32 0.0, %v8037
    %v8039 = vpop.f32.mrb[0].mxu0
    %v8040 = vadd.f32 0.0, %v8039
    %8041 = vdwg.mxu0
    %8042 = vmatprep.subr.bf16.mxu0 %v6830
    %8043 = vmatpush1.bf16.msra.mxu0 %v6829
    %8044 = vmatprep.subr.bf16.mxu0 %v6834
    %8045 = vmatpush1.bf16.msra.mxu0 %v6833
    %8046 = vmatprep.subr.bf16.mxu0 %v6838
    %8047 = vmatpush1.bf16.msra.mxu0 %v6837
    %8048 = vmatprep.subr.bf16.mxu0 %v6842
    %8049 = vmatpush1.bf16.msra.mxu0 %v6841
    %8050 = vmatprep.subr.bf16.mxu0 %v6846
    %8051 = vmatpush1.bf16.msra.mxu0 %v6845
    %8052 = vmatprep.subr.bf16.mxu0 %v6850
    %8053 = vmatpush1.bf16.msra.mxu0 %v6849
    %8054 = vmatprep.subr.bf16.mxu0 %v6854
    %8055 = vmatpush1.bf16.msra.mxu0 %v6853
    %8056 = vmatprep.subr.bf16.mxu0 %v6858
    %8057 = vmatpush1.bf16.msra.mxu0 %v6857
    %8058 = vmatprep.subr.bf16.mxu0 %v6862
    %8059 = vmatpush1.bf16.msra.mxu0 %v6861
    %8060 = vmatprep.subr.bf16.mxu0 %v6866
    %8061 = vmatpush1.bf16.msra.mxu0 %v6865
    %8062 = vmatprep.subr.bf16.mxu0 %v6870
    %8063 = vmatpush1.bf16.msra.mxu0 %v6869
    %8064 = vmatprep.subr.bf16.mxu0 %v6874
    %8065 = vmatpush1.bf16.msra.mxu0 %v6873
    %8066 = vmatprep.subr.bf16.mxu0 %v6878
    %8067 = vmatpush1.bf16.msra.mxu0 %v6877
    %8068 = vmatprep.subr.bf16.mxu0 %v6882
    %8069 = vmatpush1.bf16.msra.mxu0 %v6881
    %8070 = vmatprep.subr.bf16.mxu0 %v6886
    %8071 = vmatpush1.bf16.msra.mxu0 %v6885
    %8072 = vmatprep.subr.bf16.mxu0 %v6890
    %8073 = vmatpush1.bf16.msra.mxu0 %v6889
    %8074 = vmatprep.mubr.bf16.mxu0 %v5182
    %8075 = vmatmul.mubr.bf16.gmra.mrb[0].mxu0 %v5181
    %v8076 = vpop.f32.mrb[0].mxu0
    %v8077 = vadd.f32 %v8004, %v8076
    %v8078 = vpop.f32.mrb[0].mxu0
    %v8079 = vadd.f32 %v8006, %v8078
    %v8080 = vpop.f32.mrb[0].mxu0
    %v8081 = vadd.f32 %v8008, %v8080
    %v8082 = vpop.f32.mrb[0].mxu0
    %v8083 = vadd.f32 %v8010, %v8082
    %8084 = vmatprep.mubr.bf16.mxu0 %v5194
    %8085 = vmatmul.mubr.bf16.gmra.mrb[0].mxu0 %v5193
    %v8086 = vpop.f32.mrb[0].mxu0
    %v8087 = vadd.f32 %v8014, %v8086
    %v8088 = vpop.f32.mrb[0].mxu0
    %v8089 = vadd.f32 %v8016, %v8088
    %v8090 = vpop.f32.mrb[0].mxu0
    %v8091 = vadd.f32 %v8018, %v8090
    %v8092 = vpop.f32.mrb[0].mxu0
    %v8093 = vadd.f32 %v8020, %v8092
    %8094 = vmatprep.mubr.bf16.mxu0 %v5206
    %8095 = vmatmul.mubr.bf16.gmra.mrb[0].mxu0 %v5205
    %v8096 = vpop.f32.mrb[0].mxu0
    %v8097 = vadd.f32 %v8024, %v8096
    %v8098 = vpop.f32.mrb[0].mxu0
    %v8099 = vadd.f32 %v8026, %v8098
    %v8100 = vpop.f32.mrb[0].mxu0
    %v8101 = vadd.f32 %v8028, %v8100
    %v8102 = vpop.f32.mrb[0].mxu0
    %v8103 = vadd.f32 %v8030, %v8102
    %8104 = vmatprep.mubr.bf16.mxu0 %v5218
    %8105 = vmatmul.mubr.bf16.gmra.mrb[0].mxu0 %v5217
    %v8106 = vpop.f32.mrb[0].mxu0
    %v8107 = vadd.f32 %v8034, %v8106
    %v8108 = vpop.f32.mrb[0].mxu0
    %v8109 = vadd.f32 %v8036, %v8108
    %v8110 = vpop.f32.mrb[0].mxu0
    %v8111 = vadd.f32 %v8038, %v8110
    %v8112 = vpop.f32.mrb[0].mxu0
    %v8113 = vadd.f32 %v8040, %v8112
    %8114 = vdwg.mxu0
    %8115 = vmatprep.subr.bf16.mxu0 %v6894
    %8116 = vmatpush1.bf16.msra.mxu0 %v6893
    %8117 = vmatprep.subr.bf16.mxu0 %v6898
    %8118 = vmatpush1.bf16.msra.mxu0 %v6897
    %8119 = vmatprep.subr.bf16.mxu0 %v6902
    %8120 = vmatpush1.bf16.msra.mxu0 %v6901
    %8121 = vmatprep.subr.bf16.mxu0 %v6906
    %8122 = vmatpush1.bf16.msra.mxu0 %v6905
    %8123 = vmatprep.subr.bf16.mxu0 %v6910
    %8124 = vmatpush1.bf16.msra.mxu0 %v6909
    %8125 = vmatprep.subr.bf16.mxu0 %v6914
    %8126 = vmatpush1.bf16.msra.mxu0 %v6913
    %8127 = vmatprep.subr.bf16.mxu0 %v6918
    %8128 = vmatpush1.bf16.msra.mxu0 %v6917
    %8129 = vmatprep.subr.bf16.mxu0 %v6922
    %8130 = vmatpush1.bf16.msra.mxu0 %v6921
    %8131 = vmatprep.subr.bf16.mxu0 %v6926
    %8132 = vmatpush1.bf16.msra.mxu0 %v6925
    %8133 = vmatprep.subr.bf16.mxu0 %v6930
    %8134 = vmatpush1.bf16.msra.mxu0 %v6929
    %8135 = vmatprep.subr.bf16.mxu0 %v6934
    %8136 = vmatpush1.bf16.msra.mxu0 %v6933
    %8137 = vmatprep.subr.bf16.mxu0 %v6938
    %8138 = vmatpush1.bf16.msra.mxu0 %v6937
    %8139 = vmatprep.subr.bf16.mxu0 %v6942
    %8140 = vmatpush1.bf16.msra.mxu0 %v6941
    %8141 = vmatprep.subr.bf16.mxu0 %v6946
    %8142 = vmatpush1.bf16.msra.mxu0 %v6945
    %8143 = vmatprep.subr.bf16.mxu0 %v6950
    %8144 = vmatpush1.bf16.msra.mxu0 %v6949
    %8145 = vmatprep.subr.bf16.mxu0 %v6954
    %8146 = vmatpush1.bf16.msra.mxu0 %v6953
    %8147 = vmatprep.mubr.bf16.mxu0 %v5184
    %8148 = vmatmul.mubr.bf16.gmra.mrb[0].mxu0 %v5183
    %v8149 = vpop.f32.mrb[0].mxu0
    %v8150 = vadd.f32 %v8077, %v8149
    %v8151 = vpop.f32.mrb[0].mxu0
    %v8152 = vadd.f32 %v8079, %v8151
    %v8153 = vpop.f32.mrb[0].mxu0
    %v8154 = vadd.f32 %v8081, %v8153
    %v8155 = vpop.f32.mrb[0].mxu0
    %v8156 = vadd.f32 %v8083, %v8155
    %8157 = vmatprep.mubr.bf16.mxu0 %v5196
    %8158 = vmatmul.mubr.bf16.gmra.mrb[0].mxu0 %v5195
    %v8159 = vpop.f32.mrb[0].mxu0
    %v8160 = vadd.f32 %v8087, %v8159
    %v8161 = vpop.f32.mrb[0].mxu0
    %v8162 = vadd.f32 %v8089, %v8161
    %v8163 = vpop.f32.mrb[0].mxu0
    %v8164 = vadd.f32 %v8091, %v8163
    %v8165 = vpop.f32.mrb[0].mxu0
    %v8166 = vadd.f32 %v8093, %v8165
    %8167 = vmatprep.mubr.bf16.mxu0 %v5208
    %8168 = vmatmul.mubr.bf16.gmra.mrb[0].mxu0 %v5207
    %v8169 = vpop.f32.mrb[0].mxu0
    %v8170 = vadd.f32 %v8097, %v8169
    %v8171 = vpop.f32.mrb[0].mxu0
    %v8172 = vadd.f32 %v8099, %v8171
    %v8173 = vpop.f32.mrb[0].mxu0
    %v8174 = vadd.f32 %v8101, %v8173
    %v8175 = vpop.f32.mrb[0].mxu0
    %v8176 = vadd.f32 %v8103, %v8175
    %8177 = vmatprep.mubr.bf16.mxu0 %v5220
    %8178 = vmatmul.mubr.bf16.gmra.mrb[0].mxu0 %v5219
    %v8179 = vpop.f32.mrb[0].mxu0
    %v8180 = vadd.f32 %v8107, %v8179
    %v8181 = vpop.f32.mrb[0].mxu0
    %v8182 = vadd.f32 %v8109, %v8181
    %v8183 = vpop.f32.mrb[0].mxu0
    %v8184 = vadd.f32 %v8111, %v8183
    %v8185 = vpop.f32.mrb[0].mxu0
    %v8186 = vadd.f32 %v8113, %v8185
    %8187 = vdwg.mxu0
    %8188 = vmatprep.subr.bf16.mxu0 %v6958
    %8189 = vmatpush1.bf16.msra.mxu0 %v6957
    %8190 = vmatprep.subr.bf16.mxu0 %v6962
    %8191 = vmatpush1.bf16.msra.mxu0 %v6961
    %8192 = vmatprep.subr.bf16.mxu0 %v6966
    %8193 = vmatpush1.bf16.msra.mxu0 %v6965
    %8194 = vmatprep.subr.bf16.mxu0 %v6970
    %8195 = vmatpush1.bf16.msra.mxu0 %v6969
    %8196 = vmatprep.subr.bf16.mxu0 %v6974
    %8197 = vmatpush1.bf16.msra.mxu0 %v6973
    %8198 = vmatprep.subr.bf16.mxu0 %v6978
    %8199 = vmatpush1.bf16.msra.mxu0 %v6977
    %8200 = vmatprep.subr.bf16.mxu0 %v6982
    %8201 = vmatpush1.bf16.msra.mxu0 %v6981
    %8202 = vmatprep.subr.bf16.mxu0 %v6986
    %8203 = vmatpush1.bf16.msra.mxu0 %v6985
    %8204 = vmatprep.subr.bf16.mxu0 %v6990
    %8205 = vmatpush1.bf16.msra.mxu0 %v6989
    %8206 = vmatprep.subr.bf16.mxu0 %v6994
    %8207 = vmatpush1.bf16.msra.mxu0 %v6993
    %8208 = vmatprep.subr.bf16.mxu0 %v6998
    %8209 = vmatpush1.bf16.msra.mxu0 %v6997
    %8210 = vmatprep.subr.bf16.mxu0 %v7002
    %8211 = vmatpush1.bf16.msra.mxu0 %v7001
    %8212 = vmatprep.subr.bf16.mxu0 %v7006
    %8213 = vmatpush1.bf16.msra.mxu0 %v7005
    %8214 = vmatprep.subr.bf16.mxu0 %v7010
    %8215 = vmatpush1.bf16.msra.mxu0 %v7009
    %8216 = vmatprep.subr.bf16.mxu0 %v7014
    %8217 = vmatpush1.bf16.msra.mxu0 %v7013
    %8218 = vmatprep.subr.bf16.mxu0 %v7018
    %8219 = vmatpush1.bf16.msra.mxu0 %v7017
    %8220 = vmatprep.mubr.bf16.mxu0 %v5186
    %8221 = vmatmul.mubr.bf16.gmra.mrb[0].mxu0 %v5185
    %v8222 = vpop.f32.mrb[0].mxu0
    %v8223 = vadd.f32 %v8150, %v8222
    %v8224 = vpop.f32.mrb[0].mxu0
    %v8225 = vadd.f32 %v8152, %v8224
    %v8226 = vpop.f32.mrb[0].mxu0
    %v8227 = vadd.f32 %v8154, %v8226
    %v8228 = vpop.f32.mrb[0].mxu0
    %v8229 = vadd.f32 %v8156, %v8228
    %8230 = vmatprep.mubr.bf16.mxu0 %v5198
    %8231 = vmatmul.mubr.bf16.gmra.mrb[0].mxu0 %v5197
    %v8232 = vpop.f32.mrb[0].mxu0
    %v8233 = vadd.f32 %v8160, %v8232
    %v8234 = vpop.f32.mrb[0].mxu0
    %v8235 = vadd.f32 %v8162, %v8234
    %v8236 = vpop.f32.mrb[0].mxu0
    %v8237 = vadd.f32 %v8164, %v8236
    %v8238 = vpop.f32.mrb[0].mxu0
    %v8239 = vadd.f32 %v8166, %v8238
    %8240 = vmatprep.mubr.bf16.mxu0 %v5210
    %8241 = vmatmul.mubr.bf16.gmra.mrb[0].mxu0 %v5209
    %v8242 = vpop.f32.mrb[0].mxu0
    %v8243 = vadd.f32 %v8170, %v8242
    %v8244 = vpop.f32.mrb[0].mxu0
    %v8245 = vadd.f32 %v8172, %v8244
    %v8246 = vpop.f32.mrb[0].mxu0
    %v8247 = vadd.f32 %v8174, %v8246
    %v8248 = vpop.f32.mrb[0].mxu0
    %v8249 = vadd.f32 %v8176, %v8248
    %8250 = vmatprep.mubr.bf16.mxu0 %v5222
    %8251 = vmatmul.mubr.bf16.gmra.mrb[0].mxu0 %v5221
    %v8252 = vpop.f32.mrb[0].mxu0
    %v8253 = vadd.f32 %v8180, %v8252
    %v8254 = vpop.f32.mrb[0].mxu0
    %v8255 = vadd.f32 %v8182, %v8254
    %v8256 = vpop.f32.mrb[0].mxu0
    %v8257 = vadd.f32 %v8184, %v8256
    %v8258 = vpop.f32.mrb[0].mxu0
    %v8259 = vadd.f32 %v8186, %v8258
    %8260 = vdwg.mxu0
    %8261 = vmatprep.subr.bf16.mxu0 %v7022
    %8262 = vmatpush1.bf16.msra.mxu0 %v7021
    %8263 = vmatprep.subr.bf16.mxu0 %v7026
    %8264 = vmatpush1.bf16.msra.mxu0 %v7025
    %8265 = vmatprep.subr.bf16.mxu0 %v7030
    %8266 = vmatpush1.bf16.msra.mxu0 %v7029
    %8267 = vmatprep.subr.bf16.mxu0 %v7034
    %8268 = vmatpush1.bf16.msra.mxu0 %v7033
    %8269 = vmatprep.subr.bf16.mxu0 %v7038
    %8270 = vmatpush1.bf16.msra.mxu0 %v7037
    %8271 = vmatprep.subr.bf16.mxu0 %v7042
    %8272 = vmatpush1.bf16.msra.mxu0 %v7041
    %8273 = vmatprep.subr.bf16.mxu0 %v7046
    %8274 = vmatpush1.bf16.msra.mxu0 %v7045
    %8275 = vmatprep.subr.bf16.mxu0 %v7050
    %8276 = vmatpush1.bf16.msra.mxu0 %v7049
    %8277 = vmatprep.subr.bf16.mxu0 %v7054
    %8278 = vmatpush1.bf16.msra.mxu0 %v7053
    %8279 = vmatprep.subr.bf16.mxu0 %v7058
    %8280 = vmatpush1.bf16.msra.mxu0 %v7057
    %8281 = vmatprep.subr.bf16.mxu0 %v7062
    %8282 = vmatpush1.bf16.msra.mxu0 %v7061
    %8283 = vmatprep.subr.bf16.mxu0 %v7066
    %8284 = vmatpush1.bf16.msra.mxu0 %v7065
    %8285 = vmatprep.subr.bf16.mxu0 %v7070
    %8286 = vmatpush1.bf16.msra.mxu0 %v7069
    %8287 = vmatprep.subr.bf16.mxu0 %v7074
    %8288 = vmatpush1.bf16.msra.mxu0 %v7073
    %8289 = vmatprep.subr.bf16.mxu0 %v7078
    %8290 = vmatpush1.bf16.msra.mxu0 %v7077
    %8291 = vmatprep.subr.bf16.mxu0 %v7082
    %8292 = vmatpush1.bf16.msra.mxu0 %v7081
    %8293 = vmatprep.mubr.bf16.mxu0 %v5188
    %8294 = vmatmul.mubr.bf16.gmra.mrb[0].mxu0 %v5187
    %v8295 = vpop.f32.mrb[0].mxu0
    %v8296 = vadd.f32 %v8223, %v8295
    %v8297 = vpop.f32.mrb[0].mxu0
    %v8298 = vadd.f32 %v8225, %v8297
    %v8299 = vpop.f32.mrb[0].mxu0
    %v8300 = vadd.f32 %v8227, %v8299
    %v8301 = vpop.f32.mrb[0].mxu0
    %v8302 = vadd.f32 %v8229, %v8301
    %8303 = vmatprep.mubr.bf16.mxu0 %v5200
    %8304 = vmatmul.mubr.bf16.gmra.mrb[0].mxu0 %v5199
    %v8305 = vpop.f32.mrb[0].mxu0
    %v8306 = vadd.f32 %v8233, %v8305
    %v8307 = vpop.f32.mrb[0].mxu0
    %v8308 = vadd.f32 %v8235, %v8307
    %v8309 = vpop.f32.mrb[0].mxu0
    %v8310 = vadd.f32 %v8237, %v8309
    %v8311 = vpop.f32.mrb[0].mxu0
    %v8312 = vadd.f32 %v8239, %v8311
    %8313 = vmatprep.mubr.bf16.mxu0 %v5212
    %8314 = vmatmul.mubr.bf16.gmra.mrb[0].mxu0 %v5211
    %v8315 = vpop.f32.mrb[0].mxu0
    %v8316 = vadd.f32 %v8243, %v8315
    %v8317 = vpop.f32.mrb[0].mxu0
    %v8318 = vadd.f32 %v8245, %v8317
    %v8319 = vpop.f32.mrb[0].mxu0
    %v8320 = vadd.f32 %v8247, %v8319
    %v8321 = vpop.f32.mrb[0].mxu0
    %v8322 = vadd.f32 %v8249, %v8321
    %8323 = vmatprep.mubr.bf16.mxu0 %v5224
    %8324 = vmatmul.mubr.bf16.gmra.mrb[0].mxu0 %v5223
    %v8325 = vpop.f32.mrb[0].mxu0
    %v8326 = vadd.f32 %v8253, %v8325
    %v8327 = vpop.f32.mrb[0].mxu0
    %v8328 = vadd.f32 %v8255, %v8327
    %v8329 = vpop.f32.mrb[0].mxu0
    %v8330 = vadd.f32 %v8257, %v8329
    %v8331 = vpop.f32.mrb[0].mxu0
    %v8332 = vadd.f32 %v8259, %v8331
    %8333 = vdwg.mxu0
    %8334 = vmatprep.subr.bf16.mxu0 %v7086
    %8335 = vmatpush1.bf16.msra.mxu0 %v7085
    %8336 = vmatprep.subr.bf16.mxu0 %v7090
    %8337 = vmatpush1.bf16.msra.mxu0 %v7089
    %8338 = vmatprep.subr.bf16.mxu0 %v7094
    %8339 = vmatpush1.bf16.msra.mxu0 %v7093
    %8340 = vmatprep.subr.bf16.mxu0 %v7098
    %8341 = vmatpush1.bf16.msra.mxu0 %v7097
    %8342 = vmatprep.subr.bf16.mxu0 %v7102
    %8343 = vmatpush1.bf16.msra.mxu0 %v7101
    %8344 = vmatprep.subr.bf16.mxu0 %v7106
    %8345 = vmatpush1.bf16.msra.mxu0 %v7105
    %8346 = vmatprep.subr.bf16.mxu0 %v7110
    %8347 = vmatpush1.bf16.msra.mxu0 %v7109
    %8348 = vmatprep.subr.bf16.mxu0 %v7114
    %8349 = vmatpush1.bf16.msra.mxu0 %v7113
    %8350 = vmatprep.subr.bf16.mxu0 %v7118
    %8351 = vmatpush1.bf16.msra.mxu0 %v7117
    %8352 = vmatprep.subr.bf16.mxu0 %v7122
    %8353 = vmatpush1.bf16.msra.mxu0 %v7121
    %8354 = vmatprep.subr.bf16.mxu0 %v7126
    %8355 = vmatpush1.bf16.msra.mxu0 %v7125
    %8356 = vmatprep.subr.bf16.mxu0 %v7130
    %8357 = vmatpush1.bf16.msra.mxu0 %v7129
    %8358 = vmatprep.subr.bf16.mxu0 %v7134
    %8359 = vmatpush1.bf16.msra.mxu0 %v7133
    %8360 = vmatprep.subr.bf16.mxu0 %v7138
    %8361 = vmatpush1.bf16.msra.mxu0 %v7137
    %8362 = vmatprep.subr.bf16.mxu0 %v7142
    %8363 = vmatpush1.bf16.msra.mxu0 %v7141
    %8364 = vmatprep.subr.bf16.mxu0 %v7146
    %8365 = vmatpush1.bf16.msra.mxu0 %v7145
    %8366 = vmatprep.mubr.bf16.mxu0 %v5190
    %8367 = vmatmul.mubr.bf16.gmra.mrb[0].mxu0 %v5189
    %v8368 = vpop.f32.mrb[0].mxu0
    %v8369 = vadd.f32 %v8296, %v8368
    %v8370 = vpop.f32.mrb[0].mxu0
    %v8371 = vadd.f32 %v8298, %v8370
    %v8372 = vpop.f32.mrb[0].mxu0
    %v8373 = vadd.f32 %v8300, %v8372
    %v8374 = vpop.f32.mrb[0].mxu0
    %v8375 = vadd.f32 %v8302, %v8374
    %8376 = vmatprep.mubr.bf16.mxu0 %v5202
    %8377 = vmatmul.mubr.bf16.gmra.mrb[0].mxu0 %v5201
    %v8378 = vpop.f32.mrb[0].mxu0
    %v8379 = vadd.f32 %v8306, %v8378
    %v8380 = vpop.f32.mrb[0].mxu0
    %v8381 = vadd.f32 %v8308, %v8380
    %v8382 = vpop.f32.mrb[0].mxu0
    %v8383 = vadd.f32 %v8310, %v8382
    %v8384 = vpop.f32.mrb[0].mxu0
    %v8385 = vadd.f32 %v8312, %v8384
    %8386 = vmatprep.mubr.bf16.mxu0 %v5214
    %8387 = vmatmul.mubr.bf16.gmra.mrb[0].mxu0 %v5213
    %v8388 = vpop.f32.mrb[0].mxu0
    %v8389 = vadd.f32 %v8316, %v8388
    %v8390 = vpop.f32.mrb[0].mxu0
    %v8391 = vadd.f32 %v8318, %v8390
    %v8392 = vpop.f32.mrb[0].mxu0
    %v8393 = vadd.f32 %v8320, %v8392
    %v8394 = vpop.f32.mrb[0].mxu0
    %v8395 = vadd.f32 %v8322, %v8394
    %8396 = vmatprep.mubr.bf16.mxu0 %v5226
    %8397 = vmatmul.mubr.bf16.gmra.mrb[0].mxu0 %v5225
    %v8398 = vpop.f32.mrb[0].mxu0
    %v8399 = vadd.f32 %v8326, %v8398
    %v8400 = vpop.f32.mrb[0].mxu0
    %v8401 = vadd.f32 %v8328, %v8400
    %v8402 = vpop.f32.mrb[0].mxu0
    %v8403 = vadd.f32 %v8330, %v8402
    %v8404 = vpop.f32.mrb[0].mxu0
    %v8405 = vadd.f32 %v8332, %v8404
    %8406 = vdwg.mxu0
    %s8407 = scalar_lea.vmem [#allocation11], 4
    %v8408 = vld [vmem:[%s8407] ss:$8 sm:$0xf]
    %v8410 = vlaneseq
    %v8411 = vshrl.u32 %v8410, 7
    %v8412 = vsub.s32 0, %v8411
    %v8413 = vrot.slane %v8408, %v8412
    %v8414 = vlaneseq
    %v8415 = vshrl.u32 %v8414, 7
    %v8416 = vsub.s32 1, %v8415
    %v8417 = vrot.slane %v8408, %v8416
    %v8418 = vlaneseq
    %v8419 = vshrl.u32 %v8418, 7
    %v8420 = vsub.s32 2, %v8419
    %v8421 = vrot.slane %v8408, %v8420
    %v8422 = vlaneseq
    %v8423 = vshrl.u32 %v8422, 7
    %v8424 = vsub.s32 3, %v8423
    %v8425 = vrot.slane %v8408, %v8424
    %v8430 = vmul.f32 %v7931, %v8413
    %v8431 = vmul.f32 %v7933, %v8417
    %v8432 = vmul.f32 %v8369, %v8421
    %v8433 = vmul.f32 %v8371, %v8425
    %v8434 = vmul.f32 %v7935, %v8413
    %v8435 = vmul.f32 %v7937, %v8417
    %v8436 = vmul.f32 %v8373, %v8421
    %v8437 = vmul.f32 %v8375, %v8425
    %v8438 = vmul.f32 %v7941, %v8413
    %v8439 = vmul.f32 %v7943, %v8417
    %v8440 = vmul.f32 %v8379, %v8421
    %v8441 = vmul.f32 %v8381, %v8425
    %v8442 = vmul.f32 %v7945, %v8413
    %v8443 = vmul.f32 %v7947, %v8417
    %v8444 = vmul.f32 %v8383, %v8421
    %v8445 = vmul.f32 %v8385, %v8425
    %v8446 = vmul.f32 %v7951, %v8413
    %v8447 = vmul.f32 %v7953, %v8417
    %v8448 = vmul.f32 %v8389, %v8421
    %v8449 = vmul.f32 %v8391, %v8425
    %v8450 = vmul.f32 %v7955, %v8413
    %v8451 = vmul.f32 %v7957, %v8417
    %v8452 = vmul.f32 %v8393, %v8421
    %v8453 = vmul.f32 %v8395, %v8425
    %v8454 = vmul.f32 %v7961, %v8413
    %v8455 = vmul.f32 %v7963, %v8417
    %v8456 = vmul.f32 %v8399, %v8421
    %v8457 = vmul.f32 %v8401, %v8425
    %v8458 = vmul.f32 %v7965, %v8413
    %v8459 = vmul.f32 %v7967, %v8417
    %v8460 = vmul.f32 %v8403, %v8421
    %v8461 = vmul.f32 %v8405, %v8425
    %s8462 = scalar_lea.vmem [#allocation11], 5
    %v8463 = vld [vmem:[%s8462] ss:$8 sm:$0xf]
    %v8465 = vlaneseq
    %v8466 = vshrl.u32 %v8465, 7
    %v8467 = vsub.s32 0, %v8466
    %v8468 = vrot.slane %v8463, %v8467
    %v8469 = vlaneseq
    %v8470 = vshrl.u32 %v8469, 7
    %v8471 = vsub.s32 1, %v8470
    %v8472 = vrot.slane %v8463, %v8471
    %v8473 = vlaneseq
    %v8474 = vshrl.u32 %v8473, 7
    %v8475 = vsub.s32 2, %v8474
    %v8476 = vrot.slane %v8463, %v8475
    %v8477 = vlaneseq
    %v8478 = vshrl.u32 %v8477, 7
    %v8479 = vsub.s32 3, %v8478
    %v8480 = vrot.slane %v8463, %v8479
    %v8485 = vadd.f32 %v8430, %v8468
    %v8486 = vadd.f32 %v8431, %v8472
    %v8487 = vadd.f32 %v8432, %v8476
    %v8488 = vadd.f32 %v8433, %v8480
    %v8489 = vadd.f32 %v8434, %v8468
    %v8490 = vadd.f32 %v8435, %v8472
    %v8491 = vadd.f32 %v8436, %v8476
    %v8492 = vadd.f32 %v8437, %v8480
    %v8493 = vadd.f32 %v8438, %v8468
    %v8494 = vadd.f32 %v8439, %v8472
    %v8495 = vadd.f32 %v8440, %v8476
    %v8496 = vadd.f32 %v8441, %v8480
    %v8497 = vadd.f32 %v8442, %v8468
    %v8498 = vadd.f32 %v8443, %v8472
    %v8499 = vadd.f32 %v8444, %v8476
    %v8500 = vadd.f32 %v8445, %v8480
    %v8501 = vadd.f32 %v8446, %v8468
    %v8502 = vadd.f32 %v8447, %v8472
    %v8503 = vadd.f32 %v8448, %v8476
    %v8504 = vadd.f32 %v8449, %v8480
    %v8505 = vadd.f32 %v8450, %v8468
    %v8506 = vadd.f32 %v8451, %v8472
    %v8507 = vadd.f32 %v8452, %v8476
    %v8508 = vadd.f32 %v8453, %v8480
    %v8509 = vadd.f32 %v8454, %v8468
    %v8510 = vadd.f32 %v8455, %v8472
    %v8511 = vadd.f32 %v8456, %v8476
    %v8512 = vadd.f32 %v8457, %v8480
    %v8513 = vadd.f32 %v8458, %v8468
    %v8514 = vadd.f32 %v8459, %v8472
    %v8515 = vadd.f32 %v8460, %v8476
    %v8516 = vadd.f32 %v8461, %v8480
    %v8517 = vadd.f32 %v8485, %v8489
    %v8518 = vrot.slane %v8517, 4
    %v8519 = vadd.f32 %v8517, %v8518
    %v8520 = vrot.slane %v8519, 2
    %v8521 = vadd.f32 %v8519, %v8520
    %v8522 = vrot.slane %v8521, 1
    %v8523 = vadd.f32 %v8521, %v8522
    %v8524 = vadd.f32 %v8486, %v8490
    %v8525 = vrot.slane %v8524, 4
    %v8526 = vadd.f32 %v8524, %v8525
    %v8527 = vrot.slane %v8526, 2
    %v8528 = vadd.f32 %v8526, %v8527
    %v8529 = vrot.slane %v8528, 1
    %v8530 = vadd.f32 %v8528, %v8529
    %v8531 = vadd.f32 %v8487, %v8491
    %v8532 = vrot.slane %v8531, 4
    %v8533 = vadd.f32 %v8531, %v8532
    %v8534 = vrot.slane %v8533, 2
    %v8535 = vadd.f32 %v8533, %v8534
    %v8536 = vrot.slane %v8535, 1
    %v8537 = vadd.f32 %v8535, %v8536
    %v8538 = vadd.f32 %v8488, %v8492
    %v8539 = vrot.slane %v8538, 4
    %v8540 = vadd.f32 %v8538, %v8539
    %v8541 = vrot.slane %v8540, 2
    %v8542 = vadd.f32 %v8540, %v8541
    %v8543 = vrot.slane %v8542, 1
    %v8544 = vadd.f32 %v8542, %v8543
    %v8545 = vadd.f32 %v8493, %v8497
    %v8546 = vrot.slane %v8545, 4
    %v8547 = vadd.f32 %v8545, %v8546
    %v8548 = vrot.slane %v8547, 2
    %v8549 = vadd.f32 %v8547, %v8548
    %v8550 = vrot.slane %v8549, 1
    %v8551 = vadd.f32 %v8549, %v8550
    %v8552 = vadd.f32 %v8494, %v8498
    %v8553 = vrot.slane %v8552, 4
    %v8554 = vadd.f32 %v8552, %v8553
    %v8555 = vrot.slane %v8554, 2
    %v8556 = vadd.f32 %v8554, %v8555
    %v8557 = vrot.slane %v8556, 1
    %v8558 = vadd.f32 %v8556, %v8557
    %v8559 = vadd.f32 %v8495, %v8499
    %v8560 = vrot.slane %v8559, 4
    %v8561 = vadd.f32 %v8559, %v8560
    %v8562 = vrot.slane %v8561, 2
    %v8563 = vadd.f32 %v8561, %v8562
    %v8564 = vrot.slane %v8563, 1
    %v8565 = vadd.f32 %v8563, %v8564
    %v8566 = vadd.f32 %v8496, %v8500
    %v8567 = vrot.slane %v8566, 4
    %v8568 = vadd.f32 %v8566, %v8567
    %v8569 = vrot.slane %v8568, 2
    %v8570 = vadd.f32 %v8568, %v8569
    %v8571 = vrot.slane %v8570, 1
    %v8572 = vadd.f32 %v8570, %v8571
    %v8573 = vadd.f32 %v8501, %v8505
    %v8574 = vrot.slane %v8573, 4
    %v8575 = vadd.f32 %v8573, %v8574
    %v8576 = vrot.slane %v8575, 2
    %v8577 = vadd.f32 %v8575, %v8576
    %v8578 = vrot.slane %v8577, 1
    %v8579 = vadd.f32 %v8577, %v8578
    %v8580 = vadd.f32 %v8502, %v8506
    %v8581 = vrot.slane %v8580, 4
    %v8582 = vadd.f32 %v8580, %v8581
    %v8583 = vrot.slane %v8582, 2
    %v8584 = vadd.f32 %v8582, %v8583
    %v8585 = vrot.slane %v8584, 1
    %v8586 = vadd.f32 %v8584, %v8585
    %v8587 = vadd.f32 %v8503, %v8507
    %v8588 = vrot.slane %v8587, 4
    %v8589 = vadd.f32 %v8587, %v8588
    %v8590 = vrot.slane %v8589, 2
    %v8591 = vadd.f32 %v8589, %v8590
    %v8592 = vrot.slane %v8591, 1
    %v8593 = vadd.f32 %v8591, %v8592
    %v8594 = vadd.f32 %v8504, %v8508
    %v8595 = vrot.slane %v8594, 4
    %v8596 = vadd.f32 %v8594, %v8595
    %v8597 = vrot.slane %v8596, 2
    %v8598 = vadd.f32 %v8596, %v8597
    %v8599 = vrot.slane %v8598, 1
    %v8600 = vadd.f32 %v8598, %v8599
    %v8601 = vadd.f32 %v8509, %v8513
    %v8602 = vrot.slane %v8601, 4
    %v8603 = vadd.f32 %v8601, %v8602
    %v8604 = vrot.slane %v8603, 2
    %v8605 = vadd.f32 %v8603, %v8604
    %v8606 = vrot.slane %v8605, 1
    %v8607 = vadd.f32 %v8605, %v8606
    %v8608 = vadd.f32 %v8510, %v8514
    %v8609 = vrot.slane %v8608, 4
    %v8610 = vadd.f32 %v8608, %v8609
    %v8611 = vrot.slane %v8610, 2
    %v8612 = vadd.f32 %v8610, %v8611
    %v8613 = vrot.slane %v8612, 1
    %v8614 = vadd.f32 %v8612, %v8613
    %v8615 = vadd.f32 %v8511, %v8515
    %v8616 = vrot.slane %v8615, 4
    %v8617 = vadd.f32 %v8615, %v8616
    %v8618 = vrot.slane %v8617, 2
    %v8619 = vadd.f32 %v8617, %v8618
    %v8620 = vrot.slane %v8619, 1
    %v8621 = vadd.f32 %v8619, %v8620
    %v8622 = vadd.f32 %v8512, %v8516
    %v8623 = vrot.slane %v8622, 4
    %v8624 = vadd.f32 %v8622, %v8623
    %v8625 = vrot.slane %v8624, 2
    %v8626 = vadd.f32 %v8624, %v8625
    %v8627 = vrot.slane %v8626, 1
    %v8628 = vadd.f32 %v8626, %v8627
    %v8629 = vld [vmem:[%s5] sm:$0xff]
    %v8630 = vld [vmem:[%s5 + $0x8] sm:$0xff]
    %v8631 = vld [vmem:[%s5 + $0x10] sm:$0xff]
    %v8632 = vld [vmem:[%s5 + $0x18] sm:$0xff]
    %v8633 = vld [vmem:[%s5 + $0x20] sm:$0xff]
    %v8634 = vld [vmem:[%s5 + $0x28] sm:$0xff]
    %v8635 = vld [vmem:[%s5 + $0x30] sm:$0xff]
    %v8636 = vld [vmem:[%s5 + $0x38] sm:$0xff]
    %v8637 = vld [vmem:[%s5 + $0x40] sm:$0xff]
    %v8638 = vld [vmem:[%s5 + $0x48] sm:$0xff]
    %v8639 = vld [vmem:[%s5 + $0x50] sm:$0xff]
    %v8640 = vld [vmem:[%s5 + $0x58] sm:$0xff]
    %v8641 = vld [vmem:[%s5 + $0x60] sm:$0xff]
    %v8642 = vld [vmem:[%s5 + $0x68] sm:$0xff]
    %v8643 = vld [vmem:[%s5 + $0x70] sm:$0xff]
    %v8644 = vld [vmem:[%s5 + $0x78] sm:$0xff]
    %v8645 = vld [vmem:[%s5 + $0x80] sm:$0xff]
    %v8646 = vld [vmem:[%s5 + $0x88] sm:$0xff]
    %v8647 = vld [vmem:[%s5 + $0x90] sm:$0xff]
    %v8648 = vld [vmem:[%s5 + $0x98] sm:$0xff]
    %v8649 = vld [vmem:[%s5 + $0xa0] sm:$0xff]
    %v8650 = vld [vmem:[%s5 + $0xa8] sm:$0xff]
    %v8651 = vld [vmem:[%s5 + $0xb0] sm:$0xff]
    %v8652 = vld [vmem:[%s5 + $0xb8] sm:$0xff]
    %v8653 = vld [vmem:[%s5 + $0xc0] sm:$0xff]
    %v8654 = vld [vmem:[%s5 + $0xc8] sm:$0xff]
    %v8655 = vld [vmem:[%s5 + $0xd0] sm:$0xff]
    %v8656 = vld [vmem:[%s5 + $0xd8] sm:$0xff]
    %v8657 = vld [vmem:[%s5 + $0xe0] sm:$0xff]
    %v8658 = vld [vmem:[%s5 + $0xe8] sm:$0xff]
    %v8659 = vld [vmem:[%s5 + $0xf0] sm:$0xff]
    %v8660 = vld [vmem:[%s5 + $0xf8] sm:$0xff]
    %v8661 = vld [vmem:[%s5 + $0x100] sm:$0xff]
    %v8662 = vld [vmem:[%s5 + $0x108] sm:$0xff]
    %v8663 = vld [vmem:[%s5 + $0x110] sm:$0xff]
    %v8664 = vld [vmem:[%s5 + $0x118] sm:$0xff]
    %v8665 = vld [vmem:[%s5 + $0x120] sm:$0xff]
    %v8666 = vld [vmem:[%s5 + $0x128] sm:$0xff]
    %v8667 = vld [vmem:[%s5 + $0x130] sm:$0xff]
    %v8668 = vld [vmem:[%s5 + $0x138] sm:$0xff]
    %v8669 = vld [vmem:[%s5 + $0x140] sm:$0xff]
    %v8670 = vld [vmem:[%s5 + $0x148] sm:$0xff]
    %v8671 = vld [vmem:[%s5 + $0x150] sm:$0xff]
    %v8672 = vld [vmem:[%s5 + $0x158] sm:$0xff]
    %v8673 = vld [vmem:[%s5 + $0x160] sm:$0xff]
    %v8674 = vld [vmem:[%s5 + $0x168] sm:$0xff]
    %v8675 = vld [vmem:[%s5 + $0x170] sm:$0xff]
    %v8676 = vld [vmem:[%s5 + $0x178] sm:$0xff]
    %v8677 = vld [vmem:[%s5 + $0x180] sm:$0xff]
    %v8678 = vld [vmem:[%s5 + $0x188] sm:$0xff]
    %v8679 = vld [vmem:[%s5 + $0x190] sm:$0xff]
    %v8680 = vld [vmem:[%s5 + $0x198] sm:$0xff]
    %v8681 = vld [vmem:[%s5 + $0x1a0] sm:$0xff]
    %v8682 = vld [vmem:[%s5 + $0x1a8] sm:$0xff]
    %v8683 = vld [vmem:[%s5 + $0x1b0] sm:$0xff]
    %v8684 = vld [vmem:[%s5 + $0x1b8] sm:$0xff]
    %v8685 = vld [vmem:[%s5 + $0x1c0] sm:$0xff]
    %v8686 = vld [vmem:[%s5 + $0x1c8] sm:$0xff]
    %v8687 = vld [vmem:[%s5 + $0x1d0] sm:$0xff]
    %v8688 = vld [vmem:[%s5 + $0x1d8] sm:$0xff]
    %v8689 = vld [vmem:[%s5 + $0x1e0] sm:$0xff]
    %v8690 = vld [vmem:[%s5 + $0x1e8] sm:$0xff]
    %v8691 = vld [vmem:[%s5 + $0x1f0] sm:$0xff]
    %v8692 = vld [vmem:[%s5 + $0x1f8] sm:$0xff]
    %v8693 = vld [vmem:[#allocation14] sm:$0x1]
    %v8695 = vlaneseq
    %v8696 = vshrl.u32 %v8695, 7
    %v8697 = vsub.s32 0, %v8696
    %v8698 = vrot.slane %v8693, %v8697
    %vm8716 = vcmask 1041409
    %v8717 = vsel %vm8716, %v8551, %v8523
    %vm8718 = vcmask 1042434
    %v8719 = vsel %vm8718, %v8579, %v8717
    %vm8720 = vcmask 1043459
    %v8721 = vsel %vm8720, %v8607, %v8719
    %v8722 = vsel %vm8716, %v8558, %v8530
    %v8723 = vsel %vm8718, %v8586, %v8722
    %v8724 = vsel %vm8720, %v8614, %v8723
    %v8725 = vsel %vm8716, %v8565, %v8537
    %v8726 = vsel %vm8718, %v8593, %v8725
    %v8727 = vsel %vm8720, %v8621, %v8726
    %v8728 = vsel %vm8716, %v8572, %v8544
    %v8729 = vsel %vm8718, %v8600, %v8728
    %v8730 = vsel %vm8720, %v8628, %v8729
    %8735 = vmatprep.subr.mxu0 0.0
    %8736 = vmatpush1.msra.mxu0 %v8629
    %8737 = vmatprep.subr.mxu0 0.0
    %8738 = vmatpush1.msra.mxu0 %v8630
    %8739 = vmatprep.subr.mxu0 0.0
    %8740 = vmatpush1.msra.mxu0 %v8631
    %8741 = vmatprep.subr.mxu0 0.0
    %8742 = vmatpush1.msra.mxu0 %v8632
    %8743 = vmatprep.subr.mxu0 0.0
    %8744 = vmatpush1.msra.mxu0 %v8633
    %8745 = vmatprep.subr.mxu0 0.0
    %8746 = vmatpush1.msra.mxu0 %v8634
    %8747 = vmatprep.subr.mxu0 0.0
    %8748 = vmatpush1.msra.mxu0 %v8635
    %8749 = vmatprep.subr.mxu0 0.0
    %8750 = vmatpush1.msra.mxu0 %v8636
    %8751 = vmatprep.subr.mxu0 0.0
    %8752 = vmatpush1.msra.mxu0 %v8637
    %8753 = vmatprep.subr.mxu0 0.0
    %8754 = vmatpush1.msra.mxu0 %v8638
    %8755 = vmatprep.subr.mxu0 0.0
    %8756 = vmatpush1.msra.mxu0 %v8639
    %8757 = vmatprep.subr.mxu0 0.0
    %8758 = vmatpush1.msra.mxu0 %v8640
    %8759 = vmatprep.subr.mxu0 0.0
    %8760 = vmatpush1.msra.mxu0 %v8641
    %8761 = vmatprep.subr.mxu0 0.0
    %8762 = vmatpush1.msra.mxu0 %v8642
    %8763 = vmatprep.subr.mxu0 0.0
    %8764 = vmatpush1.msra.mxu0 %v8643
    %8765 = vmatprep.subr.mxu0 0.0
    %8766 = vmatpush1.msra.mxu0 %v8644
    %8767 = vmatprep.subr.mxu0 0.0
    %8768 = vmatpush1.msra.mxu0 %v8645
    %8769 = vmatprep.subr.mxu0 0.0
    %8770 = vmatpush1.msra.mxu0 %v8646
    %8771 = vmatprep.subr.mxu0 0.0
    %8772 = vmatpush1.msra.mxu0 %v8647
    %8773 = vmatprep.subr.mxu0 0.0
    %8774 = vmatpush1.msra.mxu0 %v8648
    %8775 = vmatprep.subr.mxu0 0.0
    %8776 = vmatpush1.msra.mxu0 %v8649
    %8777 = vmatprep.subr.mxu0 0.0
    %8778 = vmatpush1.msra.mxu0 %v8650
    %8779 = vmatprep.subr.mxu0 0.0
    %8780 = vmatpush1.msra.mxu0 %v8651
    %8781 = vmatprep.subr.mxu0 0.0
    %8782 = vmatpush1.msra.mxu0 %v8652
    %8783 = vmatprep.subr.mxu0 0.0
    %8784 = vmatpush1.msra.mxu0 %v8653
    %8785 = vmatprep.subr.mxu0 0.0
    %8786 = vmatpush1.msra.mxu0 %v8654
    %8787 = vmatprep.subr.mxu0 0.0
    %8788 = vmatpush1.msra.mxu0 %v8655
    %8789 = vmatprep.subr.mxu0 0.0
    %8790 = vmatpush1.msra.mxu0 %v8656
    %8791 = vmatprep.subr.mxu0 0.0
    %8792 = vmatpush1.msra.mxu0 %v8657
    %8793 = vmatprep.subr.mxu0 0.0
    %8794 = vmatpush1.msra.mxu0 %v8658
    %8795 = vmatprep.subr.mxu0 0.0
    %8796 = vmatpush1.msra.mxu0 %v8659
    %8797 = vmatprep.subr.mxu0 0.0
    %8798 = vmatpush1.msra.mxu0 %v8660
    %8799 = vmatprep.mubr.f32.mxu0 %v8724
    %8800 = vmatmul.mubr.f32.gmra.mrb[0].mxu0 %v8721
    %v8801 = vpop.f32.mrb[0].mxu0
    %v8802 = vadd.f32 %v8698, %v8801
    %v8803 = vpop.f32.mrb[0].mxu0
    %8804 = vdwg.mxu0
    %8805 = vmatprep.subr.mxu0 0.0
    %8806 = vmatpush1.msra.mxu0 %v8661
    %8807 = vmatprep.subr.mxu0 0.0
    %8808 = vmatpush1.msra.mxu0 %v8662
    %8809 = vmatprep.subr.mxu0 0.0
    %8810 = vmatpush1.msra.mxu0 %v8663
    %8811 = vmatprep.subr.mxu0 0.0
    %8812 = vmatpush1.msra.mxu0 %v8664
    %8813 = vmatprep.subr.mxu0 0.0
    %8814 = vmatpush1.msra.mxu0 %v8665
    %8815 = vmatprep.subr.mxu0 0.0
    %8816 = vmatpush1.msra.mxu0 %v8666
    %8817 = vmatprep.subr.mxu0 0.0
    %8818 = vmatpush1.msra.mxu0 %v8667
    %8819 = vmatprep.subr.mxu0 0.0
    %8820 = vmatpush1.msra.mxu0 %v8668
    %8821 = vmatprep.subr.mxu0 0.0
    %8822 = vmatpush1.msra.mxu0 %v8669
    %8823 = vmatprep.subr.mxu0 0.0
    %8824 = vmatpush1.msra.mxu0 %v8670
    %8825 = vmatprep.subr.mxu0 0.0
    %8826 = vmatpush1.msra.mxu0 %v8671
    %8827 = vmatprep.subr.mxu0 0.0
    %8828 = vmatpush1.msra.mxu0 %v8672
    %8829 = vmatprep.subr.mxu0 0.0
    %8830 = vmatpush1.msra.mxu0 %v8673
    %8831 = vmatprep.subr.mxu0 0.0
    %8832 = vmatpush1.msra.mxu0 %v8674
    %8833 = vmatprep.subr.mxu0 0.0
    %8834 = vmatpush1.msra.mxu0 %v8675
    %8835 = vmatprep.subr.mxu0 0.0
    %8836 = vmatpush1.msra.mxu0 %v8676
    %8837 = vmatprep.subr.mxu0 0.0
    %8838 = vmatpush1.msra.mxu0 %v8677
    %8839 = vmatprep.subr.mxu0 0.0
    %8840 = vmatpush1.msra.mxu0 %v8678
    %8841 = vmatprep.subr.mxu0 0.0
    %8842 = vmatpush1.msra.mxu0 %v8679
    %8843 = vmatprep.subr.mxu0 0.0
    %8844 = vmatpush1.msra.mxu0 %v8680
    %8845 = vmatprep.subr.mxu0 0.0
    %8846 = vmatpush1.msra.mxu0 %v8681
    %8847 = vmatprep.subr.mxu0 0.0
    %8848 = vmatpush1.msra.mxu0 %v8682
    %8849 = vmatprep.subr.mxu0 0.0
    %8850 = vmatpush1.msra.mxu0 %v8683
    %8851 = vmatprep.subr.mxu0 0.0
    %8852 = vmatpush1.msra.mxu0 %v8684
    %8853 = vmatprep.subr.mxu0 0.0
    %8854 = vmatpush1.msra.mxu0 %v8685
    %8855 = vmatprep.subr.mxu0 0.0
    %8856 = vmatpush1.msra.mxu0 %v8686
    %8857 = vmatprep.subr.mxu0 0.0
    %8858 = vmatpush1.msra.mxu0 %v8687
    %8859 = vmatprep.subr.mxu0 0.0
    %8860 = vmatpush1.msra.mxu0 %v8688
    %8861 = vmatprep.subr.mxu0 0.0
    %8862 = vmatpush1.msra.mxu0 %v8689
    %8863 = vmatprep.subr.mxu0 0.0
    %8864 = vmatpush1.msra.mxu0 %v8690
    %8865 = vmatprep.subr.mxu0 0.0
    %8866 = vmatpush1.msra.mxu0 %v8691
    %8867 = vmatprep.subr.mxu0 0.0
    %8868 = vmatpush1.msra.mxu0 %v8692
    %8869 = vmatprep.mubr.f32.mxu0 %v8730
    %8870 = vmatmul.mubr.f32.gmra.mrb[0].mxu0 %v8727
    %v8871 = vpop.f32.mrb[0].mxu0
    %v8872 = vadd.f32 %v8802, %v8871
    %v8873 = vpop.f32.mrb[0].mxu0
    %8874 = vdwg.mxu0
    %vm8875 = vcmp.ge.f32.partialorder %v8872, 0.0
    %v8876 = vstv %s132
    %v8877 = vmul.f32 %v8876, %v8872
    %v8878 = vsel %vm8875, %v8872, %v8877
    %v8879 = vld [vmem:[#allocation15] sm:$0xff]
    %v8880 = vld [vmem:[#allocation17] sm:$0xf]
    %v8882 = vlaneseq
    %v8883 = vshrl.u32 %v8882, 7
    %v8884 = vsub.s32 0, %v8883
    %v8885 = vrot.slane %v8880, %v8884
    %v8886 = vlaneseq
    %v8887 = vshrl.u32 %v8886, 7
    %v8888 = vsub.s32 1, %v8887
    %v8889 = vrot.slane %v8880, %v8888
    %v8890 = vlaneseq
    %v8891 = vshrl.u32 %v8890, 7
    %v8892 = vsub.s32 2, %v8891
    %v8893 = vrot.slane %v8880, %v8892
    %v8894 = vlaneseq
    %v8895 = vshrl.u32 %v8894, 7
    %v8896 = vsub.s32 3, %v8895
    %v8897 = vrot.slane %v8880, %v8896
    %v8903 = vcombine.high %v8879, %v8879
    %v8905 = vunpack.c.l.s4 1983009808
    %v8906 = vunpack.c.0.s8 %v8905
    %v8907 = vlaneseq
    %v8908 = vshrl.u32 %v8907, 7
    %v8909 = vsub.s32 %v8906, %v8908
    %v8910 = vrot.slane %v8879, %v8909
    %v8912 = vunpack.c.l.s4 1983009808
    %v8913 = vunpack.c.0.s8 %v8912
    %v8914 = vlaneseq
    %v8915 = vshrl.u32 %v8914, 7
    %v8916 = vsub.s32 %v8913, %v8915
    %v8917 = vrot.slane %v8903, %v8916
    %v8918 = vcombine.high %v8910, %v8910
    %v8919 = vcombine.high %v8917, %v8917
    %vm8920 = vcmask 15360
    %v8922 = vsel %vm8920, %v8878, 0
    %vm8924 = vcmask 1041408
    %v8925 = vsel %vm8924, %v8910, 0
    %v8927 = vsel %vm8924, %v8918, 0
    %v8929 = vsel %vm8924, %v8917, 0
    %v8931 = vsel %vm8924, %v8919, 0
    %8933 = vmatprep.subr.mxu0 %v8927
    %8934 = vmatpush1.msra.mxu0 %v8925
    %8935 = vmatprep.subr.mxu0 0.0
    %8936 = vmatpush1.msra.mxu0 0.0
    %8937 = vmatprep.subr.mxu0 0.0
    %8938 = vmatpush1.msra.mxu0 0.0
    %8939 = vmatprep.subr.mxu0 0.0
    %8940 = vmatpush1.msra.mxu0 0.0
    %8941 = vmatprep.subr.mxu0 0.0
    %8942 = vmatpush1.msra.mxu0 0.0
    %8943 = vmatprep.subr.mxu0 0.0
    %8944 = vmatpush1.msra.mxu0 0.0
    %8945 = vmatprep.subr.mxu0 0.0
    %8946 = vmatpush1.msra.mxu0 0.0
    %8947 = vmatprep.subr.mxu0 0.0
    %8948 = vmatpush1.msra.mxu0 0.0
    %8949 = vmatprep.subr.mxu0 0.0
    %8950 = vmatpush1.msra.mxu0 0.0
    %8951 = vmatprep.subr.mxu0 0.0
    %8952 = vmatpush1.msra.mxu0 0.0
    %8953 = vmatprep.subr.mxu0 0.0
    %8954 = vmatpush1.msra.mxu0 0.0
    %8955 = vmatprep.subr.mxu0 0.0
    %8956 = vmatpush1.msra.mxu0 0.0
    %8957 = vmatprep.subr.mxu0 0.0
    %8958 = vmatpush1.msra.mxu0 0.0
    %8959 = vmatprep.subr.mxu0 0.0
    %8960 = vmatpush1.msra.mxu0 0.0
    %8961 = vmatprep.subr.mxu0 0.0
    %8962 = vmatpush1.msra.mxu0 0.0
    %8963 = vmatprep.subr.mxu0 0.0
    %8964 = vmatpush1.msra.mxu0 0.0
    %8965 = vmatprep.subr.mxu0 0.0
    %8966 = vmatpush1.msra.mxu0 0.0
    %8967 = vmatprep.subr.mxu0 0.0
    %8968 = vmatpush1.msra.mxu0 0.0
    %8969 = vmatprep.subr.mxu0 0.0
    %8970 = vmatpush1.msra.mxu0 0.0
    %8971 = vmatprep.subr.mxu0 0.0
    %8972 = vmatpush1.msra.mxu0 0.0
    %8973 = vmatprep.subr.mxu0 0.0
    %8974 = vmatpush1.msra.mxu0 0.0
    %8975 = vmatprep.subr.mxu0 0.0
    %8976 = vmatpush1.msra.mxu0 0.0
    %8977 = vmatprep.subr.mxu0 0.0
    %8978 = vmatpush1.msra.mxu0 0.0
    %8979 = vmatprep.subr.mxu0 0.0
    %8980 = vmatpush1.msra.mxu0 0.0
    %8981 = vmatprep.subr.mxu0 0.0
    %8982 = vmatpush1.msra.mxu0 0.0
    %8983 = vmatprep.subr.mxu0 0.0
    %8984 = vmatpush1.msra.mxu0 0.0
    %8985 = vmatprep.subr.mxu0 0.0
    %8986 = vmatpush1.msra.mxu0 0.0
    %8987 = vmatprep.subr.mxu0 0.0
    %8988 = vmatpush1.msra.mxu0 0.0
    %8989 = vmatprep.subr.mxu0 0.0
    %8990 = vmatpush1.msra.mxu0 0.0
    %8991 = vmatprep.subr.mxu0 0.0
    %8992 = vmatpush1.msra.mxu0 0.0
    %8993 = vmatprep.subr.mxu0 0.0
    %8994 = vmatpush1.msra.mxu0 0.0
    %8995 = vmatprep.subr.mxu0 0.0
    %8996 = vmatpush1.msra.mxu0 0.0
    %8997 = vmatprep.mubr.f32.mxu0 0.0
    %8998 = vmatmul.mubr.f32.gmra.mrb[0].mxu0 %v8922
    %v8999 = vpop.f32.mrb[0].mxu0
    %v9000 = vadd.f32 %v8885, %v8999
    %v9001 = vpop.f32.mrb[0].mxu0
    %v9002 = vadd.f32 %v8889, %v9001
    %9003 = vdwg.mxu0
    %9004 = vmatprep.subr.mxu0 %v8931
    %9005 = vmatpush1.msra.mxu0 %v8929
    %9006 = vmatprep.subr.mxu0 0.0
    %9007 = vmatpush1.msra.mxu0 0.0
    %9008 = vmatprep.subr.mxu0 0.0
    %9009 = vmatpush1.msra.mxu0 0.0
    %9010 = vmatprep.subr.mxu0 0.0
    %9011 = vmatpush1.msra.mxu0 0.0
    %9012 = vmatprep.subr.mxu0 0.0
    %9013 = vmatpush1.msra.mxu0 0.0
    %9014 = vmatprep.subr.mxu0 0.0
    %9015 = vmatpush1.msra.mxu0 0.0
    %9016 = vmatprep.subr.mxu0 0.0
    %9017 = vmatpush1.msra.mxu0 0.0
    %9018 = vmatprep.subr.mxu0 0.0
    %9019 = vmatpush1.msra.mxu0 0.0
    %9020 = vmatprep.subr.mxu0 0.0
    %9021 = vmatpush1.msra.mxu0 0.0
    %9022 = vmatprep.subr.mxu0 0.0
    %9023 = vmatpush1.msra.mxu0 0.0
    %9024 = vmatprep.subr.mxu0 0.0
    %9025 = vmatpush1.msra.mxu0 0.0
    %9026 = vmatprep.subr.mxu0 0.0
    %9027 = vmatpush1.msra.mxu0 0.0
    %9028 = vmatprep.subr.mxu0 0.0
    %9029 = vmatpush1.msra.mxu0 0.0
    %9030 = vmatprep.subr.mxu0 0.0
    %9031 = vmatpush1.msra.mxu0 0.0
    %9032 = vmatprep.subr.mxu0 0.0
    %9033 = vmatpush1.msra.mxu0 0.0
    %9034 = vmatprep.subr.mxu0 0.0
    %9035 = vmatpush1.msra.mxu0 0.0
    %9036 = vmatprep.subr.mxu0 0.0
    %9037 = vmatpush1.msra.mxu0 0.0
    %9038 = vmatprep.subr.mxu0 0.0
    %9039 = vmatpush1.msra.mxu0 0.0
    %9040 = vmatprep.subr.mxu0 0.0
    %9041 = vmatpush1.msra.mxu0 0.0
    %9042 = vmatprep.subr.mxu0 0.0
    %9043 = vmatpush1.msra.mxu0 0.0
    %9044 = vmatprep.subr.mxu0 0.0
    %9045 = vmatpush1.msra.mxu0 0.0
    %9046 = vmatprep.subr.mxu0 0.0
    %9047 = vmatpush1.msra.mxu0 0.0
    %9048 = vmatprep.subr.mxu0 0.0
    %9049 = vmatpush1.msra.mxu0 0.0
    %9050 = vmatprep.subr.mxu0 0.0
    %9051 = vmatpush1.msra.mxu0 0.0
    %9052 = vmatprep.subr.mxu0 0.0
    %9053 = vmatpush1.msra.mxu0 0.0
    %9054 = vmatprep.subr.mxu0 0.0
    %9055 = vmatpush1.msra.mxu0 0.0
    %9056 = vmatprep.subr.mxu0 0.0
    %9057 = vmatpush1.msra.mxu0 0.0
    %9058 = vmatprep.subr.mxu0 0.0
    %9059 = vmatpush1.msra.mxu0 0.0
    %9060 = vmatprep.subr.mxu0 0.0
    %9061 = vmatpush1.msra.mxu0 0.0
    %9062 = vmatprep.subr.mxu0 0.0
    %9063 = vmatpush1.msra.mxu0 0.0
    %9064 = vmatprep.subr.mxu0 0.0
    %9065 = vmatpush1.msra.mxu0 0.0
    %9066 = vmatprep.subr.mxu0 0.0
    %9067 = vmatpush1.msra.mxu0 0.0
    %9068 = vmatprep.mubr.f32.mxu0 0.0
    %9069 = vmatmul.mubr.f32.gmra.mrb[0].mxu0 %v8922
    %v9070 = vpop.f32.mrb[0].mxu0
    %v9071 = vadd.f32 %v8893, %v9070
    %v9072 = vpop.f32.mrb[0].mxu0
    %v9073 = vadd.f32 %v8897, %v9072
    %9074 = vdwg.mxu0
    %v9075 = vxor.u32 %v9000, 2147483648
    %v9076 = vxor.u32 %v9002, 2147483648
    %v9077 = vxor.u32 %v9071, 2147483648
    %v9078 = vxor.u32 %v9073, 2147483648
    %v9079 = vmul.f32 %v9075, 1.442695
    %v9080 = vpow.pop %v9079
    %v9081 = vmul.f32 %v9076, 1.442695
    %v9082 = vpow.pop %v9081
    %v9083 = vmul.f32 %v9077, 1.442695
    %v9084 = vpow.pop %v9083
    %v9085 = vmul.f32 %v9078, 1.442695
    %v9086 = vpow.pop %v9085
    %v9087 = vadd.f32 %v9080, 1.0
    %v9088 = vadd.f32 %v9082, 1.0
    %v9089 = vadd.f32 %v9084, 1.0
    %v9090 = vadd.f32 %v9086, 1.0
    %v9091 = vrcp.pop %v9087
    %v9092 = vmul.f32 1.0, %v9091
    %v9093 = vrcp.pop %v9088
    %v9094 = vmul.f32 1.0, %v9093
    %v9095 = vrcp.pop %v9089
    %v9096 = vmul.f32 1.0, %v9095
    %v9097 = vrcp.pop %v9090
    %v9098 = vmul.f32 1.0, %v9097
    %v9103 = vcombine.low %v9092, %v9094
    %v9104 = vcombine.low %v9096, %v9098
    %v9106 = vunpack.c.l.s4 1966171168
    %v9107 = vunpack.c.0.s8 %v9106
    %v9108 = vlaneseq
    %v9109 = vshrl.u32 %v9108, 7
    %v9110 = vsub.s32 %v9107, %v9109
    %v9111 = vrot.slane %v9103, %v9110
    %v9113 = vunpack.c.l.s4 1966171168
    %v9114 = vunpack.c.0.s8 %v9113
    %v9115 = vlaneseq
    %v9116 = vshrl.u32 %v9115, 7
    %v9117 = vsub.s32 %v9114, %v9116
    %v9118 = vrot.slane %v9104, %v9117
    %v9119 = vcombine.low %v9111, %v9118
    %v9120 = vcombine.high %v9111, %v9118
    %v9122 = vunpack.c.l.s4 1966171168
    %v9123 = vunpack.c.0.s8 %v9122
    %v9124 = vlaneseq
    %v9125 = vshrl.u32 %v9124, 7
    %v9126 = vsub.s32 %v9123, %v9125
    %v9127 = vrot.slane %v9119, %v9126
    %v9129 = vunpack.c.l.s4 1966171168
    %v9130 = vunpack.c.0.s8 %v9129
    %v9131 = vlaneseq
    %v9132 = vshrl.u32 %v9131, 7
    %v9133 = vsub.s32 %v9130, %v9132
    %v9134 = vrot.slane %v9120, %v9133
    %v9135 = vcombine.high %v9127, %v9127
    %v9136 = vcombine.high %v9134, %v9134
    %v9137 = vlaneseq
    %v9138 = vshrl.u32 %v9137, 7
    %v9139 = vsub.s32 0, %v9138
    %v9140 = vrot.slane %v9127, %v9139
    %v9141 = vlaneseq
    %v9142 = vshrl.u32 %v9141, 7
    %v9143 = vsub.s32 1, %v9142
    %v9144 = vrot.slane %v9127, %v9143
    %v9145 = vlaneseq
    %v9146 = vshrl.u32 %v9145, 7
    %v9147 = vsub.s32 2, %v9146
    %v9148 = vrot.slane %v9127, %v9147
    %v9149 = vlaneseq
    %v9150 = vshrl.u32 %v9149, 7
    %v9151 = vsub.s32 3, %v9150
    %v9152 = vrot.slane %v9127, %v9151
    %v9153 = vlaneseq
    %v9154 = vshrl.u32 %v9153, 7
    %v9155 = vsub.s32 0, %v9154
    %v9156 = vrot.slane %v9134, %v9155
    %v9157 = vlaneseq
    %v9158 = vshrl.u32 %v9157, 7
    %v9159 = vsub.s32 1, %v9158
    %v9160 = vrot.slane %v9134, %v9159
    %v9161 = vlaneseq
    %v9162 = vshrl.u32 %v9161, 7
    %v9163 = vsub.s32 2, %v9162
    %v9164 = vrot.slane %v9134, %v9163
    %v9165 = vlaneseq
    %v9166 = vshrl.u32 %v9165, 7
    %v9167 = vsub.s32 3, %v9166
    %v9168 = vrot.slane %v9134, %v9167
    %v9169 = vlaneseq
    %v9170 = vshrl.u32 %v9169, 7
    %v9171 = vsub.s32 0, %v9170
    %v9172 = vrot.slane %v9135, %v9171
    %v9173 = vlaneseq
    %v9174 = vshrl.u32 %v9173, 7
    %v9175 = vsub.s32 1, %v9174
    %v9176 = vrot.slane %v9135, %v9175
    %v9177 = vlaneseq
    %v9178 = vshrl.u32 %v9177, 7
    %v9179 = vsub.s32 2, %v9178
    %v9180 = vrot.slane %v9135, %v9179
    %v9181 = vlaneseq
    %v9182 = vshrl.u32 %v9181, 7
    %v9183 = vsub.s32 3, %v9182
    %v9184 = vrot.slane %v9135, %v9183
    %v9185 = vlaneseq
    %v9186 = vshrl.u32 %v9185, 7
    %v9187 = vsub.s32 0, %v9186
    %v9188 = vrot.slane %v9136, %v9187
    %v9189 = vlaneseq
    %v9190 = vshrl.u32 %v9189, 7
    %v9191 = vsub.s32 1, %v9190
    %v9192 = vrot.slane %v9136, %v9191
    %v9193 = vlaneseq
    %v9194 = vshrl.u32 %v9193, 7
    %v9195 = vsub.s32 2, %v9194
    %v9196 = vrot.slane %v9136, %v9195
    %v9197 = vlaneseq
    %v9198 = vshrl.u32 %v9197, 7
    %v9199 = vsub.s32 3, %v9198
    %v9200 = vrot.slane %v9136, %v9199
    %v9217 = vmul.f32 %v8485, %v9140
    %v9218 = vmul.f32 %v8486, %v9144
    %v9219 = vmul.f32 %v8487, %v9148
    %v9220 = vmul.f32 %v8488, %v9152
    %v9221 = vmul.f32 %v8489, %v9140
    %v9222 = vmul.f32 %v8490, %v9144
    %v9223 = vmul.f32 %v8491, %v9148
    %v9224 = vmul.f32 %v8492, %v9152
    %v9225 = vmul.f32 %v8493, %v9156
    %v9226 = vmul.f32 %v8494, %v9160
    %v9227 = vmul.f32 %v8495, %v9164
    %v9228 = vmul.f32 %v8496, %v9168
    %v9229 = vmul.f32 %v8497, %v9156
    %v9230 = vmul.f32 %v8498, %v9160
    %v9231 = vmul.f32 %v8499, %v9164
    %v9232 = vmul.f32 %v8500, %v9168
    %v9233 = vmul.f32 %v8501, %v9172
    %v9234 = vmul.f32 %v8502, %v9176
    %v9235 = vmul.f32 %v8503, %v9180
    %v9236 = vmul.f32 %v8504, %v9184
    %v9237 = vmul.f32 %v8505, %v9172
    %v9238 = vmul.f32 %v8506, %v9176
    %v9239 = vmul.f32 %v8507, %v9180
    %v9240 = vmul.f32 %v8508, %v9184
    %v9241 = vmul.f32 %v8509, %v9188
    %v9242 = vmul.f32 %v8510, %v9192
    %v9243 = vmul.f32 %v8511, %v9196
    %v9244 = vmul.f32 %v8512, %v9200
    %v9245 = vmul.f32 %v8513, %v9188
    %v9246 = vmul.f32 %v8514, %v9192
    %v9247 = vmul.f32 %v8515, %v9196
    %v9248 = vmul.f32 %v8516, %v9200
    %v9249 = vld [vmem:[#allocation4] sm:$0xff]
    %v9250 = vld [vmem:[#allocation4 + $0x8] sm:$0xff]
    %v9251 = vld [vmem:[#allocation4 + $0x10] sm:$0xff]
    %v9252 = vld [vmem:[#allocation4 + $0x18] sm:$0xff]
    %v9253 = vld [vmem:[#allocation4 + $0x20] sm:$0xff]
    %v9254 = vld [vmem:[#allocation4 + $0x28] sm:$0xff]
    %v9255 = vld [vmem:[#allocation4 + $0x30] sm:$0xff]
    %v9256 = vld [vmem:[#allocation4 + $0x38] sm:$0xff]
    %v9257 = vld [vmem:[#allocation4 + $0x40] sm:$0xff]
    %v9258 = vld [vmem:[#allocation4 + $0x48] sm:$0xff]
    %v9259 = vld [vmem:[#allocation4 + $0x50] sm:$0xff]
    %v9260 = vld [vmem:[#allocation4 + $0x58] sm:$0xff]
    %v9261 = vld [vmem:[#allocation4 + $0x60] sm:$0xff]
    %v9262 = vld [vmem:[#allocation4 + $0x68] sm:$0xff]
    %v9263 = vld [vmem:[#allocation4 + $0x70] sm:$0xff]
    %v9264 = vld [vmem:[#allocation4 + $0x78] sm:$0xff]
    %v9265 = vld [vmem:[#allocation4 + $0x80] sm:$0xff]
    %v9266 = vld [vmem:[#allocation4 + $0x88] sm:$0xff]
    %v9267 = vld [vmem:[#allocation4 + $0x90] sm:$0xff]
    %v9268 = vld [vmem:[#allocation4 + $0x98] sm:$0xff]
    %v9269 = vld [vmem:[#allocation4 + $0xa0] sm:$0xff]
    %v9270 = vld [vmem:[#allocation4 + $0xa8] sm:$0xff]
    %v9271 = vld [vmem:[#allocation4 + $0xb0] sm:$0xff]
    %v9272 = vld [vmem:[#allocation4 + $0xb8] sm:$0xff]
    %v9273 = vld [vmem:[#allocation4 + $0xc0] sm:$0xff]
    %v9274 = vld [vmem:[#allocation4 + $0xc8] sm:$0xff]
    %v9275 = vld [vmem:[#allocation4 + $0xd0] sm:$0xff]
    %v9276 = vld [vmem:[#allocation4 + $0xd8] sm:$0xff]
    %v9277 = vld [vmem:[#allocation4 + $0xe0] sm:$0xff]
    %v9278 = vld [vmem:[#allocation4 + $0xe8] sm:$0xff]
    %v9279 = vld [vmem:[#allocation4 + $0xf0] sm:$0xff]
    %v9280 = vld [vmem:[#allocation4 + $0xf8] sm:$0xff]
    %v9281 = vadd.f32 %v9217, %v9249
    %v9282 = vadd.f32 %v9218, %v9250
    %v9283 = vadd.f32 %v9219, %v9251
    %v9284 = vadd.f32 %v9220, %v9252
    %v9285 = vadd.f32 %v9221, %v9253
    %v9286 = vadd.f32 %v9222, %v9254
    %v9287 = vadd.f32 %v9223, %v9255
    %v9288 = vadd.f32 %v9224, %v9256
    %v9289 = vadd.f32 %v9225, %v9257
    %v9290 = vadd.f32 %v9226, %v9258
    %v9291 = vadd.f32 %v9227, %v9259
    %v9292 = vadd.f32 %v9228, %v9260
    %v9293 = vadd.f32 %v9229, %v9261
    %v9294 = vadd.f32 %v9230, %v9262
    %v9295 = vadd.f32 %v9231, %v9263
    %v9296 = vadd.f32 %v9232, %v9264
    %v9297 = vadd.f32 %v9233, %v9265
    %v9298 = vadd.f32 %v9234, %v9266
    %v9299 = vadd.f32 %v9235, %v9267
    %v9300 = vadd.f32 %v9236, %v9268
    %v9301 = vadd.f32 %v9237, %v9269
    %v9302 = vadd.f32 %v9238, %v9270
    %v9303 = vadd.f32 %v9239, %v9271
    %v9304 = vadd.f32 %v9240, %v9272
    %v9305 = vadd.f32 %v9241, %v9273
    %v9306 = vadd.f32 %v9242, %v9274
    %v9307 = vadd.f32 %v9243, %v9275
    %v9308 = vadd.f32 %v9244, %v9276
    %v9309 = vadd.f32 %v9245, %v9277
    %v9310 = vadd.f32 %v9246, %v9278
    %v9311 = vadd.f32 %v9247, %v9279
    %v9312 = vadd.f32 %v9248, %v9280
    %vm9313 = vcmp.ge.f32.partialorder %v9281, 0.0
    %vm9314 = vcmp.ge.f32.partialorder %v9282, 0.0
    %vm9315 = vcmp.ge.f32.partialorder %v9283, 0.0
    %vm9316 = vcmp.ge.f32.partialorder %v9284, 0.0
    %vm9317 = vcmp.ge.f32.partialorder %v9285, 0.0
    %vm9318 = vcmp.ge.f32.partialorder %v9286, 0.0
    %vm9319 = vcmp.ge.f32.partialorder %v9287, 0.0
    %vm9320 = vcmp.ge.f32.partialorder %v9288, 0.0
    %vm9321 = vcmp.ge.f32.partialorder %v9289, 0.0
    %vm9322 = vcmp.ge.f32.partialorder %v9290, 0.0
    %vm9323 = vcmp.ge.f32.partialorder %v9291, 0.0
    %vm9324 = vcmp.ge.f32.partialorder %v9292, 0.0
    %vm9325 = vcmp.ge.f32.partialorder %v9293, 0.0
    %vm9326 = vcmp.ge.f32.partialorder %v9294, 0.0
    %vm9327 = vcmp.ge.f32.partialorder %v9295, 0.0
    %vm9328 = vcmp.ge.f32.partialorder %v9296, 0.0
    %vm9329 = vcmp.ge.f32.partialorder %v9297, 0.0
    %vm9330 = vcmp.ge.f32.partialorder %v9298, 0.0
    %vm9331 = vcmp.ge.f32.partialorder %v9299, 0.0
    %vm9332 = vcmp.ge.f32.partialorder %v9300, 0.0
    %vm9333 = vcmp.ge.f32.partialorder %v9301, 0.0
    %vm9334 = vcmp.ge.f32.partialorder %v9302, 0.0
    %vm9335 = vcmp.ge.f32.partialorder %v9303, 0.0
    %vm9336 = vcmp.ge.f32.partialorder %v9304, 0.0
    %vm9337 = vcmp.ge.f32.partialorder %v9305, 0.0
    %vm9338 = vcmp.ge.f32.partialorder %v9306, 0.0
    %vm9339 = vcmp.ge.f32.partialorder %v9307, 0.0
    %vm9340 = vcmp.ge.f32.partialorder %v9308, 0.0
    %vm9341 = vcmp.ge.f32.partialorder %v9309, 0.0
    %vm9342 = vcmp.ge.f32.partialorder %v9310, 0.0
    %vm9343 = vcmp.ge.f32.partialorder %v9311, 0.0
    %vm9344 = vcmp.ge.f32.partialorder %v9312, 0.0
    %v9345 = vmul.f32 %v4394, %v9281
    %v9346 = vmul.f32 %v4394, %v9282
    %v9347 = vmul.f32 %v4394, %v9283
    %v9348 = vmul.f32 %v4394, %v9284
    %v9349 = vmul.f32 %v4394, %v9285
    %v9350 = vmul.f32 %v4394, %v9286
    %v9351 = vmul.f32 %v4394, %v9287
    %v9352 = vmul.f32 %v4394, %v9288
    %v9353 = vmul.f32 %v4394, %v9289
    %v9354 = vmul.f32 %v4394, %v9290
    %v9355 = vmul.f32 %v4394, %v9291
    %v9356 = vmul.f32 %v4394, %v9292
    %v9357 = vmul.f32 %v4394, %v9293
    %v9358 = vmul.f32 %v4394, %v9294
    %v9359 = vmul.f32 %v4394, %v9295
    %v9360 = vmul.f32 %v4394, %v9296
    %v9361 = vmul.f32 %v4394, %v9297
    %v9362 = vmul.f32 %v4394, %v9298
    %v9363 = vmul.f32 %v4394, %v9299
    %v9364 = vmul.f32 %v4394, %v9300
    %v9365 = vmul.f32 %v4394, %v9301
    %v9366 = vmul.f32 %v4394, %v9302
    %v9367 = vmul.f32 %v4394, %v9303
    %v9368 = vmul.f32 %v4394, %v9304
    %v9369 = vmul.f32 %v4394, %v9305
    %v9370 = vmul.f32 %v4394, %v9306
    %v9371 = vmul.f32 %v4394, %v9307
    %v9372 = vmul.f32 %v4394, %v9308
    %v9373 = vmul.f32 %v4394, %v9309
    %v9374 = vmul.f32 %v4394, %v9310
    %v9375 = vmul.f32 %v4394, %v9311
    %v9376 = vmul.f32 %v4394, %v9312
    %v9377 = vsel %vm9313, %v9281, %v9345
    %v9378 = vsel %vm9314, %v9282, %v9346
    %v9379 = vsel %vm9315, %v9283, %v9347
    %v9380 = vsel %vm9316, %v9284, %v9348
    %v9381 = vsel %vm9317, %v9285, %v9349
    %v9382 = vsel %vm9318, %v9286, %v9350
    %v9383 = vsel %vm9319, %v9287, %v9351
    %v9384 = vsel %vm9320, %v9288, %v9352
    %v9385 = vsel %vm9321, %v9289, %v9353
    %v9386 = vsel %vm9322, %v9290, %v9354
    %v9387 = vsel %vm9323, %v9291, %v9355
    %v9388 = vsel %vm9324, %v9292, %v9356
    %v9389 = vsel %vm9325, %v9293, %v9357
    %v9390 = vsel %vm9326, %v9294, %v9358
    %v9391 = vsel %vm9327, %v9295, %v9359
    %v9392 = vsel %vm9328, %v9296, %v9360
    %v9393 = vsel %vm9329, %v9297, %v9361
    %v9394 = vsel %vm9330, %v9298, %v9362
    %v9395 = vsel %vm9331, %v9299, %v9363
    %v9396 = vsel %vm9332, %v9300, %v9364
    %v9397 = vsel %vm9333, %v9301, %v9365
    %v9398 = vsel %vm9334, %v9302, %v9366
    %v9399 = vsel %vm9335, %v9303, %v9367
    %v9400 = vsel %vm9336, %v9304, %v9368
    %v9401 = vsel %vm9337, %v9305, %v9369
    %v9402 = vsel %vm9338, %v9306, %v9370
    %v9403 = vsel %vm9339, %v9307, %v9371
    %v9404 = vsel %vm9340, %v9308, %v9372
    %v9405 = vsel %vm9341, %v9309, %v9373
    %v9406 = vsel %vm9342, %v9310, %v9374
    %v9407 = vsel %vm9343, %v9311, %v9375
    %v9408 = vsel %vm9344, %v9312, %v9376
    %9409 = vst [vmem:[#allocation18] sm:$0xff] %v9377
    %9410 = vst [vmem:[#allocation18 + $0x8] sm:$0xff] %v9378
    %9411 = vst [vmem:[#allocation18 + $0x10] sm:$0xff] %v9379
    %9412 = vst [vmem:[#allocation18 + $0x18] sm:$0xff] %v9380
    %9413 = vst [vmem:[#allocation18 + $0x20] sm:$0xff] %v9381
    %9414 = vst [vmem:[#allocation18 + $0x28] sm:$0xff] %v9382
    %9415 = vst [vmem:[#allocation18 + $0x30] sm:$0xff] %v9383
    %9416 = vst [vmem:[#allocation18 + $0x38] sm:$0xff] %v9384
    %9417 = vst [vmem:[#allocation18 + $0x40] sm:$0xff] %v9385
    %9418 = vst [vmem:[#allocation18 + $0x48] sm:$0xff] %v9386
    %9419 = vst [vmem:[#allocation18 + $0x50] sm:$0xff] %v9387
    %9420 = vst [vmem:[#allocation18 + $0x58] sm:$0xff] %v9388
    %9421 = vst [vmem:[#allocation18 + $0x60] sm:$0xff] %v9389
    %9422 = vst [vmem:[#allocation18 + $0x68] sm:$0xff] %v9390
    %9423 = vst [vmem:[#allocation18 + $0x70] sm:$0xff] %v9391
    %9424 = vst [vmem:[#allocation18 + $0x78] sm:$0xff] %v9392
    %9425 = vst [vmem:[#allocation18 + $0x80] sm:$0xff] %v9393
    %9426 = vst [vmem:[#allocation18 + $0x88] sm:$0xff] %v9394
    %9427 = vst [vmem:[#allocation18 + $0x90] sm:$0xff] %v9395
    %9428 = vst [vmem:[#allocation18 + $0x98] sm:$0xff] %v9396
    %9429 = vst [vmem:[#allocation18 + $0xa0] sm:$0xff] %v9397
    %9430 = vst [vmem:[#allocation18 + $0xa8] sm:$0xff] %v9398
    %9431 = vst [vmem:[#allocation18 + $0xb0] sm:$0xff] %v9399
    %9432 = vst [vmem:[#allocation18 + $0xb8] sm:$0xff] %v9400
    %9433 = vst [vmem:[#allocation18 + $0xc0] sm:$0xff] %v9401
    %9434 = vst [vmem:[#allocation18 + $0xc8] sm:$0xff] %v9402
    %9435 = vst [vmem:[#allocation18 + $0xd0] sm:$0xff] %v9403
    %9436 = vst [vmem:[#allocation18 + $0xd8] sm:$0xff] %v9404
    %9437 = vst [vmem:[#allocation18 + $0xe0] sm:$0xff] %v9405
    %9438 = vst [vmem:[#allocation18 + $0xe8] sm:$0xff] %v9406
    %9439 = vst [vmem:[#allocation18 + $0xf0] sm:$0xff] %v9407
    %9440 = vst [vmem:[#allocation18 + $0xf8] sm:$0xff] %v9408
    // Predicated region
    $region70: #{tpu_custom_call.1} parent=1 // pred_check
      _
    $region71: #{tpu_custom_call.1} parent=1 // pred_check_branch
      %9442 = sbr.rel (0) target = $region73
    $region72: #{tpu_custom_call.1} parent=1 // pred_region
      %s9444 = ssub.s32 4096, 4096
      %9445 = vsyncadd [#allocation6], %s9444
      %s9446 = sshll.u32 [#allocation18], 4
      %s9447 = int_to_ptr.vmem [resolvable:$true] %s9446
      %9452 = dma.vmem_to_hbm [thread:$0]  %s9447, 4096, %s9, [#allocation6], 512, 512, 32
    $region73: #{tpu_custom_call.1} parent=1 // pred_fallthru
      _
    // Predicated region
    $region74: #{tpu_custom_call.1} parent=1 // pred_check
      _
    $region75: #{tpu_custom_call.1} parent=1 // pred_check_branch
      %9454 = sbr.rel (0) target = $region77
    $region76: #{tpu_custom_call.1} parent=1 // pred_region
      %9455 = dma.done [#allocation6], 4096
    $region77: #{tpu_custom_call.1} parent=1 // pred_fallthru
      _
    %9456 = vsyncpa [#allocation5], 1
    %9457 = vsyncpa [#allocation9], 1
    %9458 = vsyncpa [#allocation12], 1
    %9459 = vsyncpa [#allocation16], 1
    %9460 = vsyncpa [#allocation6], 1
    %9461 = vsyncpa [#allocation7], 1

</llo_original>
